<compile_context>
chip_gen: v5e
topology: v5e:2x2
jax: 0.10.0
libtpu: 0.0.40
codegen_flags: <defaults>
</compile_context>

<pallas_src>
import math
import functools

import jax
import jax.numpy as jnp
from jax.experimental import pallas as pl
from jax.experimental.pallas import tpu as pltpu

# ---- module configuration (MEMTOVAE.__init__ defaults) ----
INPUT_DIM = 3
WINDOW = 50
MODEL_DIM = 16
LATENT_DIM = 16
MEMORY_ITEMS = 10
NHEAD = 4
NUM_LAYERS = 2
TAU = 0.1
DIM_FF = 2048          # nn.TransformerEncoderLayer default dim_feedforward
LN_EPS = 1e-5          # nn.TransformerEncoderLayer default layer_norm_eps
FF_CHUNK = 256         # feed-forward hidden-dim tile

HEAD_DIM = MODEL_DIM // NHEAD
CAT_DIM = MODEL_DIM + LATENT_DIM            # 32
FLAT_DIM = WINDOW * CAT_DIM                 # 1600 (fc_mu / fc_logvar fan-in)
DEC_DIM = WINDOW * INPUT_DIM                # 150  (decoder output per batch)
HEAD_PACK = 256                             # lane-dense packed [mu|logvar|x_hat|pad]


# ---------------- BlockSpec helpers ----------------

def _rep(shape):
    """Whole-array block, identical block for every grid step (weights)."""
    n = len(shape)
    return pl.BlockSpec(tuple(shape), lambda *_: (0,) * n)


def _per_batch(shape):
    """Leading-axis block of size 1, indexed by the batch grid axis."""
    n = len(shape)
    return pl.BlockSpec((1,) + tuple(shape[1:]), lambda b: (b,) + (0,) * (n - 1))


# ---------------- in-kernel math helpers ----------------

def _affine(x, w, b):
    """x @ w + b; x is cast to the weight dtype (bf16 MXU), f32 accumulation."""
    y = jax.lax.dot_general(x.astype(w.dtype), w,
                            (((x.ndim - 1,), (0,)), ((), ())),
                            preferred_element_type=jnp.float32)
    return y + b


def _layer_norm(x, w, b, eps=LN_EPS):
    mu = jnp.mean(x, axis=-1, keepdims=True)
    var = jnp.mean((x - mu) ** 2, axis=-1, keepdims=True)
    return (x - mu) * jax.lax.rsqrt(var + eps) * w + b


def _softmax_last(s, approx=True):
    s = s - jnp.max(s, axis=-1, keepdims=True)
    p = jnp.exp(s)
    denom = jnp.sum(p, axis=-1, keepdims=True)
    if approx:
        # EUP approximate reciprocal keeps the divide off the VALU path.
        return p * pl.reciprocal(denom, approx=True)
    return p / denom


# ---------------- shared kernel bodies ----------------

def _encode_one_batch(x2d, ew, eb, qkvw, qkvb, opw, opb,
                      l1w, l1b, f1w, f1b, f2w, f2b, l2w, l2b):
    """input_embedding + TransformerEncoder for one batch element.

    x2d: (L, input_dim) f32 value; weight args are Refs. Returns (L, D) f32.
    """
    L = x2d.shape[0]
    D = MODEL_DIM
    scale = 1.0 / math.sqrt(HEAD_DIM)

    xf = _affine(x2d, ew[...], eb[...])                     # (L, D)

    # Per-head lane masks (constant across layers, hoisted out of the loop).
    lane = jax.lax.broadcasted_iota(jnp.int32, (1, D), 1)
    head_masks = [((lane >= h * HEAD_DIM) & (lane < (h + 1) * HEAD_DIM))
                  .astype(jnp.float32) for h in range(NHEAD)]

    # TODO(synk): training-mode dropout (p=0.1) inside TransformerEncoderLayer
    # is not implemented (eval semantics only).
    for l in range(NUM_LAYERS):                             # static unroll (2)
        # Fused QKV projection: one (L, 3D) matmul, then static lane slices.
        qkv = _affine(xf, qkvw[l], qkvb[l])                 # (L, 3D)
        q = qkv[:, 0:D]
        k = qkv[:, D:2 * D]
        v = qkv[:, 2 * D:3 * D]
        attn_out = jnp.zeros((L, D), jnp.float32)
        for hm in head_masks:                               # static unroll (4)
            s = jax.lax.dot_general(q, k * hm, (((1,), (1,)), ((), ())),
                                    preferred_element_type=jnp.float32) * scale
            p = _softmax_last(s)                            # (L, L)
            attn_out = attn_out + jnp.dot(p, v * hm,
                                          preferred_element_type=jnp.float32)
        attn_out = _affine(attn_out, opw[l], opb[l])
        y = _layer_norm(xf + attn_out, l1w[l], l1b[l])

        # Feed-forward, chunked over the 2048-wide hidden dim (bf16 weights).
        y_b = y.astype(jnp.bfloat16)
        acc = jnp.zeros((L, D), jnp.float32)
        for c in range(DIM_FF // FF_CHUNK):                 # static unroll (8)
            c0 = c * FF_CHUNK
            h1 = jax.lax.dot_general(y_b, f1w[l, :, c0:c0 + FF_CHUNK],
                                     (((1,), (0,)), ((), ())),
                                     preferred_element_type=jnp.float32)
            h1 = jnp.maximum(h1 + f1b[l, :, c0:c0 + FF_CHUNK], 0.0)
            acc = acc + jax.lax.dot_general(h1.astype(jnp.bfloat16),
                                            f2w[l, c0:c0 + FF_CHUNK, :],
                                            (((1,), (0,)), ((), ())),
                                            preferred_element_type=jnp.float32)
        xf = _layer_norm(y + acc + f2b[l], l2w[l], l2b[l])
    return xf


def _query_and_head(xf, memory, eps_row, muvw, muvb, d1w, d1b, d2w, d2b,
                    flat_ref):
    """Query-update stage + VAE head for one batch element.

    xf: (L, D); memory: (M, latent); eps_row: (1, latent).
    Returns (attn_weights (L, M), packed head row (1, HEAD_PACK)).
    """
    s = jax.lax.dot_general(xf, memory, (((1,), (1,)), ((), ())),
                            preferred_element_type=jnp.float32) * (1.0 / TAU)
    w = _softmax_last(s, approx=False)                  # exact: returned to user
    q_tilde = jnp.dot(w, memory, preferred_element_type=jnp.float32)  # (L, lat)
    q_hat = jnp.concatenate([xf, q_tilde], axis=-1)     # (L, D + lat)

    # q_hat.reshape(1, L*(D+lat)) — done via a (1, 1600) VMEM scratch row with
    # static per-timestep stores (no unsupported in-register reshape).
    for l in range(WINDOW):                             # static unroll (50)
        flat_ref[:, pl.ds(l * CAT_DIM, CAT_DIM)] = q_hat[l:l + 1, :]
    q_flat = flat_ref[...]                              # (1, FLAT_DIM)

    # fc_mu / fc_logvar fused into one (1600, 2*latent) matmul.
    ml = _affine(q_flat, muvw, muvb)                    # (1, 2*latent)
    mu = ml[:, :LATENT_DIM]
    logvar = ml[:, LATENT_DIM:]
    z = mu + eps_row * jnp.exp(0.5 * logvar)            # reparameterize
    d = jnp.maximum(_affine(z, d1w, d1b), 0.0)          # decoder_fc1 + ReLU
    x_hat = _affine(d, d2w, d2b)                        # (1, window*input_dim)

    pad = jnp.zeros((1, HEAD_PACK - 2 * LATENT_DIM - DEC_DIM), jnp.float32)
    packed = jnp.concatenate([mu, logvar, x_hat, pad], axis=-1)  # (1, HEAD_PACK)
    return w, packed


# ---------------- kernel 1 (eval): fully fused forward, grid=(B,) ----------------

def _fused_fwd_kernel(x_ref, eps_ref, ew, eb, qkvw, qkvb, opw, opb,
                      l1w, l1b, f1w, f1b, f2w, f2b, l2w, l2b,
                      mem_ref, muvw, muvb, d1w, d1b, d2w, d2b,
                      attn_ref, head_ref, flat_ref):
    xf = _encode_one_batch(x_ref[0], ew, eb, qkvw, qkvb, opw, opb,
                           l1w, l1b, f1w, f1b, f2w, f2b, l2w, l2b)
    w, packed = _query_and_head(xf, mem_ref[...], eps_ref[0],
                                muvw[...], muvb[...], d1w[...], d1b[...],
                                d2w[...], d2b[...], flat_ref)
    attn_ref[0, :, :] = w
    head_ref[0, :, :] = packed


# ---------------- training kernels ----------------

def _encoder_kernel(x_ref, ew, eb, qkvw, qkvb, opw, opb,
                    l1w, l1b, f1w, f1b, f2w, f2b, l2w, l2b, q_out_ref):
    q_out_ref[0, :, :] = _encode_one_batch(
        x_ref[0], ew, eb, qkvw, qkvb, opw, opb,
        l1w, l1b, f1w, f1b, f2w, f2b, l2w, l2b)


def _train_tail_kernel(q_ref, eps_ref, mem_ref, uw, ub, ww, wb,
                       muvw, muvb, d1w, d1b, d2w, d2b,
                       newmem_ref, attn_ref, head_ref, flat_ref, *, batch):
    memory = mem_ref[...]                               # (M, latent)

    # Gated memory update: softmax over ALL B*L queries (matches PyTorch).
    scores = jnp.concatenate(
        [jax.lax.dot_general(memory, q_ref[b], (((1,), (1,)), ((), ())),
                             preferred_element_type=jnp.float32)
         for b in range(batch)], axis=-1) * (1.0 / TAU)          # (M, B*L)
    wts = _softmax_last(scores)
    fuse = jnp.zeros((MEMORY_ITEMS, LATENT_DIM), jnp.float32)
    for b in range(batch):
        fuse = fuse + jnp.dot(wts[:, b * WINDOW:(b + 1) * WINDOW], q_ref[b],
                              preferred_element_type=jnp.float32)
    psi = jax.nn.sigmoid(_affine(memory, uw[...], ub[...]) +
                         _affine(fuse, ww[...], wb[...]))
    memory = (1.0 - psi) * memory + psi * fuse
    # TODO(synk): PyTorch mutates self.memory (nn.Parameter) in place; here the
    # updated memory is returned functionally for the caller to thread back.
    newmem_ref[...] = memory

    eps_all = eps_ref[...]                              # (B, 1, latent)
    for b in range(batch):                              # static unroll
        w, packed = _query_and_head(q_ref[b], memory, eps_all[b],
                                    muvw[...], muvb[...], d1w[...], d1b[...],
                                    d2w[...], d2b[...], flat_ref)
        attn_ref[b, :, :] = w
        head_ref[b, :, :] = packed


# ---------------- pallas_call wrappers ----------------

def _weight_args(p):
    return (p["emb_w"], p["emb_b"], p["qkv_w"], p["qkv_b"], p["out_w"], p["out_b"],
            p["ln1_w"], p["ln1_b"], p["ff1_w"], p["ff1_b"],
            p["ff2_w"], p["ff2_b"], p["ln2_w"], p["ln2_b"])


def _call_fused_eval(p, x, eps3, memory):
    B = x.shape[0]
    args = (x, eps3) + _weight_args(p) + (memory, p["muv_w"], p["muv_b"],
                                          p["dec1_w"], p["dec1_b"],
                                          p["dec2_w"], p["dec2_b"])
    in_specs = [_per_batch(x.shape), _per_batch(eps3.shape)] + \
               [_rep(a.shape) for a in args[2:]]
    return pl.pallas_call(
        _fused_fwd_kernel,
        grid=(B,),
        in_specs=tuple(in_specs),
        out_specs=(_per_batch((B, WINDOW, MEMORY_ITEMS)),
                   _per_batch((B, 1, HEAD_PACK))),
        out_shape=(jax.ShapeDtypeStruct((B, WINDOW, MEMORY_ITEMS), jnp.float32),
                   jax.ShapeDtypeStruct((B, 1, HEAD_PACK), jnp.float32)),
        scratch_shapes=[pltpu.VMEM((1, FLAT_DIM), jnp.float32)],
        compiler_params=pltpu.CompilerParams(
            dimension_semantics=("parallel",)),
    )(*args)


def _call_encoder(p, x):
    B = x.shape[0]
    args = (x,) + _weight_args(p)
    in_specs = [_per_batch(x.shape)] + [_rep(a.shape) for a in args[1:]]
    return pl.pallas_call(
        _encoder_kernel,
        grid=(B,),
        in_specs=tuple(in_specs),
        out_specs=_per_batch((B, WINDOW, MODEL_DIM)),
        out_shape=jax.ShapeDtypeStruct((B, WINDOW, MODEL_DIM), jnp.float32),
        compiler_params=pltpu.CompilerParams(
            dimension_semantics=("parallel",)),
    )(*args)


def _call_train_tail(p, q, eps3, memory):
    B = q.shape[0]
    args = (q, eps3, memory, p["U_w"], p["U_b"], p["W_w"], p["W_b"],
            p["muv_w"], p["muv_b"], p["dec1_w"], p["dec1_b"],
            p["dec2_w"], p["dec2_b"])
    kern = functools.partial(_train_tail_kernel, batch=B)
    return pl.pallas_call(
        kern,
        grid=(1,),
        in_specs=tuple(_rep(a.shape) for a in args),
        out_specs=(_rep((MEMORY_ITEMS, LATENT_DIM)),
                   _rep((B, WINDOW, MEMORY_ITEMS)),
                   _rep((B, 1, HEAD_PACK))),
        out_shape=(jax.ShapeDtypeStruct((MEMORY_ITEMS, LATENT_DIM), jnp.float32),
                   jax.ShapeDtypeStruct((B, WINDOW, MEMORY_ITEMS), jnp.float32),
                   jax.ShapeDtypeStruct((B, 1, HEAD_PACK), jnp.float32)),
        scratch_shapes=[pltpu.VMEM((1, FLAT_DIM), jnp.float32)],
        compiler_params=pltpu.CompilerParams(
            dimension_semantics=("arbitrary",)),
    )(*args)


# ---------------- parameters ----------------

def init_params(key):
    keys = iter(jax.random.split(key, 32))

    def nrm(shape, scale=0.05, dtype=jnp.float32):
        return (scale * jax.random.normal(next(keys), shape)).astype(dtype)

    return {
        # embedding / memory / gate / VAE head (Linear weights are (in, out))
        "emb_w": nrm((INPUT_DIM, MODEL_DIM), dtype=jnp.bfloat16),
        "emb_b": nrm((1, MODEL_DIM)),
        "memory": jax.random.normal(next(keys), (MEMORY_ITEMS, LATENT_DIM),
                                    dtype=jnp.float32),       # ~ torch.randn
        "U_w": nrm((LATENT_DIM, LATENT_DIM)),
        "U_b": nrm((1, LATENT_DIM)),
        "W_w": nrm((LATENT_DIM, LATENT_DIM)),
        "W_b": nrm((1, LATENT_DIM)),
        # fc_mu / fc_logvar fused: output columns [0:lat)=mu, [lat:2lat)=logvar
        "muv_w": nrm((FLAT_DIM, 2 * LATENT_DIM), dtype=jnp.bfloat16),
        "muv_b": nrm((1, 2 * LATENT_DIM)),
        "dec1_w": nrm((LATENT_DIM, DEC_DIM), dtype=jnp.bfloat16),
        "dec1_b": nrm((1, DEC_DIM)),
        "dec2_w": nrm((DEC_DIM, DEC_DIM), dtype=jnp.bfloat16),
        "dec2_b": nrm((1, DEC_DIM)),
        # TransformerEncoderLayer params (leading axis = layer); QKV fused.
        "qkv_w": nrm((NUM_LAYERS, MODEL_DIM, 3 * MODEL_DIM), dtype=jnp.bfloat16),
        "qkv_b": nrm((NUM_LAYERS, 1, 3 * MODEL_DIM)),
        "out_w": nrm((NUM_LAYERS, MODEL_DIM, MODEL_DIM), dtype=jnp.bfloat16),
        "out_b": nrm((NUM_LAYERS, 1, MODEL_DIM)),
        "ln1_w": jnp.ones((NUM_LAYERS, 1, MODEL_DIM), jnp.float32),
        "ln1_b": jnp.zeros((NUM_LAYERS, 1, MODEL_DIM), jnp.float32),
        "ff1_w": nrm((NUM_LAYERS, MODEL_DIM, DIM_FF), dtype=jnp.bfloat16),
        "ff1_b": nrm((NUM_LAYERS, 1, DIM_FF)),
        "ff2_w": nrm((NUM_LAYERS, DIM_FF, MODEL_DIM), dtype=jnp.bfloat16),
        "ff2_b": nrm((NUM_LAYERS, 1, MODEL_DIM)),
        "ln2_w": jnp.ones((NUM_LAYERS, 1, MODEL_DIM), jnp.float32),
        "ln2_b": jnp.zeros((NUM_LAYERS, 1, MODEL_DIM), jnp.float32),
    }


# ---------------- forward ----------------

def memto_vae_forward(params, x, eps, *, training=False):
    """x: (B, window_size, input_dim); eps: (B, latent_dim) standard normal.

    Returns (x_hat, mu, logvar, attn_weights) like MEMTOVAE.forward; with
    training=True the gated memory update runs first (over all B*L queries) and
    the functionally-updated memory is additionally returned as a 5th output.
    """
    B, L, _ = x.shape
    eps3 = eps.reshape(B, 1, LATENT_DIM)                 # free host reshape
    if training:
        q = _call_encoder(params, x)
        new_memory, attn, head = _call_train_tail(params, q, eps3,
                                                  params["memory"])
    else:
        attn, head = _call_fused_eval(params, x, eps3, params["memory"])

    head = head.reshape(B, HEAD_PACK)                    # free host reshape
    mu = head[:, :LATENT_DIM]
    logvar = head[:, LATENT_DIM:2 * LATENT_DIM]
    x_hat = head[:, 2 * LATENT_DIM:2 * LATENT_DIM + DEC_DIM] \
        .reshape(B, WINDOW, INPUT_DIM)

    if training:
        return x_hat, mu, logvar, attn, new_memory
    return x_hat, mu, logvar, attn


# ---------------- main ----------------

if __name__ == "__main__":
    key = jax.random.PRNGKey(0)
    kp, kx, ke = jax.random.split(key, 3)
    params = init_params(kp)

    B = 2
    x = jax.random.normal(kx, (B, WINDOW, INPUT_DIM), dtype=jnp.float32)
    # torch.randn_like eps of reparameterize(), generated deterministically here
    eps = jax.random.normal(ke, (B, LATENT_DIM), dtype=jnp.float32)

    fwd = jax.jit(functools.partial(memto_vae_forward, training=False))
    x_hat, mu, logvar, attn = fwd(params, x, eps)
    jax.block_until_ready((x_hat, mu, logvar, attn))

    assert x_hat.shape == (B, WINDOW, INPUT_DIM)
    assert mu.shape == (B, LATENT_DIM)
    assert logvar.shape == (B, LATENT_DIM)
    assert attn.shape == (B, WINDOW, MEMORY_ITEMS)
    assert bool(jnp.all(jnp.isfinite(x_hat)))
    assert bool(jnp.all(jnp.isfinite(attn)))
    assert bool(jnp.all(jnp.abs(attn.sum(-1) - 1.0) < 1e-3))   # exact softmax rows
    print("KERNEL_OK")
</pallas_src>

<mosaic_0001>
module attributes {stable_mosaic.version = 11 : i64} {
  func.func @_fused_fwd_kernel(%arg0: i32, %arg1: memref<1x50x3xf32, #tpu.memory_space<vmem>>, %arg2: memref<1x1x16xf32, #tpu.memory_space<vmem>>, %arg3: memref<3x16xbf16, #tpu.memory_space<vmem>>, %arg4: memref<1x16xf32, #tpu.memory_space<vmem>>, %arg5: memref<2x16x48xbf16, #tpu.memory_space<vmem>>, %arg6: memref<2x1x48xf32, #tpu.memory_space<vmem>>, %arg7: memref<2x16x16xbf16, #tpu.memory_space<vmem>>, %arg8: memref<2x1x16xf32, #tpu.memory_space<vmem>>, %arg9: memref<2x1x16xf32, #tpu.memory_space<vmem>>, %arg10: memref<2x1x16xf32, #tpu.memory_space<vmem>>, %arg11: memref<2x16x2048xbf16, #tpu.memory_space<vmem>>, %arg12: memref<2x1x2048xf32, #tpu.memory_space<vmem>>, %arg13: memref<2x2048x16xbf16, #tpu.memory_space<vmem>>, %arg14: memref<2x1x16xf32, #tpu.memory_space<vmem>>, %arg15: memref<2x1x16xf32, #tpu.memory_space<vmem>>, %arg16: memref<2x1x16xf32, #tpu.memory_space<vmem>>, %arg17: memref<10x16xf32, #tpu.memory_space<vmem>>, %arg18: memref<1600x32xbf16, #tpu.memory_space<vmem>>, %arg19: memref<1x32xf32, #tpu.memory_space<vmem>>, %arg20: memref<16x150xbf16, #tpu.memory_space<vmem>>, %arg21: memref<1x150xf32, #tpu.memory_space<vmem>>, %arg22: memref<150x150xbf16, #tpu.memory_space<vmem>>, %arg23: memref<1x150xf32, #tpu.memory_space<vmem>>, %arg24: memref<1x50x10xf32, #tpu.memory_space<vmem>>, %arg25: memref<1x1x256xf32, #tpu.memory_space<vmem>>, %arg26: memref<1x1600xf32, #tpu.memory_space<vmem>>) attributes {dimension_semantics = [#tpu.dimension_semantics<parallel>], iteration_bounds = array<i64: 2>, scalar_prefetch = 0 : i64, scratch_operands = 1 : i64, tpu.core_type = #tpu.core_type<tc>, window_params = [{transform_indices = @transform_0, window_bounds = array<i64: 1, 50, 3>}, {transform_indices = @transform_1, window_bounds = array<i64: 1, 1, 16>}, {pipeline_mode = #tpu.pipeline_mode<synchronous>, transform_indices = @transform_2, window_bounds = array<i64: 3, 16>}, {pipeline_mode = #tpu.pipeline_mode<synchronous>, transform_indices = @transform_3, window_bounds = array<i64: 1, 16>}, {pipeline_mode = #tpu.pipeline_mode<synchronous>, transform_indices = @transform_4, window_bounds = array<i64: 2, 16, 48>}, {pipeline_mode = #tpu.pipeline_mode<synchronous>, transform_indices = @transform_5, window_bounds = array<i64: 2, 1, 48>}, {pipeline_mode = #tpu.pipeline_mode<synchronous>, transform_indices = @transform_6, window_bounds = array<i64: 2, 16, 16>}, {pipeline_mode = #tpu.pipeline_mode<synchronous>, transform_indices = @transform_7, window_bounds = array<i64: 2, 1, 16>}, {pipeline_mode = #tpu.pipeline_mode<synchronous>, transform_indices = @transform_8, window_bounds = array<i64: 2, 1, 16>}, {pipeline_mode = #tpu.pipeline_mode<synchronous>, transform_indices = @transform_9, window_bounds = array<i64: 2, 1, 16>}, {pipeline_mode = #tpu.pipeline_mode<synchronous>, transform_indices = @transform_10, window_bounds = array<i64: 2, 16, 2048>}, {pipeline_mode = #tpu.pipeline_mode<synchronous>, transform_indices = @transform_11, window_bounds = array<i64: 2, 1, 2048>}, {pipeline_mode = #tpu.pipeline_mode<synchronous>, transform_indices = @transform_12, window_bounds = array<i64: 2, 2048, 16>}, {pipeline_mode = #tpu.pipeline_mode<synchronous>, transform_indices = @transform_13, window_bounds = array<i64: 2, 1, 16>}, {pipeline_mode = #tpu.pipeline_mode<synchronous>, transform_indices = @transform_14, window_bounds = array<i64: 2, 1, 16>}, {pipeline_mode = #tpu.pipeline_mode<synchronous>, transform_indices = @transform_15, window_bounds = array<i64: 2, 1, 16>}, {pipeline_mode = #tpu.pipeline_mode<synchronous>, transform_indices = @transform_16, window_bounds = array<i64: 10, 16>}, {pipeline_mode = #tpu.pipeline_mode<synchronous>, transform_indices = @transform_17, window_bounds = array<i64: 1600, 32>}, {pipeline_mode = #tpu.pipeline_mode<synchronous>, transform_indices = @transform_18, window_bounds = array<i64: 1, 32>}, {pipeline_mode = #tpu.pipeline_mode<synchronous>, transform_indices = @transform_19, window_bounds = array<i64: 16, 150>}, {pipeline_mode = #tpu.pipeline_mode<synchronous>, transform_indices = @transform_20, window_bounds = array<i64: 1, 150>}, {pipeline_mode = #tpu.pipeline_mode<synchronous>, transform_indices = @transform_21, window_bounds = array<i64: 150, 150>}, {pipeline_mode = #tpu.pipeline_mode<synchronous>, transform_indices = @transform_22, window_bounds = array<i64: 1, 150>}, {transform_indices = @transform_23, window_bounds = array<i64: 1, 50, 10>}, {transform_indices = @transform_24, window_bounds = array<i64: 1, 1, 256>}]} {
    %c0 = arith.constant 0 : index
    %c0_0 = arith.constant 0 : index
    %c0_1 = arith.constant 0 : index
    %0 = vector.load %arg1[%c0, %c0_0, %c0_1] : memref<1x50x3xf32, #tpu.memory_space<vmem>>, vector<1x50x3xf32>
    %1 = vector.shape_cast %0 : vector<1x50x3xf32> to vector<50x3xf32>
    %c0_2 = arith.constant 0 : index
    %c0_3 = arith.constant 0 : index
    %2 = vector.load %arg3[%c0_2, %c0_3] : memref<3x16xbf16, #tpu.memory_space<vmem>>, vector<3x16xbf16>
    %c0_4 = arith.constant 0 : index
    %c0_5 = arith.constant 0 : index
    %3 = vector.load %arg4[%c0_4, %c0_5] : memref<1x16xf32, #tpu.memory_space<vmem>>, vector<1x16xf32>
    %4 = arith.truncf %1 : vector<50x3xf32> to vector<50x3xbf16>
    %cst = arith.constant dense<0.000000e+00> : vector<50x16xf32>
    %5 = tpu.matmul %4, %2, %cst {dimension_numbers = #tpu.dot_dimension_numbers<[1], [0], [0], [1], [0, 0, 1, 1], [], []>} : vector<50x3xbf16>, vector<3x16xbf16>, vector<50x16xf32> -> vector<50x16xf32>
    %6 = vector.broadcast %3 : vector<1x16xf32> to vector<50x16xf32>
    %7 = arith.addf %5, %6 : vector<50x16xf32>
    %8 = tpu.iota {dimensions = array<i32: 1>} : vector<1x16xi32>
    %c0_i32 = arith.constant 0 : i32
    %9 = vector.broadcast %c0_i32 : i32 to vector<1x16xi32>
    %10 = arith.cmpi sge, %8, %9 : vector<1x16xi32>
    %c4_i32 = arith.constant 4 : i32
    %11 = vector.broadcast %c4_i32 : i32 to vector<1x16xi32>
    %12 = arith.cmpi slt, %8, %11 : vector<1x16xi32>
    %13 = arith.andi %10, %12 : vector<1x16xi1>
    %14 = arith.extui %13 : vector<1x16xi1> to vector<1x16xi32>
    %15 = arith.sitofp %14 : vector<1x16xi32> to vector<1x16xf32>
    %c4_i32_6 = arith.constant 4 : i32
    %16 = vector.broadcast %c4_i32_6 : i32 to vector<1x16xi32>
    %17 = arith.cmpi sge, %8, %16 : vector<1x16xi32>
    %c8_i32 = arith.constant 8 : i32
    %18 = vector.broadcast %c8_i32 : i32 to vector<1x16xi32>
    %19 = arith.cmpi slt, %8, %18 : vector<1x16xi32>
    %20 = arith.andi %17, %19 : vector<1x16xi1>
    %21 = arith.extui %20 : vector<1x16xi1> to vector<1x16xi32>
    %22 = arith.sitofp %21 : vector<1x16xi32> to vector<1x16xf32>
    %c8_i32_7 = arith.constant 8 : i32
    %23 = vector.broadcast %c8_i32_7 : i32 to vector<1x16xi32>
    %24 = arith.cmpi sge, %8, %23 : vector<1x16xi32>
    %c12_i32 = arith.constant 12 : i32
    %25 = vector.broadcast %c12_i32 : i32 to vector<1x16xi32>
    %26 = arith.cmpi slt, %8, %25 : vector<1x16xi32>
    %27 = arith.andi %24, %26 : vector<1x16xi1>
    %28 = arith.extui %27 : vector<1x16xi1> to vector<1x16xi32>
    %29 = arith.sitofp %28 : vector<1x16xi32> to vector<1x16xf32>
    %c12_i32_8 = arith.constant 12 : i32
    %30 = vector.broadcast %c12_i32_8 : i32 to vector<1x16xi32>
    %31 = arith.cmpi sge, %8, %30 : vector<1x16xi32>
    %c16_i32 = arith.constant 16 : i32
    %32 = vector.broadcast %c16_i32 : i32 to vector<1x16xi32>
    %33 = arith.cmpi slt, %8, %32 : vector<1x16xi32>
    %34 = arith.andi %31, %33 : vector<1x16xi1>
    %35 = arith.extui %34 : vector<1x16xi1> to vector<1x16xi32>
    %36 = arith.sitofp %35 : vector<1x16xi32> to vector<1x16xf32>
    %c0_9 = arith.constant 0 : index
    %c0_10 = arith.constant 0 : index
    %c0_11 = arith.constant 0 : index
    %37 = vector.load %arg5[%c0_9, %c0_10, %c0_11] : memref<2x16x48xbf16, #tpu.memory_space<vmem>>, vector<1x16x48xbf16>
    %38 = vector.shape_cast %37 : vector<1x16x48xbf16> to vector<16x48xbf16>
    %c0_12 = arith.constant 0 : index
    %c0_13 = arith.constant 0 : index
    %c0_14 = arith.constant 0 : index
    %39 = vector.load %arg6[%c0_12, %c0_13, %c0_14] : memref<2x1x48xf32, #tpu.memory_space<vmem>>, vector<1x1x48xf32>
    %40 = vector.shape_cast %39 : vector<1x1x48xf32> to vector<1x48xf32>
    %41 = arith.truncf %7 : vector<50x16xf32> to vector<50x16xbf16>
    %cst_15 = arith.constant dense<0.000000e+00> : vector<50x48xf32>
    %42 = tpu.matmul %41, %38, %cst_15 {dimension_numbers = #tpu.dot_dimension_numbers<[1], [0], [0], [1], [0, 0, 1, 1], [], []>} : vector<50x16xbf16>, vector<16x48xbf16>, vector<50x48xf32> -> vector<50x48xf32>
    %43 = vector.broadcast %40 : vector<1x48xf32> to vector<50x48xf32>
    %44 = arith.addf %42, %43 : vector<50x48xf32>
    %45 = vector.extract_strided_slice %44 {offsets = [0, 0], sizes = [50, 16], strides = [1, 1]} : vector<50x48xf32> to vector<50x16xf32>
    %46 = vector.extract_strided_slice %44 {offsets = [0, 16], sizes = [50, 16], strides = [1, 1]} : vector<50x48xf32> to vector<50x16xf32>
    %47 = vector.extract_strided_slice %44 {offsets = [0, 32], sizes = [50, 16], strides = [1, 1]} : vector<50x48xf32> to vector<50x16xf32>
    %cst_16 = arith.constant 0.000000e+00 : f32
    %48 = vector.broadcast %cst_16 : f32 to vector<50x16xf32>
    %49 = vector.broadcast %15 : vector<1x16xf32> to vector<50x16xf32>
    %50 = arith.mulf %46, %49 : vector<50x16xf32>
    %cst_17 = arith.constant dense<0.000000e+00> : vector<50x50xf32>
    %51 = tpu.matmul %45, %50, %cst_17 {dimension_numbers = #tpu.dot_dimension_numbers<[1], [1], [0], [0], [0, 0, 1, 0], [], []>} : vector<50x16xf32>, vector<50x16xf32>, vector<50x50xf32> -> vector<50x50xf32>
    %cst_18 = arith.constant 5.000000e-01 : f32
    %52 = vector.broadcast %cst_18 : f32 to vector<50x50xf32>
    %53 = arith.mulf %51, %52 : vector<50x50xf32>
    %cst_19 = arith.constant dense<0xFF800000> : vector<50xf32>
    %54 = vector.multi_reduction <maximumf>, %53, %cst_19 [1] : vector<50x50xf32> to vector<50xf32>
    %55 = vector.shape_cast %54 : vector<50xf32> to vector<50x1xf32>
    %56 = vector.broadcast %55 : vector<50x1xf32> to vector<50x50xf32>
    %57 = arith.subf %53, %56 : vector<50x50xf32>
    %58 = math.exp %57 : vector<50x50xf32>
    %cst_20 = arith.constant dense<0.000000e+00> : vector<50xf32>
    %59 = vector.multi_reduction <add>, %58, %cst_20 [1] : vector<50x50xf32> to vector<50xf32>
    %60 = vector.shape_cast %59 : vector<50xf32> to vector<50x1xf32>
    %61 = tpu.reciprocal %60 {approx = true} : vector<50x1xf32> -> vector<50x1xf32>
    %62 = vector.broadcast %61 : vector<50x1xf32> to vector<50x50xf32>
    %63 = arith.mulf %58, %62 : vector<50x50xf32>
    %64 = vector.broadcast %15 : vector<1x16xf32> to vector<50x16xf32>
    %65 = arith.mulf %47, %64 : vector<50x16xf32>
    %cst_21 = arith.constant dense<0.000000e+00> : vector<50x16xf32>
    %66 = tpu.matmul %63, %65, %cst_21 {dimension_numbers = #tpu.dot_dimension_numbers<[1], [0], [0], [1], [0, 0, 1, 1], [], []>} : vector<50x50xf32>, vector<50x16xf32>, vector<50x16xf32> -> vector<50x16xf32>
    %67 = arith.addf %48, %66 : vector<50x16xf32>
    %68 = vector.broadcast %22 : vector<1x16xf32> to vector<50x16xf32>
    %69 = arith.mulf %46, %68 : vector<50x16xf32>
    %cst_22 = arith.constant dense<0.000000e+00> : vector<50x50xf32>
    %70 = tpu.matmul %45, %69, %cst_22 {dimension_numbers = #tpu.dot_dimension_numbers<[1], [1], [0], [0], [0, 0, 1, 0], [], []>} : vector<50x16xf32>, vector<50x16xf32>, vector<50x50xf32> -> vector<50x50xf32>
    %cst_23 = arith.constant 5.000000e-01 : f32
    %71 = vector.broadcast %cst_23 : f32 to vector<50x50xf32>
    %72 = arith.mulf %70, %71 : vector<50x50xf32>
    %cst_24 = arith.constant dense<0xFF800000> : vector<50xf32>
    %73 = vector.multi_reduction <maximumf>, %72, %cst_24 [1] : vector<50x50xf32> to vector<50xf32>
    %74 = vector.shape_cast %73 : vector<50xf32> to vector<50x1xf32>
    %75 = vector.broadcast %74 : vector<50x1xf32> to vector<50x50xf32>
    %76 = arith.subf %72, %75 : vector<50x50xf32>
    %77 = math.exp %76 : vector<50x50xf32>
    %cst_25 = arith.constant dense<0.000000e+00> : vector<50xf32>
    %78 = vector.multi_reduction <add>, %77, %cst_25 [1] : vector<50x50xf32> to vector<50xf32>
    %79 = vector.shape_cast %78 : vector<50xf32> to vector<50x1xf32>
    %80 = tpu.reciprocal %79 {approx = true} : vector<50x1xf32> -> vector<50x1xf32>
    %81 = vector.broadcast %80 : vector<50x1xf32> to vector<50x50xf32>
    %82 = arith.mulf %77, %81 : vector<50x50xf32>
    %83 = vector.broadcast %22 : vector<1x16xf32> to vector<50x16xf32>
    %84 = arith.mulf %47, %83 : vector<50x16xf32>
    %cst_26 = arith.constant dense<0.000000e+00> : vector<50x16xf32>
    %85 = tpu.matmul %82, %84, %cst_26 {dimension_numbers = #tpu.dot_dimension_numbers<[1], [0], [0], [1], [0, 0, 1, 1], [], []>} : vector<50x50xf32>, vector<50x16xf32>, vector<50x16xf32> -> vector<50x16xf32>
    %86 = arith.addf %67, %85 : vector<50x16xf32>
    %87 = vector.broadcast %29 : vector<1x16xf32> to vector<50x16xf32>
    %88 = arith.mulf %46, %87 : vector<50x16xf32>
    %cst_27 = arith.constant dense<0.000000e+00> : vector<50x50xf32>
    %89 = tpu.matmul %45, %88, %cst_27 {dimension_numbers = #tpu.dot_dimension_numbers<[1], [1], [0], [0], [0, 0, 1, 0], [], []>} : vector<50x16xf32>, vector<50x16xf32>, vector<50x50xf32> -> vector<50x50xf32>
    %cst_28 = arith.constant 5.000000e-01 : f32
    %90 = vector.broadcast %cst_28 : f32 to vector<50x50xf32>
    %91 = arith.mulf %89, %90 : vector<50x50xf32>
    %cst_29 = arith.constant dense<0xFF800000> : vector<50xf32>
    %92 = vector.multi_reduction <maximumf>, %91, %cst_29 [1] : vector<50x50xf32> to vector<50xf32>
    %93 = vector.shape_cast %92 : vector<50xf32> to vector<50x1xf32>
    %94 = vector.broadcast %93 : vector<50x1xf32> to vector<50x50xf32>
    %95 = arith.subf %91, %94 : vector<50x50xf32>
    %96 = math.exp %95 : vector<50x50xf32>
    %cst_30 = arith.constant dense<0.000000e+00> : vector<50xf32>
    %97 = vector.multi_reduction <add>, %96, %cst_30 [1] : vector<50x50xf32> to vector<50xf32>
    %98 = vector.shape_cast %97 : vector<50xf32> to vector<50x1xf32>
    %99 = tpu.reciprocal %98 {approx = true} : vector<50x1xf32> -> vector<50x1xf32>
    %100 = vector.broadcast %99 : vector<50x1xf32> to vector<50x50xf32>
    %101 = arith.mulf %96, %100 : vector<50x50xf32>
    %102 = vector.broadcast %29 : vector<1x16xf32> to vector<50x16xf32>
    %103 = arith.mulf %47, %102 : vector<50x16xf32>
    %cst_31 = arith.constant dense<0.000000e+00> : vector<50x16xf32>
    %104 = tpu.matmul %101, %103, %cst_31 {dimension_numbers = #tpu.dot_dimension_numbers<[1], [0], [0], [1], [0, 0, 1, 1], [], []>} : vector<50x50xf32>, vector<50x16xf32>, vector<50x16xf32> -> vector<50x16xf32>
    %105 = arith.addf %86, %104 : vector<50x16xf32>
    %106 = vector.broadcast %36 : vector<1x16xf32> to vector<50x16xf32>
    %107 = arith.mulf %46, %106 : vector<50x16xf32>
    %cst_32 = arith.constant dense<0.000000e+00> : vector<50x50xf32>
    %108 = tpu.matmul %45, %107, %cst_32 {dimension_numbers = #tpu.dot_dimension_numbers<[1], [1], [0], [0], [0, 0, 1, 0], [], []>} : vector<50x16xf32>, vector<50x16xf32>, vector<50x50xf32> -> vector<50x50xf32>
    %cst_33 = arith.constant 5.000000e-01 : f32
    %109 = vector.broadcast %cst_33 : f32 to vector<50x50xf32>
    %110 = arith.mulf %108, %109 : vector<50x50xf32>
    %cst_34 = arith.constant dense<0xFF800000> : vector<50xf32>
    %111 = vector.multi_reduction <maximumf>, %110, %cst_34 [1] : vector<50x50xf32> to vector<50xf32>
    %112 = vector.shape_cast %111 : vector<50xf32> to vector<50x1xf32>
    %113 = vector.broadcast %112 : vector<50x1xf32> to vector<50x50xf32>
    %114 = arith.subf %110, %113 : vector<50x50xf32>
    %115 = math.exp %114 : vector<50x50xf32>
    %cst_35 = arith.constant dense<0.000000e+00> : vector<50xf32>
    %116 = vector.multi_reduction <add>, %115, %cst_35 [1] : vector<50x50xf32> to vector<50xf32>
    %117 = vector.shape_cast %116 : vector<50xf32> to vector<50x1xf32>
    %118 = tpu.reciprocal %117 {approx = true} : vector<50x1xf32> -> vector<50x1xf32>
    %119 = vector.broadcast %118 : vector<50x1xf32> to vector<50x50xf32>
    %120 = arith.mulf %115, %119 : vector<50x50xf32>
    %121 = vector.broadcast %36 : vector<1x16xf32> to vector<50x16xf32>
    %122 = arith.mulf %47, %121 : vector<50x16xf32>
    %cst_36 = arith.constant dense<0.000000e+00> : vector<50x16xf32>
    %123 = tpu.matmul %120, %122, %cst_36 {dimension_numbers = #tpu.dot_dimension_numbers<[1], [0], [0], [1], [0, 0, 1, 1], [], []>} : vector<50x50xf32>, vector<50x16xf32>, vector<50x16xf32> -> vector<50x16xf32>
    %124 = arith.addf %105, %123 : vector<50x16xf32>
    %c0_37 = arith.constant 0 : index
    %c0_38 = arith.constant 0 : index
    %c0_39 = arith.constant 0 : index
    %125 = vector.load %arg7[%c0_37, %c0_38, %c0_39] : memref<2x16x16xbf16, #tpu.memory_space<vmem>>, vector<1x16x16xbf16>
    %126 = vector.shape_cast %125 : vector<1x16x16xbf16> to vector<16x16xbf16>
    %c0_40 = arith.constant 0 : index
    %c0_41 = arith.constant 0 : index
    %c0_42 = arith.constant 0 : index
    %127 = vector.load %arg8[%c0_40, %c0_41, %c0_42] : memref<2x1x16xf32, #tpu.memory_space<vmem>>, vector<1x1x16xf32>
    %128 = vector.shape_cast %127 : vector<1x1x16xf32> to vector<1x16xf32>
    %129 = arith.truncf %124 : vector<50x16xf32> to vector<50x16xbf16>
    %cst_43 = arith.constant dense<0.000000e+00> : vector<50x16xf32>
    %130 = tpu.matmul %129, %126, %cst_43 {dimension_numbers = #tpu.dot_dimension_numbers<[1], [0], [0], [1], [0, 0, 1, 1], [], []>} : vector<50x16xbf16>, vector<16x16xbf16>, vector<50x16xf32> -> vector<50x16xf32>
    %131 = vector.broadcast %128 : vector<1x16xf32> to vector<50x16xf32>
    %132 = arith.addf %130, %131 : vector<50x16xf32>
    %133 = arith.addf %7, %132 : vector<50x16xf32>
    %c0_44 = arith.constant 0 : index
    %c0_45 = arith.constant 0 : index
    %c0_46 = arith.constant 0 : index
    %134 = vector.load %arg9[%c0_44, %c0_45, %c0_46] : memref<2x1x16xf32, #tpu.memory_space<vmem>>, vector<1x1x16xf32>
    %135 = vector.shape_cast %134 : vector<1x1x16xf32> to vector<1x16xf32>
    %c0_47 = arith.constant 0 : index
    %c0_48 = arith.constant 0 : index
    %c0_49 = arith.constant 0 : index
    %136 = vector.load %arg10[%c0_47, %c0_48, %c0_49] : memref<2x1x16xf32, #tpu.memory_space<vmem>>, vector<1x1x16xf32>
    %137 = vector.shape_cast %136 : vector<1x1x16xf32> to vector<1x16xf32>
    %cst_50 = arith.constant dense<0.000000e+00> : vector<50xf32>
    %138 = vector.multi_reduction <add>, %133, %cst_50 [1] : vector<50x16xf32> to vector<50xf32>
    %139 = vector.shape_cast %138 : vector<50xf32> to vector<50x1xf32>
    %cst_51 = arith.constant 1.600000e+01 : f32
    %140 = vector.broadcast %cst_51 : f32 to vector<50x1xf32>
    %141 = arith.divf %139, %140 : vector<50x1xf32>
    %142 = vector.broadcast %141 : vector<50x1xf32> to vector<50x16xf32>
    %143 = arith.subf %133, %142 : vector<50x16xf32>
    %144 = arith.mulf %143, %143 : vector<50x16xf32>
    %cst_52 = arith.constant dense<0.000000e+00> : vector<50xf32>
    %145 = vector.multi_reduction <add>, %144, %cst_52 [1] : vector<50x16xf32> to vector<50xf32>
    %146 = vector.shape_cast %145 : vector<50xf32> to vector<50x1xf32>
    %cst_53 = arith.constant 1.600000e+01 : f32
    %147 = vector.broadcast %cst_53 : f32 to vector<50x1xf32>
    %148 = arith.divf %146, %147 : vector<50x1xf32>
    %149 = vector.broadcast %141 : vector<50x1xf32> to vector<50x16xf32>
    %150 = arith.subf %133, %149 : vector<50x16xf32>
    %cst_54 = arith.constant 9.99999974E-6 : f32
    %151 = vector.broadcast %cst_54 : f32 to vector<50x1xf32>
    %152 = arith.addf %148, %151 : vector<50x1xf32>
    %153 = math.rsqrt %152 : vector<50x1xf32>
    %154 = vector.broadcast %153 : vector<50x1xf32> to vector<50x16xf32>
    %155 = arith.mulf %150, %154 : vector<50x16xf32>
    %156 = vector.broadcast %135 : vector<1x16xf32> to vector<50x16xf32>
    %157 = arith.mulf %155, %156 : vector<50x16xf32>
    %158 = vector.broadcast %137 : vector<1x16xf32> to vector<50x16xf32>
    %159 = arith.addf %157, %158 : vector<50x16xf32>
    %160 = arith.truncf %159 : vector<50x16xf32> to vector<50x16xbf16>
    %cst_55 = arith.constant 0.000000e+00 : f32
    %161 = vector.broadcast %cst_55 : f32 to vector<50x16xf32>
    %c0_56 = arith.constant 0 : index
    %c0_57 = arith.constant 0 : index
    %c0_58 = arith.constant 0 : index
    %162 = vector.load %arg11[%c0_56, %c0_57, %c0_58] : memref<2x16x2048xbf16, #tpu.memory_space<vmem>>, vector<1x16x256xbf16>
    %163 = vector.shape_cast %162 : vector<1x16x256xbf16> to vector<16x256xbf16>
    %cst_59 = arith.constant dense<0.000000e+00> : vector<50x256xf32>
    %164 = tpu.matmul %160, %163, %cst_59 {dimension_numbers = #tpu.dot_dimension_numbers<[1], [0], [0], [1], [0, 0, 1, 1], [], []>} : vector<50x16xbf16>, vector<16x256xbf16>, vector<50x256xf32> -> vector<50x256xf32>
    %c0_60 = arith.constant 0 : index
    %c0_61 = arith.constant 0 : index
    %c0_62 = arith.constant 0 : index
    %165 = vector.load %arg12[%c0_60, %c0_61, %c0_62] : memref<2x1x2048xf32, #tpu.memory_space<vmem>>, vector<1x1x256xf32>
    %166 = vector.shape_cast %165 : vector<1x1x256xf32> to vector<1x256xf32>
    %167 = vector.broadcast %166 : vector<1x256xf32> to vector<50x256xf32>
    %168 = arith.addf %164, %167 : vector<50x256xf32>
    %cst_63 = arith.constant 0.000000e+00 : f32
    %169 = vector.broadcast %cst_63 : f32 to vector<50x256xf32>
    %170 = arith.maximumf %168, %169 : vector<50x256xf32>
    %171 = arith.truncf %170 : vector<50x256xf32> to vector<50x256xbf16>
    %c0_64 = arith.constant 0 : index
    %c0_65 = arith.constant 0 : index
    %c0_66 = arith.constant 0 : index
    %172 = vector.load %arg13[%c0_64, %c0_65, %c0_66] : memref<2x2048x16xbf16, #tpu.memory_space<vmem>>, vector<1x256x16xbf16>
    %173 = vector.shape_cast %172 : vector<1x256x16xbf16> to vector<256x16xbf16>
    %cst_67 = arith.constant dense<0.000000e+00> : vector<50x16xf32>
    %174 = tpu.matmul %171, %173, %cst_67 {dimension_numbers = #tpu.dot_dimension_numbers<[1], [0], [0], [1], [0, 0, 1, 1], [], []>} : vector<50x256xbf16>, vector<256x16xbf16>, vector<50x16xf32> -> vector<50x16xf32>
    %175 = arith.addf %161, %174 : vector<50x16xf32>
    %c0_68 = arith.constant 0 : index
    %c0_69 = arith.constant 0 : index
    %c256 = arith.constant 256 : index
    %176 = vector.load %arg11[%c0_68, %c0_69, %c256] : memref<2x16x2048xbf16, #tpu.memory_space<vmem>>, vector<1x16x256xbf16>
    %177 = vector.shape_cast %176 : vector<1x16x256xbf16> to vector<16x256xbf16>
    %cst_70 = arith.constant dense<0.000000e+00> : vector<50x256xf32>
    %178 = tpu.matmul %160, %177, %cst_70 {dimension_numbers = #tpu.dot_dimension_numbers<[1], [0], [0], [1], [0, 0, 1, 1], [], []>} : vector<50x16xbf16>, vector<16x256xbf16>, vector<50x256xf32> -> vector<50x256xf32>
    %c0_71 = arith.constant 0 : index
    %c0_72 = arith.constant 0 : index
    %c256_73 = arith.constant 256 : index
    %179 = vector.load %arg12[%c0_71, %c0_72, %c256_73] : memref<2x1x2048xf32, #tpu.memory_space<vmem>>, vector<1x1x256xf32>
    %180 = vector.shape_cast %179 : vector<1x1x256xf32> to vector<1x256xf32>
    %181 = vector.broadcast %180 : vector<1x256xf32> to vector<50x256xf32>
    %182 = arith.addf %178, %181 : vector<50x256xf32>
    %cst_74 = arith.constant 0.000000e+00 : f32
    %183 = vector.broadcast %cst_74 : f32 to vector<50x256xf32>
    %184 = arith.maximumf %182, %183 : vector<50x256xf32>
    %185 = arith.truncf %184 : vector<50x256xf32> to vector<50x256xbf16>
    %c0_75 = arith.constant 0 : index
    %c256_76 = arith.constant 256 : index
    %c0_77 = arith.constant 0 : index
    %186 = vector.load %arg13[%c0_75, %c256_76, %c0_77] : memref<2x2048x16xbf16, #tpu.memory_space<vmem>>, vector<1x256x16xbf16>
    %187 = vector.shape_cast %186 : vector<1x256x16xbf16> to vector<256x16xbf16>
    %cst_78 = arith.constant dense<0.000000e+00> : vector<50x16xf32>
    %188 = tpu.matmul %185, %187, %cst_78 {dimension_numbers = #tpu.dot_dimension_numbers<[1], [0], [0], [1], [0, 0, 1, 1], [], []>} : vector<50x256xbf16>, vector<256x16xbf16>, vector<50x16xf32> -> vector<50x16xf32>
    %189 = arith.addf %175, %188 : vector<50x16xf32>
    %c0_79 = arith.constant 0 : index
    %c0_80 = arith.constant 0 : index
    %c512 = arith.constant 512 : index
    %190 = vector.load %arg11[%c0_79, %c0_80, %c512] : memref<2x16x2048xbf16, #tpu.memory_space<vmem>>, vector<1x16x256xbf16>
    %191 = vector.shape_cast %190 : vector<1x16x256xbf16> to vector<16x256xbf16>
    %cst_81 = arith.constant dense<0.000000e+00> : vector<50x256xf32>
    %192 = tpu.matmul %160, %191, %cst_81 {dimension_numbers = #tpu.dot_dimension_numbers<[1], [0], [0], [1], [0, 0, 1, 1], [], []>} : vector<50x16xbf16>, vector<16x256xbf16>, vector<50x256xf32> -> vector<50x256xf32>
    %c0_82 = arith.constant 0 : index
    %c0_83 = arith.constant 0 : index
    %c512_84 = arith.constant 512 : index
    %193 = vector.load %arg12[%c0_82, %c0_83, %c512_84] : memref<2x1x2048xf32, #tpu.memory_space<vmem>>, vector<1x1x256xf32>
    %194 = vector.shape_cast %193 : vector<1x1x256xf32> to vector<1x256xf32>
    %195 = vector.broadcast %194 : vector<1x256xf32> to vector<50x256xf32>
    %196 = arith.addf %192, %195 : vector<50x256xf32>
    %cst_85 = arith.constant 0.000000e+00 : f32
    %197 = vector.broadcast %cst_85 : f32 to vector<50x256xf32>
    %198 = arith.maximumf %196, %197 : vector<50x256xf32>
    %199 = arith.truncf %198 : vector<50x256xf32> to vector<50x256xbf16>
    %c0_86 = arith.constant 0 : index
    %c512_87 = arith.constant 512 : index
    %c0_88 = arith.constant 0 : index
    %200 = vector.load %arg13[%c0_86, %c512_87, %c0_88] : memref<2x2048x16xbf16, #tpu.memory_space<vmem>>, vector<1x256x16xbf16>
    %201 = vector.shape_cast %200 : vector<1x256x16xbf16> to vector<256x16xbf16>
    %cst_89 = arith.constant dense<0.000000e+00> : vector<50x16xf32>
    %202 = tpu.matmul %199, %201, %cst_89 {dimension_numbers = #tpu.dot_dimension_numbers<[1], [0], [0], [1], [0, 0, 1, 1], [], []>} : vector<50x256xbf16>, vector<256x16xbf16>, vector<50x16xf32> -> vector<50x16xf32>
    %203 = arith.addf %189, %202 : vector<50x16xf32>
    %c0_90 = arith.constant 0 : index
    %c0_91 = arith.constant 0 : index
    %c768 = arith.constant 768 : index
    %204 = vector.load %arg11[%c0_90, %c0_91, %c768] : memref<2x16x2048xbf16, #tpu.memory_space<vmem>>, vector<1x16x256xbf16>
    %205 = vector.shape_cast %204 : vector<1x16x256xbf16> to vector<16x256xbf16>
    %cst_92 = arith.constant dense<0.000000e+00> : vector<50x256xf32>
    %206 = tpu.matmul %160, %205, %cst_92 {dimension_numbers = #tpu.dot_dimension_numbers<[1], [0], [0], [1], [0, 0, 1, 1], [], []>} : vector<50x16xbf16>, vector<16x256xbf16>, vector<50x256xf32> -> vector<50x256xf32>
    %c0_93 = arith.constant 0 : index
    %c0_94 = arith.constant 0 : index
    %c768_95 = arith.constant 768 : index
    %207 = vector.load %arg12[%c0_93, %c0_94, %c768_95] : memref<2x1x2048xf32, #tpu.memory_space<vmem>>, vector<1x1x256xf32>
    %208 = vector.shape_cast %207 : vector<1x1x256xf32> to vector<1x256xf32>
    %209 = vector.broadcast %208 : vector<1x256xf32> to vector<50x256xf32>
    %210 = arith.addf %206, %209 : vector<50x256xf32>
    %cst_96 = arith.constant 0.000000e+00 : f32
    %211 = vector.broadcast %cst_96 : f32 to vector<50x256xf32>
    %212 = arith.maximumf %210, %211 : vector<50x256xf32>
    %213 = arith.truncf %212 : vector<50x256xf32> to vector<50x256xbf16>
    %c0_97 = arith.constant 0 : index
    %c768_98 = arith.constant 768 : index
    %c0_99 = arith.constant 0 : index
    %214 = vector.load %arg13[%c0_97, %c768_98, %c0_99] : memref<2x2048x16xbf16, #tpu.memory_space<vmem>>, vector<1x256x16xbf16>
    %215 = vector.shape_cast %214 : vector<1x256x16xbf16> to vector<256x16xbf16>
    %cst_100 = arith.constant dense<0.000000e+00> : vector<50x16xf32>
    %216 = tpu.matmul %213, %215, %cst_100 {dimension_numbers = #tpu.dot_dimension_numbers<[1], [0], [0], [1], [0, 0, 1, 1], [], []>} : vector<50x256xbf16>, vector<256x16xbf16>, vector<50x16xf32> -> vector<50x16xf32>
    %217 = arith.addf %203, %216 : vector<50x16xf32>
    %c0_101 = arith.constant 0 : index
    %c0_102 = arith.constant 0 : index
    %c1024 = arith.constant 1024 : index
    %218 = vector.load %arg11[%c0_101, %c0_102, %c1024] : memref<2x16x2048xbf16, #tpu.memory_space<vmem>>, vector<1x16x256xbf16>
    %219 = vector.shape_cast %218 : vector<1x16x256xbf16> to vector<16x256xbf16>
    %cst_103 = arith.constant dense<0.000000e+00> : vector<50x256xf32>
    %220 = tpu.matmul %160, %219, %cst_103 {dimension_numbers = #tpu.dot_dimension_numbers<[1], [0], [0], [1], [0, 0, 1, 1], [], []>} : vector<50x16xbf16>, vector<16x256xbf16>, vector<50x256xf32> -> vector<50x256xf32>
    %c0_104 = arith.constant 0 : index
    %c0_105 = arith.constant 0 : index
    %c1024_106 = arith.constant 1024 : index
    %221 = vector.load %arg12[%c0_104, %c0_105, %c1024_106] : memref<2x1x2048xf32, #tpu.memory_space<vmem>>, vector<1x1x256xf32>
    %222 = vector.shape_cast %221 : vector<1x1x256xf32> to vector<1x256xf32>
    %223 = vector.broadcast %222 : vector<1x256xf32> to vector<50x256xf32>
    %224 = arith.addf %220, %223 : vector<50x256xf32>
    %cst_107 = arith.constant 0.000000e+00 : f32
    %225 = vector.broadcast %cst_107 : f32 to vector<50x256xf32>
    %226 = arith.maximumf %224, %225 : vector<50x256xf32>
    %227 = arith.truncf %226 : vector<50x256xf32> to vector<50x256xbf16>
    %c0_108 = arith.constant 0 : index
    %c1024_109 = arith.constant 1024 : index
    %c0_110 = arith.constant 0 : index
    %228 = vector.load %arg13[%c0_108, %c1024_109, %c0_110] : memref<2x2048x16xbf16, #tpu.memory_space<vmem>>, vector<1x256x16xbf16>
    %229 = vector.shape_cast %228 : vector<1x256x16xbf16> to vector<256x16xbf16>
    %cst_111 = arith.constant dense<0.000000e+00> : vector<50x16xf32>
    %230 = tpu.matmul %227, %229, %cst_111 {dimension_numbers = #tpu.dot_dimension_numbers<[1], [0], [0], [1], [0, 0, 1, 1], [], []>} : vector<50x256xbf16>, vector<256x16xbf16>, vector<50x16xf32> -> vector<50x16xf32>
    %231 = arith.addf %217, %230 : vector<50x16xf32>
    %c0_112 = arith.constant 0 : index
    %c0_113 = arith.constant 0 : index
    %c1280 = arith.constant 1280 : index
    %232 = vector.load %arg11[%c0_112, %c0_113, %c1280] : memref<2x16x2048xbf16, #tpu.memory_space<vmem>>, vector<1x16x256xbf16>
    %233 = vector.shape_cast %232 : vector<1x16x256xbf16> to vector<16x256xbf16>
    %cst_114 = arith.constant dense<0.000000e+00> : vector<50x256xf32>
    %234 = tpu.matmul %160, %233, %cst_114 {dimension_numbers = #tpu.dot_dimension_numbers<[1], [0], [0], [1], [0, 0, 1, 1], [], []>} : vector<50x16xbf16>, vector<16x256xbf16>, vector<50x256xf32> -> vector<50x256xf32>
    %c0_115 = arith.constant 0 : index
    %c0_116 = arith.constant 0 : index
    %c1280_117 = arith.constant 1280 : index
    %235 = vector.load %arg12[%c0_115, %c0_116, %c1280_117] : memref<2x1x2048xf32, #tpu.memory_space<vmem>>, vector<1x1x256xf32>
    %236 = vector.shape_cast %235 : vector<1x1x256xf32> to vector<1x256xf32>
    %237 = vector.broadcast %236 : vector<1x256xf32> to vector<50x256xf32>
    %238 = arith.addf %234, %237 : vector<50x256xf32>
    %cst_118 = arith.constant 0.000000e+00 : f32
    %239 = vector.broadcast %cst_118 : f32 to vector<50x256xf32>
    %240 = arith.maximumf %238, %239 : vector<50x256xf32>
    %241 = arith.truncf %240 : vector<50x256xf32> to vector<50x256xbf16>
    %c0_119 = arith.constant 0 : index
    %c1280_120 = arith.constant 1280 : index
    %c0_121 = arith.constant 0 : index
    %242 = vector.load %arg13[%c0_119, %c1280_120, %c0_121] : memref<2x2048x16xbf16, #tpu.memory_space<vmem>>, vector<1x256x16xbf16>
    %243 = vector.shape_cast %242 : vector<1x256x16xbf16> to vector<256x16xbf16>
    %cst_122 = arith.constant dense<0.000000e+00> : vector<50x16xf32>
    %244 = tpu.matmul %241, %243, %cst_122 {dimension_numbers = #tpu.dot_dimension_numbers<[1], [0], [0], [1], [0, 0, 1, 1], [], []>} : vector<50x256xbf16>, vector<256x16xbf16>, vector<50x16xf32> -> vector<50x16xf32>
    %245 = arith.addf %231, %244 : vector<50x16xf32>
    %c0_123 = arith.constant 0 : index
    %c0_124 = arith.constant 0 : index
    %c1536 = arith.constant 1536 : index
    %246 = vector.load %arg11[%c0_123, %c0_124, %c1536] : memref<2x16x2048xbf16, #tpu.memory_space<vmem>>, vector<1x16x256xbf16>
    %247 = vector.shape_cast %246 : vector<1x16x256xbf16> to vector<16x256xbf16>
    %cst_125 = arith.constant dense<0.000000e+00> : vector<50x256xf32>
    %248 = tpu.matmul %160, %247, %cst_125 {dimension_numbers = #tpu.dot_dimension_numbers<[1], [0], [0], [1], [0, 0, 1, 1], [], []>} : vector<50x16xbf16>, vector<16x256xbf16>, vector<50x256xf32> -> vector<50x256xf32>
    %c0_126 = arith.constant 0 : index
    %c0_127 = arith.constant 0 : index
    %c1536_128 = arith.constant 1536 : index
    %249 = vector.load %arg12[%c0_126, %c0_127, %c1536_128] : memref<2x1x2048xf32, #tpu.memory_space<vmem>>, vector<1x1x256xf32>
    %250 = vector.shape_cast %249 : vector<1x1x256xf32> to vector<1x256xf32>
    %251 = vector.broadcast %250 : vector<1x256xf32> to vector<50x256xf32>
    %252 = arith.addf %248, %251 : vector<50x256xf32>
    %cst_129 = arith.constant 0.000000e+00 : f32
    %253 = vector.broadcast %cst_129 : f32 to vector<50x256xf32>
    %254 = arith.maximumf %252, %253 : vector<50x256xf32>
    %255 = arith.truncf %254 : vector<50x256xf32> to vector<50x256xbf16>
    %c0_130 = arith.constant 0 : index
    %c1536_131 = arith.constant 1536 : index
    %c0_132 = arith.constant 0 : index
    %256 = vector.load %arg13[%c0_130, %c1536_131, %c0_132] : memref<2x2048x16xbf16, #tpu.memory_space<vmem>>, vector<1x256x16xbf16>
    %257 = vector.shape_cast %256 : vector<1x256x16xbf16> to vector<256x16xbf16>
    %cst_133 = arith.constant dense<0.000000e+00> : vector<50x16xf32>
    %258 = tpu.matmul %255, %257, %cst_133 {dimension_numbers = #tpu.dot_dimension_numbers<[1], [0], [0], [1], [0, 0, 1, 1], [], []>} : vector<50x256xbf16>, vector<256x16xbf16>, vector<50x16xf32> -> vector<50x16xf32>
    %259 = arith.addf %245, %258 : vector<50x16xf32>
    %c0_134 = arith.constant 0 : index
    %c0_135 = arith.constant 0 : index
    %c1792 = arith.constant 1792 : index
    %260 = vector.load %arg11[%c0_134, %c0_135, %c1792] : memref<2x16x2048xbf16, #tpu.memory_space<vmem>>, vector<1x16x256xbf16>
    %261 = vector.shape_cast %260 : vector<1x16x256xbf16> to vector<16x256xbf16>
    %cst_136 = arith.constant dense<0.000000e+00> : vector<50x256xf32>
    %262 = tpu.matmul %160, %261, %cst_136 {dimension_numbers = #tpu.dot_dimension_numbers<[1], [0], [0], [1], [0, 0, 1, 1], [], []>} : vector<50x16xbf16>, vector<16x256xbf16>, vector<50x256xf32> -> vector<50x256xf32>
    %c0_137 = arith.constant 0 : index
    %c0_138 = arith.constant 0 : index
    %c1792_139 = arith.constant 1792 : index
    %263 = vector.load %arg12[%c0_137, %c0_138, %c1792_139] : memref<2x1x2048xf32, #tpu.memory_space<vmem>>, vector<1x1x256xf32>
    %264 = vector.shape_cast %263 : vector<1x1x256xf32> to vector<1x256xf32>
    %265 = vector.broadcast %264 : vector<1x256xf32> to vector<50x256xf32>
    %266 = arith.addf %262, %265 : vector<50x256xf32>
    %cst_140 = arith.constant 0.000000e+00 : f32
    %267 = vector.broadcast %cst_140 : f32 to vector<50x256xf32>
    %268 = arith.maximumf %266, %267 : vector<50x256xf32>
    %269 = arith.truncf %268 : vector<50x256xf32> to vector<50x256xbf16>
    %c0_141 = arith.constant 0 : index
    %c1792_142 = arith.constant 1792 : index
    %c0_143 = arith.constant 0 : index
    %270 = vector.load %arg13[%c0_141, %c1792_142, %c0_143] : memref<2x2048x16xbf16, #tpu.memory_space<vmem>>, vector<1x256x16xbf16>
    %271 = vector.shape_cast %270 : vector<1x256x16xbf16> to vector<256x16xbf16>
    %cst_144 = arith.constant dense<0.000000e+00> : vector<50x16xf32>
    %272 = tpu.matmul %269, %271, %cst_144 {dimension_numbers = #tpu.dot_dimension_numbers<[1], [0], [0], [1], [0, 0, 1, 1], [], []>} : vector<50x256xbf16>, vector<256x16xbf16>, vector<50x16xf32> -> vector<50x16xf32>
    %273 = arith.addf %259, %272 : vector<50x16xf32>
    %274 = arith.addf %159, %273 : vector<50x16xf32>
    %c0_145 = arith.constant 0 : index
    %c0_146 = arith.constant 0 : index
    %c0_147 = arith.constant 0 : index
    %275 = vector.load %arg14[%c0_145, %c0_146, %c0_147] : memref<2x1x16xf32, #tpu.memory_space<vmem>>, vector<1x1x16xf32>
    %276 = vector.shape_cast %275 : vector<1x1x16xf32> to vector<1x16xf32>
    %277 = vector.broadcast %276 : vector<1x16xf32> to vector<50x16xf32>
    %278 = arith.addf %274, %277 : vector<50x16xf32>
    %c0_148 = arith.constant 0 : index
    %c0_149 = arith.constant 0 : index
    %c0_150 = arith.constant 0 : index
    %279 = vector.load %arg15[%c0_148, %c0_149, %c0_150] : memref<2x1x16xf32, #tpu.memory_space<vmem>>, vector<1x1x16xf32>
    %280 = vector.shape_cast %279 : vector<1x1x16xf32> to vector<1x16xf32>
    %c0_151 = arith.constant 0 : index
    %c0_152 = arith.constant 0 : index
    %c0_153 = arith.constant 0 : index
    %281 = vector.load %arg16[%c0_151, %c0_152, %c0_153] : memref<2x1x16xf32, #tpu.memory_space<vmem>>, vector<1x1x16xf32>
    %282 = vector.shape_cast %281 : vector<1x1x16xf32> to vector<1x16xf32>
    %cst_154 = arith.constant dense<0.000000e+00> : vector<50xf32>
    %283 = vector.multi_reduction <add>, %278, %cst_154 [1] : vector<50x16xf32> to vector<50xf32>
    %284 = vector.shape_cast %283 : vector<50xf32> to vector<50x1xf32>
    %cst_155 = arith.constant 1.600000e+01 : f32
    %285 = vector.broadcast %cst_155 : f32 to vector<50x1xf32>
    %286 = arith.divf %284, %285 : vector<50x1xf32>
    %287 = vector.broadcast %286 : vector<50x1xf32> to vector<50x16xf32>
    %288 = arith.subf %278, %287 : vector<50x16xf32>
    %289 = arith.mulf %288, %288 : vector<50x16xf32>
    %cst_156 = arith.constant dense<0.000000e+00> : vector<50xf32>
    %290 = vector.multi_reduction <add>, %289, %cst_156 [1] : vector<50x16xf32> to vector<50xf32>
    %291 = vector.shape_cast %290 : vector<50xf32> to vector<50x1xf32>
    %cst_157 = arith.constant 1.600000e+01 : f32
    %292 = vector.broadcast %cst_157 : f32 to vector<50x1xf32>
    %293 = arith.divf %291, %292 : vector<50x1xf32>
    %294 = vector.broadcast %286 : vector<50x1xf32> to vector<50x16xf32>
    %295 = arith.subf %278, %294 : vector<50x16xf32>
    %cst_158 = arith.constant 9.99999974E-6 : f32
    %296 = vector.broadcast %cst_158 : f32 to vector<50x1xf32>
    %297 = arith.addf %293, %296 : vector<50x1xf32>
    %298 = math.rsqrt %297 : vector<50x1xf32>
    %299 = vector.broadcast %298 : vector<50x1xf32> to vector<50x16xf32>
    %300 = arith.mulf %295, %299 : vector<50x16xf32>
    %301 = vector.broadcast %280 : vector<1x16xf32> to vector<50x16xf32>
    %302 = arith.mulf %300, %301 : vector<50x16xf32>
    %303 = vector.broadcast %282 : vector<1x16xf32> to vector<50x16xf32>
    %304 = arith.addf %302, %303 : vector<50x16xf32>
    %c1 = arith.constant 1 : index
    %c0_159 = arith.constant 0 : index
    %c0_160 = arith.constant 0 : index
    %305 = vector.load %arg5[%c1, %c0_159, %c0_160] : memref<2x16x48xbf16, #tpu.memory_space<vmem>>, vector<1x16x48xbf16>
    %306 = vector.shape_cast %305 : vector<1x16x48xbf16> to vector<16x48xbf16>
    %c1_161 = arith.constant 1 : index
    %c0_162 = arith.constant 0 : index
    %c0_163 = arith.constant 0 : index
    %307 = vector.load %arg6[%c1_161, %c0_162, %c0_163] : memref<2x1x48xf32, #tpu.memory_space<vmem>>, vector<1x1x48xf32>
    %308 = vector.shape_cast %307 : vector<1x1x48xf32> to vector<1x48xf32>
    %309 = arith.truncf %304 : vector<50x16xf32> to vector<50x16xbf16>
    %cst_164 = arith.constant dense<0.000000e+00> : vector<50x48xf32>
    %310 = tpu.matmul %309, %306, %cst_164 {dimension_numbers = #tpu.dot_dimension_numbers<[1], [0], [0], [1], [0, 0, 1, 1], [], []>} : vector<50x16xbf16>, vector<16x48xbf16>, vector<50x48xf32> -> vector<50x48xf32>
    %311 = vector.broadcast %308 : vector<1x48xf32> to vector<50x48xf32>
    %312 = arith.addf %310, %311 : vector<50x48xf32>
    %313 = vector.extract_strided_slice %312 {offsets = [0, 0], sizes = [50, 16], strides = [1, 1]} : vector<50x48xf32> to vector<50x16xf32>
    %314 = vector.extract_strided_slice %312 {offsets = [0, 16], sizes = [50, 16], strides = [1, 1]} : vector<50x48xf32> to vector<50x16xf32>
    %315 = vector.extract_strided_slice %312 {offsets = [0, 32], sizes = [50, 16], strides = [1, 1]} : vector<50x48xf32> to vector<50x16xf32>
    %cst_165 = arith.constant 0.000000e+00 : f32
    %316 = vector.broadcast %cst_165 : f32 to vector<50x16xf32>
    %317 = vector.broadcast %15 : vector<1x16xf32> to vector<50x16xf32>
    %318 = arith.mulf %314, %317 : vector<50x16xf32>
    %cst_166 = arith.constant dense<0.000000e+00> : vector<50x50xf32>
    %319 = tpu.matmul %313, %318, %cst_166 {dimension_numbers = #tpu.dot_dimension_numbers<[1], [1], [0], [0], [0, 0, 1, 0], [], []>} : vector<50x16xf32>, vector<50x16xf32>, vector<50x50xf32> -> vector<50x50xf32>
    %cst_167 = arith.constant 5.000000e-01 : f32
    %320 = vector.broadcast %cst_167 : f32 to vector<50x50xf32>
    %321 = arith.mulf %319, %320 : vector<50x50xf32>
    %cst_168 = arith.constant dense<0xFF800000> : vector<50xf32>
    %322 = vector.multi_reduction <maximumf>, %321, %cst_168 [1] : vector<50x50xf32> to vector<50xf32>
    %323 = vector.shape_cast %322 : vector<50xf32> to vector<50x1xf32>
    %324 = vector.broadcast %323 : vector<50x1xf32> to vector<50x50xf32>
    %325 = arith.subf %321, %324 : vector<50x50xf32>
    %326 = math.exp %325 : vector<50x50xf32>
    %cst_169 = arith.constant dense<0.000000e+00> : vector<50xf32>
    %327 = vector.multi_reduction <add>, %326, %cst_169 [1] : vector<50x50xf32> to vector<50xf32>
    %328 = vector.shape_cast %327 : vector<50xf32> to vector<50x1xf32>
    %329 = tpu.reciprocal %328 {approx = true} : vector<50x1xf32> -> vector<50x1xf32>
    %330 = vector.broadcast %329 : vector<50x1xf32> to vector<50x50xf32>
    %331 = arith.mulf %326, %330 : vector<50x50xf32>
    %332 = vector.broadcast %15 : vector<1x16xf32> to vector<50x16xf32>
    %333 = arith.mulf %315, %332 : vector<50x16xf32>
    %cst_170 = arith.constant dense<0.000000e+00> : vector<50x16xf32>
    %334 = tpu.matmul %331, %333, %cst_170 {dimension_numbers = #tpu.dot_dimension_numbers<[1], [0], [0], [1], [0, 0, 1, 1], [], []>} : vector<50x50xf32>, vector<50x16xf32>, vector<50x16xf32> -> vector<50x16xf32>
    %335 = arith.addf %316, %334 : vector<50x16xf32>
    %336 = vector.broadcast %22 : vector<1x16xf32> to vector<50x16xf32>
    %337 = arith.mulf %314, %336 : vector<50x16xf32>
    %cst_171 = arith.constant dense<0.000000e+00> : vector<50x50xf32>
    %338 = tpu.matmul %313, %337, %cst_171 {dimension_numbers = #tpu.dot_dimension_numbers<[1], [1], [0], [0], [0, 0, 1, 0], [], []>} : vector<50x16xf32>, vector<50x16xf32>, vector<50x50xf32> -> vector<50x50xf32>
    %cst_172 = arith.constant 5.000000e-01 : f32
    %339 = vector.broadcast %cst_172 : f32 to vector<50x50xf32>
    %340 = arith.mulf %338, %339 : vector<50x50xf32>
    %cst_173 = arith.constant dense<0xFF800000> : vector<50xf32>
    %341 = vector.multi_reduction <maximumf>, %340, %cst_173 [1] : vector<50x50xf32> to vector<50xf32>
    %342 = vector.shape_cast %341 : vector<50xf32> to vector<50x1xf32>
    %343 = vector.broadcast %342 : vector<50x1xf32> to vector<50x50xf32>
    %344 = arith.subf %340, %343 : vector<50x50xf32>
    %345 = math.exp %344 : vector<50x50xf32>
    %cst_174 = arith.constant dense<0.000000e+00> : vector<50xf32>
    %346 = vector.multi_reduction <add>, %345, %cst_174 [1] : vector<50x50xf32> to vector<50xf32>
    %347 = vector.shape_cast %346 : vector<50xf32> to vector<50x1xf32>
    %348 = tpu.reciprocal %347 {approx = true} : vector<50x1xf32> -> vector<50x1xf32>
    %349 = vector.broadcast %348 : vector<50x1xf32> to vector<50x50xf32>
    %350 = arith.mulf %345, %349 : vector<50x50xf32>
    %351 = vector.broadcast %22 : vector<1x16xf32> to vector<50x16xf32>
    %352 = arith.mulf %315, %351 : vector<50x16xf32>
    %cst_175 = arith.constant dense<0.000000e+00> : vector<50x16xf32>
    %353 = tpu.matmul %350, %352, %cst_175 {dimension_numbers = #tpu.dot_dimension_numbers<[1], [0], [0], [1], [0, 0, 1, 1], [], []>} : vector<50x50xf32>, vector<50x16xf32>, vector<50x16xf32> -> vector<50x16xf32>
    %354 = arith.addf %335, %353 : vector<50x16xf32>
    %355 = vector.broadcast %29 : vector<1x16xf32> to vector<50x16xf32>
    %356 = arith.mulf %314, %355 : vector<50x16xf32>
    %cst_176 = arith.constant dense<0.000000e+00> : vector<50x50xf32>
    %357 = tpu.matmul %313, %356, %cst_176 {dimension_numbers = #tpu.dot_dimension_numbers<[1], [1], [0], [0], [0, 0, 1, 0], [], []>} : vector<50x16xf32>, vector<50x16xf32>, vector<50x50xf32> -> vector<50x50xf32>
    %cst_177 = arith.constant 5.000000e-01 : f32
    %358 = vector.broadcast %cst_177 : f32 to vector<50x50xf32>
    %359 = arith.mulf %357, %358 : vector<50x50xf32>
    %cst_178 = arith.constant dense<0xFF800000> : vector<50xf32>
    %360 = vector.multi_reduction <maximumf>, %359, %cst_178 [1] : vector<50x50xf32> to vector<50xf32>
    %361 = vector.shape_cast %360 : vector<50xf32> to vector<50x1xf32>
    %362 = vector.broadcast %361 : vector<50x1xf32> to vector<50x50xf32>
    %363 = arith.subf %359, %362 : vector<50x50xf32>
    %364 = math.exp %363 : vector<50x50xf32>
    %cst_179 = arith.constant dense<0.000000e+00> : vector<50xf32>
    %365 = vector.multi_reduction <add>, %364, %cst_179 [1] : vector<50x50xf32> to vector<50xf32>
    %366 = vector.shape_cast %365 : vector<50xf32> to vector<50x1xf32>
    %367 = tpu.reciprocal %366 {approx = true} : vector<50x1xf32> -> vector<50x1xf32>
    %368 = vector.broadcast %367 : vector<50x1xf32> to vector<50x50xf32>
    %369 = arith.mulf %364, %368 : vector<50x50xf32>
    %370 = vector.broadcast %29 : vector<1x16xf32> to vector<50x16xf32>
    %371 = arith.mulf %315, %370 : vector<50x16xf32>
    %cst_180 = arith.constant dense<0.000000e+00> : vector<50x16xf32>
    %372 = tpu.matmul %369, %371, %cst_180 {dimension_numbers = #tpu.dot_dimension_numbers<[1], [0], [0], [1], [0, 0, 1, 1], [], []>} : vector<50x50xf32>, vector<50x16xf32>, vector<50x16xf32> -> vector<50x16xf32>
    %373 = arith.addf %354, %372 : vector<50x16xf32>
    %374 = vector.broadcast %36 : vector<1x16xf32> to vector<50x16xf32>
    %375 = arith.mulf %314, %374 : vector<50x16xf32>
    %cst_181 = arith.constant dense<0.000000e+00> : vector<50x50xf32>
    %376 = tpu.matmul %313, %375, %cst_181 {dimension_numbers = #tpu.dot_dimension_numbers<[1], [1], [0], [0], [0, 0, 1, 0], [], []>} : vector<50x16xf32>, vector<50x16xf32>, vector<50x50xf32> -> vector<50x50xf32>
    %cst_182 = arith.constant 5.000000e-01 : f32
    %377 = vector.broadcast %cst_182 : f32 to vector<50x50xf32>
    %378 = arith.mulf %376, %377 : vector<50x50xf32>
    %cst_183 = arith.constant dense<0xFF800000> : vector<50xf32>
    %379 = vector.multi_reduction <maximumf>, %378, %cst_183 [1] : vector<50x50xf32> to vector<50xf32>
    %380 = vector.shape_cast %379 : vector<50xf32> to vector<50x1xf32>
    %381 = vector.broadcast %380 : vector<50x1xf32> to vector<50x50xf32>
    %382 = arith.subf %378, %381 : vector<50x50xf32>
    %383 = math.exp %382 : vector<50x50xf32>
    %cst_184 = arith.constant dense<0.000000e+00> : vector<50xf32>
    %384 = vector.multi_reduction <add>, %383, %cst_184 [1] : vector<50x50xf32> to vector<50xf32>
    %385 = vector.shape_cast %384 : vector<50xf32> to vector<50x1xf32>
    %386 = tpu.reciprocal %385 {approx = true} : vector<50x1xf32> -> vector<50x1xf32>
    %387 = vector.broadcast %386 : vector<50x1xf32> to vector<50x50xf32>
    %388 = arith.mulf %383, %387 : vector<50x50xf32>
    %389 = vector.broadcast %36 : vector<1x16xf32> to vector<50x16xf32>
    %390 = arith.mulf %315, %389 : vector<50x16xf32>
    %cst_185 = arith.constant dense<0.000000e+00> : vector<50x16xf32>
    %391 = tpu.matmul %388, %390, %cst_185 {dimension_numbers = #tpu.dot_dimension_numbers<[1], [0], [0], [1], [0, 0, 1, 1], [], []>} : vector<50x50xf32>, vector<50x16xf32>, vector<50x16xf32> -> vector<50x16xf32>
    %392 = arith.addf %373, %391 : vector<50x16xf32>
    %c1_186 = arith.constant 1 : index
    %c0_187 = arith.constant 0 : index
    %c0_188 = arith.constant 0 : index
    %393 = vector.load %arg7[%c1_186, %c0_187, %c0_188] : memref<2x16x16xbf16, #tpu.memory_space<vmem>>, vector<1x16x16xbf16>
    %394 = vector.shape_cast %393 : vector<1x16x16xbf16> to vector<16x16xbf16>
    %c1_189 = arith.constant 1 : index
    %c0_190 = arith.constant 0 : index
    %c0_191 = arith.constant 0 : index
    %395 = vector.load %arg8[%c1_189, %c0_190, %c0_191] : memref<2x1x16xf32, #tpu.memory_space<vmem>>, vector<1x1x16xf32>
    %396 = vector.shape_cast %395 : vector<1x1x16xf32> to vector<1x16xf32>
    %397 = arith.truncf %392 : vector<50x16xf32> to vector<50x16xbf16>
    %cst_192 = arith.constant dense<0.000000e+00> : vector<50x16xf32>
    %398 = tpu.matmul %397, %394, %cst_192 {dimension_numbers = #tpu.dot_dimension_numbers<[1], [0], [0], [1], [0, 0, 1, 1], [], []>} : vector<50x16xbf16>, vector<16x16xbf16>, vector<50x16xf32> -> vector<50x16xf32>
    %399 = vector.broadcast %396 : vector<1x16xf32> to vector<50x16xf32>
    %400 = arith.addf %398, %399 : vector<50x16xf32>
    %401 = arith.addf %304, %400 : vector<50x16xf32>
    %c1_193 = arith.constant 1 : index
    %c0_194 = arith.constant 0 : index
    %c0_195 = arith.constant 0 : index
    %402 = vector.load %arg9[%c1_193, %c0_194, %c0_195] : memref<2x1x16xf32, #tpu.memory_space<vmem>>, vector<1x1x16xf32>
    %403 = vector.shape_cast %402 : vector<1x1x16xf32> to vector<1x16xf32>
    %c1_196 = arith.constant 1 : index
    %c0_197 = arith.constant 0 : index
    %c0_198 = arith.constant 0 : index
    %404 = vector.load %arg10[%c1_196, %c0_197, %c0_198] : memref<2x1x16xf32, #tpu.memory_space<vmem>>, vector<1x1x16xf32>
    %405 = vector.shape_cast %404 : vector<1x1x16xf32> to vector<1x16xf32>
    %cst_199 = arith.constant dense<0.000000e+00> : vector<50xf32>
    %406 = vector.multi_reduction <add>, %401, %cst_199 [1] : vector<50x16xf32> to vector<50xf32>
    %407 = vector.shape_cast %406 : vector<50xf32> to vector<50x1xf32>
    %cst_200 = arith.constant 1.600000e+01 : f32
    %408 = vector.broadcast %cst_200 : f32 to vector<50x1xf32>
    %409 = arith.divf %407, %408 : vector<50x1xf32>
    %410 = vector.broadcast %409 : vector<50x1xf32> to vector<50x16xf32>
    %411 = arith.subf %401, %410 : vector<50x16xf32>
    %412 = arith.mulf %411, %411 : vector<50x16xf32>
    %cst_201 = arith.constant dense<0.000000e+00> : vector<50xf32>
    %413 = vector.multi_reduction <add>, %412, %cst_201 [1] : vector<50x16xf32> to vector<50xf32>
    %414 = vector.shape_cast %413 : vector<50xf32> to vector<50x1xf32>
    %cst_202 = arith.constant 1.600000e+01 : f32
    %415 = vector.broadcast %cst_202 : f32 to vector<50x1xf32>
    %416 = arith.divf %414, %415 : vector<50x1xf32>
    %417 = vector.broadcast %409 : vector<50x1xf32> to vector<50x16xf32>
    %418 = arith.subf %401, %417 : vector<50x16xf32>
    %cst_203 = arith.constant 9.99999974E-6 : f32
    %419 = vector.broadcast %cst_203 : f32 to vector<50x1xf32>
    %420 = arith.addf %416, %419 : vector<50x1xf32>
    %421 = math.rsqrt %420 : vector<50x1xf32>
    %422 = vector.broadcast %421 : vector<50x1xf32> to vector<50x16xf32>
    %423 = arith.mulf %418, %422 : vector<50x16xf32>
    %424 = vector.broadcast %403 : vector<1x16xf32> to vector<50x16xf32>
    %425 = arith.mulf %423, %424 : vector<50x16xf32>
    %426 = vector.broadcast %405 : vector<1x16xf32> to vector<50x16xf32>
    %427 = arith.addf %425, %426 : vector<50x16xf32>
    %428 = arith.truncf %427 : vector<50x16xf32> to vector<50x16xbf16>
    %cst_204 = arith.constant 0.000000e+00 : f32
    %429 = vector.broadcast %cst_204 : f32 to vector<50x16xf32>
    %c1_205 = arith.constant 1 : index
    %c0_206 = arith.constant 0 : index
    %c0_207 = arith.constant 0 : index
    %430 = vector.load %arg11[%c1_205, %c0_206, %c0_207] : memref<2x16x2048xbf16, #tpu.memory_space<vmem>>, vector<1x16x256xbf16>
    %431 = vector.shape_cast %430 : vector<1x16x256xbf16> to vector<16x256xbf16>
    %cst_208 = arith.constant dense<0.000000e+00> : vector<50x256xf32>
    %432 = tpu.matmul %428, %431, %cst_208 {dimension_numbers = #tpu.dot_dimension_numbers<[1], [0], [0], [1], [0, 0, 1, 1], [], []>} : vector<50x16xbf16>, vector<16x256xbf16>, vector<50x256xf32> -> vector<50x256xf32>
    %c1_209 = arith.constant 1 : index
    %c0_210 = arith.constant 0 : index
    %c0_211 = arith.constant 0 : index
    %433 = vector.load %arg12[%c1_209, %c0_210, %c0_211] : memref<2x1x2048xf32, #tpu.memory_space<vmem>>, vector<1x1x256xf32>
    %434 = vector.shape_cast %433 : vector<1x1x256xf32> to vector<1x256xf32>
    %435 = vector.broadcast %434 : vector<1x256xf32> to vector<50x256xf32>
    %436 = arith.addf %432, %435 : vector<50x256xf32>
    %cst_212 = arith.constant 0.000000e+00 : f32
    %437 = vector.broadcast %cst_212 : f32 to vector<50x256xf32>
    %438 = arith.maximumf %436, %437 : vector<50x256xf32>
    %439 = arith.truncf %438 : vector<50x256xf32> to vector<50x256xbf16>
    %c1_213 = arith.constant 1 : index
    %c0_214 = arith.constant 0 : index
    %c0_215 = arith.constant 0 : index
    %440 = vector.load %arg13[%c1_213, %c0_214, %c0_215] : memref<2x2048x16xbf16, #tpu.memory_space<vmem>>, vector<1x256x16xbf16>
    %441 = vector.shape_cast %440 : vector<1x256x16xbf16> to vector<256x16xbf16>
    %cst_216 = arith.constant dense<0.000000e+00> : vector<50x16xf32>
    %442 = tpu.matmul %439, %441, %cst_216 {dimension_numbers = #tpu.dot_dimension_numbers<[1], [0], [0], [1], [0, 0, 1, 1], [], []>} : vector<50x256xbf16>, vector<256x16xbf16>, vector<50x16xf32> -> vector<50x16xf32>
    %443 = arith.addf %429, %442 : vector<50x16xf32>
    %c1_217 = arith.constant 1 : index
    %c0_218 = arith.constant 0 : index
    %c256_219 = arith.constant 256 : index
    %444 = vector.load %arg11[%c1_217, %c0_218, %c256_219] : memref<2x16x2048xbf16, #tpu.memory_space<vmem>>, vector<1x16x256xbf16>
    %445 = vector.shape_cast %444 : vector<1x16x256xbf16> to vector<16x256xbf16>
    %cst_220 = arith.constant dense<0.000000e+00> : vector<50x256xf32>
    %446 = tpu.matmul %428, %445, %cst_220 {dimension_numbers = #tpu.dot_dimension_numbers<[1], [0], [0], [1], [0, 0, 1, 1], [], []>} : vector<50x16xbf16>, vector<16x256xbf16>, vector<50x256xf32> -> vector<50x256xf32>
    %c1_221 = arith.constant 1 : index
    %c0_222 = arith.constant 0 : index
    %c256_223 = arith.constant 256 : index
    %447 = vector.load %arg12[%c1_221, %c0_222, %c256_223] : memref<2x1x2048xf32, #tpu.memory_space<vmem>>, vector<1x1x256xf32>
    %448 = vector.shape_cast %447 : vector<1x1x256xf32> to vector<1x256xf32>
    %449 = vector.broadcast %448 : vector<1x256xf32> to vector<50x256xf32>
    %450 = arith.addf %446, %449 : vector<50x256xf32>
    %cst_224 = arith.constant 0.000000e+00 : f32
    %451 = vector.broadcast %cst_224 : f32 to vector<50x256xf32>
    %452 = arith.maximumf %450, %451 : vector<50x256xf32>
    %453 = arith.truncf %452 : vector<50x256xf32> to vector<50x256xbf16>
    %c1_225 = arith.constant 1 : index
    %c256_226 = arith.constant 256 : index
    %c0_227 = arith.constant 0 : index
    %454 = vector.load %arg13[%c1_225, %c256_226, %c0_227] : memref<2x2048x16xbf16, #tpu.memory_space<vmem>>, vector<1x256x16xbf16>
    %455 = vector.shape_cast %454 : vector<1x256x16xbf16> to vector<256x16xbf16>
    %cst_228 = arith.constant dense<0.000000e+00> : vector<50x16xf32>
    %456 = tpu.matmul %453, %455, %cst_228 {dimension_numbers = #tpu.dot_dimension_numbers<[1], [0], [0], [1], [0, 0, 1, 1], [], []>} : vector<50x256xbf16>, vector<256x16xbf16>, vector<50x16xf32> -> vector<50x16xf32>
    %457 = arith.addf %443, %456 : vector<50x16xf32>
    %c1_229 = arith.constant 1 : index
    %c0_230 = arith.constant 0 : index
    %c512_231 = arith.constant 512 : index
    %458 = vector.load %arg11[%c1_229, %c0_230, %c512_231] : memref<2x16x2048xbf16, #tpu.memory_space<vmem>>, vector<1x16x256xbf16>
    %459 = vector.shape_cast %458 : vector<1x16x256xbf16> to vector<16x256xbf16>
    %cst_232 = arith.constant dense<0.000000e+00> : vector<50x256xf32>
    %460 = tpu.matmul %428, %459, %cst_232 {dimension_numbers = #tpu.dot_dimension_numbers<[1], [0], [0], [1], [0, 0, 1, 1], [], []>} : vector<50x16xbf16>, vector<16x256xbf16>, vector<50x256xf32> -> vector<50x256xf32>
    %c1_233 = arith.constant 1 : index
    %c0_234 = arith.constant 0 : index
    %c512_235 = arith.constant 512 : index
    %461 = vector.load %arg12[%c1_233, %c0_234, %c512_235] : memref<2x1x2048xf32, #tpu.memory_space<vmem>>, vector<1x1x256xf32>
    %462 = vector.shape_cast %461 : vector<1x1x256xf32> to vector<1x256xf32>
    %463 = vector.broadcast %462 : vector<1x256xf32> to vector<50x256xf32>
    %464 = arith.addf %460, %463 : vector<50x256xf32>
    %cst_236 = arith.constant 0.000000e+00 : f32
    %465 = vector.broadcast %cst_236 : f32 to vector<50x256xf32>
    %466 = arith.maximumf %464, %465 : vector<50x256xf32>
    %467 = arith.truncf %466 : vector<50x256xf32> to vector<50x256xbf16>
    %c1_237 = arith.constant 1 : index
    %c512_238 = arith.constant 512 : index
    %c0_239 = arith.constant 0 : index
    %468 = vector.load %arg13[%c1_237, %c512_238, %c0_239] : memref<2x2048x16xbf16, #tpu.memory_space<vmem>>, vector<1x256x16xbf16>
    %469 = vector.shape_cast %468 : vector<1x256x16xbf16> to vector<256x16xbf16>
    %cst_240 = arith.constant dense<0.000000e+00> : vector<50x16xf32>
    %470 = tpu.matmul %467, %469, %cst_240 {dimension_numbers = #tpu.dot_dimension_numbers<[1], [0], [0], [1], [0, 0, 1, 1], [], []>} : vector<50x256xbf16>, vector<256x16xbf16>, vector<50x16xf32> -> vector<50x16xf32>
    %471 = arith.addf %457, %470 : vector<50x16xf32>
    %c1_241 = arith.constant 1 : index
    %c0_242 = arith.constant 0 : index
    %c768_243 = arith.constant 768 : index
    %472 = vector.load %arg11[%c1_241, %c0_242, %c768_243] : memref<2x16x2048xbf16, #tpu.memory_space<vmem>>, vector<1x16x256xbf16>
    %473 = vector.shape_cast %472 : vector<1x16x256xbf16> to vector<16x256xbf16>
    %cst_244 = arith.constant dense<0.000000e+00> : vector<50x256xf32>
    %474 = tpu.matmul %428, %473, %cst_244 {dimension_numbers = #tpu.dot_dimension_numbers<[1], [0], [0], [1], [0, 0, 1, 1], [], []>} : vector<50x16xbf16>, vector<16x256xbf16>, vector<50x256xf32> -> vector<50x256xf32>
    %c1_245 = arith.constant 1 : index
    %c0_246 = arith.constant 0 : index
    %c768_247 = arith.constant 768 : index
    %475 = vector.load %arg12[%c1_245, %c0_246, %c768_247] : memref<2x1x2048xf32, #tpu.memory_space<vmem>>, vector<1x1x256xf32>
    %476 = vector.shape_cast %475 : vector<1x1x256xf32> to vector<1x256xf32>
    %477 = vector.broadcast %476 : vector<1x256xf32> to vector<50x256xf32>
    %478 = arith.addf %474, %477 : vector<50x256xf32>
    %cst_248 = arith.constant 0.000000e+00 : f32
    %479 = vector.broadcast %cst_248 : f32 to vector<50x256xf32>
    %480 = arith.maximumf %478, %479 : vector<50x256xf32>
    %481 = arith.truncf %480 : vector<50x256xf32> to vector<50x256xbf16>
    %c1_249 = arith.constant 1 : index
    %c768_250 = arith.constant 768 : index
    %c0_251 = arith.constant 0 : index
    %482 = vector.load %arg13[%c1_249, %c768_250, %c0_251] : memref<2x2048x16xbf16, #tpu.memory_space<vmem>>, vector<1x256x16xbf16>
    %483 = vector.shape_cast %482 : vector<1x256x16xbf16> to vector<256x16xbf16>
    %cst_252 = arith.constant dense<0.000000e+00> : vector<50x16xf32>
    %484 = tpu.matmul %481, %483, %cst_252 {dimension_numbers = #tpu.dot_dimension_numbers<[1], [0], [0], [1], [0, 0, 1, 1], [], []>} : vector<50x256xbf16>, vector<256x16xbf16>, vector<50x16xf32> -> vector<50x16xf32>
    %485 = arith.addf %471, %484 : vector<50x16xf32>
    %c1_253 = arith.constant 1 : index
    %c0_254 = arith.constant 0 : index
    %c1024_255 = arith.constant 1024 : index
    %486 = vector.load %arg11[%c1_253, %c0_254, %c1024_255] : memref<2x16x2048xbf16, #tpu.memory_space<vmem>>, vector<1x16x256xbf16>
    %487 = vector.shape_cast %486 : vector<1x16x256xbf16> to vector<16x256xbf16>
    %cst_256 = arith.constant dense<0.000000e+00> : vector<50x256xf32>
    %488 = tpu.matmul %428, %487, %cst_256 {dimension_numbers = #tpu.dot_dimension_numbers<[1], [0], [0], [1], [0, 0, 1, 1], [], []>} : vector<50x16xbf16>, vector<16x256xbf16>, vector<50x256xf32> -> vector<50x256xf32>
    %c1_257 = arith.constant 1 : index
    %c0_258 = arith.constant 0 : index
    %c1024_259 = arith.constant 1024 : index
    %489 = vector.load %arg12[%c1_257, %c0_258, %c1024_259] : memref<2x1x2048xf32, #tpu.memory_space<vmem>>, vector<1x1x256xf32>
    %490 = vector.shape_cast %489 : vector<1x1x256xf32> to vector<1x256xf32>
    %491 = vector.broadcast %490 : vector<1x256xf32> to vector<50x256xf32>
    %492 = arith.addf %488, %491 : vector<50x256xf32>
    %cst_260 = arith.constant 0.000000e+00 : f32
    %493 = vector.broadcast %cst_260 : f32 to vector<50x256xf32>
    %494 = arith.maximumf %492, %493 : vector<50x256xf32>
    %495 = arith.truncf %494 : vector<50x256xf32> to vector<50x256xbf16>
    %c1_261 = arith.constant 1 : index
    %c1024_262 = arith.constant 1024 : index
    %c0_263 = arith.constant 0 : index
    %496 = vector.load %arg13[%c1_261, %c1024_262, %c0_263] : memref<2x2048x16xbf16, #tpu.memory_space<vmem>>, vector<1x256x16xbf16>
    %497 = vector.shape_cast %496 : vector<1x256x16xbf16> to vector<256x16xbf16>
    %cst_264 = arith.constant dense<0.000000e+00> : vector<50x16xf32>
    %498 = tpu.matmul %495, %497, %cst_264 {dimension_numbers = #tpu.dot_dimension_numbers<[1], [0], [0], [1], [0, 0, 1, 1], [], []>} : vector<50x256xbf16>, vector<256x16xbf16>, vector<50x16xf32> -> vector<50x16xf32>
    %499 = arith.addf %485, %498 : vector<50x16xf32>
    %c1_265 = arith.constant 1 : index
    %c0_266 = arith.constant 0 : index
    %c1280_267 = arith.constant 1280 : index
    %500 = vector.load %arg11[%c1_265, %c0_266, %c1280_267] : memref<2x16x2048xbf16, #tpu.memory_space<vmem>>, vector<1x16x256xbf16>
    %501 = vector.shape_cast %500 : vector<1x16x256xbf16> to vector<16x256xbf16>
    %cst_268 = arith.constant dense<0.000000e+00> : vector<50x256xf32>
    %502 = tpu.matmul %428, %501, %cst_268 {dimension_numbers = #tpu.dot_dimension_numbers<[1], [0], [0], [1], [0, 0, 1, 1], [], []>} : vector<50x16xbf16>, vector<16x256xbf16>, vector<50x256xf32> -> vector<50x256xf32>
    %c1_269 = arith.constant 1 : index
    %c0_270 = arith.constant 0 : index
    %c1280_271 = arith.constant 1280 : index
    %503 = vector.load %arg12[%c1_269, %c0_270, %c1280_271] : memref<2x1x2048xf32, #tpu.memory_space<vmem>>, vector<1x1x256xf32>
    %504 = vector.shape_cast %503 : vector<1x1x256xf32> to vector<1x256xf32>
    %505 = vector.broadcast %504 : vector<1x256xf32> to vector<50x256xf32>
    %506 = arith.addf %502, %505 : vector<50x256xf32>
    %cst_272 = arith.constant 0.000000e+00 : f32
    %507 = vector.broadcast %cst_272 : f32 to vector<50x256xf32>
    %508 = arith.maximumf %506, %507 : vector<50x256xf32>
    %509 = arith.truncf %508 : vector<50x256xf32> to vector<50x256xbf16>
    %c1_273 = arith.constant 1 : index
    %c1280_274 = arith.constant 1280 : index
    %c0_275 = arith.constant 0 : index
    %510 = vector.load %arg13[%c1_273, %c1280_274, %c0_275] : memref<2x2048x16xbf16, #tpu.memory_space<vmem>>, vector<1x256x16xbf16>
    %511 = vector.shape_cast %510 : vector<1x256x16xbf16> to vector<256x16xbf16>
    %cst_276 = arith.constant dense<0.000000e+00> : vector<50x16xf32>
    %512 = tpu.matmul %509, %511, %cst_276 {dimension_numbers = #tpu.dot_dimension_numbers<[1], [0], [0], [1], [0, 0, 1, 1], [], []>} : vector<50x256xbf16>, vector<256x16xbf16>, vector<50x16xf32> -> vector<50x16xf32>
    %513 = arith.addf %499, %512 : vector<50x16xf32>
    %c1_277 = arith.constant 1 : index
    %c0_278 = arith.constant 0 : index
    %c1536_279 = arith.constant 1536 : index
    %514 = vector.load %arg11[%c1_277, %c0_278, %c1536_279] : memref<2x16x2048xbf16, #tpu.memory_space<vmem>>, vector<1x16x256xbf16>
    %515 = vector.shape_cast %514 : vector<1x16x256xbf16> to vector<16x256xbf16>
    %cst_280 = arith.constant dense<0.000000e+00> : vector<50x256xf32>
    %516 = tpu.matmul %428, %515, %cst_280 {dimension_numbers = #tpu.dot_dimension_numbers<[1], [0], [0], [1], [0, 0, 1, 1], [], []>} : vector<50x16xbf16>, vector<16x256xbf16>, vector<50x256xf32> -> vector<50x256xf32>
    %c1_281 = arith.constant 1 : index
    %c0_282 = arith.constant 0 : index
    %c1536_283 = arith.constant 1536 : index
    %517 = vector.load %arg12[%c1_281, %c0_282, %c1536_283] : memref<2x1x2048xf32, #tpu.memory_space<vmem>>, vector<1x1x256xf32>
    %518 = vector.shape_cast %517 : vector<1x1x256xf32> to vector<1x256xf32>
    %519 = vector.broadcast %518 : vector<1x256xf32> to vector<50x256xf32>
    %520 = arith.addf %516, %519 : vector<50x256xf32>
    %cst_284 = arith.constant 0.000000e+00 : f32
    %521 = vector.broadcast %cst_284 : f32 to vector<50x256xf32>
    %522 = arith.maximumf %520, %521 : vector<50x256xf32>
    %523 = arith.truncf %522 : vector<50x256xf32> to vector<50x256xbf16>
    %c1_285 = arith.constant 1 : index
    %c1536_286 = arith.constant 1536 : index
    %c0_287 = arith.constant 0 : index
    %524 = vector.load %arg13[%c1_285, %c1536_286, %c0_287] : memref<2x2048x16xbf16, #tpu.memory_space<vmem>>, vector<1x256x16xbf16>
    %525 = vector.shape_cast %524 : vector<1x256x16xbf16> to vector<256x16xbf16>
    %cst_288 = arith.constant dense<0.000000e+00> : vector<50x16xf32>
    %526 = tpu.matmul %523, %525, %cst_288 {dimension_numbers = #tpu.dot_dimension_numbers<[1], [0], [0], [1], [0, 0, 1, 1], [], []>} : vector<50x256xbf16>, vector<256x16xbf16>, vector<50x16xf32> -> vector<50x16xf32>
    %527 = arith.addf %513, %526 : vector<50x16xf32>
    %c1_289 = arith.constant 1 : index
    %c0_290 = arith.constant 0 : index
    %c1792_291 = arith.constant 1792 : index
    %528 = vector.load %arg11[%c1_289, %c0_290, %c1792_291] : memref<2x16x2048xbf16, #tpu.memory_space<vmem>>, vector<1x16x256xbf16>
    %529 = vector.shape_cast %528 : vector<1x16x256xbf16> to vector<16x256xbf16>
    %cst_292 = arith.constant dense<0.000000e+00> : vector<50x256xf32>
    %530 = tpu.matmul %428, %529, %cst_292 {dimension_numbers = #tpu.dot_dimension_numbers<[1], [0], [0], [1], [0, 0, 1, 1], [], []>} : vector<50x16xbf16>, vector<16x256xbf16>, vector<50x256xf32> -> vector<50x256xf32>
    %c1_293 = arith.constant 1 : index
    %c0_294 = arith.constant 0 : index
    %c1792_295 = arith.constant 1792 : index
    %531 = vector.load %arg12[%c1_293, %c0_294, %c1792_295] : memref<2x1x2048xf32, #tpu.memory_space<vmem>>, vector<1x1x256xf32>
    %532 = vector.shape_cast %531 : vector<1x1x256xf32> to vector<1x256xf32>
    %533 = vector.broadcast %532 : vector<1x256xf32> to vector<50x256xf32>
    %534 = arith.addf %530, %533 : vector<50x256xf32>
    %cst_296 = arith.constant 0.000000e+00 : f32
    %535 = vector.broadcast %cst_296 : f32 to vector<50x256xf32>
    %536 = arith.maximumf %534, %535 : vector<50x256xf32>
    %537 = arith.truncf %536 : vector<50x256xf32> to vector<50x256xbf16>
    %c1_297 = arith.constant 1 : index
    %c1792_298 = arith.constant 1792 : index
    %c0_299 = arith.constant 0 : index
    %538 = vector.load %arg13[%c1_297, %c1792_298, %c0_299] : memref<2x2048x16xbf16, #tpu.memory_space<vmem>>, vector<1x256x16xbf16>
    %539 = vector.shape_cast %538 : vector<1x256x16xbf16> to vector<256x16xbf16>
    %cst_300 = arith.constant dense<0.000000e+00> : vector<50x16xf32>
    %540 = tpu.matmul %537, %539, %cst_300 {dimension_numbers = #tpu.dot_dimension_numbers<[1], [0], [0], [1], [0, 0, 1, 1], [], []>} : vector<50x256xbf16>, vector<256x16xbf16>, vector<50x16xf32> -> vector<50x16xf32>
    %541 = arith.addf %527, %540 : vector<50x16xf32>
    %542 = arith.addf %427, %541 : vector<50x16xf32>
    %c1_301 = arith.constant 1 : index
    %c0_302 = arith.constant 0 : index
    %c0_303 = arith.constant 0 : index
    %543 = vector.load %arg14[%c1_301, %c0_302, %c0_303] : memref<2x1x16xf32, #tpu.memory_space<vmem>>, vector<1x1x16xf32>
    %544 = vector.shape_cast %543 : vector<1x1x16xf32> to vector<1x16xf32>
    %545 = vector.broadcast %544 : vector<1x16xf32> to vector<50x16xf32>
    %546 = arith.addf %542, %545 : vector<50x16xf32>
    %c1_304 = arith.constant 1 : index
    %c0_305 = arith.constant 0 : index
    %c0_306 = arith.constant 0 : index
    %547 = vector.load %arg15[%c1_304, %c0_305, %c0_306] : memref<2x1x16xf32, #tpu.memory_space<vmem>>, vector<1x1x16xf32>
    %548 = vector.shape_cast %547 : vector<1x1x16xf32> to vector<1x16xf32>
    %c1_307 = arith.constant 1 : index
    %c0_308 = arith.constant 0 : index
    %c0_309 = arith.constant 0 : index
    %549 = vector.load %arg16[%c1_307, %c0_308, %c0_309] : memref<2x1x16xf32, #tpu.memory_space<vmem>>, vector<1x1x16xf32>
    %550 = vector.shape_cast %549 : vector<1x1x16xf32> to vector<1x16xf32>
    %cst_310 = arith.constant dense<0.000000e+00> : vector<50xf32>
    %551 = vector.multi_reduction <add>, %546, %cst_310 [1] : vector<50x16xf32> to vector<50xf32>
    %552 = vector.shape_cast %551 : vector<50xf32> to vector<50x1xf32>
    %cst_311 = arith.constant 1.600000e+01 : f32
    %553 = vector.broadcast %cst_311 : f32 to vector<50x1xf32>
    %554 = arith.divf %552, %553 : vector<50x1xf32>
    %555 = vector.broadcast %554 : vector<50x1xf32> to vector<50x16xf32>
    %556 = arith.subf %546, %555 : vector<50x16xf32>
    %557 = arith.mulf %556, %556 : vector<50x16xf32>
    %cst_312 = arith.constant dense<0.000000e+00> : vector<50xf32>
    %558 = vector.multi_reduction <add>, %557, %cst_312 [1] : vector<50x16xf32> to vector<50xf32>
    %559 = vector.shape_cast %558 : vector<50xf32> to vector<50x1xf32>
    %cst_313 = arith.constant 1.600000e+01 : f32
    %560 = vector.broadcast %cst_313 : f32 to vector<50x1xf32>
    %561 = arith.divf %559, %560 : vector<50x1xf32>
    %562 = vector.broadcast %554 : vector<50x1xf32> to vector<50x16xf32>
    %563 = arith.subf %546, %562 : vector<50x16xf32>
    %cst_314 = arith.constant 9.99999974E-6 : f32
    %564 = vector.broadcast %cst_314 : f32 to vector<50x1xf32>
    %565 = arith.addf %561, %564 : vector<50x1xf32>
    %566 = math.rsqrt %565 : vector<50x1xf32>
    %567 = vector.broadcast %566 : vector<50x1xf32> to vector<50x16xf32>
    %568 = arith.mulf %563, %567 : vector<50x16xf32>
    %569 = vector.broadcast %548 : vector<1x16xf32> to vector<50x16xf32>
    %570 = arith.mulf %568, %569 : vector<50x16xf32>
    %571 = vector.broadcast %550 : vector<1x16xf32> to vector<50x16xf32>
    %572 = arith.addf %570, %571 : vector<50x16xf32>
    %c0_315 = arith.constant 0 : index
    %c0_316 = arith.constant 0 : index
    %573 = vector.load %arg17[%c0_315, %c0_316] : memref<10x16xf32, #tpu.memory_space<vmem>>, vector<10x16xf32>
    %c0_317 = arith.constant 0 : index
    %c0_318 = arith.constant 0 : index
    %c0_319 = arith.constant 0 : index
    %574 = vector.load %arg2[%c0_317, %c0_318, %c0_319] : memref<1x1x16xf32, #tpu.memory_space<vmem>>, vector<1x1x16xf32>
    %575 = vector.shape_cast %574 : vector<1x1x16xf32> to vector<1x16xf32>
    %c0_320 = arith.constant 0 : index
    %c0_321 = arith.constant 0 : index
    %576 = vector.load %arg18[%c0_320, %c0_321] : memref<1600x32xbf16, #tpu.memory_space<vmem>>, vector<1600x32xbf16>
    %c0_322 = arith.constant 0 : index
    %c0_323 = arith.constant 0 : index
    %577 = vector.load %arg19[%c0_322, %c0_323] : memref<1x32xf32, #tpu.memory_space<vmem>>, vector<1x32xf32>
    %c0_324 = arith.constant 0 : index
    %c0_325 = arith.constant 0 : index
    %578 = vector.load %arg20[%c0_324, %c0_325] : memref<16x150xbf16, #tpu.memory_space<vmem>>, vector<16x150xbf16>
    %c0_326 = arith.constant 0 : index
    %c0_327 = arith.constant 0 : index
    %579 = vector.load %arg21[%c0_326, %c0_327] : memref<1x150xf32, #tpu.memory_space<vmem>>, vector<1x150xf32>
    %c0_328 = arith.constant 0 : index
    %c0_329 = arith.constant 0 : index
    %580 = vector.load %arg22[%c0_328, %c0_329] : memref<150x150xbf16, #tpu.memory_space<vmem>>, vector<150x150xbf16>
    %c0_330 = arith.constant 0 : index
    %c0_331 = arith.constant 0 : index
    %581 = vector.load %arg23[%c0_330, %c0_331] : memref<1x150xf32, #tpu.memory_space<vmem>>, vector<1x150xf32>
    %cst_332 = arith.constant dense<0.000000e+00> : vector<50x10xf32>
    %582 = tpu.matmul %572, %573, %cst_332 {dimension_numbers = #tpu.dot_dimension_numbers<[1], [1], [0], [0], [0, 0, 1, 0], [], []>} : vector<50x16xf32>, vector<10x16xf32>, vector<50x10xf32> -> vector<50x10xf32>
    %cst_333 = arith.constant 1.000000e+01 : f32
    %583 = vector.broadcast %cst_333 : f32 to vector<50x10xf32>
    %584 = arith.mulf %582, %583 : vector<50x10xf32>
    %cst_334 = arith.constant dense<0xFF800000> : vector<50xf32>
    %585 = vector.multi_reduction <maximumf>, %584, %cst_334 [1] : vector<50x10xf32> to vector<50xf32>
    %586 = vector.shape_cast %585 : vector<50xf32> to vector<50x1xf32>
    %587 = vector.broadcast %586 : vector<50x1xf32> to vector<50x10xf32>
    %588 = arith.subf %584, %587 : vector<50x10xf32>
    %589 = math.exp %588 : vector<50x10xf32>
    %cst_335 = arith.constant dense<0.000000e+00> : vector<50xf32>
    %590 = vector.multi_reduction <add>, %589, %cst_335 [1] : vector<50x10xf32> to vector<50xf32>
    %591 = vector.shape_cast %590 : vector<50xf32> to vector<50x1xf32>
    %592 = vector.broadcast %591 : vector<50x1xf32> to vector<50x10xf32>
    %593 = arith.divf %589, %592 : vector<50x10xf32>
    %cst_336 = arith.constant dense<0.000000e+00> : vector<50x16xf32>
    %594 = tpu.matmul %593, %573, %cst_336 {dimension_numbers = #tpu.dot_dimension_numbers<[1], [0], [0], [1], [0, 0, 1, 1], [], []>} : vector<50x10xf32>, vector<10x16xf32>, vector<50x16xf32> -> vector<50x16xf32>
    %595 = tpu.concatenate %572, %594 in 1 : vector<50x16xf32>, vector<50x16xf32> -> vector<50x32xf32>
    %596 = vector.extract_strided_slice %595 {offsets = [0, 0], sizes = [1, 32], strides = [1, 1]} : vector<50x32xf32> to vector<1x32xf32>
    %c0_337 = arith.constant 0 : index
    %c0_338 = arith.constant 0 : index
    %597 = vector.load %arg26[%c0_337, %c0_338] : memref<1x1600xf32, #tpu.memory_space<vmem>>, vector<1x32xf32>
    tpu.vector_store %arg26[%c0_337, %c0_338], %596 {strides = array<i32>} : memref<1x1600xf32, #tpu.memory_space<vmem>>, vector<1x32xf32>,
    %598 = vector.extract_strided_slice %595 {offsets = [1, 0], sizes = [1, 32], strides = [1, 1]} : vector<50x32xf32> to vector<1x32xf32>
    %c0_339 = arith.constant 0 : index
    %c32 = arith.constant 32 : index
    %599 = vector.load %arg26[%c0_339, %c32] : memref<1x1600xf32, #tpu.memory_space<vmem>>, vector<1x32xf32>
    tpu.vector_store %arg26[%c0_339, %c32], %598 {strides = array<i32>} : memref<1x1600xf32, #tpu.memory_space<vmem>>, vector<1x32xf32>,
    %600 = vector.extract_strided_slice %595 {offsets = [2, 0], sizes = [1, 32], strides = [1, 1]} : vector<50x32xf32> to vector<1x32xf32>
    %c0_340 = arith.constant 0 : index
    %c64 = arith.constant 64 : index
    %601 = vector.load %arg26[%c0_340, %c64] : memref<1x1600xf32, #tpu.memory_space<vmem>>, vector<1x32xf32>
    tpu.vector_store %arg26[%c0_340, %c64], %600 {strides = array<i32>} : memref<1x1600xf32, #tpu.memory_space<vmem>>, vector<1x32xf32>,
    %602 = vector.extract_strided_slice %595 {offsets = [3, 0], sizes = [1, 32], strides = [1, 1]} : vector<50x32xf32> to vector<1x32xf32>
    %c0_341 = arith.constant 0 : index
    %c96 = arith.constant 96 : index
    %603 = vector.load %arg26[%c0_341, %c96] : memref<1x1600xf32, #tpu.memory_space<vmem>>, vector<1x32xf32>
    tpu.vector_store %arg26[%c0_341, %c96], %602 {strides = array<i32>} : memref<1x1600xf32, #tpu.memory_space<vmem>>, vector<1x32xf32>,
    %604 = vector.extract_strided_slice %595 {offsets = [4, 0], sizes = [1, 32], strides = [1, 1]} : vector<50x32xf32> to vector<1x32xf32>
    %c0_342 = arith.constant 0 : index
    %c128 = arith.constant 128 : index
    %605 = vector.load %arg26[%c0_342, %c128] : memref<1x1600xf32, #tpu.memory_space<vmem>>, vector<1x32xf32>
    tpu.vector_store %arg26[%c0_342, %c128], %604 {strides = array<i32>} : memref<1x1600xf32, #tpu.memory_space<vmem>>, vector<1x32xf32>,
    %606 = vector.extract_strided_slice %595 {offsets = [5, 0], sizes = [1, 32], strides = [1, 1]} : vector<50x32xf32> to vector<1x32xf32>
    %c0_343 = arith.constant 0 : index
    %c160 = arith.constant 160 : index
    %607 = vector.load %arg26[%c0_343, %c160] : memref<1x1600xf32, #tpu.memory_space<vmem>>, vector<1x32xf32>
    tpu.vector_store %arg26[%c0_343, %c160], %606 {strides = array<i32>} : memref<1x1600xf32, #tpu.memory_space<vmem>>, vector<1x32xf32>,
    %608 = vector.extract_strided_slice %595 {offsets = [6, 0], sizes = [1, 32], strides = [1, 1]} : vector<50x32xf32> to vector<1x32xf32>
    %c0_344 = arith.constant 0 : index
    %c192 = arith.constant 192 : index
    %609 = vector.load %arg26[%c0_344, %c192] : memref<1x1600xf32, #tpu.memory_space<vmem>>, vector<1x32xf32>
    tpu.vector_store %arg26[%c0_344, %c192], %608 {strides = array<i32>} : memref<1x1600xf32, #tpu.memory_space<vmem>>, vector<1x32xf32>,
    %610 = vector.extract_strided_slice %595 {offsets = [7, 0], sizes = [1, 32], strides = [1, 1]} : vector<50x32xf32> to vector<1x32xf32>
    %c0_345 = arith.constant 0 : index
    %c224 = arith.constant 224 : index
    %611 = vector.load %arg26[%c0_345, %c224] : memref<1x1600xf32, #tpu.memory_space<vmem>>, vector<1x32xf32>
    tpu.vector_store %arg26[%c0_345, %c224], %610 {strides = array<i32>} : memref<1x1600xf32, #tpu.memory_space<vmem>>, vector<1x32xf32>,
    %612 = vector.extract_strided_slice %595 {offsets = [8, 0], sizes = [1, 32], strides = [1, 1]} : vector<50x32xf32> to vector<1x32xf32>
    %c0_346 = arith.constant 0 : index
    %c256_347 = arith.constant 256 : index
    %613 = vector.load %arg26[%c0_346, %c256_347] : memref<1x1600xf32, #tpu.memory_space<vmem>>, vector<1x32xf32>
    tpu.vector_store %arg26[%c0_346, %c256_347], %612 {strides = array<i32>} : memref<1x1600xf32, #tpu.memory_space<vmem>>, vector<1x32xf32>,
    %614 = vector.extract_strided_slice %595 {offsets = [9, 0], sizes = [1, 32], strides = [1, 1]} : vector<50x32xf32> to vector<1x32xf32>
    %c0_348 = arith.constant 0 : index
    %c288 = arith.constant 288 : index
    %615 = vector.load %arg26[%c0_348, %c288] : memref<1x1600xf32, #tpu.memory_space<vmem>>, vector<1x32xf32>
    tpu.vector_store %arg26[%c0_348, %c288], %614 {strides = array<i32>} : memref<1x1600xf32, #tpu.memory_space<vmem>>, vector<1x32xf32>,
    %616 = vector.extract_strided_slice %595 {offsets = [10, 0], sizes = [1, 32], strides = [1, 1]} : vector<50x32xf32> to vector<1x32xf32>
    %c0_349 = arith.constant 0 : index
    %c320 = arith.constant 320 : index
    %617 = vector.load %arg26[%c0_349, %c320] : memref<1x1600xf32, #tpu.memory_space<vmem>>, vector<1x32xf32>
    tpu.vector_store %arg26[%c0_349, %c320], %616 {strides = array<i32>} : memref<1x1600xf32, #tpu.memory_space<vmem>>, vector<1x32xf32>,
    %618 = vector.extract_strided_slice %595 {offsets = [11, 0], sizes = [1, 32], strides = [1, 1]} : vector<50x32xf32> to vector<1x32xf32>
    %c0_350 = arith.constant 0 : index
    %c352 = arith.constant 352 : index
    %619 = vector.load %arg26[%c0_350, %c352] : memref<1x1600xf32, #tpu.memory_space<vmem>>, vector<1x32xf32>
    tpu.vector_store %arg26[%c0_350, %c352], %618 {strides = array<i32>} : memref<1x1600xf32, #tpu.memory_space<vmem>>, vector<1x32xf32>,
    %620 = vector.extract_strided_slice %595 {offsets = [12, 0], sizes = [1, 32], strides = [1, 1]} : vector<50x32xf32> to vector<1x32xf32>
    %c0_351 = arith.constant 0 : index
    %c384 = arith.constant 384 : index
    %621 = vector.load %arg26[%c0_351, %c384] : memref<1x1600xf32, #tpu.memory_space<vmem>>, vector<1x32xf32>
    tpu.vector_store %arg26[%c0_351, %c384], %620 {strides = array<i32>} : memref<1x1600xf32, #tpu.memory_space<vmem>>, vector<1x32xf32>,
    %622 = vector.extract_strided_slice %595 {offsets = [13, 0], sizes = [1, 32], strides = [1, 1]} : vector<50x32xf32> to vector<1x32xf32>
    %c0_352 = arith.constant 0 : index
    %c416 = arith.constant 416 : index
    %623 = vector.load %arg26[%c0_352, %c416] : memref<1x1600xf32, #tpu.memory_space<vmem>>, vector<1x32xf32>
    tpu.vector_store %arg26[%c0_352, %c416], %622 {strides = array<i32>} : memref<1x1600xf32, #tpu.memory_space<vmem>>, vector<1x32xf32>,
    %624 = vector.extract_strided_slice %595 {offsets = [14, 0], sizes = [1, 32], strides = [1, 1]} : vector<50x32xf32> to vector<1x32xf32>
    %c0_353 = arith.constant 0 : index
    %c448 = arith.constant 448 : index
    %625 = vector.load %arg26[%c0_353, %c448] : memref<1x1600xf32, #tpu.memory_space<vmem>>, vector<1x32xf32>
    tpu.vector_store %arg26[%c0_353, %c448], %624 {strides = array<i32>} : memref<1x1600xf32, #tpu.memory_space<vmem>>, vector<1x32xf32>,
    %626 = vector.extract_strided_slice %595 {offsets = [15, 0], sizes = [1, 32], strides = [1, 1]} : vector<50x32xf32> to vector<1x32xf32>
    %c0_354 = arith.constant 0 : index
    %c480 = arith.constant 480 : index
    %627 = vector.load %arg26[%c0_354, %c480] : memref<1x1600xf32, #tpu.memory_space<vmem>>, vector<1x32xf32>
    tpu.vector_store %arg26[%c0_354, %c480], %626 {strides = array<i32>} : memref<1x1600xf32, #tpu.memory_space<vmem>>, vector<1x32xf32>,
    %628 = vector.extract_strided_slice %595 {offsets = [16, 0], sizes = [1, 32], strides = [1, 1]} : vector<50x32xf32> to vector<1x32xf32>
    %c0_355 = arith.constant 0 : index
    %c512_356 = arith.constant 512 : index
    %629 = vector.load %arg26[%c0_355, %c512_356] : memref<1x1600xf32, #tpu.memory_space<vmem>>, vector<1x32xf32>
    tpu.vector_store %arg26[%c0_355, %c512_356], %628 {strides = array<i32>} : memref<1x1600xf32, #tpu.memory_space<vmem>>, vector<1x32xf32>,
    %630 = vector.extract_strided_slice %595 {offsets = [17, 0], sizes = [1, 32], strides = [1, 1]} : vector<50x32xf32> to vector<1x32xf32>
    %c0_357 = arith.constant 0 : index
    %c544 = arith.constant 544 : index
    %631 = vector.load %arg26[%c0_357, %c544] : memref<1x1600xf32, #tpu.memory_space<vmem>>, vector<1x32xf32>
    tpu.vector_store %arg26[%c0_357, %c544], %630 {strides = array<i32>} : memref<1x1600xf32, #tpu.memory_space<vmem>>, vector<1x32xf32>,
    %632 = vector.extract_strided_slice %595 {offsets = [18, 0], sizes = [1, 32], strides = [1, 1]} : vector<50x32xf32> to vector<1x32xf32>
    %c0_358 = arith.constant 0 : index
    %c576 = arith.constant 576 : index
    %633 = vector.load %arg26[%c0_358, %c576] : memref<1x1600xf32, #tpu.memory_space<vmem>>, vector<1x32xf32>
    tpu.vector_store %arg26[%c0_358, %c576], %632 {strides = array<i32>} : memref<1x1600xf32, #tpu.memory_space<vmem>>, vector<1x32xf32>,
    %634 = vector.extract_strided_slice %595 {offsets = [19, 0], sizes = [1, 32], strides = [1, 1]} : vector<50x32xf32> to vector<1x32xf32>
    %c0_359 = arith.constant 0 : index
    %c608 = arith.constant 608 : index
    %635 = vector.load %arg26[%c0_359, %c608] : memref<1x1600xf32, #tpu.memory_space<vmem>>, vector<1x32xf32>
    tpu.vector_store %arg26[%c0_359, %c608], %634 {strides = array<i32>} : memref<1x1600xf32, #tpu.memory_space<vmem>>, vector<1x32xf32>,
    %636 = vector.extract_strided_slice %595 {offsets = [20, 0], sizes = [1, 32], strides = [1, 1]} : vector<50x32xf32> to vector<1x32xf32>
    %c0_360 = arith.constant 0 : index
    %c640 = arith.constant 640 : index
    %637 = vector.load %arg26[%c0_360, %c640] : memref<1x1600xf32, #tpu.memory_space<vmem>>, vector<1x32xf32>
    tpu.vector_store %arg26[%c0_360, %c640], %636 {strides = array<i32>} : memref<1x1600xf32, #tpu.memory_space<vmem>>, vector<1x32xf32>,
    %638 = vector.extract_strided_slice %595 {offsets = [21, 0], sizes = [1, 32], strides = [1, 1]} : vector<50x32xf32> to vector<1x32xf32>
    %c0_361 = arith.constant 0 : index
    %c672 = arith.constant 672 : index
    %639 = vector.load %arg26[%c0_361, %c672] : memref<1x1600xf32, #tpu.memory_space<vmem>>, vector<1x32xf32>
    tpu.vector_store %arg26[%c0_361, %c672], %638 {strides = array<i32>} : memref<1x1600xf32, #tpu.memory_space<vmem>>, vector<1x32xf32>,
    %640 = vector.extract_strided_slice %595 {offsets = [22, 0], sizes = [1, 32], strides = [1, 1]} : vector<50x32xf32> to vector<1x32xf32>
    %c0_362 = arith.constant 0 : index
    %c704 = arith.constant 704 : index
    %641 = vector.load %arg26[%c0_362, %c704] : memref<1x1600xf32, #tpu.memory_space<vmem>>, vector<1x32xf32>
    tpu.vector_store %arg26[%c0_362, %c704], %640 {strides = array<i32>} : memref<1x1600xf32, #tpu.memory_space<vmem>>, vector<1x32xf32>,
    %642 = vector.extract_strided_slice %595 {offsets = [23, 0], sizes = [1, 32], strides = [1, 1]} : vector<50x32xf32> to vector<1x32xf32>
    %c0_363 = arith.constant 0 : index
    %c736 = arith.constant 736 : index
    %643 = vector.load %arg26[%c0_363, %c736] : memref<1x1600xf32, #tpu.memory_space<vmem>>, vector<1x32xf32>
    tpu.vector_store %arg26[%c0_363, %c736], %642 {strides = array<i32>} : memref<1x1600xf32, #tpu.memory_space<vmem>>, vector<1x32xf32>,
    %644 = vector.extract_strided_slice %595 {offsets = [24, 0], sizes = [1, 32], strides = [1, 1]} : vector<50x32xf32> to vector<1x32xf32>
    %c0_364 = arith.constant 0 : index
    %c768_365 = arith.constant 768 : index
    %645 = vector.load %arg26[%c0_364, %c768_365] : memref<1x1600xf32, #tpu.memory_space<vmem>>, vector<1x32xf32>
    tpu.vector_store %arg26[%c0_364, %c768_365], %644 {strides = array<i32>} : memref<1x1600xf32, #tpu.memory_space<vmem>>, vector<1x32xf32>,
    %646 = vector.extract_strided_slice %595 {offsets = [25, 0], sizes = [1, 32], strides = [1, 1]} : vector<50x32xf32> to vector<1x32xf32>
    %c0_366 = arith.constant 0 : index
    %c800 = arith.constant 800 : index
    %647 = vector.load %arg26[%c0_366, %c800] : memref<1x1600xf32, #tpu.memory_space<vmem>>, vector<1x32xf32>
    tpu.vector_store %arg26[%c0_366, %c800], %646 {strides = array<i32>} : memref<1x1600xf32, #tpu.memory_space<vmem>>, vector<1x32xf32>,
    %648 = vector.extract_strided_slice %595 {offsets = [26, 0], sizes = [1, 32], strides = [1, 1]} : vector<50x32xf32> to vector<1x32xf32>
    %c0_367 = arith.constant 0 : index
    %c832 = arith.constant 832 : index
    %649 = vector.load %arg26[%c0_367, %c832] : memref<1x1600xf32, #tpu.memory_space<vmem>>, vector<1x32xf32>
    tpu.vector_store %arg26[%c0_367, %c832], %648 {strides = array<i32>} : memref<1x1600xf32, #tpu.memory_space<vmem>>, vector<1x32xf32>,
    %650 = vector.extract_strided_slice %595 {offsets = [27, 0], sizes = [1, 32], strides = [1, 1]} : vector<50x32xf32> to vector<1x32xf32>
    %c0_368 = arith.constant 0 : index
    %c864 = arith.constant 864 : index
    %651 = vector.load %arg26[%c0_368, %c864] : memref<1x1600xf32, #tpu.memory_space<vmem>>, vector<1x32xf32>
    tpu.vector_store %arg26[%c0_368, %c864], %650 {strides = array<i32>} : memref<1x1600xf32, #tpu.memory_space<vmem>>, vector<1x32xf32>,
    %652 = vector.extract_strided_slice %595 {offsets = [28, 0], sizes = [1, 32], strides = [1, 1]} : vector<50x32xf32> to vector<1x32xf32>
    %c0_369 = arith.constant 0 : index
    %c896 = arith.constant 896 : index
    %653 = vector.load %arg26[%c0_369, %c896] : memref<1x1600xf32, #tpu.memory_space<vmem>>, vector<1x32xf32>
    tpu.vector_store %arg26[%c0_369, %c896], %652 {strides = array<i32>} : memref<1x1600xf32, #tpu.memory_space<vmem>>, vector<1x32xf32>,
    %654 = vector.extract_strided_slice %595 {offsets = [29, 0], sizes = [1, 32], strides = [1, 1]} : vector<50x32xf32> to vector<1x32xf32>
    %c0_370 = arith.constant 0 : index
    %c928 = arith.constant 928 : index
    %655 = vector.load %arg26[%c0_370, %c928] : memref<1x1600xf32, #tpu.memory_space<vmem>>, vector<1x32xf32>
    tpu.vector_store %arg26[%c0_370, %c928], %654 {strides = array<i32>} : memref<1x1600xf32, #tpu.memory_space<vmem>>, vector<1x32xf32>,
    %656 = vector.extract_strided_slice %595 {offsets = [30, 0], sizes = [1, 32], strides = [1, 1]} : vector<50x32xf32> to vector<1x32xf32>
    %c0_371 = arith.constant 0 : index
    %c960 = arith.constant 960 : index
    %657 = vector.load %arg26[%c0_371, %c960] : memref<1x1600xf32, #tpu.memory_space<vmem>>, vector<1x32xf32>
    tpu.vector_store %arg26[%c0_371, %c960], %656 {strides = array<i32>} : memref<1x1600xf32, #tpu.memory_space<vmem>>, vector<1x32xf32>,
    %658 = vector.extract_strided_slice %595 {offsets = [31, 0], sizes = [1, 32], strides = [1, 1]} : vector<50x32xf32> to vector<1x32xf32>
    %c0_372 = arith.constant 0 : index
    %c992 = arith.constant 992 : index
    %659 = vector.load %arg26[%c0_372, %c992] : memref<1x1600xf32, #tpu.memory_space<vmem>>, vector<1x32xf32>
    tpu.vector_store %arg26[%c0_372, %c992], %658 {strides = array<i32>} : memref<1x1600xf32, #tpu.memory_space<vmem>>, vector<1x32xf32>,
    %660 = vector.extract_strided_slice %595 {offsets = [32, 0], sizes = [1, 32], strides = [1, 1]} : vector<50x32xf32> to vector<1x32xf32>
    %c0_373 = arith.constant 0 : index
    %c1024_374 = arith.constant 1024 : index
    %661 = vector.load %arg26[%c0_373, %c1024_374] : memref<1x1600xf32, #tpu.memory_space<vmem>>, vector<1x32xf32>
    tpu.vector_store %arg26[%c0_373, %c1024_374], %660 {strides = array<i32>} : memref<1x1600xf32, #tpu.memory_space<vmem>>, vector<1x32xf32>,
    %662 = vector.extract_strided_slice %595 {offsets = [33, 0], sizes = [1, 32], strides = [1, 1]} : vector<50x32xf32> to vector<1x32xf32>
    %c0_375 = arith.constant 0 : index
    %c1056 = arith.constant 1056 : index
    %663 = vector.load %arg26[%c0_375, %c1056] : memref<1x1600xf32, #tpu.memory_space<vmem>>, vector<1x32xf32>
    tpu.vector_store %arg26[%c0_375, %c1056], %662 {strides = array<i32>} : memref<1x1600xf32, #tpu.memory_space<vmem>>, vector<1x32xf32>,
    %664 = vector.extract_strided_slice %595 {offsets = [34, 0], sizes = [1, 32], strides = [1, 1]} : vector<50x32xf32> to vector<1x32xf32>
    %c0_376 = arith.constant 0 : index
    %c1088 = arith.constant 1088 : index
    %665 = vector.load %arg26[%c0_376, %c1088] : memref<1x1600xf32, #tpu.memory_space<vmem>>, vector<1x32xf32>
    tpu.vector_store %arg26[%c0_376, %c1088], %664 {strides = array<i32>} : memref<1x1600xf32, #tpu.memory_space<vmem>>, vector<1x32xf32>,
    %666 = vector.extract_strided_slice %595 {offsets = [35, 0], sizes = [1, 32], strides = [1, 1]} : vector<50x32xf32> to vector<1x32xf32>
    %c0_377 = arith.constant 0 : index
    %c1120 = arith.constant 1120 : index
    %667 = vector.load %arg26[%c0_377, %c1120] : memref<1x1600xf32, #tpu.memory_space<vmem>>, vector<1x32xf32>
    tpu.vector_store %arg26[%c0_377, %c1120], %666 {strides = array<i32>} : memref<1x1600xf32, #tpu.memory_space<vmem>>, vector<1x32xf32>,
    %668 = vector.extract_strided_slice %595 {offsets = [36, 0], sizes = [1, 32], strides = [1, 1]} : vector<50x32xf32> to vector<1x32xf32>
    %c0_378 = arith.constant 0 : index
    %c1152 = arith.constant 1152 : index
    %669 = vector.load %arg26[%c0_378, %c1152] : memref<1x1600xf32, #tpu.memory_space<vmem>>, vector<1x32xf32>
    tpu.vector_store %arg26[%c0_378, %c1152], %668 {strides = array<i32>} : memref<1x1600xf32, #tpu.memory_space<vmem>>, vector<1x32xf32>,
    %670 = vector.extract_strided_slice %595 {offsets = [37, 0], sizes = [1, 32], strides = [1, 1]} : vector<50x32xf32> to vector<1x32xf32>
    %c0_379 = arith.constant 0 : index
    %c1184 = arith.constant 1184 : index
    %671 = vector.load %arg26[%c0_379, %c1184] : memref<1x1600xf32, #tpu.memory_space<vmem>>, vector<1x32xf32>
    tpu.vector_store %arg26[%c0_379, %c1184], %670 {strides = array<i32>} : memref<1x1600xf32, #tpu.memory_space<vmem>>, vector<1x32xf32>,
    %672 = vector.extract_strided_slice %595 {offsets = [38, 0], sizes = [1, 32], strides = [1, 1]} : vector<50x32xf32> to vector<1x32xf32>
    %c0_380 = arith.constant 0 : index
    %c1216 = arith.constant 1216 : index
    %673 = vector.load %arg26[%c0_380, %c1216] : memref<1x1600xf32, #tpu.memory_space<vmem>>, vector<1x32xf32>
    tpu.vector_store %arg26[%c0_380, %c1216], %672 {strides = array<i32>} : memref<1x1600xf32, #tpu.memory_space<vmem>>, vector<1x32xf32>,
    %674 = vector.extract_strided_slice %595 {offsets = [39, 0], sizes = [1, 32], strides = [1, 1]} : vector<50x32xf32> to vector<1x32xf32>
    %c0_381 = arith.constant 0 : index
    %c1248 = arith.constant 1248 : index
    %675 = vector.load %arg26[%c0_381, %c1248] : memref<1x1600xf32, #tpu.memory_space<vmem>>, vector<1x32xf32>
    tpu.vector_store %arg26[%c0_381, %c1248], %674 {strides = array<i32>} : memref<1x1600xf32, #tpu.memory_space<vmem>>, vector<1x32xf32>,
    %676 = vector.extract_strided_slice %595 {offsets = [40, 0], sizes = [1, 32], strides = [1, 1]} : vector<50x32xf32> to vector<1x32xf32>
    %c0_382 = arith.constant 0 : index
    %c1280_383 = arith.constant 1280 : index
    %677 = vector.load %arg26[%c0_382, %c1280_383] : memref<1x1600xf32, #tpu.memory_space<vmem>>, vector<1x32xf32>
    tpu.vector_store %arg26[%c0_382, %c1280_383], %676 {strides = array<i32>} : memref<1x1600xf32, #tpu.memory_space<vmem>>, vector<1x32xf32>,
    %678 = vector.extract_strided_slice %595 {offsets = [41, 0], sizes = [1, 32], strides = [1, 1]} : vector<50x32xf32> to vector<1x32xf32>
    %c0_384 = arith.constant 0 : index
    %c1312 = arith.constant 1312 : index
    %679 = vector.load %arg26[%c0_384, %c1312] : memref<1x1600xf32, #tpu.memory_space<vmem>>, vector<1x32xf32>
    tpu.vector_store %arg26[%c0_384, %c1312], %678 {strides = array<i32>} : memref<1x1600xf32, #tpu.memory_space<vmem>>, vector<1x32xf32>,
    %680 = vector.extract_strided_slice %595 {offsets = [42, 0], sizes = [1, 32], strides = [1, 1]} : vector<50x32xf32> to vector<1x32xf32>
    %c0_385 = arith.constant 0 : index
    %c1344 = arith.constant 1344 : index
    %681 = vector.load %arg26[%c0_385, %c1344] : memref<1x1600xf32, #tpu.memory_space<vmem>>, vector<1x32xf32>
    tpu.vector_store %arg26[%c0_385, %c1344], %680 {strides = array<i32>} : memref<1x1600xf32, #tpu.memory_space<vmem>>, vector<1x32xf32>,
    %682 = vector.extract_strided_slice %595 {offsets = [43, 0], sizes = [1, 32], strides = [1, 1]} : vector<50x32xf32> to vector<1x32xf32>
    %c0_386 = arith.constant 0 : index
    %c1376 = arith.constant 1376 : index
    %683 = vector.load %arg26[%c0_386, %c1376] : memref<1x1600xf32, #tpu.memory_space<vmem>>, vector<1x32xf32>
    tpu.vector_store %arg26[%c0_386, %c1376], %682 {strides = array<i32>} : memref<1x1600xf32, #tpu.memory_space<vmem>>, vector<1x32xf32>,
    %684 = vector.extract_strided_slice %595 {offsets = [44, 0], sizes = [1, 32], strides = [1, 1]} : vector<50x32xf32> to vector<1x32xf32>
    %c0_387 = arith.constant 0 : index
    %c1408 = arith.constant 1408 : index
    %685 = vector.load %arg26[%c0_387, %c1408] : memref<1x1600xf32, #tpu.memory_space<vmem>>, vector<1x32xf32>
    tpu.vector_store %arg26[%c0_387, %c1408], %684 {strides = array<i32>} : memref<1x1600xf32, #tpu.memory_space<vmem>>, vector<1x32xf32>,
    %686 = vector.extract_strided_slice %595 {offsets = [45, 0], sizes = [1, 32], strides = [1, 1]} : vector<50x32xf32> to vector<1x32xf32>
    %c0_388 = arith.constant 0 : index
    %c1440 = arith.constant 1440 : index
    %687 = vector.load %arg26[%c0_388, %c1440] : memref<1x1600xf32, #tpu.memory_space<vmem>>, vector<1x32xf32>
    tpu.vector_store %arg26[%c0_388, %c1440], %686 {strides = array<i32>} : memref<1x1600xf32, #tpu.memory_space<vmem>>, vector<1x32xf32>,
    %688 = vector.extract_strided_slice %595 {offsets = [46, 0], sizes = [1, 32], strides = [1, 1]} : vector<50x32xf32> to vector<1x32xf32>
    %c0_389 = arith.constant 0 : index
    %c1472 = arith.constant 1472 : index
    %689 = vector.load %arg26[%c0_389, %c1472] : memref<1x1600xf32, #tpu.memory_space<vmem>>, vector<1x32xf32>
    tpu.vector_store %arg26[%c0_389, %c1472], %688 {strides = array<i32>} : memref<1x1600xf32, #tpu.memory_space<vmem>>, vector<1x32xf32>,
    %690 = vector.extract_strided_slice %595 {offsets = [47, 0], sizes = [1, 32], strides = [1, 1]} : vector<50x32xf32> to vector<1x32xf32>
    %c0_390 = arith.constant 0 : index
    %c1504 = arith.constant 1504 : index
    %691 = vector.load %arg26[%c0_390, %c1504] : memref<1x1600xf32, #tpu.memory_space<vmem>>, vector<1x32xf32>
    tpu.vector_store %arg26[%c0_390, %c1504], %690 {strides = array<i32>} : memref<1x1600xf32, #tpu.memory_space<vmem>>, vector<1x32xf32>,
    %692 = vector.extract_strided_slice %595 {offsets = [48, 0], sizes = [1, 32], strides = [1, 1]} : vector<50x32xf32> to vector<1x32xf32>
    %c0_391 = arith.constant 0 : index
    %c1536_392 = arith.constant 1536 : index
    %693 = vector.load %arg26[%c0_391, %c1536_392] : memref<1x1600xf32, #tpu.memory_space<vmem>>, vector<1x32xf32>
    tpu.vector_store %arg26[%c0_391, %c1536_392], %692 {strides = array<i32>} : memref<1x1600xf32, #tpu.memory_space<vmem>>, vector<1x32xf32>,
    %694 = vector.extract_strided_slice %595 {offsets = [49, 0], sizes = [1, 32], strides = [1, 1]} : vector<50x32xf32> to vector<1x32xf32>
    %c0_393 = arith.constant 0 : index
    %c1568 = arith.constant 1568 : index
    %695 = vector.load %arg26[%c0_393, %c1568] : memref<1x1600xf32, #tpu.memory_space<vmem>>, vector<1x32xf32>
    tpu.vector_store %arg26[%c0_393, %c1568], %694 {strides = array<i32>} : memref<1x1600xf32, #tpu.memory_space<vmem>>, vector<1x32xf32>,
    %c0_394 = arith.constant 0 : index
    %c0_395 = arith.constant 0 : index
    %696 = vector.load %arg26[%c0_394, %c0_395] : memref<1x1600xf32, #tpu.memory_space<vmem>>, vector<1x1600xf32>
    %697 = arith.truncf %696 : vector<1x1600xf32> to vector<1x1600xbf16>
    %cst_396 = arith.constant dense<0.000000e+00> : vector<1x32xf32>
    %698 = tpu.matmul %697, %576, %cst_396 {dimension_numbers = #tpu.dot_dimension_numbers<[1], [0], [0], [1], [0, 0, 1, 1], [], []>} : vector<1x1600xbf16>, vector<1600x32xbf16>, vector<1x32xf32> -> vector<1x32xf32>
    %699 = arith.addf %698, %577 : vector<1x32xf32>
    %700 = vector.extract_strided_slice %699 {offsets = [0, 0], sizes = [1, 16], strides = [1, 1]} : vector<1x32xf32> to vector<1x16xf32>
    %701 = vector.extract_strided_slice %699 {offsets = [0, 16], sizes = [1, 16], strides = [1, 1]} : vector<1x32xf32> to vector<1x16xf32>
    %cst_397 = arith.constant 5.000000e-01 : f32
    %702 = vector.broadcast %cst_397 : f32 to vector<1x16xf32>
    %703 = arith.mulf %702, %701 : vector<1x16xf32>
    %704 = math.exp %703 : vector<1x16xf32>
    %705 = arith.mulf %575, %704 : vector<1x16xf32>
    %706 = arith.addf %700, %705 : vector<1x16xf32>
    %707 = arith.truncf %706 : vector<1x16xf32> to vector<1x16xbf16>
    %cst_398 = arith.constant dense<0.000000e+00> : vector<1x150xf32>
    %708 = tpu.matmul %707, %578, %cst_398 {dimension_numbers = #tpu.dot_dimension_numbers<[1], [0], [0], [1], [0, 0, 1, 1], [], []>} : vector<1x16xbf16>, vector<16x150xbf16>, vector<1x150xf32> -> vector<1x150xf32>
    %709 = arith.addf %708, %579 : vector<1x150xf32>
    %cst_399 = arith.constant 0.000000e+00 : f32
    %710 = vector.broadcast %cst_399 : f32 to vector<1x150xf32>
    %711 = arith.maximumf %709, %710 : vector<1x150xf32>
    %712 = arith.truncf %711 : vector<1x150xf32> to vector<1x150xbf16>
    %cst_400 = arith.constant dense<0.000000e+00> : vector<1x150xf32>
    %713 = tpu.matmul %712, %580, %cst_400 {dimension_numbers = #tpu.dot_dimension_numbers<[1], [0], [0], [1], [0, 0, 1, 1], [], []>} : vector<1x150xbf16>, vector<150x150xbf16>, vector<1x150xf32> -> vector<1x150xf32>
    %714 = arith.addf %713, %581 : vector<1x150xf32>
    %cst_401 = arith.constant 0.000000e+00 : f32
    %715 = vector.broadcast %cst_401 : f32 to vector<1x74xf32>
    %716 = tpu.concatenate %700, %701, %714, %715 in 1 : vector<1x16xf32>, vector<1x16xf32>, vector<1x150xf32>, vector<1x74xf32> -> vector<1x256xf32>
    %c0_402 = arith.constant 0 : index
    %c0_403 = arith.constant 0 : index
    %c0_404 = arith.constant 0 : index
    %717 = vector.load %arg24[%c0_402, %c0_403, %c0_404] : memref<1x50x10xf32, #tpu.memory_space<vmem>>, vector<1x50x10xf32>
    %718 = vector.shape_cast %717 : vector<1x50x10xf32> to vector<50x10xf32>
    %719 = vector.shape_cast %593 : vector<50x10xf32> to vector<1x50x10xf32>
    tpu.vector_store %arg24[%c0_402, %c0_403, %c0_404], %719 {strides = array<i32>} : memref<1x50x10xf32, #tpu.memory_space<vmem>>, vector<1x50x10xf32>,
    %c0_405 = arith.constant 0 : index
    %c0_406 = arith.constant 0 : index
    %c0_407 = arith.constant 0 : index
    %720 = vector.load %arg25[%c0_405, %c0_406, %c0_407] : memref<1x1x256xf32, #tpu.memory_space<vmem>>, vector<1x1x256xf32>
    %721 = vector.shape_cast %720 : vector<1x1x256xf32> to vector<1x256xf32>
    %722 = vector.shape_cast %716 : vector<1x256xf32> to vector<1x1x256xf32>
    tpu.vector_store %arg25[%c0_405, %c0_406, %c0_407], %722 {strides = array<i32>} : memref<1x1x256xf32, #tpu.memory_space<vmem>>, vector<1x1x256xf32>,
    return
  }
  func.func @transform_0(%arg0: i32) -> (i32, i32, i32) {
    %c0_i32 = arith.constant 0 : i32
    %c0_i32_0 = arith.constant 0 : i32
    %c0_i32_1 = arith.constant 0 : i32
    return %arg0, %c0_i32, %c0_i32_0 : i32, i32, i32
  }
  func.func @transform_1(%arg0: i32) -> (i32, i32, i32) {
    %c0_i32 = arith.constant 0 : i32
    %c0_i32_0 = arith.constant 0 : i32
    %c0_i32_1 = arith.constant 0 : i32
    return %arg0, %c0_i32, %c0_i32_0 : i32, i32, i32
  }
  func.func @transform_2(%arg0: i32) -> (i32, i32) {
    %c0_i32 = arith.constant 0 : i32
    %c0_i32_0 = arith.constant 0 : i32
    %c0_i32_1 = arith.constant 0 : i32
    return %c0_i32, %c0_i32_0 : i32, i32
  }
  func.func @transform_3(%arg0: i32) -> (i32, i32) {
    %c0_i32 = arith.constant 0 : i32
    %c0_i32_0 = arith.constant 0 : i32
    %c0_i32_1 = arith.constant 0 : i32
    return %c0_i32, %c0_i32_0 : i32, i32
  }
  func.func @transform_4(%arg0: i32) -> (i32, i32, i32) {
    %c0_i32 = arith.constant 0 : i32
    %c0_i32_0 = arith.constant 0 : i32
    %c0_i32_1 = arith.constant 0 : i32
    %c0_i32_2 = arith.constant 0 : i32
    return %c0_i32, %c0_i32_0, %c0_i32_1 : i32, i32, i32
  }
  func.func @transform_5(%arg0: i32) -> (i32, i32, i32) {
    %c0_i32 = arith.constant 0 : i32
    %c0_i32_0 = arith.constant 0 : i32
    %c0_i32_1 = arith.constant 0 : i32
    %c0_i32_2 = arith.constant 0 : i32
    return %c0_i32, %c0_i32_0, %c0_i32_1 : i32, i32, i32
  }
  func.func @transform_6(%arg0: i32) -> (i32, i32, i32) {
    %c0_i32 = arith.constant 0 : i32
    %c0_i32_0 = arith.constant 0 : i32
    %c0_i32_1 = arith.constant 0 : i32
    %c0_i32_2 = arith.constant 0 : i32
    return %c0_i32, %c0_i32_0, %c0_i32_1 : i32, i32, i32
  }
  func.func @transform_7(%arg0: i32) -> (i32, i32, i32) {
    %c0_i32 = arith.constant 0 : i32
    %c0_i32_0 = arith.constant 0 : i32
    %c0_i32_1 = arith.constant 0 : i32
    %c0_i32_2 = arith.constant 0 : i32
    return %c0_i32, %c0_i32_0, %c0_i32_1 : i32, i32, i32
  }
  func.func @transform_8(%arg0: i32) -> (i32, i32, i32) {
    %c0_i32 = arith.constant 0 : i32
    %c0_i32_0 = arith.constant 0 : i32
    %c0_i32_1 = arith.constant 0 : i32
    %c0_i32_2 = arith.constant 0 : i32
    return %c0_i32, %c0_i32_0, %c0_i32_1 : i32, i32, i32
  }
  func.func @transform_9(%arg0: i32) -> (i32, i32, i32) {
    %c0_i32 = arith.constant 0 : i32
    %c0_i32_0 = arith.constant 0 : i32
    %c0_i32_1 = arith.constant 0 : i32
    %c0_i32_2 = arith.constant 0 : i32
    return %c0_i32, %c0_i32_0, %c0_i32_1 : i32, i32, i32
  }
  func.func @transform_10(%arg0: i32) -> (i32, i32, i32) {
    %c0_i32 = arith.constant 0 : i32
    %c0_i32_0 = arith.constant 0 : i32
    %c0_i32_1 = arith.constant 0 : i32
    %c0_i32_2 = arith.constant 0 : i32
    return %c0_i32, %c0_i32_0, %c0_i32_1 : i32, i32, i32
  }
  func.func @transform_11(%arg0: i32) -> (i32, i32, i32) {
    %c0_i32 = arith.constant 0 : i32
    %c0_i32_0 = arith.constant 0 : i32
    %c0_i32_1 = arith.constant 0 : i32
    %c0_i32_2 = arith.constant 0 : i32
    return %c0_i32, %c0_i32_0, %c0_i32_1 : i32, i32, i32
  }
  func.func @transform_12(%arg0: i32) -> (i32, i32, i32) {
    %c0_i32 = arith.constant 0 : i32
    %c0_i32_0 = arith.constant 0 : i32
    %c0_i32_1 = arith.constant 0 : i32
    %c0_i32_2 = arith.constant 0 : i32
    return %c0_i32, %c0_i32_0, %c0_i32_1 : i32, i32, i32
  }
  func.func @transform_13(%arg0: i32) -> (i32, i32, i32) {
    %c0_i32 = arith.constant 0 : i32
    %c0_i32_0 = arith.constant 0 : i32
    %c0_i32_1 = arith.constant 0 : i32
    %c0_i32_2 = arith.constant 0 : i32
    return %c0_i32, %c0_i32_0, %c0_i32_1 : i32, i32, i32
  }
  func.func @transform_14(%arg0: i32) -> (i32, i32, i32) {
    %c0_i32 = arith.constant 0 : i32
    %c0_i32_0 = arith.constant 0 : i32
    %c0_i32_1 = arith.constant 0 : i32
    %c0_i32_2 = arith.constant 0 : i32
    return %c0_i32, %c0_i32_0, %c0_i32_1 : i32, i32, i32
  }
  func.func @transform_15(%arg0: i32) -> (i32, i32, i32) {
    %c0_i32 = arith.constant 0 : i32
    %c0_i32_0 = arith.constant 0 : i32
    %c0_i32_1 = arith.constant 0 : i32
    %c0_i32_2 = arith.constant 0 : i32
    return %c0_i32, %c0_i32_0, %c0_i32_1 : i32, i32, i32
  }
  func.func @transform_16(%arg0: i32) -> (i32, i32) {
    %c0_i32 = arith.constant 0 : i32
    %c0_i32_0 = arith.constant 0 : i32
    %c0_i32_1 = arith.constant 0 : i32
    return %c0_i32, %c0_i32_0 : i32, i32
  }
  func.func @transform_17(%arg0: i32) -> (i32, i32) {
    %c0_i32 = arith.constant 0 : i32
    %c0_i32_0 = arith.constant 0 : i32
    %c0_i32_1 = arith.constant 0 : i32
    return %c0_i32, %c0_i32_0 : i32, i32
  }
  func.func @transform_18(%arg0: i32) -> (i32, i32) {
    %c0_i32 = arith.constant 0 : i32
    %c0_i32_0 = arith.constant 0 : i32
    %c0_i32_1 = arith.constant 0 : i32
    return %c0_i32, %c0_i32_0 : i32, i32
  }
  func.func @transform_19(%arg0: i32) -> (i32, i32) {
    %c0_i32 = arith.constant 0 : i32
    %c0_i32_0 = arith.constant 0 : i32
    %c0_i32_1 = arith.constant 0 : i32
    return %c0_i32, %c0_i32_0 : i32, i32
  }
  func.func @transform_20(%arg0: i32) -> (i32, i32) {
    %c0_i32 = arith.constant 0 : i32
    %c0_i32_0 = arith.constant 0 : i32
    %c0_i32_1 = arith.constant 0 : i32
    return %c0_i32, %c0_i32_0 : i32, i32
  }
  func.func @transform_21(%arg0: i32) -> (i32, i32) {
    %c0_i32 = arith.constant 0 : i32
    %c0_i32_0 = arith.constant 0 : i32
    %c0_i32_1 = arith.constant 0 : i32
    return %c0_i32, %c0_i32_0 : i32, i32
  }
  func.func @transform_22(%arg0: i32) -> (i32, i32) {
    %c0_i32 = arith.constant 0 : i32
    %c0_i32_0 = arith.constant 0 : i32
    %c0_i32_1 = arith.constant 0 : i32
    return %c0_i32, %c0_i32_0 : i32, i32
  }
  func.func @transform_23(%arg0: i32) -> (i32, i32, i32) {
    %c0_i32 = arith.constant 0 : i32
    %c0_i32_0 = arith.constant 0 : i32
    %c0_i32_1 = arith.constant 0 : i32
    return %arg0, %c0_i32, %c0_i32_0 : i32, i32, i32
  }
  func.func @transform_24(%arg0: i32) -> (i32, i32, i32) {
    %c0_i32 = arith.constant 0 : i32
    %c0_i32_0 = arith.constant 0 : i32
    %c0_i32_1 = arith.constant 0 : i32
    return %arg0, %c0_i32, %c0_i32_0 : i32, i32, i32
  }
}

</mosaic_0001>

<llo_original>
// kernel: memto_vae_forward.1
$region0: #{memto_vae_forward.1}
  #allocation0 [shape = 'u32[]', space=smem, size = 0x4, offset = 0x4, fixed_abs, tag = 'smem constant byte address 0x4 - core index']
  #allocation1 [shape = 'u32[72,128]{1,0:T(1,128)}', space=vmem, size = 0x9000, scoped, tag = 'internal scratch']
  #allocation2 [shape = 'f32[1,1600]{1,0:T(1,128)}', space=vmem, size = 0x1a00, scoped, tag = 'scratch operand']
  %s0 = inlined_call_operand.vmem [shape: f32[2,50,3], index: 0, kind: input, shape index: {}]
  %s1 = inlined_call_operand.vmem [shape: f32[2,1,16], index: 1, kind: input, shape index: {}]
  %s2 = inlined_call_operand.vmem [shape: bf16[3,16], index: 2, kind: input, shape index: {}]
  %s3 = inlined_call_operand.vmem [shape: f32[1,16], index: 3, kind: input, shape index: {}]
  %s4 = inlined_call_operand.vmem [shape: bf16[2,16,48], index: 4, kind: input, shape index: {}]
  %s5 = inlined_call_operand.vmem [shape: f32[2,1,48], index: 5, kind: input, shape index: {}]
  %s6 = inlined_call_operand.vmem [shape: bf16[2,16,16], index: 6, kind: input, shape index: {}]
  %s7 = inlined_call_operand.vmem [shape: f32[2,1,16], index: 7, kind: input, shape index: {}]
  %s8 = inlined_call_operand.vmem [shape: f32[2,1,16], index: 8, kind: input, shape index: {}]
  %s9 = inlined_call_operand.vmem [shape: f32[2,1,16], index: 9, kind: input, shape index: {}]
  %s10 = inlined_call_operand.vmem [shape: bf16[2,16,2048], index: 10, kind: input, shape index: {}]
  %s11 = inlined_call_operand.vmem [shape: f32[2,1,2048], index: 11, kind: input, shape index: {}]
  %s12 = inlined_call_operand.vmem [shape: bf16[2,2048,16], index: 12, kind: input, shape index: {}]
  %s13 = inlined_call_operand.vmem [shape: f32[2,1,16], index: 13, kind: input, shape index: {}]
  %s14 = inlined_call_operand.vmem [shape: f32[2,1,16], index: 14, kind: input, shape index: {}]
  %s15 = inlined_call_operand.vmem [shape: f32[2,1,16], index: 15, kind: input, shape index: {}]
  %s16 = inlined_call_operand.vmem [shape: f32[10,16], index: 16, kind: input, shape index: {}]
  %s17 = inlined_call_operand.vmem [shape: bf16[1600,32], index: 17, kind: input, shape index: {}]
  %s18 = inlined_call_operand.vmem [shape: f32[1,32], index: 18, kind: input, shape index: {}]
  %s19 = inlined_call_operand.vmem [shape: bf16[16,150], index: 19, kind: input, shape index: {}]
  %s20 = inlined_call_operand.vmem [shape: f32[1,150], index: 20, kind: input, shape index: {}]
  %s21 = inlined_call_operand.vmem [shape: bf16[150,150], index: 21, kind: input, shape index: {}]
  %s22 = inlined_call_operand.vmem [shape: f32[1,150], index: 22, kind: input, shape index: {}]
  %s23 = inlined_call_operand.vmem [shape: f32[2,50,10], index: 23, kind: output, shape index: {0}]
  %s24 = inlined_call_operand.vmem [shape: f32[2,1,256], index: 24, kind: output, shape index: {1}]
  %25 = xla_tuple %s23, %s24
  %s26 = sld [smem:[#allocation0]]
  $region133: #{memto_vae_forward.1} parent=0
    _
  %s28 = ssub.s32 1, %s26
  %s29 = scalar_select 0, %s28, %s26
  loop: start=0, step=1, limit=4
  $region2: #{memto_vae_forward.1} parent=0 // loop_pre_header
    _
  $region3: #{memto_vae_forward.1} parent=0 // loop_header
    %s31 = sphi 0, %s35
    %p32 = scmp.ge.s32.totalorder %s31, 4
    %s41 = sphi 0, %s43
    %s44 = sphi 0, %s41
    %s45 = sphi 0, %s44
    %s61 = sphi 0, %s45
    %s67 = sphi 0, %s69
    %s70 = sphi 0, %s67
    %s71 = sphi 0, %s70
    %s87 = sphi 0, %s71
    %s91 = sphi 0, %s91
    %s93 = sphi 0, %s91
    %s94 = sphi 0, %s93
    %s108 = sphi 0, %s94
    %s112 = sphi 0, %s112
    %s114 = sphi 0, %s112
    %s115 = sphi 0, %s114
    %s129 = sphi 0, %s115
    %s133 = sphi 0, %s133
    %s135 = sphi 0, %s133
    %s136 = sphi 0, %s135
    %s150 = sphi 0, %s136
    %s154 = sphi 0, %s154
    %s156 = sphi 0, %s154
    %s157 = sphi 0, %s156
    %s171 = sphi 0, %s157
    %s175 = sphi 0, %s175
    %s177 = sphi 0, %s175
    %s178 = sphi 0, %s177
    %s192 = sphi 0, %s178
    %s196 = sphi 0, %s196
    %s198 = sphi 0, %s196
    %s199 = sphi 0, %s198
    %s213 = sphi 0, %s199
    %s217 = sphi 0, %s217
    %s219 = sphi 0, %s217
    %s220 = sphi 0, %s219
    %s234 = sphi 0, %s220
    %s238 = sphi 0, %s238
    %s240 = sphi 0, %s238
    %s241 = sphi 0, %s240
    %s255 = sphi 0, %s241
    %s259 = sphi 0, %s259
    %s261 = sphi 0, %s259
    %s262 = sphi 0, %s261
    %s276 = sphi 0, %s262
    %s280 = sphi 0, %s280
    %s282 = sphi 0, %s280
    %s283 = sphi 0, %s282
    %s297 = sphi 0, %s283
    %s301 = sphi 0, %s301
    %s303 = sphi 0, %s301
    %s304 = sphi 0, %s303
    %s318 = sphi 0, %s304
    %s322 = sphi 0, %s322
    %s324 = sphi 0, %s322
    %s325 = sphi 0, %s324
    %s339 = sphi 0, %s325
    %s343 = sphi 0, %s343
    %s345 = sphi 0, %s343
    %s346 = sphi 0, %s345
    %s360 = sphi 0, %s346
    %s364 = sphi 0, %s364
    %s366 = sphi 0, %s364
    %s367 = sphi 0, %s366
    %s381 = sphi 0, %s367
    %s385 = sphi 0, %s385
    %s387 = sphi 0, %s385
    %s388 = sphi 0, %s387
    %s402 = sphi 0, %s388
    %s406 = sphi 0, %s406
    %s408 = sphi 0, %s406
    %s409 = sphi 0, %s408
    %s423 = sphi 0, %s409
    %s427 = sphi 0, %s427
    %s429 = sphi 0, %s427
    %s430 = sphi 0, %s429
    %s444 = sphi 0, %s430
    %s448 = sphi 0, %s448
    %s450 = sphi 0, %s448
    %s451 = sphi 0, %s450
    %s465 = sphi 0, %s451
    %s469 = sphi 0, %s469
    %s471 = sphi 0, %s469
    %s472 = sphi 0, %s471
    %s486 = sphi 0, %s472
    %s490 = sphi 0, %s490
    %s492 = sphi 0, %s490
    %s493 = sphi 0, %s492
    %s507 = sphi 0, %s493
    %s511 = sphi 0, %s511
    %s513 = sphi 0, %s511
    %s514 = sphi 0, %s513
    %s528 = sphi 0, %s514
    %s534 = sphi 0, %s536
    %s537 = sphi 0, %s534
    %s538 = sphi 0, %s537
    %s554 = sphi 0, %s538
    %s560 = sphi 0, %s562
    %s563 = sphi 0, %s560
    %s564 = sphi 0, %s563
    %s580 = sphi 0, %s564
  $region4: #{memto_vae_forward.1} parent=0 // loop_header_branch
    %34 = sbr.rel (%p32) target = $region8
  $region5: #{memto_vae_forward.1} parent=0 // loop_body
    %s36 = ssub.s32 %s31, 1
    %s37 = ssub.s32 %s31, 2
    %s38 = sadd.s32 %s31, 1
    %s39 = ssub.s32 %s31, %s38
    %p40 = scmp.eq.s32.totalorder %s39, 0
    %s42 = sadd.s32 %s41, 1
    %s43 = scalar_select %p40, %s41, %s42
    %p46 = pneg %p40
    %p47 = scmp.eq.s32.totalorder %s31, 1
    %p48 = por %p46, %p47
    %p49 = scmp.ne.s32.totalorder %s41, %s44
    %p50 = scmp.eq.s32.totalorder %s31, 0
    %p51 = por %p49, %p50
    %p52 = scmp.ne.s32.totalorder %s41, %s44
    %p53 = scmp.eq.s32.totalorder %s36, 1
    %p54 = por %p52, %p53
    %p55 = scmp.ne.s32.totalorder %s44, %s45
    %p56 = scmp.eq.s32.totalorder %s36, 0
    %p57 = por %p55, %p56
    %p58 = scmp.ne.s32.totalorder %s44, %s45
    %p59 = scmp.eq.s32.totalorder %s37, 1
    %p60 = por %p58, %p59
    %p62 = scmp.ne.s32.totalorder %s45, %s61
    %p63 = scmp.eq.s32.totalorder %s37, 0
    %p64 = por %p62, %p63
    %s65 = ssub.s32 %s31, %s38
    %p66 = scmp.eq.s32.totalorder %s65, 0
    %s68 = sadd.s32 %s67, 1
    %s69 = scalar_select %p66, %s67, %s68
    %p72 = pneg %p66
    %p73 = scmp.eq.s32.totalorder %s31, 1
    %p74 = por %p72, %p73
    %p75 = scmp.ne.s32.totalorder %s67, %s70
    %p76 = scmp.eq.s32.totalorder %s31, 0
    %p77 = por %p75, %p76
    %p78 = scmp.ne.s32.totalorder %s67, %s70
    %p79 = scmp.eq.s32.totalorder %s36, 1
    %p80 = por %p78, %p79
    %p81 = scmp.ne.s32.totalorder %s70, %s71
    %p82 = scmp.eq.s32.totalorder %s36, 0
    %p83 = por %p81, %p82
    %p84 = scmp.ne.s32.totalorder %s70, %s71
    %p85 = scmp.eq.s32.totalorder %s37, 1
    %p86 = por %p84, %p85
    %p88 = scmp.ne.s32.totalorder %s71, %s87
    %p89 = scmp.eq.s32.totalorder %s37, 0
    %p90 = por %p88, %p89
    %s92 = sadd.s32 %s91, 1
    %p95 = scmp.eq.s32.totalorder %s31, 1
    %p96 = scmp.ne.s32.totalorder %s91, %s93
    %p97 = scmp.eq.s32.totalorder %s31, 0
    %p98 = por %p96, %p97
    %p99 = scmp.ne.s32.totalorder %s91, %s93
    %p100 = scmp.eq.s32.totalorder %s36, 1
    %p101 = por %p99, %p100
    %p102 = scmp.ne.s32.totalorder %s93, %s94
    %p103 = scmp.eq.s32.totalorder %s36, 0
    %p104 = por %p102, %p103
    %p105 = scmp.ne.s32.totalorder %s93, %s94
    %p106 = scmp.eq.s32.totalorder %s37, 1
    %p107 = por %p105, %p106
    %p109 = scmp.ne.s32.totalorder %s94, %s108
    %p110 = scmp.eq.s32.totalorder %s37, 0
    %p111 = por %p109, %p110
    %s113 = sadd.s32 %s112, 1
    %p116 = scmp.eq.s32.totalorder %s31, 1
    %p117 = scmp.ne.s32.totalorder %s112, %s114
    %p118 = scmp.eq.s32.totalorder %s31, 0
    %p119 = por %p117, %p118
    %p120 = scmp.ne.s32.totalorder %s112, %s114
    %p121 = scmp.eq.s32.totalorder %s36, 1
    %p122 = por %p120, %p121
    %p123 = scmp.ne.s32.totalorder %s114, %s115
    %p124 = scmp.eq.s32.totalorder %s36, 0
    %p125 = por %p123, %p124
    %p126 = scmp.ne.s32.totalorder %s114, %s115
    %p127 = scmp.eq.s32.totalorder %s37, 1
    %p128 = por %p126, %p127
    %p130 = scmp.ne.s32.totalorder %s115, %s129
    %p131 = scmp.eq.s32.totalorder %s37, 0
    %p132 = por %p130, %p131
    %s134 = sadd.s32 %s133, 1
    %p137 = scmp.eq.s32.totalorder %s31, 1
    %p138 = scmp.ne.s32.totalorder %s133, %s135
    %p139 = scmp.eq.s32.totalorder %s31, 0
    %p140 = por %p138, %p139
    %p141 = scmp.ne.s32.totalorder %s133, %s135
    %p142 = scmp.eq.s32.totalorder %s36, 1
    %p143 = por %p141, %p142
    %p144 = scmp.ne.s32.totalorder %s135, %s136
    %p145 = scmp.eq.s32.totalorder %s36, 0
    %p146 = por %p144, %p145
    %p147 = scmp.ne.s32.totalorder %s135, %s136
    %p148 = scmp.eq.s32.totalorder %s37, 1
    %p149 = por %p147, %p148
    %p151 = scmp.ne.s32.totalorder %s136, %s150
    %p152 = scmp.eq.s32.totalorder %s37, 0
    %p153 = por %p151, %p152
    %s155 = sadd.s32 %s154, 1
    %p158 = scmp.eq.s32.totalorder %s31, 1
    %p159 = scmp.ne.s32.totalorder %s154, %s156
    %p160 = scmp.eq.s32.totalorder %s31, 0
    %p161 = por %p159, %p160
    %p162 = scmp.ne.s32.totalorder %s154, %s156
    %p163 = scmp.eq.s32.totalorder %s36, 1
    %p164 = por %p162, %p163
    %p165 = scmp.ne.s32.totalorder %s156, %s157
    %p166 = scmp.eq.s32.totalorder %s36, 0
    %p167 = por %p165, %p166
    %p168 = scmp.ne.s32.totalorder %s156, %s157
    %p169 = scmp.eq.s32.totalorder %s37, 1
    %p170 = por %p168, %p169
    %p172 = scmp.ne.s32.totalorder %s157, %s171
    %p173 = scmp.eq.s32.totalorder %s37, 0
    %p174 = por %p172, %p173
    %s176 = sadd.s32 %s175, 1
    %p179 = scmp.eq.s32.totalorder %s31, 1
    %p180 = scmp.ne.s32.totalorder %s175, %s177
    %p181 = scmp.eq.s32.totalorder %s31, 0
    %p182 = por %p180, %p181
    %p183 = scmp.ne.s32.totalorder %s175, %s177
    %p184 = scmp.eq.s32.totalorder %s36, 1
    %p185 = por %p183, %p184
    %p186 = scmp.ne.s32.totalorder %s177, %s178
    %p187 = scmp.eq.s32.totalorder %s36, 0
    %p188 = por %p186, %p187
    %p189 = scmp.ne.s32.totalorder %s177, %s178
    %p190 = scmp.eq.s32.totalorder %s37, 1
    %p191 = por %p189, %p190
    %p193 = scmp.ne.s32.totalorder %s178, %s192
    %p194 = scmp.eq.s32.totalorder %s37, 0
    %p195 = por %p193, %p194
    %s197 = sadd.s32 %s196, 1
    %p200 = scmp.eq.s32.totalorder %s31, 1
    %p201 = scmp.ne.s32.totalorder %s196, %s198
    %p202 = scmp.eq.s32.totalorder %s31, 0
    %p203 = por %p201, %p202
    %p204 = scmp.ne.s32.totalorder %s196, %s198
    %p205 = scmp.eq.s32.totalorder %s36, 1
    %p206 = por %p204, %p205
    %p207 = scmp.ne.s32.totalorder %s198, %s199
    %p208 = scmp.eq.s32.totalorder %s36, 0
    %p209 = por %p207, %p208
    %p210 = scmp.ne.s32.totalorder %s198, %s199
    %p211 = scmp.eq.s32.totalorder %s37, 1
    %p212 = por %p210, %p211
    %p214 = scmp.ne.s32.totalorder %s199, %s213
    %p215 = scmp.eq.s32.totalorder %s37, 0
    %p216 = por %p214, %p215
    %s218 = sadd.s32 %s217, 1
    %p221 = scmp.eq.s32.totalorder %s31, 1
    %p222 = scmp.ne.s32.totalorder %s217, %s219
    %p223 = scmp.eq.s32.totalorder %s31, 0
    %p224 = por %p222, %p223
    %p225 = scmp.ne.s32.totalorder %s217, %s219
    %p226 = scmp.eq.s32.totalorder %s36, 1
    %p227 = por %p225, %p226
    %p228 = scmp.ne.s32.totalorder %s219, %s220
    %p229 = scmp.eq.s32.totalorder %s36, 0
    %p230 = por %p228, %p229
    %p231 = scmp.ne.s32.totalorder %s219, %s220
    %p232 = scmp.eq.s32.totalorder %s37, 1
    %p233 = por %p231, %p232
    %p235 = scmp.ne.s32.totalorder %s220, %s234
    %p236 = scmp.eq.s32.totalorder %s37, 0
    %p237 = por %p235, %p236
    %s239 = sadd.s32 %s238, 1
    %p242 = scmp.eq.s32.totalorder %s31, 1
    %p243 = scmp.ne.s32.totalorder %s238, %s240
    %p244 = scmp.eq.s32.totalorder %s31, 0
    %p245 = por %p243, %p244
    %p246 = scmp.ne.s32.totalorder %s238, %s240
    %p247 = scmp.eq.s32.totalorder %s36, 1
    %p248 = por %p246, %p247
    %p249 = scmp.ne.s32.totalorder %s240, %s241
    %p250 = scmp.eq.s32.totalorder %s36, 0
    %p251 = por %p249, %p250
    %p252 = scmp.ne.s32.totalorder %s240, %s241
    %p253 = scmp.eq.s32.totalorder %s37, 1
    %p254 = por %p252, %p253
    %p256 = scmp.ne.s32.totalorder %s241, %s255
    %p257 = scmp.eq.s32.totalorder %s37, 0
    %p258 = por %p256, %p257
    %s260 = sadd.s32 %s259, 1
    %p263 = scmp.eq.s32.totalorder %s31, 1
    %p264 = scmp.ne.s32.totalorder %s259, %s261
    %p265 = scmp.eq.s32.totalorder %s31, 0
    %p266 = por %p264, %p265
    %p267 = scmp.ne.s32.totalorder %s259, %s261
    %p268 = scmp.eq.s32.totalorder %s36, 1
    %p269 = por %p267, %p268
    %p270 = scmp.ne.s32.totalorder %s261, %s262
    %p271 = scmp.eq.s32.totalorder %s36, 0
    %p272 = por %p270, %p271
    %p273 = scmp.ne.s32.totalorder %s261, %s262
    %p274 = scmp.eq.s32.totalorder %s37, 1
    %p275 = por %p273, %p274
    %p277 = scmp.ne.s32.totalorder %s262, %s276
    %p278 = scmp.eq.s32.totalorder %s37, 0
    %p279 = por %p277, %p278
    %s281 = sadd.s32 %s280, 1
    %p284 = scmp.eq.s32.totalorder %s31, 1
    %p285 = scmp.ne.s32.totalorder %s280, %s282
    %p286 = scmp.eq.s32.totalorder %s31, 0
    %p287 = por %p285, %p286
    %p288 = scmp.ne.s32.totalorder %s280, %s282
    %p289 = scmp.eq.s32.totalorder %s36, 1
    %p290 = por %p288, %p289
    %p291 = scmp.ne.s32.totalorder %s282, %s283
    %p292 = scmp.eq.s32.totalorder %s36, 0
    %p293 = por %p291, %p292
    %p294 = scmp.ne.s32.totalorder %s282, %s283
    %p295 = scmp.eq.s32.totalorder %s37, 1
    %p296 = por %p294, %p295
    %p298 = scmp.ne.s32.totalorder %s283, %s297
    %p299 = scmp.eq.s32.totalorder %s37, 0
    %p300 = por %p298, %p299
    %s302 = sadd.s32 %s301, 1
    %p305 = scmp.eq.s32.totalorder %s31, 1
    %p306 = scmp.ne.s32.totalorder %s301, %s303
    %p307 = scmp.eq.s32.totalorder %s31, 0
    %p308 = por %p306, %p307
    %p309 = scmp.ne.s32.totalorder %s301, %s303
    %p310 = scmp.eq.s32.totalorder %s36, 1
    %p311 = por %p309, %p310
    %p312 = scmp.ne.s32.totalorder %s303, %s304
    %p313 = scmp.eq.s32.totalorder %s36, 0
    %p314 = por %p312, %p313
    %p315 = scmp.ne.s32.totalorder %s303, %s304
    %p316 = scmp.eq.s32.totalorder %s37, 1
    %p317 = por %p315, %p316
    %p319 = scmp.ne.s32.totalorder %s304, %s318
    %p320 = scmp.eq.s32.totalorder %s37, 0
    %p321 = por %p319, %p320
    %s323 = sadd.s32 %s322, 1
    %p326 = scmp.eq.s32.totalorder %s31, 1
    %p327 = scmp.ne.s32.totalorder %s322, %s324
    %p328 = scmp.eq.s32.totalorder %s31, 0
    %p329 = por %p327, %p328
    %p330 = scmp.ne.s32.totalorder %s322, %s324
    %p331 = scmp.eq.s32.totalorder %s36, 1
    %p332 = por %p330, %p331
    %p333 = scmp.ne.s32.totalorder %s324, %s325
    %p334 = scmp.eq.s32.totalorder %s36, 0
    %p335 = por %p333, %p334
    %p336 = scmp.ne.s32.totalorder %s324, %s325
    %p337 = scmp.eq.s32.totalorder %s37, 1
    %p338 = por %p336, %p337
    %p340 = scmp.ne.s32.totalorder %s325, %s339
    %p341 = scmp.eq.s32.totalorder %s37, 0
    %p342 = por %p340, %p341
    %s344 = sadd.s32 %s343, 1
    %p347 = scmp.eq.s32.totalorder %s31, 1
    %p348 = scmp.ne.s32.totalorder %s343, %s345
    %p349 = scmp.eq.s32.totalorder %s31, 0
    %p350 = por %p348, %p349
    %p351 = scmp.ne.s32.totalorder %s343, %s345
    %p352 = scmp.eq.s32.totalorder %s36, 1
    %p353 = por %p351, %p352
    %p354 = scmp.ne.s32.totalorder %s345, %s346
    %p355 = scmp.eq.s32.totalorder %s36, 0
    %p356 = por %p354, %p355
    %p357 = scmp.ne.s32.totalorder %s345, %s346
    %p358 = scmp.eq.s32.totalorder %s37, 1
    %p359 = por %p357, %p358
    %p361 = scmp.ne.s32.totalorder %s346, %s360
    %p362 = scmp.eq.s32.totalorder %s37, 0
    %p363 = por %p361, %p362
    %s365 = sadd.s32 %s364, 1
    %p368 = scmp.eq.s32.totalorder %s31, 1
    %p369 = scmp.ne.s32.totalorder %s364, %s366
    %p370 = scmp.eq.s32.totalorder %s31, 0
    %p371 = por %p369, %p370
    %p372 = scmp.ne.s32.totalorder %s364, %s366
    %p373 = scmp.eq.s32.totalorder %s36, 1
    %p374 = por %p372, %p373
    %p375 = scmp.ne.s32.totalorder %s366, %s367
    %p376 = scmp.eq.s32.totalorder %s36, 0
    %p377 = por %p375, %p376
    %p378 = scmp.ne.s32.totalorder %s366, %s367
    %p379 = scmp.eq.s32.totalorder %s37, 1
    %p380 = por %p378, %p379
    %p382 = scmp.ne.s32.totalorder %s367, %s381
    %p383 = scmp.eq.s32.totalorder %s37, 0
    %p384 = por %p382, %p383
    %s386 = sadd.s32 %s385, 1
    %p389 = scmp.eq.s32.totalorder %s31, 1
    %p390 = scmp.ne.s32.totalorder %s385, %s387
    %p391 = scmp.eq.s32.totalorder %s31, 0
    %p392 = por %p390, %p391
    %p393 = scmp.ne.s32.totalorder %s385, %s387
    %p394 = scmp.eq.s32.totalorder %s36, 1
    %p395 = por %p393, %p394
    %p396 = scmp.ne.s32.totalorder %s387, %s388
    %p397 = scmp.eq.s32.totalorder %s36, 0
    %p398 = por %p396, %p397
    %p399 = scmp.ne.s32.totalorder %s387, %s388
    %p400 = scmp.eq.s32.totalorder %s37, 1
    %p401 = por %p399, %p400
    %p403 = scmp.ne.s32.totalorder %s388, %s402
    %p404 = scmp.eq.s32.totalorder %s37, 0
    %p405 = por %p403, %p404
    %s407 = sadd.s32 %s406, 1
    %p410 = scmp.eq.s32.totalorder %s31, 1
    %p411 = scmp.ne.s32.totalorder %s406, %s408
    %p412 = scmp.eq.s32.totalorder %s31, 0
    %p413 = por %p411, %p412
    %p414 = scmp.ne.s32.totalorder %s406, %s408
    %p415 = scmp.eq.s32.totalorder %s36, 1
    %p416 = por %p414, %p415
    %p417 = scmp.ne.s32.totalorder %s408, %s409
    %p418 = scmp.eq.s32.totalorder %s36, 0
    %p419 = por %p417, %p418
    %p420 = scmp.ne.s32.totalorder %s408, %s409
    %p421 = scmp.eq.s32.totalorder %s37, 1
    %p422 = por %p420, %p421
    %p424 = scmp.ne.s32.totalorder %s409, %s423
    %p425 = scmp.eq.s32.totalorder %s37, 0
    %p426 = por %p424, %p425
    %s428 = sadd.s32 %s427, 1
    %p431 = scmp.eq.s32.totalorder %s31, 1
    %p432 = scmp.ne.s32.totalorder %s427, %s429
    %p433 = scmp.eq.s32.totalorder %s31, 0
    %p434 = por %p432, %p433
    %p435 = scmp.ne.s32.totalorder %s427, %s429
    %p436 = scmp.eq.s32.totalorder %s36, 1
    %p437 = por %p435, %p436
    %p438 = scmp.ne.s32.totalorder %s429, %s430
    %p439 = scmp.eq.s32.totalorder %s36, 0
    %p440 = por %p438, %p439
    %p441 = scmp.ne.s32.totalorder %s429, %s430
    %p442 = scmp.eq.s32.totalorder %s37, 1
    %p443 = por %p441, %p442
    %p445 = scmp.ne.s32.totalorder %s430, %s444
    %p446 = scmp.eq.s32.totalorder %s37, 0
    %p447 = por %p445, %p446
    %s449 = sadd.s32 %s448, 1
    %p452 = scmp.eq.s32.totalorder %s31, 1
    %p453 = scmp.ne.s32.totalorder %s448, %s450
    %p454 = scmp.eq.s32.totalorder %s31, 0
    %p455 = por %p453, %p454
    %p456 = scmp.ne.s32.totalorder %s448, %s450
    %p457 = scmp.eq.s32.totalorder %s36, 1
    %p458 = por %p456, %p457
    %p459 = scmp.ne.s32.totalorder %s450, %s451
    %p460 = scmp.eq.s32.totalorder %s36, 0
    %p461 = por %p459, %p460
    %p462 = scmp.ne.s32.totalorder %s450, %s451
    %p463 = scmp.eq.s32.totalorder %s37, 1
    %p464 = por %p462, %p463
    %p466 = scmp.ne.s32.totalorder %s451, %s465
    %p467 = scmp.eq.s32.totalorder %s37, 0
    %p468 = por %p466, %p467
    %s470 = sadd.s32 %s469, 1
    %p473 = scmp.eq.s32.totalorder %s31, 1
    %p474 = scmp.ne.s32.totalorder %s469, %s471
    %p475 = scmp.eq.s32.totalorder %s31, 0
    %p476 = por %p474, %p475
    %p477 = scmp.ne.s32.totalorder %s469, %s471
    %p478 = scmp.eq.s32.totalorder %s36, 1
    %p479 = por %p477, %p478
    %p480 = scmp.ne.s32.totalorder %s471, %s472
    %p481 = scmp.eq.s32.totalorder %s36, 0
    %p482 = por %p480, %p481
    %p483 = scmp.ne.s32.totalorder %s471, %s472
    %p484 = scmp.eq.s32.totalorder %s37, 1
    %p485 = por %p483, %p484
    %p487 = scmp.ne.s32.totalorder %s472, %s486
    %p488 = scmp.eq.s32.totalorder %s37, 0
    %p489 = por %p487, %p488
    %s491 = sadd.s32 %s490, 1
    %p494 = scmp.eq.s32.totalorder %s31, 1
    %p495 = scmp.ne.s32.totalorder %s490, %s492
    %p496 = scmp.eq.s32.totalorder %s31, 0
    %p497 = por %p495, %p496
    %p498 = scmp.ne.s32.totalorder %s490, %s492
    %p499 = scmp.eq.s32.totalorder %s36, 1
    %p500 = por %p498, %p499
    %p501 = scmp.ne.s32.totalorder %s492, %s493
    %p502 = scmp.eq.s32.totalorder %s36, 0
    %p503 = por %p501, %p502
    %p504 = scmp.ne.s32.totalorder %s492, %s493
    %p505 = scmp.eq.s32.totalorder %s37, 1
    %p506 = por %p504, %p505
    %p508 = scmp.ne.s32.totalorder %s493, %s507
    %p509 = scmp.eq.s32.totalorder %s37, 0
    %p510 = por %p508, %p509
    %s512 = sadd.s32 %s511, 1
    %p515 = scmp.eq.s32.totalorder %s31, 1
    %p516 = scmp.ne.s32.totalorder %s511, %s513
    %p517 = scmp.eq.s32.totalorder %s31, 0
    %p518 = por %p516, %p517
    %p519 = scmp.ne.s32.totalorder %s511, %s513
    %p520 = scmp.eq.s32.totalorder %s36, 1
    %p521 = por %p519, %p520
    %p522 = scmp.ne.s32.totalorder %s513, %s514
    %p523 = scmp.eq.s32.totalorder %s36, 0
    %p524 = por %p522, %p523
    %p525 = scmp.ne.s32.totalorder %s513, %s514
    %p526 = scmp.eq.s32.totalorder %s37, 1
    %p527 = por %p525, %p526
    %p529 = scmp.ne.s32.totalorder %s514, %s528
    %p530 = scmp.eq.s32.totalorder %s37, 0
    %p531 = por %p529, %p530
    %s532 = ssub.s32 %s31, %s38
    %p533 = scmp.eq.s32.totalorder %s532, 0
    %s535 = sadd.s32 %s534, 1
    %s536 = scalar_select %p533, %s534, %s535
    %p539 = pneg %p533
    %p540 = scmp.eq.s32.totalorder %s31, 1
    %p541 = por %p539, %p540
    %p542 = scmp.ne.s32.totalorder %s534, %s537
    %p543 = scmp.eq.s32.totalorder %s31, 0
    %p544 = por %p542, %p543
    %p545 = scmp.ne.s32.totalorder %s534, %s537
    %p546 = scmp.eq.s32.totalorder %s36, 1
    %p547 = por %p545, %p546
    %p548 = scmp.ne.s32.totalorder %s537, %s538
    %p549 = scmp.eq.s32.totalorder %s36, 0
    %p550 = por %p548, %p549
    %p551 = scmp.ne.s32.totalorder %s537, %s538
    %p552 = scmp.eq.s32.totalorder %s37, 1
    %p553 = por %p551, %p552
    %p555 = scmp.ne.s32.totalorder %s538, %s554
    %p556 = scmp.eq.s32.totalorder %s37, 0
    %p557 = por %p555, %p556
    %s558 = ssub.s32 %s31, %s38
    %p559 = scmp.eq.s32.totalorder %s558, 0
    %s561 = sadd.s32 %s560, 1
    %s562 = scalar_select %p559, %s560, %s561
    %p565 = pneg %p559
    %p566 = scmp.eq.s32.totalorder %s31, 1
    %p567 = por %p565, %p566
    %p568 = scmp.ne.s32.totalorder %s560, %s563
    %p569 = scmp.eq.s32.totalorder %s31, 0
    %p570 = por %p568, %p569
    %p571 = scmp.ne.s32.totalorder %s560, %s563
    %p572 = scmp.eq.s32.totalorder %s36, 1
    %p573 = por %p571, %p572
    %p574 = scmp.ne.s32.totalorder %s563, %s564
    %p575 = scmp.eq.s32.totalorder %s36, 0
    %p576 = por %p574, %p575
    %p577 = scmp.ne.s32.totalorder %s563, %s564
    %p578 = scmp.eq.s32.totalorder %s37, 1
    %p579 = por %p577, %p578
    %p581 = scmp.ne.s32.totalorder %s564, %s580
    %p582 = scmp.eq.s32.totalorder %s37, 0
    %p583 = por %p581, %p582
    %p584 = scmp.le.s32.totalorder 1, %s31
    %p585 = scmp.lt.s32.totalorder %s31, 3
    %p586 = pnand %p584, %p585
    %p587 = pneg %p586
    // Predicated region
    $region9: #{memto_vae_forward.1} parent=5 // pred_check
      _
    $region10: #{memto_vae_forward.1} parent=5 // pred_check_branch
      %589 = sbr.rel (%p586) target = $region12
    $region11: #{memto_vae_forward.1} parent=5 // pred_region
      %s590 = ssub.s32 %s31, 1
      // Predicated region
      $region13: #{memto_vae_forward.1} parent=11 // pred_check
        %p591 = pneg %p104
      $region14: #{memto_vae_forward.1} parent=11 // pred_check_branch
        %593 = sbr.rel (%p591) target = $region16
      $region15: #{memto_vae_forward.1} parent=11 // pred_region
        _
      $region16: #{memto_vae_forward.1} parent=11 // pred_fallthru
        _
      // Predicated region
      $region17: #{memto_vae_forward.1} parent=11 // pred_check
        %p594 = pneg %p125
      $region18: #{memto_vae_forward.1} parent=11 // pred_check_branch
        %596 = sbr.rel (%p594) target = $region20
      $region19: #{memto_vae_forward.1} parent=11 // pred_region
        _
      $region20: #{memto_vae_forward.1} parent=11 // pred_fallthru
        _
      // Predicated region
      $region21: #{memto_vae_forward.1} parent=11 // pred_check
        %p597 = pneg %p146
      $region22: #{memto_vae_forward.1} parent=11 // pred_check_branch
        %599 = sbr.rel (%p597) target = $region24
      $region23: #{memto_vae_forward.1} parent=11 // pred_region
        _
      $region24: #{memto_vae_forward.1} parent=11 // pred_fallthru
        _
      // Predicated region
      $region25: #{memto_vae_forward.1} parent=11 // pred_check
        %p600 = pneg %p167
      $region26: #{memto_vae_forward.1} parent=11 // pred_check_branch
        %602 = sbr.rel (%p600) target = $region28
      $region27: #{memto_vae_forward.1} parent=11 // pred_region
        _
      $region28: #{memto_vae_forward.1} parent=11 // pred_fallthru
        _
      // Predicated region
      $region29: #{memto_vae_forward.1} parent=11 // pred_check
        %p603 = pneg %p188
      $region30: #{memto_vae_forward.1} parent=11 // pred_check_branch
        %605 = sbr.rel (%p603) target = $region32
      $region31: #{memto_vae_forward.1} parent=11 // pred_region
        _
      $region32: #{memto_vae_forward.1} parent=11 // pred_fallthru
        _
      // Predicated region
      $region33: #{memto_vae_forward.1} parent=11 // pred_check
        %p606 = pneg %p209
      $region34: #{memto_vae_forward.1} parent=11 // pred_check_branch
        %608 = sbr.rel (%p606) target = $region36
      $region35: #{memto_vae_forward.1} parent=11 // pred_region
        _
      $region36: #{memto_vae_forward.1} parent=11 // pred_fallthru
        _
      // Predicated region
      $region37: #{memto_vae_forward.1} parent=11 // pred_check
        %p609 = pneg %p230
      $region38: #{memto_vae_forward.1} parent=11 // pred_check_branch
        %611 = sbr.rel (%p609) target = $region40
      $region39: #{memto_vae_forward.1} parent=11 // pred_region
        _
      $region40: #{memto_vae_forward.1} parent=11 // pred_fallthru
        _
      // Predicated region
      $region41: #{memto_vae_forward.1} parent=11 // pred_check
        %p612 = pneg %p251
      $region42: #{memto_vae_forward.1} parent=11 // pred_check_branch
        %614 = sbr.rel (%p612) target = $region44
      $region43: #{memto_vae_forward.1} parent=11 // pred_region
        _
      $region44: #{memto_vae_forward.1} parent=11 // pred_fallthru
        _
      // Predicated region
      $region45: #{memto_vae_forward.1} parent=11 // pred_check
        %p615 = pneg %p272
      $region46: #{memto_vae_forward.1} parent=11 // pred_check_branch
        %617 = sbr.rel (%p615) target = $region48
      $region47: #{memto_vae_forward.1} parent=11 // pred_region
        _
      $region48: #{memto_vae_forward.1} parent=11 // pred_fallthru
        _
      // Predicated region
      $region49: #{memto_vae_forward.1} parent=11 // pred_check
        %p618 = pneg %p293
      $region50: #{memto_vae_forward.1} parent=11 // pred_check_branch
        %620 = sbr.rel (%p618) target = $region52
      $region51: #{memto_vae_forward.1} parent=11 // pred_region
        _
      $region52: #{memto_vae_forward.1} parent=11 // pred_fallthru
        _
      // Predicated region
      $region53: #{memto_vae_forward.1} parent=11 // pred_check
        %p621 = pneg %p314
      $region54: #{memto_vae_forward.1} parent=11 // pred_check_branch
        %623 = sbr.rel (%p621) target = $region56
      $region55: #{memto_vae_forward.1} parent=11 // pred_region
        _
      $region56: #{memto_vae_forward.1} parent=11 // pred_fallthru
        _
      // Predicated region
      $region57: #{memto_vae_forward.1} parent=11 // pred_check
        %p624 = pneg %p335
      $region58: #{memto_vae_forward.1} parent=11 // pred_check_branch
        %626 = sbr.rel (%p624) target = $region60
      $region59: #{memto_vae_forward.1} parent=11 // pred_region
        _
      $region60: #{memto_vae_forward.1} parent=11 // pred_fallthru
        _
      // Predicated region
      $region61: #{memto_vae_forward.1} parent=11 // pred_check
        %p627 = pneg %p356
      $region62: #{memto_vae_forward.1} parent=11 // pred_check_branch
        %629 = sbr.rel (%p627) target = $region64
      $region63: #{memto_vae_forward.1} parent=11 // pred_region
        _
      $region64: #{memto_vae_forward.1} parent=11 // pred_fallthru
        _
      // Predicated region
      $region65: #{memto_vae_forward.1} parent=11 // pred_check
        %p630 = pneg %p377
      $region66: #{memto_vae_forward.1} parent=11 // pred_check_branch
        %632 = sbr.rel (%p630) target = $region68
      $region67: #{memto_vae_forward.1} parent=11 // pred_region
        _
      $region68: #{memto_vae_forward.1} parent=11 // pred_fallthru
        _
      // Predicated region
      $region69: #{memto_vae_forward.1} parent=11 // pred_check
        %p633 = pneg %p398
      $region70: #{memto_vae_forward.1} parent=11 // pred_check_branch
        %635 = sbr.rel (%p633) target = $region72
      $region71: #{memto_vae_forward.1} parent=11 // pred_region
        _
      $region72: #{memto_vae_forward.1} parent=11 // pred_fallthru
        _
      // Predicated region
      $region73: #{memto_vae_forward.1} parent=11 // pred_check
        %p636 = pneg %p419
      $region74: #{memto_vae_forward.1} parent=11 // pred_check_branch
        %638 = sbr.rel (%p636) target = $region76
      $region75: #{memto_vae_forward.1} parent=11 // pred_region
        _
      $region76: #{memto_vae_forward.1} parent=11 // pred_fallthru
        _
      // Predicated region
      $region77: #{memto_vae_forward.1} parent=11 // pred_check
        %p639 = pneg %p440
      $region78: #{memto_vae_forward.1} parent=11 // pred_check_branch
        %641 = sbr.rel (%p639) target = $region80
      $region79: #{memto_vae_forward.1} parent=11 // pred_region
        _
      $region80: #{memto_vae_forward.1} parent=11 // pred_fallthru
        _
      // Predicated region
      $region81: #{memto_vae_forward.1} parent=11 // pred_check
        %p642 = pneg %p461
      $region82: #{memto_vae_forward.1} parent=11 // pred_check_branch
        %644 = sbr.rel (%p642) target = $region84
      $region83: #{memto_vae_forward.1} parent=11 // pred_region
        _
      $region84: #{memto_vae_forward.1} parent=11 // pred_fallthru
        _
      // Predicated region
      $region85: #{memto_vae_forward.1} parent=11 // pred_check
        %p645 = pneg %p482
      $region86: #{memto_vae_forward.1} parent=11 // pred_check_branch
        %647 = sbr.rel (%p645) target = $region88
      $region87: #{memto_vae_forward.1} parent=11 // pred_region
        _
      $region88: #{memto_vae_forward.1} parent=11 // pred_fallthru
        _
      // Predicated region
      $region89: #{memto_vae_forward.1} parent=11 // pred_check
        %p648 = pneg %p503
      $region90: #{memto_vae_forward.1} parent=11 // pred_check_branch
        %650 = sbr.rel (%p648) target = $region92
      $region91: #{memto_vae_forward.1} parent=11 // pred_region
        _
      $region92: #{memto_vae_forward.1} parent=11 // pred_fallthru
        _
      // Predicated region
      $region93: #{memto_vae_forward.1} parent=11 // pred_check
        %p651 = pneg %p524
      $region94: #{memto_vae_forward.1} parent=11 // pred_check_branch
        %653 = sbr.rel (%p651) target = $region96
      $region95: #{memto_vae_forward.1} parent=11 // pred_region
        _
      $region96: #{memto_vae_forward.1} parent=11 // pred_fallthru
        _
    $region12: #{memto_vae_forward.1} parent=5 // pred_fallthru
      _
    %p654 = scmp.lt.s32.totalorder %s31, 2
    // Predicated region
    $region97: #{memto_vae_forward.1} parent=5 // pred_check
      %p655 = pneg %p654
    $region98: #{memto_vae_forward.1} parent=5 // pred_check_branch
      %657 = sbr.rel (%p655) target = $region100
    $region99: #{memto_vae_forward.1} parent=5 // pred_region
      // Predicated region
      $region101: #{memto_vae_forward.1} parent=99 // pred_check
        %p658 = pneg %p51
      $region102: #{memto_vae_forward.1} parent=99 // pred_check_branch
        %660 = sbr.rel (%p658) target = $region104
      $region103: #{memto_vae_forward.1} parent=99 // pred_region
        %p661 = scmp.lt.s32.totalorder %s31, 1
        %s662 = scalar_select %p661, %s31, 1
        %s663 = smul.addr %s662, 7
        %s664 = smul.addr %s663, 8
        %s665 = scalar_lea.vmem %s0, %s664
      $region104: #{memto_vae_forward.1} parent=99 // pred_fallthru
        _
      // Predicated region
      $region105: #{memto_vae_forward.1} parent=99 // pred_check
        %p666 = pneg %p77
      $region106: #{memto_vae_forward.1} parent=99 // pred_check_branch
        %668 = sbr.rel (%p666) target = $region108
      $region107: #{memto_vae_forward.1} parent=99 // pred_region
        %p669 = scmp.lt.s32.totalorder %s31, 1
        %s670 = scalar_select %p669, %s31, 1
        %s671 = scalar_lea.vmem %s1, %s670
      $region108: #{memto_vae_forward.1} parent=99 // pred_fallthru
        _
    $region100: #{memto_vae_forward.1} parent=5 // pred_fallthru
      _
    %p672 = scmp.le.s32.totalorder 1, %s31
    %p673 = scmp.lt.s32.totalorder %s31, 3
    %p674 = pnand %p672, %p673
    %p675 = pneg %p674
    // Predicated region
    $region109: #{memto_vae_forward.1} parent=5 // pred_check
      _
    $region110: #{memto_vae_forward.1} parent=5 // pred_check_branch
      %677 = sbr.rel (%p674) target = $region112
    $region111: #{memto_vae_forward.1} parent=5 // pred_region
      %s678 = ssub.s32 %s31, 1
      %p679 = scmp.lt.s32.totalorder %s36, 1
      %s680 = scalar_select %p679, %s36, 1
      %s681 = smul.addr %s680, 7
      %s682 = smul.addr %s681, 8
      %s683 = scalar_lea.vmem %s0, %s682
      %p684 = pneg %p57
      %p685 = pneg %p54
      %p686 = scmp.lt.s32.totalorder %s36, 1
      %s687 = scalar_select %p686, %s36, 1
      %s688 = scalar_lea.vmem %s1, %s687
      %p689 = pneg %p83
      %p690 = pneg %p80
      %p691 = pneg %p104
      %p692 = pneg %p101
      %p693 = pneg %p125
      %p694 = pneg %p122
      %p695 = pneg %p146
      %p696 = pneg %p143
      %p697 = pneg %p167
      %p698 = pneg %p164
      %p699 = pneg %p188
      %p700 = pneg %p185
      %p701 = pneg %p209
      %p702 = pneg %p206
      %p703 = pneg %p230
      %p704 = pneg %p227
      %p705 = pneg %p251
      %p706 = pneg %p248
      %p707 = pneg %p272
      %p708 = pneg %p269
      %p709 = pneg %p293
      %p710 = pneg %p290
      %p711 = pneg %p314
      %p712 = pneg %p311
      %p713 = pneg %p335
      %p714 = pneg %p332
      %p715 = pneg %p356
      %p716 = pneg %p353
      %p717 = pneg %p377
      %p718 = pneg %p374
      %p719 = pneg %p398
      %p720 = pneg %p395
      %p721 = pneg %p419
      %p722 = pneg %p416
      %p723 = pneg %p440
      %p724 = pneg %p437
      %p725 = pneg %p461
      %p726 = pneg %p458
      %p727 = pneg %p482
      %p728 = pneg %p479
      %p729 = pneg %p503
      %p730 = pneg %p500
      %p731 = pneg %p524
      %p732 = pneg %p521
      %p733 = pneg %p550
      %p734 = pneg %p547
      %p735 = scmp.lt.s32.totalorder %s36, 1
      %s736 = scalar_select %p735, %s36, 1
      %s737 = smul.addr %s736, 7
      %s738 = smul.addr %s737, 8
      %s739 = scalar_lea.vmem %s23, %s738
      %p740 = pneg %p576
      %p741 = pneg %p573
      %p742 = scmp.lt.s32.totalorder %s36, 1
      %s743 = scalar_select %p742, %s36, 1
      %s744 = smul.addr %s743, 2
      %s745 = scalar_lea.vmem %s24, %s744
      %p746 = scmp.lt.s32.totalorder %s36, 1
      %s747 = scalar_select %p746, %s36, 1
      %s748 = smul.addr %s747, 7
      %s749 = smul.addr %s748, 8
      %s750 = scalar_lea.vmem %s0, %s749
      %p751 = scmp.lt.s32.totalorder %s36, 1
      %s752 = scalar_select %p751, %s36, 1
      %s753 = scalar_lea.vmem %s1, %s752
      %p754 = scmp.lt.s32.totalorder %s36, 1
      %s755 = scalar_select %p754, %s36, 1
      %s756 = smul.addr %s755, 7
      %s757 = smul.addr %s756, 8
      %s758 = scalar_lea.vmem %s23, %s757
      %p759 = scmp.lt.s32.totalorder %s36, 1
      %s760 = scalar_select %p759, %s36, 1
      %s761 = smul.addr %s760, 2
      %s762 = scalar_lea.vmem %s24, %s761
      %v764 = vld [vmem:[%s750] sm:$0xff]
      %v765 = vld [vmem:[%s750 + $0x8] sm:$0xff]
      %v766 = vld [vmem:[%s750 + $0x10] sm:$0xff]
      %v767 = vld [vmem:[%s750 + $0x18] sm:$0xff]
      %v768 = vld [vmem:[%s750 + $0x20] sm:$0xff]
      %v769 = vld [vmem:[%s750 + $0x28] sm:$0xff]
      %v770 = vld [vmem:[%s750 + $0x30] sm:$0x3]
      %v771 = vld [vmem:[%s2] sm:$0x3]
      %v772 = vld [vmem:[%s3] sm:$0x1]
      %v773 = vpack.c.bf16 %v765, %v764
      %v774 = vpack.c.bf16 %v767, %v766
      %v775 = vpack.c.bf16 %v769, %v768
      %v776 = vpack.c.bf16 %v770, %v770
      %v778 = vperm.slane %v772, 0
      %vm780 = vcmask 23552
      %v782 = vsel %vm780, %v773, 0
      %v785 = vsel %vm780, %v774, 0
      %v788 = vsel %vm780, %v775, 0
      %v791 = vsel %vm780, %v776, 0
      %vm793 = vcmask 1040384
      %vm794 = vcmask 1041408
      %v795 = vsel %vm793, 4294967295, 65535
      %v796 = vsel %vm794, %v795, 0
      %v798 = vand.u32 %v771, %v796
      %800 = vmatpush.bf16.msra.mxu0 0
      %801 = vmatpush.bf16.msra.mxu0 0
      %802 = vmatpush.bf16.msra.mxu0 0
      %803 = vmatpush.bf16.msra.mxu0 0
      %804 = vmatpush.bf16.msra.mxu0 0
      %805 = vmatpush.bf16.msra.mxu0 0
      %806 = vmatpush.bf16.msra.mxu0 0
      %807 = vmatpush.bf16.msra.mxu0 %v798
      %808 = vmatmul.bf16.gmra.mxu0 %v782
      %v809 = vpop.f32.mrf.mxu0
      %v810 = vadd.f32 %v778, %v809
      %v811 = vpop.f32.mrf.mxu0
      %v812 = vadd.f32 %v778, %v811
      %813 = vmatmul.bf16.gmra.mxu0 %v785
      %v814 = vpop.f32.mrf.mxu0
      %v815 = vadd.f32 %v778, %v814
      %v816 = vpop.f32.mrf.mxu0
      %v817 = vadd.f32 %v778, %v816
      %818 = vmatmul.bf16.gmra.mxu0 %v788
      %v819 = vpop.f32.mrf.mxu0
      %v820 = vadd.f32 %v778, %v819
      %v821 = vpop.f32.mrf.mxu0
      %v822 = vadd.f32 %v778, %v821
      %823 = vmatmul.bf16.gmra.mxu0 %v791
      %v824 = vpop.f32.mrf.mxu0
      %v825 = vadd.f32 %v778, %v824
      %v826 = vpop.f32.mrf.mxu0
      %827 = vdwg.mxu0
      %v828 = vlaneseq
      %v829 = vand.u32 %v828, 127
      %vm830 = vcmp.ge.s32.totalorder %v829, 0
      %vm831 = vcmp.lt.s32.totalorder %v829, 4
      %vm832 = vmand %vm830, %vm831
      %v833 = vsel %vm832, 1, 0
      %v834 = vcvt.s32.f32 %v833
      %vm835 = vcmp.ge.s32.totalorder %v829, 4
      %vm836 = vcmp.lt.s32.totalorder %v829, 8
      %vm837 = vmand %vm835, %vm836
      %v838 = vsel %vm837, 1, 0
      %v839 = vcvt.s32.f32 %v838
      %vm840 = vcmp.ge.s32.totalorder %v829, 8
      %vm841 = vcmp.lt.s32.totalorder %v829, 12
      %vm842 = vmand %vm840, %vm841
      %v843 = vsel %vm842, 1, 0
      %v844 = vcvt.s32.f32 %v843
      %vm845 = vcmp.ge.s32.totalorder %v829, 12
      %vm846 = vcmp.lt.s32.totalorder %v829, 16
      %vm847 = vmand %vm845, %vm846
      %v848 = vsel %vm847, 1, 0
      %v849 = vcvt.s32.f32 %v848
      %v850 = vld [vmem:[%s4] sm:$0xf]
      %v851 = vld [vmem:[%s4 + $0x4] sm:$0xf]
      %v852 = vld [vmem:[%s5] sm:$0x1]
      %v853 = vpack.c.bf16 %v812, %v810
      %v854 = vpack.c.bf16 %v817, %v815
      %v855 = vpack.c.bf16 %v822, %v820
      %v856 = vpack.c.bf16 %v825, %v825
      %v858 = vperm.slane %v852, 0
      %v862 = vunpack.c.l.b16 %v850
      %v863 = vunpack.c.l.b16 %v851
      %v864 = vpack.c.b16 %v863, %v862
      %vm866 = vcmask 130048
      %v868 = vsel %vm866, %v853, 0
      %v871 = vsel %vm866, %v854, 0
      %v874 = vsel %vm866, %v855, 0
      %v877 = vsel %vm866, %v856, 0
      %879 = vmatpush.bf16.msra.mxu0 0
      %880 = vmatpush.bf16.msra.mxu0 0
      %881 = vmatpush.bf16.msra.mxu0 0
      %882 = vmatpush.bf16.msra.mxu0 0
      %883 = vmatpush.bf16.msra.mxu0 0
      %884 = vmatpush.bf16.msra.mxu0 0
      %885 = vmatpush.bf16.msra.mxu0 0
      %886 = vmatpush.bf16.msra.mxu0 %v864
      %887 = vmatmul.bf16.gmra.mxu0 %v868
      %v888 = vpop.f32.mrf.mxu0
      %v889 = vadd.f32 %v858, %v888
      %v890 = vpop.f32.mrf.mxu0
      %v891 = vadd.f32 %v858, %v890
      %892 = vmatmul.bf16.gmra.mxu0 %v871
      %v893 = vpop.f32.mrf.mxu0
      %v894 = vadd.f32 %v858, %v893
      %v895 = vpop.f32.mrf.mxu0
      %v896 = vadd.f32 %v858, %v895
      %897 = vmatmul.bf16.gmra.mxu0 %v874
      %v898 = vpop.f32.mrf.mxu0
      %v899 = vadd.f32 %v858, %v898
      %v900 = vpop.f32.mrf.mxu0
      %v901 = vadd.f32 %v858, %v900
      %902 = vmatmul.bf16.gmra.mxu0 %v877
      %v903 = vpop.f32.mrf.mxu0
      %v904 = vadd.f32 %v858, %v903
      %v905 = vpop.f32.mrf.mxu0
      %906 = vdwg.mxu0
      %908 = vrot.lane.b32.xlu0 %v834, 16
      %v909 = vpop.permute.xlu0 %908
      %v911 = vmul.f32 %v889, %v909
      %v912 = vmul.f32 %v891, %v909
      %v913 = vmul.f32 %v894, %v909
      %v914 = vmul.f32 %v896, %v909
      %v915 = vmul.f32 %v899, %v909
      %v916 = vmul.f32 %v901, %v909
      %v917 = vmul.f32 %v904, %v909
      %925 = vrot.lane.b32.xlu0 %v911, 112
      %v926 = vpop.permute.xlu0 %925
      %927 = vrot.lane.b32.xlu0 %v912, 112
      %v928 = vpop.permute.xlu0 %927
      %929 = vrot.lane.b32.xlu0 %v913, 112
      %v930 = vpop.permute.xlu0 %929
      %931 = vrot.lane.b32.xlu0 %v914, 112
      %v932 = vpop.permute.xlu0 %931
      %933 = vrot.lane.b32.xlu0 %v915, 112
      %v934 = vpop.permute.xlu0 %933
      %935 = vrot.lane.b32.xlu0 %v916, 112
      %v936 = vpop.permute.xlu0 %935
      %937 = vrot.lane.b32.xlu0 %v917, 112
      %v938 = vpop.permute.xlu0 %937
      %v940 = vsel %vm866, %v889, 0
      %v943 = vsel %vm866, %v891, 0
      %v946 = vsel %vm866, %v894, 0
      %v949 = vsel %vm866, %v896, 0
      %v952 = vsel %vm866, %v899, 0
      %v955 = vsel %vm866, %v901, 0
      %v958 = vsel %vm866, %v904, 0
      %v960 = vsel %vm866, %v926, 0
      %v962 = vsel %vm866, %v928, 0
      %v964 = vsel %vm866, %v930, 0
      %v966 = vsel %vm866, %v932, 0
      %v968 = vsel %vm866, %v934, 0
      %v970 = vsel %vm866, %v936, 0
      %v972 = vsel %vm866, %v938, 0
      %974 = vmatpush.xpose.msra.mxu0 0.0
      %975 = vmatpush.xpose.msra.mxu0 0.0
      %976 = vmatpush.xpose.msra.mxu0 0.0
      %977 = vmatpush.xpose.msra.mxu0 0.0
      %978 = vmatpush.xpose.msra.mxu0 0.0
      %979 = vmatpush.xpose.msra.mxu0 0.0
      %980 = vmatpush.xpose.msra.mxu0 0.0
      %981 = vmatpush.xpose.msra.mxu0 0.0
      %982 = vmatpush.xpose.msra.mxu0 0.0
      %983 = vmatpush.xpose.msra.mxu0 %v972
      %984 = vmatpush.xpose.msra.mxu0 %v970
      %985 = vmatpush.xpose.msra.mxu0 %v968
      %986 = vmatpush.xpose.msra.mxu0 %v966
      %987 = vmatpush.xpose.msra.mxu0 %v964
      %988 = vmatpush.xpose.msra.mxu0 %v962
      %989 = vmatpush.xpose.msra.mxu0 %v960
      %990 = vmatmul.f32.gmra.mxu0 %v940
      %v991 = vpop.f32.mrf.mxu0
      %v992 = vadd.f32 0.0, %v991
      %993 = vmatmul.f32.gmra.mxu0 %v943
      %v994 = vpop.f32.mrf.mxu0
      %v995 = vadd.f32 0.0, %v994
      %996 = vmatmul.f32.gmra.mxu0 %v946
      %v997 = vpop.f32.mrf.mxu0
      %v998 = vadd.f32 0.0, %v997
      %999 = vmatmul.f32.gmra.mxu0 %v949
      %v1000 = vpop.f32.mrf.mxu0
      %v1001 = vadd.f32 0.0, %v1000
      %1002 = vmatmul.f32.gmra.mxu0 %v952
      %v1003 = vpop.f32.mrf.mxu0
      %v1004 = vadd.f32 0.0, %v1003
      %1005 = vmatmul.f32.gmra.mxu0 %v955
      %v1006 = vpop.f32.mrf.mxu0
      %v1007 = vadd.f32 0.0, %v1006
      %1008 = vmatmul.f32.gmra.mxu0 %v958
      %v1009 = vpop.f32.mrf.mxu0
      %v1010 = vadd.f32 0.0, %v1009
      %1011 = vdwg.mxu0
      %v1012 = vmul.f32 %v992, 0.5
      %v1013 = vmul.f32 %v995, 0.5
      %v1014 = vmul.f32 %v998, 0.5
      %v1015 = vmul.f32 %v1001, 0.5
      %v1016 = vmul.f32 %v1004, 0.5
      %v1017 = vmul.f32 %v1007, 0.5
      %v1018 = vmul.f32 %v1010, 0.5
      %vm1019 = vcmask 408576
      %v1020 = vsel %vm1019, %v1012, -inf
      %1021 = vmax.xlane.f32.xlu0 %v1020
      %v1022 = vpop.xlane.xlu0 %1021
      %v1023 = vsel %vm1019, %v1013, -inf
      %1024 = vmax.xlane.f32.xlu0 %v1023
      %v1025 = vpop.xlane.xlu0 %1024
      %v1026 = vsel %vm1019, %v1014, -inf
      %1027 = vmax.xlane.f32.xlu0 %v1026
      %v1028 = vpop.xlane.xlu0 %1027
      %v1029 = vsel %vm1019, %v1015, -inf
      %1030 = vmax.xlane.f32.xlu0 %v1029
      %v1031 = vpop.xlane.xlu0 %1030
      %v1032 = vsel %vm1019, %v1016, -inf
      %1033 = vmax.xlane.f32.xlu0 %v1032
      %v1034 = vpop.xlane.xlu0 %1033
      %v1035 = vsel %vm1019, %v1017, -inf
      %1036 = vmax.xlane.f32.xlu0 %v1035
      %v1037 = vpop.xlane.xlu0 %1036
      %vm1038 = vcmask 402432
      %v1039 = vsel %vm1038, %v1018, -inf
      %1040 = vmax.xlane.f32.xlu0 %v1039
      %v1041 = vpop.xlane.xlu0 %1040
      %v1042 = vsub.f32 %v1012, %v1022
      %v1043 = vsub.f32 %v1013, %v1025
      %v1044 = vsub.f32 %v1014, %v1028
      %v1045 = vsub.f32 %v1015, %v1031
      %v1046 = vsub.f32 %v1016, %v1034
      %v1047 = vsub.f32 %v1017, %v1037
      %v1048 = vsub.f32 %v1018, %v1041
      %v1049 = vmul.f32 %v1042, 1.442695
      %v1050 = vpow.pop %v1049
      %v1051 = vmul.f32 %v1043, 1.442695
      %v1052 = vpow.pop %v1051
      %v1053 = vmul.f32 %v1044, 1.442695
      %v1054 = vpow.pop %v1053
      %v1055 = vmul.f32 %v1045, 1.442695
      %v1056 = vpow.pop %v1055
      %v1057 = vmul.f32 %v1046, 1.442695
      %v1058 = vpow.pop %v1057
      %v1059 = vmul.f32 %v1047, 1.442695
      %v1060 = vpow.pop %v1059
      %v1061 = vmul.f32 %v1048, 1.442695
      %v1062 = vpow.pop %v1061
      %v1063 = vsel %vm1019, %v1050, 0.0
      %1064 = vadd.xlane.f32.xlu0 %v1063
      %v1065 = vpop.xlane.xlu0 %1064
      %v1066 = vsel %vm1019, %v1052, 0.0
      %1067 = vadd.xlane.f32.xlu0 %v1066
      %v1068 = vpop.xlane.xlu0 %1067
      %v1069 = vsel %vm1019, %v1054, 0.0
      %1070 = vadd.xlane.f32.xlu0 %v1069
      %v1071 = vpop.xlane.xlu0 %1070
      %v1072 = vsel %vm1019, %v1056, 0.0
      %1073 = vadd.xlane.f32.xlu0 %v1072
      %v1074 = vpop.xlane.xlu0 %1073
      %v1075 = vsel %vm1019, %v1058, 0.0
      %1076 = vadd.xlane.f32.xlu0 %v1075
      %v1077 = vpop.xlane.xlu0 %1076
      %v1078 = vsel %vm1019, %v1060, 0.0
      %1079 = vadd.xlane.f32.xlu0 %v1078
      %v1080 = vpop.xlane.xlu0 %1079
      %v1081 = vsel %vm1038, %v1062, 0.0
      %1082 = vadd.xlane.f32.xlu0 %v1081
      %v1083 = vpop.xlane.xlu0 %1082
      %v1084 = vrcp.pop %v1065
      %v1085 = vrcp.pop %v1068
      %v1086 = vrcp.pop %v1071
      %v1087 = vrcp.pop %v1074
      %v1088 = vrcp.pop %v1077
      %v1089 = vrcp.pop %v1080
      %v1090 = vrcp.pop %v1083
      %v1091 = vmul.f32 %v1050, %v1084
      %v1092 = vmul.f32 %v1052, %v1085
      %v1093 = vmul.f32 %v1054, %v1086
      %v1094 = vmul.f32 %v1056, %v1087
      %v1095 = vmul.f32 %v1058, %v1088
      %v1096 = vmul.f32 %v1060, %v1089
      %v1097 = vmul.f32 %v1062, %v1090
      %1098 = vrot.lane.b32.xlu0 %v834, 32
      %v1099 = vpop.permute.xlu0 %1098
      %v1101 = vmul.f32 %v889, %v1099
      %v1102 = vmul.f32 %v891, %v1099
      %v1103 = vmul.f32 %v894, %v1099
      %v1104 = vmul.f32 %v896, %v1099
      %v1105 = vmul.f32 %v899, %v1099
      %v1106 = vmul.f32 %v901, %v1099
      %v1107 = vmul.f32 %v904, %v1099
      %1109 = vrot.lane.b32.xlu0 %v839, 16
      %v1110 = vpop.permute.xlu0 %1109
      %v1112 = vmul.f32 %v889, %v1110
      %v1113 = vmul.f32 %v891, %v1110
      %v1114 = vmul.f32 %v894, %v1110
      %v1115 = vmul.f32 %v896, %v1110
      %v1116 = vmul.f32 %v899, %v1110
      %v1117 = vmul.f32 %v901, %v1110
      %v1118 = vmul.f32 %v904, %v1110
      %1126 = vrot.lane.b32.xlu0 %v1112, 112
      %v1127 = vpop.permute.xlu0 %1126
      %1128 = vrot.lane.b32.xlu0 %v1113, 112
      %v1129 = vpop.permute.xlu0 %1128
      %1130 = vrot.lane.b32.xlu0 %v1114, 112
      %v1131 = vpop.permute.xlu0 %1130
      %1132 = vrot.lane.b32.xlu0 %v1115, 112
      %v1133 = vpop.permute.xlu0 %1132
      %1134 = vrot.lane.b32.xlu0 %v1116, 112
      %v1135 = vpop.permute.xlu0 %1134
      %1136 = vrot.lane.b32.xlu0 %v1117, 112
      %v1137 = vpop.permute.xlu0 %1136
      %1138 = vrot.lane.b32.xlu0 %v1118, 112
      %v1139 = vpop.permute.xlu0 %1138
      %v1140 = vsel %vm866, %v1127, 0
      %v1142 = vsel %vm866, %v1129, 0
      %v1144 = vsel %vm866, %v1131, 0
      %v1146 = vsel %vm866, %v1133, 0
      %v1148 = vsel %vm866, %v1135, 0
      %v1150 = vsel %vm866, %v1137, 0
      %v1152 = vsel %vm866, %v1139, 0
      %1154 = vmatpush.xpose.msra.mxu0 0.0
      %1155 = vmatpush.xpose.msra.mxu0 0.0
      %1156 = vmatpush.xpose.msra.mxu0 0.0
      %1157 = vmatpush.xpose.msra.mxu0 0.0
      %1158 = vmatpush.xpose.msra.mxu0 0.0
      %1159 = vmatpush.xpose.msra.mxu0 0.0
      %1160 = vmatpush.xpose.msra.mxu0 0.0
      %1161 = vmatpush.xpose.msra.mxu0 0.0
      %1162 = vmatpush.xpose.msra.mxu0 0.0
      %1163 = vmatpush.xpose.msra.mxu0 %v1152
      %1164 = vmatpush.xpose.msra.mxu0 %v1150
      %1165 = vmatpush.xpose.msra.mxu0 %v1148
      %1166 = vmatpush.xpose.msra.mxu0 %v1146
      %1167 = vmatpush.xpose.msra.mxu0 %v1144
      %1168 = vmatpush.xpose.msra.mxu0 %v1142
      %1169 = vmatpush.xpose.msra.mxu0 %v1140
      %1170 = vmatmul.f32.gmra.mxu0 %v940
      %v1171 = vpop.f32.mrf.mxu0
      %v1172 = vadd.f32 0.0, %v1171
      %1173 = vmatmul.f32.gmra.mxu0 %v943
      %v1174 = vpop.f32.mrf.mxu0
      %v1175 = vadd.f32 0.0, %v1174
      %1176 = vmatmul.f32.gmra.mxu0 %v946
      %v1177 = vpop.f32.mrf.mxu0
      %v1178 = vadd.f32 0.0, %v1177
      %1179 = vmatmul.f32.gmra.mxu0 %v949
      %v1180 = vpop.f32.mrf.mxu0
      %v1181 = vadd.f32 0.0, %v1180
      %1182 = vmatmul.f32.gmra.mxu0 %v952
      %v1183 = vpop.f32.mrf.mxu0
      %v1184 = vadd.f32 0.0, %v1183
      %1185 = vmatmul.f32.gmra.mxu0 %v955
      %v1186 = vpop.f32.mrf.mxu0
      %v1187 = vadd.f32 0.0, %v1186
      %1188 = vmatmul.f32.gmra.mxu0 %v958
      %v1189 = vpop.f32.mrf.mxu0
      %v1190 = vadd.f32 0.0, %v1189
      %1191 = vdwg.mxu0
      %v1192 = vmul.f32 %v1172, 0.5
      %v1193 = vmul.f32 %v1175, 0.5
      %v1194 = vmul.f32 %v1178, 0.5
      %v1195 = vmul.f32 %v1181, 0.5
      %v1196 = vmul.f32 %v1184, 0.5
      %v1197 = vmul.f32 %v1187, 0.5
      %v1198 = vmul.f32 %v1190, 0.5
      %v1199 = vsel %vm1019, %v1192, -inf
      %1200 = vmax.xlane.f32.xlu0 %v1199
      %v1201 = vpop.xlane.xlu0 %1200
      %v1202 = vsel %vm1019, %v1193, -inf
      %1203 = vmax.xlane.f32.xlu0 %v1202
      %v1204 = vpop.xlane.xlu0 %1203
      %v1205 = vsel %vm1019, %v1194, -inf
      %1206 = vmax.xlane.f32.xlu0 %v1205
      %v1207 = vpop.xlane.xlu0 %1206
      %v1208 = vsel %vm1019, %v1195, -inf
      %1209 = vmax.xlane.f32.xlu0 %v1208
      %v1210 = vpop.xlane.xlu0 %1209
      %v1211 = vsel %vm1019, %v1196, -inf
      %1212 = vmax.xlane.f32.xlu0 %v1211
      %v1213 = vpop.xlane.xlu0 %1212
      %v1214 = vsel %vm1019, %v1197, -inf
      %1215 = vmax.xlane.f32.xlu0 %v1214
      %v1216 = vpop.xlane.xlu0 %1215
      %v1217 = vsel %vm1038, %v1198, -inf
      %1218 = vmax.xlane.f32.xlu0 %v1217
      %v1219 = vpop.xlane.xlu0 %1218
      %v1220 = vsub.f32 %v1192, %v1201
      %v1221 = vsub.f32 %v1193, %v1204
      %v1222 = vsub.f32 %v1194, %v1207
      %v1223 = vsub.f32 %v1195, %v1210
      %v1224 = vsub.f32 %v1196, %v1213
      %v1225 = vsub.f32 %v1197, %v1216
      %v1226 = vsub.f32 %v1198, %v1219
      %v1227 = vmul.f32 %v1220, 1.442695
      %v1228 = vpow.pop %v1227
      %v1229 = vmul.f32 %v1221, 1.442695
      %v1230 = vpow.pop %v1229
      %v1231 = vmul.f32 %v1222, 1.442695
      %v1232 = vpow.pop %v1231
      %v1233 = vmul.f32 %v1223, 1.442695
      %v1234 = vpow.pop %v1233
      %v1235 = vmul.f32 %v1224, 1.442695
      %v1236 = vpow.pop %v1235
      %v1237 = vmul.f32 %v1225, 1.442695
      %v1238 = vpow.pop %v1237
      %v1239 = vmul.f32 %v1226, 1.442695
      %v1240 = vpow.pop %v1239
      %v1241 = vsel %vm1019, %v1228, 0.0
      %1242 = vadd.xlane.f32.xlu0 %v1241
      %v1243 = vpop.xlane.xlu0 %1242
      %v1244 = vsel %vm1019, %v1230, 0.0
      %1245 = vadd.xlane.f32.xlu0 %v1244
      %v1246 = vpop.xlane.xlu0 %1245
      %v1247 = vsel %vm1019, %v1232, 0.0
      %1248 = vadd.xlane.f32.xlu0 %v1247
      %v1249 = vpop.xlane.xlu0 %1248
      %v1250 = vsel %vm1019, %v1234, 0.0
      %1251 = vadd.xlane.f32.xlu0 %v1250
      %v1252 = vpop.xlane.xlu0 %1251
      %v1253 = vsel %vm1019, %v1236, 0.0
      %1254 = vadd.xlane.f32.xlu0 %v1253
      %v1255 = vpop.xlane.xlu0 %1254
      %v1256 = vsel %vm1019, %v1238, 0.0
      %1257 = vadd.xlane.f32.xlu0 %v1256
      %v1258 = vpop.xlane.xlu0 %1257
      %v1259 = vsel %vm1038, %v1240, 0.0
      %1260 = vadd.xlane.f32.xlu0 %v1259
      %v1261 = vpop.xlane.xlu0 %1260
      %v1262 = vrcp.pop %v1243
      %v1263 = vrcp.pop %v1246
      %v1264 = vrcp.pop %v1249
      %v1265 = vrcp.pop %v1252
      %v1266 = vrcp.pop %v1255
      %v1267 = vrcp.pop %v1258
      %v1268 = vrcp.pop %v1261
      %v1269 = vmul.f32 %v1228, %v1262
      %v1270 = vmul.f32 %v1230, %v1263
      %v1271 = vmul.f32 %v1232, %v1264
      %v1272 = vmul.f32 %v1234, %v1265
      %v1273 = vmul.f32 %v1236, %v1266
      %v1274 = vmul.f32 %v1238, %v1267
      %v1275 = vmul.f32 %v1240, %v1268
      %1276 = vrot.lane.b32.xlu0 %v839, 32
      %v1277 = vpop.permute.xlu0 %1276
      %v1279 = vmul.f32 %v889, %v1277
      %v1280 = vmul.f32 %v891, %v1277
      %v1281 = vmul.f32 %v894, %v1277
      %v1282 = vmul.f32 %v896, %v1277
      %v1283 = vmul.f32 %v899, %v1277
      %v1284 = vmul.f32 %v901, %v1277
      %v1285 = vmul.f32 %v904, %v1277
      %1293 = vrot.lane.b32.xlu0 %v1279, 96
      %v1294 = vpop.permute.xlu0 %1293
      %1295 = vrot.lane.b32.xlu0 %v1280, 96
      %v1296 = vpop.permute.xlu0 %1295
      %1297 = vrot.lane.b32.xlu0 %v1281, 96
      %v1298 = vpop.permute.xlu0 %1297
      %1299 = vrot.lane.b32.xlu0 %v1282, 96
      %v1300 = vpop.permute.xlu0 %1299
      %1301 = vrot.lane.b32.xlu0 %v1283, 96
      %v1302 = vpop.permute.xlu0 %1301
      %1303 = vrot.lane.b32.xlu0 %v1284, 96
      %v1304 = vpop.permute.xlu0 %1303
      %1305 = vrot.lane.b32.xlu0 %v1285, 96
      %v1306 = vpop.permute.xlu0 %1305
      %v1314 = vsel %vm1019, %v1269, 0
      %v1317 = vsel %vm1019, %v1270, 0
      %v1320 = vsel %vm1019, %v1271, 0
      %v1323 = vsel %vm1019, %v1272, 0
      %v1326 = vsel %vm1019, %v1273, 0
      %v1329 = vsel %vm1019, %v1274, 0
      %v1332 = vsel %vm1019, %v1275, 0
      %v1334 = vsel %vm794, %v1306, 0
      %1336 = vmatpush.msra.mxu0 0.0
      %1337 = vmatpush.msra.mxu0 0.0
      %1338 = vmatpush.msra.mxu0 0.0
      %1339 = vmatpush.msra.mxu0 0.0
      %1340 = vmatpush.msra.mxu0 0.0
      %1341 = vmatpush.msra.mxu0 0.0
      %1342 = vmatpush.msra.mxu0 0.0
      %1343 = vmatpush.msra.mxu0 0.0
      %1344 = vmatpush.msra.mxu0 0.0
      %1345 = vmatpush.msra.mxu0 %v1334
      %1346 = vmatpush.msra.mxu0 %v1304
      %1347 = vmatpush.msra.mxu0 %v1302
      %1348 = vmatpush.msra.mxu0 %v1300
      %1349 = vmatpush.msra.mxu0 %v1298
      %1350 = vmatpush.msra.mxu0 %v1296
      %1351 = vmatpush.msra.mxu0 %v1294
      %1352 = vmatmul.f32.gmra.mxu0 %v1314
      %v1353 = vpop.f32.mrf.mxu0
      %v1354 = vadd.f32 0.0, %v1353
      %1355 = vmatmul.f32.gmra.mxu0 %v1317
      %v1356 = vpop.f32.mrf.mxu0
      %v1357 = vadd.f32 0.0, %v1356
      %1358 = vmatmul.f32.gmra.mxu0 %v1320
      %v1359 = vpop.f32.mrf.mxu0
      %v1360 = vadd.f32 0.0, %v1359
      %1361 = vmatmul.f32.gmra.mxu0 %v1323
      %v1362 = vpop.f32.mrf.mxu0
      %v1363 = vadd.f32 0.0, %v1362
      %1364 = vmatmul.f32.gmra.mxu0 %v1326
      %v1365 = vpop.f32.mrf.mxu0
      %v1366 = vadd.f32 0.0, %v1365
      %1367 = vmatmul.f32.gmra.mxu0 %v1329
      %v1368 = vpop.f32.mrf.mxu0
      %v1369 = vadd.f32 0.0, %v1368
      %1370 = vmatmul.f32.gmra.mxu0 %v1332
      %v1371 = vpop.f32.mrf.mxu0
      %v1372 = vadd.f32 0.0, %v1371
      %1373 = vdwg.mxu0
      %1381 = vrot.lane.b32.xlu0 %v1101, 96
      %v1382 = vpop.permute.xlu0 %1381
      %1383 = vrot.lane.b32.xlu0 %v1102, 96
      %v1384 = vpop.permute.xlu0 %1383
      %1385 = vrot.lane.b32.xlu0 %v1103, 96
      %v1386 = vpop.permute.xlu0 %1385
      %1387 = vrot.lane.b32.xlu0 %v1104, 96
      %v1388 = vpop.permute.xlu0 %1387
      %1389 = vrot.lane.b32.xlu0 %v1105, 96
      %v1390 = vpop.permute.xlu0 %1389
      %1391 = vrot.lane.b32.xlu0 %v1106, 96
      %v1392 = vpop.permute.xlu0 %1391
      %1393 = vrot.lane.b32.xlu0 %v1107, 96
      %v1394 = vpop.permute.xlu0 %1393
      %v1402 = vsel %vm1019, %v1091, 0
      %v1405 = vsel %vm1019, %v1092, 0
      %v1408 = vsel %vm1019, %v1093, 0
      %v1411 = vsel %vm1019, %v1094, 0
      %v1414 = vsel %vm1019, %v1095, 0
      %v1417 = vsel %vm1019, %v1096, 0
      %v1420 = vsel %vm1019, %v1097, 0
      %v1422 = vsel %vm794, %v1394, 0
      %1424 = vmatpush.msra.mxu0 0.0
      %1425 = vmatpush.msra.mxu0 0.0
      %1426 = vmatpush.msra.mxu0 0.0
      %1427 = vmatpush.msra.mxu0 0.0
      %1428 = vmatpush.msra.mxu0 0.0
      %1429 = vmatpush.msra.mxu0 0.0
      %1430 = vmatpush.msra.mxu0 0.0
      %1431 = vmatpush.msra.mxu0 0.0
      %1432 = vmatpush.msra.mxu0 0.0
      %1433 = vmatpush.msra.mxu0 %v1422
      %1434 = vmatpush.msra.mxu0 %v1392
      %1435 = vmatpush.msra.mxu0 %v1390
      %1436 = vmatpush.msra.mxu0 %v1388
      %1437 = vmatpush.msra.mxu0 %v1386
      %1438 = vmatpush.msra.mxu0 %v1384
      %1439 = vmatpush.msra.mxu0 %v1382
      %1440 = vmatmul.f32.gmra.mxu0 %v1402
      %v1441 = vpop.f32.mrf.mxu0
      %v1442 = vadd.f32 %v1354, %v1441
      %1443 = vmatmul.f32.gmra.mxu0 %v1405
      %v1444 = vpop.f32.mrf.mxu0
      %v1445 = vadd.f32 %v1357, %v1444
      %1446 = vmatmul.f32.gmra.mxu0 %v1408
      %v1447 = vpop.f32.mrf.mxu0
      %v1448 = vadd.f32 %v1360, %v1447
      %1449 = vmatmul.f32.gmra.mxu0 %v1411
      %v1450 = vpop.f32.mrf.mxu0
      %v1451 = vadd.f32 %v1363, %v1450
      %1452 = vmatmul.f32.gmra.mxu0 %v1414
      %v1453 = vpop.f32.mrf.mxu0
      %v1454 = vadd.f32 %v1366, %v1453
      %1455 = vmatmul.f32.gmra.mxu0 %v1417
      %v1456 = vpop.f32.mrf.mxu0
      %v1457 = vadd.f32 %v1369, %v1456
      %1458 = vmatmul.f32.gmra.mxu0 %v1420
      %v1459 = vpop.f32.mrf.mxu0
      %v1460 = vadd.f32 %v1372, %v1459
      %1461 = vdwg.mxu0
      %1463 = vrot.lane.b32.xlu0 %v844, 16
      %v1464 = vpop.permute.xlu0 %1463
      %v1466 = vmul.f32 %v889, %v1464
      %v1467 = vmul.f32 %v891, %v1464
      %v1468 = vmul.f32 %v894, %v1464
      %v1469 = vmul.f32 %v896, %v1464
      %v1470 = vmul.f32 %v899, %v1464
      %v1471 = vmul.f32 %v901, %v1464
      %v1472 = vmul.f32 %v904, %v1464
      %1480 = vrot.lane.b32.xlu0 %v1466, 112
      %v1481 = vpop.permute.xlu0 %1480
      %1482 = vrot.lane.b32.xlu0 %v1467, 112
      %v1483 = vpop.permute.xlu0 %1482
      %1484 = vrot.lane.b32.xlu0 %v1468, 112
      %v1485 = vpop.permute.xlu0 %1484
      %1486 = vrot.lane.b32.xlu0 %v1469, 112
      %v1487 = vpop.permute.xlu0 %1486
      %1488 = vrot.lane.b32.xlu0 %v1470, 112
      %v1489 = vpop.permute.xlu0 %1488
      %1490 = vrot.lane.b32.xlu0 %v1471, 112
      %v1491 = vpop.permute.xlu0 %1490
      %1492 = vrot.lane.b32.xlu0 %v1472, 112
      %v1493 = vpop.permute.xlu0 %1492
      %v1494 = vsel %vm866, %v1481, 0
      %v1496 = vsel %vm866, %v1483, 0
      %v1498 = vsel %vm866, %v1485, 0
      %v1500 = vsel %vm866, %v1487, 0
      %v1502 = vsel %vm866, %v1489, 0
      %v1504 = vsel %vm866, %v1491, 0
      %v1506 = vsel %vm866, %v1493, 0
      %1508 = vmatpush.xpose.msra.mxu0 0.0
      %1509 = vmatpush.xpose.msra.mxu0 0.0
      %1510 = vmatpush.xpose.msra.mxu0 0.0
      %1511 = vmatpush.xpose.msra.mxu0 0.0
      %1512 = vmatpush.xpose.msra.mxu0 0.0
      %1513 = vmatpush.xpose.msra.mxu0 0.0
      %1514 = vmatpush.xpose.msra.mxu0 0.0
      %1515 = vmatpush.xpose.msra.mxu0 0.0
      %1516 = vmatpush.xpose.msra.mxu0 0.0
      %1517 = vmatpush.xpose.msra.mxu0 %v1506
      %1518 = vmatpush.xpose.msra.mxu0 %v1504
      %1519 = vmatpush.xpose.msra.mxu0 %v1502
      %1520 = vmatpush.xpose.msra.mxu0 %v1500
      %1521 = vmatpush.xpose.msra.mxu0 %v1498
      %1522 = vmatpush.xpose.msra.mxu0 %v1496
      %1523 = vmatpush.xpose.msra.mxu0 %v1494
      %1524 = vmatmul.f32.gmra.mxu0 %v940
      %v1525 = vpop.f32.mrf.mxu0
      %v1526 = vadd.f32 0.0, %v1525
      %1527 = vmatmul.f32.gmra.mxu0 %v943
      %v1528 = vpop.f32.mrf.mxu0
      %v1529 = vadd.f32 0.0, %v1528
      %1530 = vmatmul.f32.gmra.mxu0 %v946
      %v1531 = vpop.f32.mrf.mxu0
      %v1532 = vadd.f32 0.0, %v1531
      %1533 = vmatmul.f32.gmra.mxu0 %v949
      %v1534 = vpop.f32.mrf.mxu0
      %v1535 = vadd.f32 0.0, %v1534
      %1536 = vmatmul.f32.gmra.mxu0 %v952
      %v1537 = vpop.f32.mrf.mxu0
      %v1538 = vadd.f32 0.0, %v1537
      %1539 = vmatmul.f32.gmra.mxu0 %v955
      %v1540 = vpop.f32.mrf.mxu0
      %v1541 = vadd.f32 0.0, %v1540
      %1542 = vmatmul.f32.gmra.mxu0 %v958
      %v1543 = vpop.f32.mrf.mxu0
      %v1544 = vadd.f32 0.0, %v1543
      %1545 = vdwg.mxu0
      %v1546 = vmul.f32 %v1526, 0.5
      %v1547 = vmul.f32 %v1529, 0.5
      %v1548 = vmul.f32 %v1532, 0.5
      %v1549 = vmul.f32 %v1535, 0.5
      %v1550 = vmul.f32 %v1538, 0.5
      %v1551 = vmul.f32 %v1541, 0.5
      %v1552 = vmul.f32 %v1544, 0.5
      %v1553 = vsel %vm1019, %v1546, -inf
      %1554 = vmax.xlane.f32.xlu0 %v1553
      %v1555 = vpop.xlane.xlu0 %1554
      %v1556 = vsel %vm1019, %v1547, -inf
      %1557 = vmax.xlane.f32.xlu0 %v1556
      %v1558 = vpop.xlane.xlu0 %1557
      %v1559 = vsel %vm1019, %v1548, -inf
      %1560 = vmax.xlane.f32.xlu0 %v1559
      %v1561 = vpop.xlane.xlu0 %1560
      %v1562 = vsel %vm1019, %v1549, -inf
      %1563 = vmax.xlane.f32.xlu0 %v1562
      %v1564 = vpop.xlane.xlu0 %1563
      %v1565 = vsel %vm1019, %v1550, -inf
      %1566 = vmax.xlane.f32.xlu0 %v1565
      %v1567 = vpop.xlane.xlu0 %1566
      %v1568 = vsel %vm1019, %v1551, -inf
      %1569 = vmax.xlane.f32.xlu0 %v1568
      %v1570 = vpop.xlane.xlu0 %1569
      %v1571 = vsel %vm1038, %v1552, -inf
      %1572 = vmax.xlane.f32.xlu0 %v1571
      %v1573 = vpop.xlane.xlu0 %1572
      %v1574 = vsub.f32 %v1546, %v1555
      %v1575 = vsub.f32 %v1547, %v1558
      %v1576 = vsub.f32 %v1548, %v1561
      %v1577 = vsub.f32 %v1549, %v1564
      %v1578 = vsub.f32 %v1550, %v1567
      %v1579 = vsub.f32 %v1551, %v1570
      %v1580 = vsub.f32 %v1552, %v1573
      %v1581 = vmul.f32 %v1574, 1.442695
      %v1582 = vpow.pop %v1581
      %v1583 = vmul.f32 %v1575, 1.442695
      %v1584 = vpow.pop %v1583
      %v1585 = vmul.f32 %v1576, 1.442695
      %v1586 = vpow.pop %v1585
      %v1587 = vmul.f32 %v1577, 1.442695
      %v1588 = vpow.pop %v1587
      %v1589 = vmul.f32 %v1578, 1.442695
      %v1590 = vpow.pop %v1589
      %v1591 = vmul.f32 %v1579, 1.442695
      %v1592 = vpow.pop %v1591
      %v1593 = vmul.f32 %v1580, 1.442695
      %v1594 = vpow.pop %v1593
      %v1595 = vsel %vm1019, %v1582, 0.0
      %1596 = vadd.xlane.f32.xlu0 %v1595
      %v1597 = vpop.xlane.xlu0 %1596
      %v1598 = vsel %vm1019, %v1584, 0.0
      %1599 = vadd.xlane.f32.xlu0 %v1598
      %v1600 = vpop.xlane.xlu0 %1599
      %v1601 = vsel %vm1019, %v1586, 0.0
      %1602 = vadd.xlane.f32.xlu0 %v1601
      %v1603 = vpop.xlane.xlu0 %1602
      %v1604 = vsel %vm1019, %v1588, 0.0
      %1605 = vadd.xlane.f32.xlu0 %v1604
      %v1606 = vpop.xlane.xlu0 %1605
      %v1607 = vsel %vm1019, %v1590, 0.0
      %1608 = vadd.xlane.f32.xlu0 %v1607
      %v1609 = vpop.xlane.xlu0 %1608
      %v1610 = vsel %vm1019, %v1592, 0.0
      %1611 = vadd.xlane.f32.xlu0 %v1610
      %v1612 = vpop.xlane.xlu0 %1611
      %v1613 = vsel %vm1038, %v1594, 0.0
      %1614 = vadd.xlane.f32.xlu0 %v1613
      %v1615 = vpop.xlane.xlu0 %1614
      %v1616 = vrcp.pop %v1597
      %v1617 = vrcp.pop %v1600
      %v1618 = vrcp.pop %v1603
      %v1619 = vrcp.pop %v1606
      %v1620 = vrcp.pop %v1609
      %v1621 = vrcp.pop %v1612
      %v1622 = vrcp.pop %v1615
      %v1623 = vmul.f32 %v1582, %v1616
      %v1624 = vmul.f32 %v1584, %v1617
      %v1625 = vmul.f32 %v1586, %v1618
      %v1626 = vmul.f32 %v1588, %v1619
      %v1627 = vmul.f32 %v1590, %v1620
      %v1628 = vmul.f32 %v1592, %v1621
      %v1629 = vmul.f32 %v1594, %v1622
      %1630 = vrot.lane.b32.xlu0 %v844, 32
      %v1631 = vpop.permute.xlu0 %1630
      %v1633 = vmul.f32 %v889, %v1631
      %v1634 = vmul.f32 %v891, %v1631
      %v1635 = vmul.f32 %v894, %v1631
      %v1636 = vmul.f32 %v896, %v1631
      %v1637 = vmul.f32 %v899, %v1631
      %v1638 = vmul.f32 %v901, %v1631
      %v1639 = vmul.f32 %v904, %v1631
      %1647 = vrot.lane.b32.xlu0 %v1633, 96
      %v1648 = vpop.permute.xlu0 %1647
      %1649 = vrot.lane.b32.xlu0 %v1634, 96
      %v1650 = vpop.permute.xlu0 %1649
      %1651 = vrot.lane.b32.xlu0 %v1635, 96
      %v1652 = vpop.permute.xlu0 %1651
      %1653 = vrot.lane.b32.xlu0 %v1636, 96
      %v1654 = vpop.permute.xlu0 %1653
      %1655 = vrot.lane.b32.xlu0 %v1637, 96
      %v1656 = vpop.permute.xlu0 %1655
      %1657 = vrot.lane.b32.xlu0 %v1638, 96
      %v1658 = vpop.permute.xlu0 %1657
      %1659 = vrot.lane.b32.xlu0 %v1639, 96
      %v1660 = vpop.permute.xlu0 %1659
      %v1668 = vsel %vm1019, %v1623, 0
      %v1671 = vsel %vm1019, %v1624, 0
      %v1674 = vsel %vm1019, %v1625, 0
      %v1677 = vsel %vm1019, %v1626, 0
      %v1680 = vsel %vm1019, %v1627, 0
      %v1683 = vsel %vm1019, %v1628, 0
      %v1686 = vsel %vm1019, %v1629, 0
      %v1688 = vsel %vm794, %v1660, 0
      %1690 = vmatpush.msra.mxu0 0.0
      %1691 = vmatpush.msra.mxu0 0.0
      %1692 = vmatpush.msra.mxu0 0.0
      %1693 = vmatpush.msra.mxu0 0.0
      %1694 = vmatpush.msra.mxu0 0.0
      %1695 = vmatpush.msra.mxu0 0.0
      %1696 = vmatpush.msra.mxu0 0.0
      %1697 = vmatpush.msra.mxu0 0.0
      %1698 = vmatpush.msra.mxu0 0.0
      %1699 = vmatpush.msra.mxu0 %v1688
      %1700 = vmatpush.msra.mxu0 %v1658
      %1701 = vmatpush.msra.mxu0 %v1656
      %1702 = vmatpush.msra.mxu0 %v1654
      %1703 = vmatpush.msra.mxu0 %v1652
      %1704 = vmatpush.msra.mxu0 %v1650
      %1705 = vmatpush.msra.mxu0 %v1648
      %1706 = vmatmul.f32.gmra.mxu0 %v1668
      %v1707 = vpop.f32.mrf.mxu0
      %v1708 = vadd.f32 0.0, %v1707
      %1709 = vmatmul.f32.gmra.mxu0 %v1671
      %v1710 = vpop.f32.mrf.mxu0
      %v1711 = vadd.f32 0.0, %v1710
      %1712 = vmatmul.f32.gmra.mxu0 %v1674
      %v1713 = vpop.f32.mrf.mxu0
      %v1714 = vadd.f32 0.0, %v1713
      %1715 = vmatmul.f32.gmra.mxu0 %v1677
      %v1716 = vpop.f32.mrf.mxu0
      %v1717 = vadd.f32 0.0, %v1716
      %1718 = vmatmul.f32.gmra.mxu0 %v1680
      %v1719 = vpop.f32.mrf.mxu0
      %v1720 = vadd.f32 0.0, %v1719
      %1721 = vmatmul.f32.gmra.mxu0 %v1683
      %v1722 = vpop.f32.mrf.mxu0
      %v1723 = vadd.f32 0.0, %v1722
      %1724 = vmatmul.f32.gmra.mxu0 %v1686
      %v1725 = vpop.f32.mrf.mxu0
      %v1726 = vadd.f32 0.0, %v1725
      %1727 = vdwg.mxu0
      %v1728 = vadd.f32 %v1442, %v1708
      %v1729 = vadd.f32 %v1445, %v1711
      %v1730 = vadd.f32 %v1448, %v1714
      %v1731 = vadd.f32 %v1451, %v1717
      %v1732 = vadd.f32 %v1454, %v1720
      %v1733 = vadd.f32 %v1457, %v1723
      %v1734 = vadd.f32 %v1460, %v1726
      %1736 = vrot.lane.b32.xlu0 %v849, 16
      %v1737 = vpop.permute.xlu0 %1736
      %v1739 = vmul.f32 %v889, %v1737
      %v1740 = vmul.f32 %v891, %v1737
      %v1741 = vmul.f32 %v894, %v1737
      %v1742 = vmul.f32 %v896, %v1737
      %v1743 = vmul.f32 %v899, %v1737
      %v1744 = vmul.f32 %v901, %v1737
      %v1745 = vmul.f32 %v904, %v1737
      %1753 = vrot.lane.b32.xlu0 %v1739, 112
      %v1754 = vpop.permute.xlu0 %1753
      %1755 = vrot.lane.b32.xlu0 %v1740, 112
      %v1756 = vpop.permute.xlu0 %1755
      %1757 = vrot.lane.b32.xlu0 %v1741, 112
      %v1758 = vpop.permute.xlu0 %1757
      %1759 = vrot.lane.b32.xlu0 %v1742, 112
      %v1760 = vpop.permute.xlu0 %1759
      %1761 = vrot.lane.b32.xlu0 %v1743, 112
      %v1762 = vpop.permute.xlu0 %1761
      %1763 = vrot.lane.b32.xlu0 %v1744, 112
      %v1764 = vpop.permute.xlu0 %1763
      %1765 = vrot.lane.b32.xlu0 %v1745, 112
      %v1766 = vpop.permute.xlu0 %1765
      %v1767 = vsel %vm866, %v1754, 0
      %v1769 = vsel %vm866, %v1756, 0
      %v1771 = vsel %vm866, %v1758, 0
      %v1773 = vsel %vm866, %v1760, 0
      %v1775 = vsel %vm866, %v1762, 0
      %v1777 = vsel %vm866, %v1764, 0
      %v1779 = vsel %vm866, %v1766, 0
      %1781 = vmatpush.xpose.msra.mxu0 0.0
      %1782 = vmatpush.xpose.msra.mxu0 0.0
      %1783 = vmatpush.xpose.msra.mxu0 0.0
      %1784 = vmatpush.xpose.msra.mxu0 0.0
      %1785 = vmatpush.xpose.msra.mxu0 0.0
      %1786 = vmatpush.xpose.msra.mxu0 0.0
      %1787 = vmatpush.xpose.msra.mxu0 0.0
      %1788 = vmatpush.xpose.msra.mxu0 0.0
      %1789 = vmatpush.xpose.msra.mxu0 0.0
      %1790 = vmatpush.xpose.msra.mxu0 %v1779
      %1791 = vmatpush.xpose.msra.mxu0 %v1777
      %1792 = vmatpush.xpose.msra.mxu0 %v1775
      %1793 = vmatpush.xpose.msra.mxu0 %v1773
      %1794 = vmatpush.xpose.msra.mxu0 %v1771
      %1795 = vmatpush.xpose.msra.mxu0 %v1769
      %1796 = vmatpush.xpose.msra.mxu0 %v1767
      %1797 = vmatmul.f32.gmra.mxu0 %v940
      %v1798 = vpop.f32.mrf.mxu0
      %v1799 = vadd.f32 0.0, %v1798
      %1800 = vmatmul.f32.gmra.mxu0 %v943
      %v1801 = vpop.f32.mrf.mxu0
      %v1802 = vadd.f32 0.0, %v1801
      %1803 = vmatmul.f32.gmra.mxu0 %v946
      %v1804 = vpop.f32.mrf.mxu0
      %v1805 = vadd.f32 0.0, %v1804
      %1806 = vmatmul.f32.gmra.mxu0 %v949
      %v1807 = vpop.f32.mrf.mxu0
      %v1808 = vadd.f32 0.0, %v1807
      %1809 = vmatmul.f32.gmra.mxu0 %v952
      %v1810 = vpop.f32.mrf.mxu0
      %v1811 = vadd.f32 0.0, %v1810
      %1812 = vmatmul.f32.gmra.mxu0 %v955
      %v1813 = vpop.f32.mrf.mxu0
      %v1814 = vadd.f32 0.0, %v1813
      %1815 = vmatmul.f32.gmra.mxu0 %v958
      %v1816 = vpop.f32.mrf.mxu0
      %v1817 = vadd.f32 0.0, %v1816
      %1818 = vdwg.mxu0
      %v1819 = vmul.f32 %v1799, 0.5
      %v1820 = vmul.f32 %v1802, 0.5
      %v1821 = vmul.f32 %v1805, 0.5
      %v1822 = vmul.f32 %v1808, 0.5
      %v1823 = vmul.f32 %v1811, 0.5
      %v1824 = vmul.f32 %v1814, 0.5
      %v1825 = vmul.f32 %v1817, 0.5
      %v1826 = vsel %vm1019, %v1819, -inf
      %1827 = vmax.xlane.f32.xlu0 %v1826
      %v1828 = vpop.xlane.xlu0 %1827
      %v1829 = vsel %vm1019, %v1820, -inf
      %1830 = vmax.xlane.f32.xlu0 %v1829
      %v1831 = vpop.xlane.xlu0 %1830
      %v1832 = vsel %vm1019, %v1821, -inf
      %1833 = vmax.xlane.f32.xlu0 %v1832
      %v1834 = vpop.xlane.xlu0 %1833
      %v1835 = vsel %vm1019, %v1822, -inf
      %1836 = vmax.xlane.f32.xlu0 %v1835
      %v1837 = vpop.xlane.xlu0 %1836
      %v1838 = vsel %vm1019, %v1823, -inf
      %1839 = vmax.xlane.f32.xlu0 %v1838
      %v1840 = vpop.xlane.xlu0 %1839
      %v1841 = vsel %vm1019, %v1824, -inf
      %1842 = vmax.xlane.f32.xlu0 %v1841
      %v1843 = vpop.xlane.xlu0 %1842
      %v1844 = vsel %vm1038, %v1825, -inf
      %1845 = vmax.xlane.f32.xlu0 %v1844
      %v1846 = vpop.xlane.xlu0 %1845
      %v1847 = vsub.f32 %v1819, %v1828
      %v1848 = vsub.f32 %v1820, %v1831
      %v1849 = vsub.f32 %v1821, %v1834
      %v1850 = vsub.f32 %v1822, %v1837
      %v1851 = vsub.f32 %v1823, %v1840
      %v1852 = vsub.f32 %v1824, %v1843
      %v1853 = vsub.f32 %v1825, %v1846
      %v1854 = vmul.f32 %v1847, 1.442695
      %v1855 = vpow.pop %v1854
      %v1856 = vmul.f32 %v1848, 1.442695
      %v1857 = vpow.pop %v1856
      %v1858 = vmul.f32 %v1849, 1.442695
      %v1859 = vpow.pop %v1858
      %v1860 = vmul.f32 %v1850, 1.442695
      %v1861 = vpow.pop %v1860
      %v1862 = vmul.f32 %v1851, 1.442695
      %v1863 = vpow.pop %v1862
      %v1864 = vmul.f32 %v1852, 1.442695
      %v1865 = vpow.pop %v1864
      %v1866 = vmul.f32 %v1853, 1.442695
      %v1867 = vpow.pop %v1866
      %v1868 = vsel %vm1019, %v1855, 0.0
      %1869 = vadd.xlane.f32.xlu0 %v1868
      %v1870 = vpop.xlane.xlu0 %1869
      %v1871 = vsel %vm1019, %v1857, 0.0
      %1872 = vadd.xlane.f32.xlu0 %v1871
      %v1873 = vpop.xlane.xlu0 %1872
      %v1874 = vsel %vm1019, %v1859, 0.0
      %1875 = vadd.xlane.f32.xlu0 %v1874
      %v1876 = vpop.xlane.xlu0 %1875
      %v1877 = vsel %vm1019, %v1861, 0.0
      %1878 = vadd.xlane.f32.xlu0 %v1877
      %v1879 = vpop.xlane.xlu0 %1878
      %v1880 = vsel %vm1019, %v1863, 0.0
      %1881 = vadd.xlane.f32.xlu0 %v1880
      %v1882 = vpop.xlane.xlu0 %1881
      %v1883 = vsel %vm1019, %v1865, 0.0
      %1884 = vadd.xlane.f32.xlu0 %v1883
      %v1885 = vpop.xlane.xlu0 %1884
      %v1886 = vsel %vm1038, %v1867, 0.0
      %1887 = vadd.xlane.f32.xlu0 %v1886
      %v1888 = vpop.xlane.xlu0 %1887
      %v1889 = vrcp.pop %v1870
      %v1890 = vrcp.pop %v1873
      %v1891 = vrcp.pop %v1876
      %v1892 = vrcp.pop %v1879
      %v1893 = vrcp.pop %v1882
      %v1894 = vrcp.pop %v1885
      %v1895 = vrcp.pop %v1888
      %v1896 = vmul.f32 %v1855, %v1889
      %v1897 = vmul.f32 %v1857, %v1890
      %v1898 = vmul.f32 %v1859, %v1891
      %v1899 = vmul.f32 %v1861, %v1892
      %v1900 = vmul.f32 %v1863, %v1893
      %v1901 = vmul.f32 %v1865, %v1894
      %v1902 = vmul.f32 %v1867, %v1895
      %1903 = vrot.lane.b32.xlu0 %v849, 32
      %v1904 = vpop.permute.xlu0 %1903
      %v1906 = vmul.f32 %v889, %v1904
      %v1907 = vmul.f32 %v891, %v1904
      %v1908 = vmul.f32 %v894, %v1904
      %v1909 = vmul.f32 %v896, %v1904
      %v1910 = vmul.f32 %v899, %v1904
      %v1911 = vmul.f32 %v901, %v1904
      %v1912 = vmul.f32 %v904, %v1904
      %1920 = vrot.lane.b32.xlu0 %v1906, 96
      %v1921 = vpop.permute.xlu0 %1920
      %1922 = vrot.lane.b32.xlu0 %v1907, 96
      %v1923 = vpop.permute.xlu0 %1922
      %1924 = vrot.lane.b32.xlu0 %v1908, 96
      %v1925 = vpop.permute.xlu0 %1924
      %1926 = vrot.lane.b32.xlu0 %v1909, 96
      %v1927 = vpop.permute.xlu0 %1926
      %1928 = vrot.lane.b32.xlu0 %v1910, 96
      %v1929 = vpop.permute.xlu0 %1928
      %1930 = vrot.lane.b32.xlu0 %v1911, 96
      %v1931 = vpop.permute.xlu0 %1930
      %1932 = vrot.lane.b32.xlu0 %v1912, 96
      %v1933 = vpop.permute.xlu0 %1932
      %v1941 = vsel %vm1019, %v1896, 0
      %v1944 = vsel %vm1019, %v1897, 0
      %v1947 = vsel %vm1019, %v1898, 0
      %v1950 = vsel %vm1019, %v1899, 0
      %v1953 = vsel %vm1019, %v1900, 0
      %v1956 = vsel %vm1019, %v1901, 0
      %v1959 = vsel %vm1019, %v1902, 0
      %v1961 = vsel %vm794, %v1933, 0
      %1963 = vmatpush.msra.mxu0 0.0
      %1964 = vmatpush.msra.mxu0 0.0
      %1965 = vmatpush.msra.mxu0 0.0
      %1966 = vmatpush.msra.mxu0 0.0
      %1967 = vmatpush.msra.mxu0 0.0
      %1968 = vmatpush.msra.mxu0 0.0
      %1969 = vmatpush.msra.mxu0 0.0
      %1970 = vmatpush.msra.mxu0 0.0
      %1971 = vmatpush.msra.mxu0 0.0
      %1972 = vmatpush.msra.mxu0 %v1961
      %1973 = vmatpush.msra.mxu0 %v1931
      %1974 = vmatpush.msra.mxu0 %v1929
      %1975 = vmatpush.msra.mxu0 %v1927
      %1976 = vmatpush.msra.mxu0 %v1925
      %1977 = vmatpush.msra.mxu0 %v1923
      %1978 = vmatpush.msra.mxu0 %v1921
      %1979 = vmatmul.f32.gmra.mxu0 %v1941
      %v1980 = vpop.f32.mrf.mxu0
      %v1981 = vadd.f32 0.0, %v1980
      %1982 = vmatmul.f32.gmra.mxu0 %v1944
      %v1983 = vpop.f32.mrf.mxu0
      %v1984 = vadd.f32 0.0, %v1983
      %1985 = vmatmul.f32.gmra.mxu0 %v1947
      %v1986 = vpop.f32.mrf.mxu0
      %v1987 = vadd.f32 0.0, %v1986
      %1988 = vmatmul.f32.gmra.mxu0 %v1950
      %v1989 = vpop.f32.mrf.mxu0
      %v1990 = vadd.f32 0.0, %v1989
      %1991 = vmatmul.f32.gmra.mxu0 %v1953
      %v1992 = vpop.f32.mrf.mxu0
      %v1993 = vadd.f32 0.0, %v1992
      %1994 = vmatmul.f32.gmra.mxu0 %v1956
      %v1995 = vpop.f32.mrf.mxu0
      %v1996 = vadd.f32 0.0, %v1995
      %1997 = vmatmul.f32.gmra.mxu0 %v1959
      %v1998 = vpop.f32.mrf.mxu0
      %v1999 = vadd.f32 0.0, %v1998
      %2000 = vdwg.mxu0
      %v2001 = vadd.f32 %v1728, %v1981
      %v2002 = vadd.f32 %v1729, %v1984
      %v2003 = vadd.f32 %v1730, %v1987
      %v2004 = vadd.f32 %v1731, %v1990
      %v2005 = vadd.f32 %v1732, %v1993
      %v2006 = vadd.f32 %v1733, %v1996
      %v2007 = vadd.f32 %v1734, %v1999
      %v2008 = vld [vmem:[%s6] sm:$0xf]
      %v2009 = vld [vmem:[%s6 + $0x4] sm:$0xf]
      %v2010 = vld [vmem:[%s7] sm:$0x1]
      %v2011 = vpack.c.bf16 %v2002, %v2001
      %v2012 = vpack.c.bf16 %v2004, %v2003
      %v2013 = vpack.c.bf16 %v2006, %v2005
      %v2014 = vpack.c.bf16 %v2007, %v2007
      %v2016 = vperm.slane %v2010, 0
      %v2020 = vunpack.c.l.b16 %v2008
      %v2021 = vunpack.c.l.b16 %v2009
      %v2022 = vpack.c.b16 %v2021, %v2020
      %v2025 = vsel %vm866, %v2011, 0
      %v2028 = vsel %vm866, %v2012, 0
      %v2031 = vsel %vm866, %v2013, 0
      %v2034 = vsel %vm866, %v2014, 0
      %2036 = vmatpush.bf16.msra.mxu0 0
      %2037 = vmatpush.bf16.msra.mxu0 0
      %2038 = vmatpush.bf16.msra.mxu0 0
      %2039 = vmatpush.bf16.msra.mxu0 0
      %2040 = vmatpush.bf16.msra.mxu0 0
      %2041 = vmatpush.bf16.msra.mxu0 0
      %2042 = vmatpush.bf16.msra.mxu0 0
      %2043 = vmatpush.bf16.msra.mxu0 %v2022
      %2044 = vmatmul.bf16.gmra.mxu0 %v2025
      %v2045 = vpop.f32.mrf.mxu0
      %v2046 = vadd.f32 %v2016, %v2045
      %v2047 = vpop.f32.mrf.mxu0
      %v2048 = vadd.f32 %v2016, %v2047
      %2049 = vmatmul.bf16.gmra.mxu0 %v2028
      %v2050 = vpop.f32.mrf.mxu0
      %v2051 = vadd.f32 %v2016, %v2050
      %v2052 = vpop.f32.mrf.mxu0
      %v2053 = vadd.f32 %v2016, %v2052
      %2054 = vmatmul.bf16.gmra.mxu0 %v2031
      %v2055 = vpop.f32.mrf.mxu0
      %v2056 = vadd.f32 %v2016, %v2055
      %v2057 = vpop.f32.mrf.mxu0
      %v2058 = vadd.f32 %v2016, %v2057
      %2059 = vmatmul.bf16.gmra.mxu0 %v2034
      %v2060 = vpop.f32.mrf.mxu0
      %v2061 = vadd.f32 %v2016, %v2060
      %v2062 = vpop.f32.mrf.mxu0
      %2063 = vdwg.mxu0
      %v2064 = vadd.f32 %v810, %v2046
      %v2065 = vadd.f32 %v812, %v2048
      %v2066 = vadd.f32 %v815, %v2051
      %v2067 = vadd.f32 %v817, %v2053
      %v2068 = vadd.f32 %v820, %v2056
      %v2069 = vadd.f32 %v822, %v2058
      %v2070 = vadd.f32 %v825, %v2061
      %v2071 = vld [vmem:[%s8] sm:$0x1]
      %v2072 = vld [vmem:[%s9] sm:$0x1]
      %v2073 = vsel %vm866, %v2064, 0.0
      %2074 = vadd.xlane.f32.xlu0 %v2073
      %v2075 = vpop.xlane.xlu0 %2074
      %v2076 = vsel %vm866, %v2065, 0.0
      %2077 = vadd.xlane.f32.xlu0 %v2076
      %v2078 = vpop.xlane.xlu0 %2077
      %v2079 = vsel %vm866, %v2066, 0.0
      %2080 = vadd.xlane.f32.xlu0 %v2079
      %v2081 = vpop.xlane.xlu0 %2080
      %v2082 = vsel %vm866, %v2067, 0.0
      %2083 = vadd.xlane.f32.xlu0 %v2082
      %v2084 = vpop.xlane.xlu0 %2083
      %v2085 = vsel %vm866, %v2068, 0.0
      %2086 = vadd.xlane.f32.xlu0 %v2085
      %v2087 = vpop.xlane.xlu0 %2086
      %v2088 = vsel %vm866, %v2069, 0.0
      %2089 = vadd.xlane.f32.xlu0 %v2088
      %v2090 = vpop.xlane.xlu0 %2089
      %vm2091 = vcmask 123904
      %v2092 = vsel %vm2091, %v2070, 0.0
      %2093 = vadd.xlane.f32.xlu0 %v2092
      %v2094 = vpop.xlane.xlu0 %2093
      %v2095 = vrcp.pop 16.0
      %v2096 = vmul.f32 16.0, %v2095
      %v2097 = vsub.f32 1.0, %v2096
      %v2098 = vmul.f32 %v2095, %v2097
      %v2099 = vadd.f32 %v2095, %v2098
      %vm2100 = vweird.f32 %v2095
      %v2101 = vsel %vm2100, %v2095, %v2099
      %v2102 = vmul.f32 %v2075, %v2101
      %v2103 = vmul.f32 %v2078, %v2101
      %v2104 = vmul.f32 %v2081, %v2101
      %v2105 = vmul.f32 %v2084, %v2101
      %v2106 = vmul.f32 %v2087, %v2101
      %v2107 = vmul.f32 %v2090, %v2101
      %v2108 = vmul.f32 %v2094, %v2101
      %v2109 = vsub.f32 %v2064, %v2102
      %v2110 = vsub.f32 %v2065, %v2103
      %v2111 = vsub.f32 %v2066, %v2104
      %v2112 = vsub.f32 %v2067, %v2105
      %v2113 = vsub.f32 %v2068, %v2106
      %v2114 = vsub.f32 %v2069, %v2107
      %v2115 = vsub.f32 %v2070, %v2108
      %v2116 = vmul.f32 %v2109, %v2109
      %v2117 = vmul.f32 %v2110, %v2110
      %v2118 = vmul.f32 %v2111, %v2111
      %v2119 = vmul.f32 %v2112, %v2112
      %v2120 = vmul.f32 %v2113, %v2113
      %v2121 = vmul.f32 %v2114, %v2114
      %v2122 = vmul.f32 %v2115, %v2115
      %v2123 = vsel %vm866, %v2116, 0.0
      %2124 = vadd.xlane.f32.xlu0 %v2123
      %v2125 = vpop.xlane.xlu0 %2124
      %v2126 = vsel %vm866, %v2117, 0.0
      %2127 = vadd.xlane.f32.xlu0 %v2126
      %v2128 = vpop.xlane.xlu0 %2127
      %v2129 = vsel %vm866, %v2118, 0.0
      %2130 = vadd.xlane.f32.xlu0 %v2129
      %v2131 = vpop.xlane.xlu0 %2130
      %v2132 = vsel %vm866, %v2119, 0.0
      %2133 = vadd.xlane.f32.xlu0 %v2132
      %v2134 = vpop.xlane.xlu0 %2133
      %v2135 = vsel %vm866, %v2120, 0.0
      %2136 = vadd.xlane.f32.xlu0 %v2135
      %v2137 = vpop.xlane.xlu0 %2136
      %v2138 = vsel %vm866, %v2121, 0.0
      %2139 = vadd.xlane.f32.xlu0 %v2138
      %v2140 = vpop.xlane.xlu0 %2139
      %v2141 = vsel %vm2091, %v2122, 0.0
      %2142 = vadd.xlane.f32.xlu0 %v2141
      %v2143 = vpop.xlane.xlu0 %2142
      %v2144 = vmul.f32 %v2125, %v2101
      %v2145 = vmul.f32 %v2128, %v2101
      %v2146 = vmul.f32 %v2131, %v2101
      %v2147 = vmul.f32 %v2134, %v2101
      %v2148 = vmul.f32 %v2137, %v2101
      %v2149 = vmul.f32 %v2140, %v2101
      %v2150 = vmul.f32 %v2143, %v2101
      %v2151 = vadd.f32 %v2144, 1e-05
      %v2152 = vadd.f32 %v2145, 1e-05
      %v2153 = vadd.f32 %v2146, 1e-05
      %v2154 = vadd.f32 %v2147, 1e-05
      %v2155 = vadd.f32 %v2148, 1e-05
      %v2156 = vadd.f32 %v2149, 1e-05
      %v2157 = vadd.f32 %v2150, 1e-05
      %v2158 = vrsqrt.pop %v2151
      %v2159 = vmul.f32 %v2158, %v2151
      %v2160 = vmul.f32 %v2159, %v2158
      %v2161 = vmul.f32 0.5, %v2160
      %v2162 = vsub.f32 1.5, %v2161
      %v2163 = vmul.f32 %v2158, %v2162
      %vm2164 = vweird.f32 %v2151
      %vm2165 = vweird.f32 %v2158
      %vm2166 = vmor %vm2164, %vm2165
      %v2167 = vsel %vm2166, %v2158, %v2163
      %v2168 = vrsqrt.pop %v2152
      %v2169 = vmul.f32 %v2168, %v2152
      %v2170 = vmul.f32 %v2169, %v2168
      %v2171 = vmul.f32 0.5, %v2170
      %v2172 = vsub.f32 1.5, %v2171
      %v2173 = vmul.f32 %v2168, %v2172
      %vm2174 = vweird.f32 %v2152
      %vm2175 = vweird.f32 %v2168
      %vm2176 = vmor %vm2174, %vm2175
      %v2177 = vsel %vm2176, %v2168, %v2173
      %v2178 = vrsqrt.pop %v2153
      %v2179 = vmul.f32 %v2178, %v2153
      %v2180 = vmul.f32 %v2179, %v2178
      %v2181 = vmul.f32 0.5, %v2180
      %v2182 = vsub.f32 1.5, %v2181
      %v2183 = vmul.f32 %v2178, %v2182
      %vm2184 = vweird.f32 %v2153
      %vm2185 = vweird.f32 %v2178
      %vm2186 = vmor %vm2184, %vm2185
      %v2187 = vsel %vm2186, %v2178, %v2183
      %v2188 = vrsqrt.pop %v2154
      %v2189 = vmul.f32 %v2188, %v2154
      %v2190 = vmul.f32 %v2189, %v2188
      %v2191 = vmul.f32 0.5, %v2190
      %v2192 = vsub.f32 1.5, %v2191
      %v2193 = vmul.f32 %v2188, %v2192
      %vm2194 = vweird.f32 %v2154
      %vm2195 = vweird.f32 %v2188
      %vm2196 = vmor %vm2194, %vm2195
      %v2197 = vsel %vm2196, %v2188, %v2193
      %v2198 = vrsqrt.pop %v2155
      %v2199 = vmul.f32 %v2198, %v2155
      %v2200 = vmul.f32 %v2199, %v2198
      %v2201 = vmul.f32 0.5, %v2200
      %v2202 = vsub.f32 1.5, %v2201
      %v2203 = vmul.f32 %v2198, %v2202
      %vm2204 = vweird.f32 %v2155
      %vm2205 = vweird.f32 %v2198
      %vm2206 = vmor %vm2204, %vm2205
      %v2207 = vsel %vm2206, %v2198, %v2203
      %v2208 = vrsqrt.pop %v2156
      %v2209 = vmul.f32 %v2208, %v2156
      %v2210 = vmul.f32 %v2209, %v2208
      %v2211 = vmul.f32 0.5, %v2210
      %v2212 = vsub.f32 1.5, %v2211
      %v2213 = vmul.f32 %v2208, %v2212
      %vm2214 = vweird.f32 %v2156
      %vm2215 = vweird.f32 %v2208
      %vm2216 = vmor %vm2214, %vm2215
      %v2217 = vsel %vm2216, %v2208, %v2213
      %v2218 = vrsqrt.pop %v2157
      %v2219 = vmul.f32 %v2218, %v2157
      %v2220 = vmul.f32 %v2219, %v2218
      %v2221 = vmul.f32 0.5, %v2220
      %v2222 = vsub.f32 1.5, %v2221
      %v2223 = vmul.f32 %v2218, %v2222
      %vm2224 = vweird.f32 %v2157
      %vm2225 = vweird.f32 %v2218
      %vm2226 = vmor %vm2224, %vm2225
      %v2227 = vsel %vm2226, %v2218, %v2223
      %v2228 = vmul.f32 %v2109, %v2167
      %v2229 = vmul.f32 %v2110, %v2177
      %v2230 = vmul.f32 %v2111, %v2187
      %v2231 = vmul.f32 %v2112, %v2197
      %v2232 = vmul.f32 %v2113, %v2207
      %v2233 = vmul.f32 %v2114, %v2217
      %v2234 = vmul.f32 %v2115, %v2227
      %v2236 = vperm.slane %v2071, 0
      %v2238 = vmul.f32 %v2228, %v2236
      %v2239 = vmul.f32 %v2229, %v2236
      %v2240 = vmul.f32 %v2230, %v2236
      %v2241 = vmul.f32 %v2231, %v2236
      %v2242 = vmul.f32 %v2232, %v2236
      %v2243 = vmul.f32 %v2233, %v2236
      %v2244 = vmul.f32 %v2234, %v2236
      %v2246 = vperm.slane %v2072, 0
      %v2248 = vadd.f32 %v2238, %v2246
      %v2249 = vadd.f32 %v2239, %v2246
      %v2250 = vadd.f32 %v2240, %v2246
      %v2251 = vadd.f32 %v2241, %v2246
      %v2252 = vadd.f32 %v2242, %v2246
      %v2253 = vadd.f32 %v2243, %v2246
      %v2254 = vadd.f32 %v2244, %v2246
      %v2255 = vpack.c.bf16 %v2249, %v2248
      %v2256 = vpack.c.bf16 %v2251, %v2250
      %v2257 = vpack.c.bf16 %v2253, %v2252
      %v2258 = vpack.c.bf16 %v2254, %v2254
      %v2259 = vld [vmem:[%s10] sm:$0xff]
      %v2260 = vld [vmem:[%s10 + $0x40] sm:$0xff]
      %v2261 = vld [vmem:[%s11] sm:$0x3]
      %v2263 = vperm.slane %v2261, 0
      %v2264 = vperm.slane %v2261, 1
      %v2269 = vunpack.c.l.b16 %v2259
      %v2270 = vunpack.c.h.b16 %v2259
      %v2271 = vunpack.c.l.b16 %v2260
      %v2272 = vunpack.c.h.b16 %v2260
      %v2273 = vpack.c.b16 %v2271, %v2269
      %v2274 = vpack.c.b16 %v2272, %v2270
      %v2278 = vsel %vm866, %v2255, 0
      %v2281 = vsel %vm866, %v2256, 0
      %v2284 = vsel %vm866, %v2257, 0
      %v2287 = vsel %vm866, %v2258, 0
      %2289 = vmatpush.bf16.msra.mxu0 0
      %2290 = vmatpush.bf16.msra.mxu0 0
      %2291 = vmatpush.bf16.msra.mxu0 0
      %2292 = vmatpush.bf16.msra.mxu0 0
      %2293 = vmatpush.bf16.msra.mxu0 0
      %2294 = vmatpush.bf16.msra.mxu0 0
      %2295 = vmatpush.bf16.msra.mxu0 0
      %2296 = vmatpush.bf16.msra.mxu0 %v2273
      %2297 = vmatmul.bf16.gmra.mxu0 %v2278
      %v2298 = vpop.f32.mrf.mxu0
      %v2299 = vadd.f32 %v2263, %v2298
      %v2300 = vpop.f32.mrf.mxu0
      %v2301 = vadd.f32 %v2263, %v2300
      %2302 = vmatmul.bf16.gmra.mxu0 %v2281
      %v2303 = vpop.f32.mrf.mxu0
      %v2304 = vadd.f32 %v2263, %v2303
      %v2305 = vpop.f32.mrf.mxu0
      %v2306 = vadd.f32 %v2263, %v2305
      %2307 = vmatmul.bf16.gmra.mxu0 %v2284
      %v2308 = vpop.f32.mrf.mxu0
      %v2309 = vadd.f32 %v2263, %v2308
      %v2310 = vpop.f32.mrf.mxu0
      %v2311 = vadd.f32 %v2263, %v2310
      %2312 = vmatmul.bf16.gmra.mxu0 %v2287
      %v2313 = vpop.f32.mrf.mxu0
      %v2314 = vadd.f32 %v2263, %v2313
      %v2315 = vpop.f32.mrf.mxu0
      %2316 = vdwg.mxu0
      %2317 = vmatpush.bf16.msra.mxu0 0
      %2318 = vmatpush.bf16.msra.mxu0 0
      %2319 = vmatpush.bf16.msra.mxu0 0
      %2320 = vmatpush.bf16.msra.mxu0 0
      %2321 = vmatpush.bf16.msra.mxu0 0
      %2322 = vmatpush.bf16.msra.mxu0 0
      %2323 = vmatpush.bf16.msra.mxu0 0
      %2324 = vmatpush.bf16.msra.mxu0 %v2274
      %2325 = vmatmul.bf16.gmra.mxu0 %v2278
      %v2326 = vpop.f32.mrf.mxu0
      %v2327 = vadd.f32 %v2264, %v2326
      %v2328 = vpop.f32.mrf.mxu0
      %v2329 = vadd.f32 %v2264, %v2328
      %2330 = vmatmul.bf16.gmra.mxu0 %v2281
      %v2331 = vpop.f32.mrf.mxu0
      %v2332 = vadd.f32 %v2264, %v2331
      %v2333 = vpop.f32.mrf.mxu0
      %v2334 = vadd.f32 %v2264, %v2333
      %2335 = vmatmul.bf16.gmra.mxu0 %v2284
      %v2336 = vpop.f32.mrf.mxu0
      %v2337 = vadd.f32 %v2264, %v2336
      %v2338 = vpop.f32.mrf.mxu0
      %v2339 = vadd.f32 %v2264, %v2338
      %2340 = vmatmul.bf16.gmra.mxu0 %v2287
      %v2341 = vpop.f32.mrf.mxu0
      %v2342 = vadd.f32 %v2264, %v2341
      %v2343 = vpop.f32.mrf.mxu0
      %2344 = vdwg.mxu0
      %v2345 = vmax.f32 %v2299, 0.0
      %v2346 = vmax.f32 %v2327, 0.0
      %v2347 = vmax.f32 %v2301, 0.0
      %v2348 = vmax.f32 %v2329, 0.0
      %v2349 = vmax.f32 %v2304, 0.0
      %v2350 = vmax.f32 %v2332, 0.0
      %v2351 = vmax.f32 %v2306, 0.0
      %v2352 = vmax.f32 %v2334, 0.0
      %v2353 = vmax.f32 %v2309, 0.0
      %v2354 = vmax.f32 %v2337, 0.0
      %v2355 = vmax.f32 %v2311, 0.0
      %v2356 = vmax.f32 %v2339, 0.0
      %v2357 = vmax.f32 %v2314, 0.0
      %v2358 = vmax.f32 %v2342, 0.0
      %v2359 = vpack.c.bf16 %v2347, %v2345
      %v2360 = vpack.c.bf16 %v2348, %v2346
      %v2361 = vpack.c.bf16 %v2351, %v2349
      %v2362 = vpack.c.bf16 %v2352, %v2350
      %v2363 = vpack.c.bf16 %v2355, %v2353
      %v2364 = vpack.c.bf16 %v2356, %v2354
      %v2365 = vpack.c.bf16 %v2357, %v2357
      %v2366 = vpack.c.bf16 %v2358, %v2358
      %v2367 = vld [vmem:[%s12] sm:$0xf]
      %v2368 = vld [vmem:[%s12 + $0x4] sm:$0xf]
      %v2369 = vld [vmem:[%s12 + $0x8] sm:$0xf]
      %v2370 = vld [vmem:[%s12 + $0xc] sm:$0xf]
      %v2371 = vld [vmem:[%s12 + $0x10] sm:$0xf]
      %v2372 = vld [vmem:[%s12 + $0x14] sm:$0xf]
      %v2373 = vld [vmem:[%s12 + $0x18] sm:$0xf]
      %v2374 = vld [vmem:[%s12 + $0x1c] sm:$0xf]
      %v2375 = vld [vmem:[%s12 + $0x20] sm:$0xf]
      %v2376 = vld [vmem:[%s12 + $0x24] sm:$0xf]
      %v2377 = vld [vmem:[%s12 + $0x28] sm:$0xf]
      %v2378 = vld [vmem:[%s12 + $0x2c] sm:$0xf]
      %v2379 = vld [vmem:[%s12 + $0x30] sm:$0xf]
      %v2380 = vld [vmem:[%s12 + $0x34] sm:$0xf]
      %v2381 = vld [vmem:[%s12 + $0x38] sm:$0xf]
      %v2382 = vld [vmem:[%s12 + $0x3c] sm:$0xf]
      %v2383 = vld [vmem:[%s12 + $0x40] sm:$0xf]
      %v2384 = vld [vmem:[%s12 + $0x44] sm:$0xf]
      %v2385 = vld [vmem:[%s12 + $0x48] sm:$0xf]
      %v2386 = vld [vmem:[%s12 + $0x4c] sm:$0xf]
      %v2387 = vld [vmem:[%s12 + $0x50] sm:$0xf]
      %v2388 = vld [vmem:[%s12 + $0x54] sm:$0xf]
      %v2389 = vld [vmem:[%s12 + $0x58] sm:$0xf]
      %v2390 = vld [vmem:[%s12 + $0x5c] sm:$0xf]
      %v2391 = vld [vmem:[%s12 + $0x60] sm:$0xf]
      %v2392 = vld [vmem:[%s12 + $0x64] sm:$0xf]
      %v2393 = vld [vmem:[%s12 + $0x68] sm:$0xf]
      %v2394 = vld [vmem:[%s12 + $0x6c] sm:$0xf]
      %v2395 = vld [vmem:[%s12 + $0x70] sm:$0xf]
      %v2396 = vld [vmem:[%s12 + $0x74] sm:$0xf]
      %v2397 = vld [vmem:[%s12 + $0x78] sm:$0xf]
      %v2398 = vld [vmem:[%s12 + $0x7c] sm:$0xf]
      %v2399 = vld [vmem:[%s10 + $0x8] sm:$0xff]
      %v2400 = vld [vmem:[%s10 + $0x48] sm:$0xff]
      %v2401 = vld [vmem:[%s11 + $0x2] sm:$0x3]
      %v2403 = vperm.slane %v2401, 0
      %v2404 = vperm.slane %v2401, 1
      %v2409 = vunpack.c.l.b16 %v2399
      %v2410 = vunpack.c.h.b16 %v2399
      %v2411 = vunpack.c.l.b16 %v2400
      %v2412 = vunpack.c.h.b16 %v2400
      %v2413 = vpack.c.b16 %v2411, %v2409
      %v2414 = vpack.c.b16 %v2412, %v2410
      %2417 = vmatpush.bf16.msra.mxu0 0
      %2418 = vmatpush.bf16.msra.mxu0 0
      %2419 = vmatpush.bf16.msra.mxu0 0
      %2420 = vmatpush.bf16.msra.mxu0 0
      %2421 = vmatpush.bf16.msra.mxu0 0
      %2422 = vmatpush.bf16.msra.mxu0 0
      %2423 = vmatpush.bf16.msra.mxu0 0
      %2424 = vmatpush.bf16.msra.mxu0 %v2413
      %2425 = vmatmul.bf16.gmra.mxu0 %v2278
      %v2426 = vpop.f32.mrf.mxu0
      %v2427 = vadd.f32 %v2403, %v2426
      %v2428 = vpop.f32.mrf.mxu0
      %v2429 = vadd.f32 %v2403, %v2428
      %2430 = vmatmul.bf16.gmra.mxu0 %v2281
      %v2431 = vpop.f32.mrf.mxu0
      %v2432 = vadd.f32 %v2403, %v2431
      %v2433 = vpop.f32.mrf.mxu0
      %v2434 = vadd.f32 %v2403, %v2433
      %2435 = vmatmul.bf16.gmra.mxu0 %v2284
      %v2436 = vpop.f32.mrf.mxu0
      %v2437 = vadd.f32 %v2403, %v2436
      %v2438 = vpop.f32.mrf.mxu0
      %v2439 = vadd.f32 %v2403, %v2438
      %2440 = vmatmul.bf16.gmra.mxu0 %v2287
      %v2441 = vpop.f32.mrf.mxu0
      %v2442 = vadd.f32 %v2403, %v2441
      %v2443 = vpop.f32.mrf.mxu0
      %2444 = vdwg.mxu0
      %2445 = vmatpush.bf16.msra.mxu0 0
      %2446 = vmatpush.bf16.msra.mxu0 0
      %2447 = vmatpush.bf16.msra.mxu0 0
      %2448 = vmatpush.bf16.msra.mxu0 0
      %2449 = vmatpush.bf16.msra.mxu0 0
      %2450 = vmatpush.bf16.msra.mxu0 0
      %2451 = vmatpush.bf16.msra.mxu0 0
      %2452 = vmatpush.bf16.msra.mxu0 %v2414
      %2453 = vmatmul.bf16.gmra.mxu0 %v2278
      %v2454 = vpop.f32.mrf.mxu0
      %v2455 = vadd.f32 %v2404, %v2454
      %v2456 = vpop.f32.mrf.mxu0
      %v2457 = vadd.f32 %v2404, %v2456
      %2458 = vmatmul.bf16.gmra.mxu0 %v2281
      %v2459 = vpop.f32.mrf.mxu0
      %v2460 = vadd.f32 %v2404, %v2459
      %v2461 = vpop.f32.mrf.mxu0
      %v2462 = vadd.f32 %v2404, %v2461
      %2463 = vmatmul.bf16.gmra.mxu0 %v2284
      %v2464 = vpop.f32.mrf.mxu0
      %v2465 = vadd.f32 %v2404, %v2464
      %v2466 = vpop.f32.mrf.mxu0
      %v2467 = vadd.f32 %v2404, %v2466
      %2468 = vmatmul.bf16.gmra.mxu0 %v2287
      %v2469 = vpop.f32.mrf.mxu0
      %v2470 = vadd.f32 %v2404, %v2469
      %v2471 = vpop.f32.mrf.mxu0
      %2472 = vdwg.mxu0
      %v2473 = vmax.f32 %v2427, 0.0
      %v2474 = vmax.f32 %v2455, 0.0
      %v2475 = vmax.f32 %v2429, 0.0
      %v2476 = vmax.f32 %v2457, 0.0
      %v2477 = vmax.f32 %v2432, 0.0
      %v2478 = vmax.f32 %v2460, 0.0
      %v2479 = vmax.f32 %v2434, 0.0
      %v2480 = vmax.f32 %v2462, 0.0
      %v2481 = vmax.f32 %v2437, 0.0
      %v2482 = vmax.f32 %v2465, 0.0
      %v2483 = vmax.f32 %v2439, 0.0
      %v2484 = vmax.f32 %v2467, 0.0
      %v2485 = vmax.f32 %v2442, 0.0
      %v2486 = vmax.f32 %v2470, 0.0
      %v2487 = vpack.c.bf16 %v2475, %v2473
      %v2488 = vpack.c.bf16 %v2476, %v2474
      %v2489 = vpack.c.bf16 %v2479, %v2477
      %v2490 = vpack.c.bf16 %v2480, %v2478
      %v2491 = vpack.c.bf16 %v2483, %v2481
      %v2492 = vpack.c.bf16 %v2484, %v2482
      %v2493 = vpack.c.bf16 %v2485, %v2485
      %v2494 = vpack.c.bf16 %v2486, %v2486
      %v2495 = vld [vmem:[%s12 + $0x80] sm:$0xf]
      %v2496 = vld [vmem:[%s12 + $0x84] sm:$0xf]
      %v2497 = vld [vmem:[%s12 + $0x88] sm:$0xf]
      %v2498 = vld [vmem:[%s12 + $0x8c] sm:$0xf]
      %v2499 = vld [vmem:[%s12 + $0x90] sm:$0xf]
      %v2500 = vld [vmem:[%s12 + $0x94] sm:$0xf]
      %v2501 = vld [vmem:[%s12 + $0x98] sm:$0xf]
      %v2502 = vld [vmem:[%s12 + $0x9c] sm:$0xf]
      %v2503 = vld [vmem:[%s12 + $0xa0] sm:$0xf]
      %v2504 = vld [vmem:[%s12 + $0xa4] sm:$0xf]
      %v2505 = vld [vmem:[%s12 + $0xa8] sm:$0xf]
      %v2506 = vld [vmem:[%s12 + $0xac] sm:$0xf]
      %v2507 = vld [vmem:[%s12 + $0xb0] sm:$0xf]
      %v2508 = vld [vmem:[%s12 + $0xb4] sm:$0xf]
      %v2509 = vld [vmem:[%s12 + $0xb8] sm:$0xf]
      %v2510 = vld [vmem:[%s12 + $0xbc] sm:$0xf]
      %v2511 = vld [vmem:[%s12 + $0xc0] sm:$0xf]
      %v2512 = vld [vmem:[%s12 + $0xc4] sm:$0xf]
      %v2513 = vld [vmem:[%s12 + $0xc8] sm:$0xf]
      %v2514 = vld [vmem:[%s12 + $0xcc] sm:$0xf]
      %v2515 = vld [vmem:[%s12 + $0xd0] sm:$0xf]
      %v2516 = vld [vmem:[%s12 + $0xd4] sm:$0xf]
      %v2517 = vld [vmem:[%s12 + $0xd8] sm:$0xf]
      %v2518 = vld [vmem:[%s12 + $0xdc] sm:$0xf]
      %v2519 = vld [vmem:[%s12 + $0xe0] sm:$0xf]
      %v2520 = vld [vmem:[%s12 + $0xe4] sm:$0xf]
      %v2521 = vld [vmem:[%s12 + $0xe8] sm:$0xf]
      %v2522 = vld [vmem:[%s12 + $0xec] sm:$0xf]
      %v2523 = vld [vmem:[%s12 + $0xf0] sm:$0xf]
      %v2524 = vld [vmem:[%s12 + $0xf4] sm:$0xf]
      %v2525 = vld [vmem:[%s12 + $0xf8] sm:$0xf]
      %v2526 = vld [vmem:[%s12 + $0xfc] sm:$0xf]
      %v2559 = vunpack.c.l.b16 %v2495
      %v2560 = vunpack.c.l.b16 %v2496
      %v2561 = vunpack.c.l.b16 %v2497
      %v2562 = vunpack.c.l.b16 %v2498
      %v2563 = vunpack.c.l.b16 %v2499
      %v2564 = vunpack.c.l.b16 %v2500
      %v2565 = vunpack.c.l.b16 %v2501
      %v2566 = vunpack.c.l.b16 %v2502
      %v2567 = vunpack.c.l.b16 %v2503
      %v2568 = vunpack.c.l.b16 %v2504
      %v2569 = vunpack.c.l.b16 %v2505
      %v2570 = vunpack.c.l.b16 %v2506
      %v2571 = vunpack.c.l.b16 %v2507
      %v2572 = vunpack.c.l.b16 %v2508
      %v2573 = vunpack.c.l.b16 %v2509
      %v2574 = vunpack.c.l.b16 %v2510
      %v2575 = vunpack.c.l.b16 %v2511
      %v2576 = vunpack.c.l.b16 %v2512
      %v2577 = vunpack.c.l.b16 %v2513
      %v2578 = vunpack.c.l.b16 %v2514
      %v2579 = vunpack.c.l.b16 %v2515
      %v2580 = vunpack.c.l.b16 %v2516
      %v2581 = vunpack.c.l.b16 %v2517
      %v2582 = vunpack.c.l.b16 %v2518
      %v2583 = vunpack.c.l.b16 %v2519
      %v2584 = vunpack.c.l.b16 %v2520
      %v2585 = vunpack.c.l.b16 %v2521
      %v2586 = vunpack.c.l.b16 %v2522
      %v2587 = vunpack.c.l.b16 %v2523
      %v2588 = vunpack.c.l.b16 %v2524
      %v2589 = vunpack.c.l.b16 %v2525
      %v2590 = vunpack.c.l.b16 %v2526
      %v2591 = vpack.c.b16 %v2560, %v2559
      %v2592 = vpack.c.b16 %v2562, %v2561
      %v2593 = vpack.c.b16 %v2564, %v2563
      %v2594 = vpack.c.b16 %v2566, %v2565
      %v2595 = vpack.c.b16 %v2568, %v2567
      %v2596 = vpack.c.b16 %v2570, %v2569
      %v2597 = vpack.c.b16 %v2572, %v2571
      %v2598 = vpack.c.b16 %v2574, %v2573
      %v2599 = vpack.c.b16 %v2576, %v2575
      %v2600 = vpack.c.b16 %v2578, %v2577
      %v2601 = vpack.c.b16 %v2580, %v2579
      %v2602 = vpack.c.b16 %v2582, %v2581
      %v2603 = vpack.c.b16 %v2584, %v2583
      %v2604 = vpack.c.b16 %v2586, %v2585
      %v2605 = vpack.c.b16 %v2588, %v2587
      %v2606 = vpack.c.b16 %v2590, %v2589
      %2623 = vmatpush.bf16.msra.mxu0 %v2598
      %2624 = vmatpush.bf16.msra.mxu0 %v2597
      %2625 = vmatpush.bf16.msra.mxu0 %v2596
      %2626 = vmatpush.bf16.msra.mxu0 %v2595
      %2627 = vmatpush.bf16.msra.mxu0 %v2594
      %2628 = vmatpush.bf16.msra.mxu0 %v2593
      %2629 = vmatpush.bf16.msra.mxu0 %v2592
      %2630 = vmatpush.bf16.msra.mxu0 %v2591
      %2631 = vmatmul.bf16.gmra.mxu0 %v2487
      %v2632 = vpop.f32.mrf.mxu0
      %v2633 = vadd.f32 0.0, %v2632
      %v2634 = vpop.f32.mrf.mxu0
      %v2635 = vadd.f32 0.0, %v2634
      %2636 = vmatmul.bf16.gmra.mxu0 %v2489
      %v2637 = vpop.f32.mrf.mxu0
      %v2638 = vadd.f32 0.0, %v2637
      %v2639 = vpop.f32.mrf.mxu0
      %v2640 = vadd.f32 0.0, %v2639
      %2641 = vmatmul.bf16.gmra.mxu0 %v2491
      %v2642 = vpop.f32.mrf.mxu0
      %v2643 = vadd.f32 0.0, %v2642
      %v2644 = vpop.f32.mrf.mxu0
      %v2645 = vadd.f32 0.0, %v2644
      %2646 = vmatmul.bf16.gmra.mxu0 %v2493
      %v2647 = vpop.f32.mrf.mxu0
      %v2648 = vadd.f32 0.0, %v2647
      %v2649 = vpop.f32.mrf.mxu0
      %2650 = vdwg.mxu0
      %2651 = vmatpush.bf16.msra.mxu0 %v2606
      %2652 = vmatpush.bf16.msra.mxu0 %v2605
      %2653 = vmatpush.bf16.msra.mxu0 %v2604
      %2654 = vmatpush.bf16.msra.mxu0 %v2603
      %2655 = vmatpush.bf16.msra.mxu0 %v2602
      %2656 = vmatpush.bf16.msra.mxu0 %v2601
      %2657 = vmatpush.bf16.msra.mxu0 %v2600
      %2658 = vmatpush.bf16.msra.mxu0 %v2599
      %2659 = vmatmul.bf16.gmra.mxu0 %v2488
      %v2660 = vpop.f32.mrf.mxu0
      %v2661 = vadd.f32 %v2633, %v2660
      %v2662 = vpop.f32.mrf.mxu0
      %v2663 = vadd.f32 %v2635, %v2662
      %2664 = vmatmul.bf16.gmra.mxu0 %v2490
      %v2665 = vpop.f32.mrf.mxu0
      %v2666 = vadd.f32 %v2638, %v2665
      %v2667 = vpop.f32.mrf.mxu0
      %v2668 = vadd.f32 %v2640, %v2667
      %2669 = vmatmul.bf16.gmra.mxu0 %v2492
      %v2670 = vpop.f32.mrf.mxu0
      %v2671 = vadd.f32 %v2643, %v2670
      %v2672 = vpop.f32.mrf.mxu0
      %v2673 = vadd.f32 %v2645, %v2672
      %2674 = vmatmul.bf16.gmra.mxu0 %v2494
      %v2675 = vpop.f32.mrf.mxu0
      %v2676 = vadd.f32 %v2648, %v2675
      %v2677 = vpop.f32.mrf.mxu0
      %2678 = vdwg.mxu0
      %v2711 = vunpack.c.l.b16 %v2367
      %v2712 = vunpack.c.l.b16 %v2368
      %v2713 = vunpack.c.l.b16 %v2369
      %v2714 = vunpack.c.l.b16 %v2370
      %v2715 = vunpack.c.l.b16 %v2371
      %v2716 = vunpack.c.l.b16 %v2372
      %v2717 = vunpack.c.l.b16 %v2373
      %v2718 = vunpack.c.l.b16 %v2374
      %v2719 = vunpack.c.l.b16 %v2375
      %v2720 = vunpack.c.l.b16 %v2376
      %v2721 = vunpack.c.l.b16 %v2377
      %v2722 = vunpack.c.l.b16 %v2378
      %v2723 = vunpack.c.l.b16 %v2379
      %v2724 = vunpack.c.l.b16 %v2380
      %v2725 = vunpack.c.l.b16 %v2381
      %v2726 = vunpack.c.l.b16 %v2382
      %v2727 = vunpack.c.l.b16 %v2383
      %v2728 = vunpack.c.l.b16 %v2384
      %v2729 = vunpack.c.l.b16 %v2385
      %v2730 = vunpack.c.l.b16 %v2386
      %v2731 = vunpack.c.l.b16 %v2387
      %v2732 = vunpack.c.l.b16 %v2388
      %v2733 = vunpack.c.l.b16 %v2389
      %v2734 = vunpack.c.l.b16 %v2390
      %v2735 = vunpack.c.l.b16 %v2391
      %v2736 = vunpack.c.l.b16 %v2392
      %v2737 = vunpack.c.l.b16 %v2393
      %v2738 = vunpack.c.l.b16 %v2394
      %v2739 = vunpack.c.l.b16 %v2395
      %v2740 = vunpack.c.l.b16 %v2396
      %v2741 = vunpack.c.l.b16 %v2397
      %v2742 = vunpack.c.l.b16 %v2398
      %v2743 = vpack.c.b16 %v2712, %v2711
      %v2744 = vpack.c.b16 %v2714, %v2713
      %v2745 = vpack.c.b16 %v2716, %v2715
      %v2746 = vpack.c.b16 %v2718, %v2717
      %v2747 = vpack.c.b16 %v2720, %v2719
      %v2748 = vpack.c.b16 %v2722, %v2721
      %v2749 = vpack.c.b16 %v2724, %v2723
      %v2750 = vpack.c.b16 %v2726, %v2725
      %v2751 = vpack.c.b16 %v2728, %v2727
      %v2752 = vpack.c.b16 %v2730, %v2729
      %v2753 = vpack.c.b16 %v2732, %v2731
      %v2754 = vpack.c.b16 %v2734, %v2733
      %v2755 = vpack.c.b16 %v2736, %v2735
      %v2756 = vpack.c.b16 %v2738, %v2737
      %v2757 = vpack.c.b16 %v2740, %v2739
      %v2758 = vpack.c.b16 %v2742, %v2741
      %2775 = vmatpush.bf16.msra.mxu0 %v2750
      %2776 = vmatpush.bf16.msra.mxu0 %v2749
      %2777 = vmatpush.bf16.msra.mxu0 %v2748
      %2778 = vmatpush.bf16.msra.mxu0 %v2747
      %2779 = vmatpush.bf16.msra.mxu0 %v2746
      %2780 = vmatpush.bf16.msra.mxu0 %v2745
      %2781 = vmatpush.bf16.msra.mxu0 %v2744
      %2782 = vmatpush.bf16.msra.mxu0 %v2743
      %2783 = vmatmul.bf16.gmra.mxu0 %v2359
      %v2784 = vpop.f32.mrf.mxu0
      %v2785 = vadd.f32 %v2661, %v2784
      %v2786 = vpop.f32.mrf.mxu0
      %v2787 = vadd.f32 %v2663, %v2786
      %2788 = vmatmul.bf16.gmra.mxu0 %v2361
      %v2789 = vpop.f32.mrf.mxu0
      %v2790 = vadd.f32 %v2666, %v2789
      %v2791 = vpop.f32.mrf.mxu0
      %v2792 = vadd.f32 %v2668, %v2791
      %2793 = vmatmul.bf16.gmra.mxu0 %v2363
      %v2794 = vpop.f32.mrf.mxu0
      %v2795 = vadd.f32 %v2671, %v2794
      %v2796 = vpop.f32.mrf.mxu0
      %v2797 = vadd.f32 %v2673, %v2796
      %2798 = vmatmul.bf16.gmra.mxu0 %v2365
      %v2799 = vpop.f32.mrf.mxu0
      %v2800 = vadd.f32 %v2676, %v2799
      %v2801 = vpop.f32.mrf.mxu0
      %2802 = vdwg.mxu0
      %2803 = vmatpush.bf16.msra.mxu0 %v2758
      %2804 = vmatpush.bf16.msra.mxu0 %v2757
      %2805 = vmatpush.bf16.msra.mxu0 %v2756
      %2806 = vmatpush.bf16.msra.mxu0 %v2755
      %2807 = vmatpush.bf16.msra.mxu0 %v2754
      %2808 = vmatpush.bf16.msra.mxu0 %v2753
      %2809 = vmatpush.bf16.msra.mxu0 %v2752
      %2810 = vmatpush.bf16.msra.mxu0 %v2751
      %2811 = vmatmul.bf16.gmra.mxu0 %v2360
      %v2812 = vpop.f32.mrf.mxu0
      %v2813 = vadd.f32 %v2785, %v2812
      %v2814 = vpop.f32.mrf.mxu0
      %v2815 = vadd.f32 %v2787, %v2814
      %2816 = vmatmul.bf16.gmra.mxu0 %v2362
      %v2817 = vpop.f32.mrf.mxu0
      %v2818 = vadd.f32 %v2790, %v2817
      %v2819 = vpop.f32.mrf.mxu0
      %v2820 = vadd.f32 %v2792, %v2819
      %2821 = vmatmul.bf16.gmra.mxu0 %v2364
      %v2822 = vpop.f32.mrf.mxu0
      %v2823 = vadd.f32 %v2795, %v2822
      %v2824 = vpop.f32.mrf.mxu0
      %v2825 = vadd.f32 %v2797, %v2824
      %2826 = vmatmul.bf16.gmra.mxu0 %v2366
      %v2827 = vpop.f32.mrf.mxu0
      %v2828 = vadd.f32 %v2800, %v2827
      %v2829 = vpop.f32.mrf.mxu0
      %2830 = vdwg.mxu0
      %v2831 = vld [vmem:[%s10 + $0x10] sm:$0xff]
      %v2832 = vld [vmem:[%s10 + $0x50] sm:$0xff]
      %v2833 = vld [vmem:[%s11 + $0x4] sm:$0x3]
      %v2835 = vperm.slane %v2833, 0
      %v2836 = vperm.slane %v2833, 1
      %v2841 = vunpack.c.l.b16 %v2831
      %v2842 = vunpack.c.h.b16 %v2831
      %v2843 = vunpack.c.l.b16 %v2832
      %v2844 = vunpack.c.h.b16 %v2832
      %v2845 = vpack.c.b16 %v2843, %v2841
      %v2846 = vpack.c.b16 %v2844, %v2842
      %2849 = vmatpush.bf16.msra.mxu0 0
      %2850 = vmatpush.bf16.msra.mxu0 0
      %2851 = vmatpush.bf16.msra.mxu0 0
      %2852 = vmatpush.bf16.msra.mxu0 0
      %2853 = vmatpush.bf16.msra.mxu0 0
      %2854 = vmatpush.bf16.msra.mxu0 0
      %2855 = vmatpush.bf16.msra.mxu0 0
      %2856 = vmatpush.bf16.msra.mxu0 %v2845
      %2857 = vmatmul.bf16.gmra.mxu0 %v2278
      %v2858 = vpop.f32.mrf.mxu0
      %v2859 = vadd.f32 %v2835, %v2858
      %v2860 = vpop.f32.mrf.mxu0
      %v2861 = vadd.f32 %v2835, %v2860
      %2862 = vmatmul.bf16.gmra.mxu0 %v2281
      %v2863 = vpop.f32.mrf.mxu0
      %v2864 = vadd.f32 %v2835, %v2863
      %v2865 = vpop.f32.mrf.mxu0
      %v2866 = vadd.f32 %v2835, %v2865
      %2867 = vmatmul.bf16.gmra.mxu0 %v2284
      %v2868 = vpop.f32.mrf.mxu0
      %v2869 = vadd.f32 %v2835, %v2868
      %v2870 = vpop.f32.mrf.mxu0
      %v2871 = vadd.f32 %v2835, %v2870
      %2872 = vmatmul.bf16.gmra.mxu0 %v2287
      %v2873 = vpop.f32.mrf.mxu0
      %v2874 = vadd.f32 %v2835, %v2873
      %v2875 = vpop.f32.mrf.mxu0
      %2876 = vdwg.mxu0
      %2877 = vmatpush.bf16.msra.mxu0 0
      %2878 = vmatpush.bf16.msra.mxu0 0
      %2879 = vmatpush.bf16.msra.mxu0 0
      %2880 = vmatpush.bf16.msra.mxu0 0
      %2881 = vmatpush.bf16.msra.mxu0 0
      %2882 = vmatpush.bf16.msra.mxu0 0
      %2883 = vmatpush.bf16.msra.mxu0 0
      %2884 = vmatpush.bf16.msra.mxu0 %v2846
      %2885 = vmatmul.bf16.gmra.mxu0 %v2278
      %v2886 = vpop.f32.mrf.mxu0
      %v2887 = vadd.f32 %v2836, %v2886
      %v2888 = vpop.f32.mrf.mxu0
      %v2889 = vadd.f32 %v2836, %v2888
      %2890 = vmatmul.bf16.gmra.mxu0 %v2281
      %v2891 = vpop.f32.mrf.mxu0
      %v2892 = vadd.f32 %v2836, %v2891
      %v2893 = vpop.f32.mrf.mxu0
      %v2894 = vadd.f32 %v2836, %v2893
      %2895 = vmatmul.bf16.gmra.mxu0 %v2284
      %v2896 = vpop.f32.mrf.mxu0
      %v2897 = vadd.f32 %v2836, %v2896
      %v2898 = vpop.f32.mrf.mxu0
      %v2899 = vadd.f32 %v2836, %v2898
      %2900 = vmatmul.bf16.gmra.mxu0 %v2287
      %v2901 = vpop.f32.mrf.mxu0
      %v2902 = vadd.f32 %v2836, %v2901
      %v2903 = vpop.f32.mrf.mxu0
      %2904 = vdwg.mxu0
      %v2905 = vmax.f32 %v2859, 0.0
      %v2906 = vmax.f32 %v2887, 0.0
      %v2907 = vmax.f32 %v2861, 0.0
      %v2908 = vmax.f32 %v2889, 0.0
      %v2909 = vmax.f32 %v2864, 0.0
      %v2910 = vmax.f32 %v2892, 0.0
      %v2911 = vmax.f32 %v2866, 0.0
      %v2912 = vmax.f32 %v2894, 0.0
      %v2913 = vmax.f32 %v2869, 0.0
      %v2914 = vmax.f32 %v2897, 0.0
      %v2915 = vmax.f32 %v2871, 0.0
      %v2916 = vmax.f32 %v2899, 0.0
      %v2917 = vmax.f32 %v2874, 0.0
      %v2918 = vmax.f32 %v2902, 0.0
      %v2919 = vpack.c.bf16 %v2907, %v2905
      %v2920 = vpack.c.bf16 %v2908, %v2906
      %v2921 = vpack.c.bf16 %v2911, %v2909
      %v2922 = vpack.c.bf16 %v2912, %v2910
      %v2923 = vpack.c.bf16 %v2915, %v2913
      %v2924 = vpack.c.bf16 %v2916, %v2914
      %v2925 = vpack.c.bf16 %v2917, %v2917
      %v2926 = vpack.c.bf16 %v2918, %v2918
      %v2927 = vld [vmem:[%s12 + $0x100] sm:$0xf]
      %v2928 = vld [vmem:[%s12 + $0x104] sm:$0xf]
      %v2929 = vld [vmem:[%s12 + $0x108] sm:$0xf]
      %v2930 = vld [vmem:[%s12 + $0x10c] sm:$0xf]
      %v2931 = vld [vmem:[%s12 + $0x110] sm:$0xf]
      %v2932 = vld [vmem:[%s12 + $0x114] sm:$0xf]
      %v2933 = vld [vmem:[%s12 + $0x118] sm:$0xf]
      %v2934 = vld [vmem:[%s12 + $0x11c] sm:$0xf]
      %v2935 = vld [vmem:[%s12 + $0x120] sm:$0xf]
      %v2936 = vld [vmem:[%s12 + $0x124] sm:$0xf]
      %v2937 = vld [vmem:[%s12 + $0x128] sm:$0xf]
      %v2938 = vld [vmem:[%s12 + $0x12c] sm:$0xf]
      %v2939 = vld [vmem:[%s12 + $0x130] sm:$0xf]
      %v2940 = vld [vmem:[%s12 + $0x134] sm:$0xf]
      %v2941 = vld [vmem:[%s12 + $0x138] sm:$0xf]
      %v2942 = vld [vmem:[%s12 + $0x13c] sm:$0xf]
      %v2943 = vld [vmem:[%s12 + $0x140] sm:$0xf]
      %v2944 = vld [vmem:[%s12 + $0x144] sm:$0xf]
      %v2945 = vld [vmem:[%s12 + $0x148] sm:$0xf]
      %v2946 = vld [vmem:[%s12 + $0x14c] sm:$0xf]
      %v2947 = vld [vmem:[%s12 + $0x150] sm:$0xf]
      %v2948 = vld [vmem:[%s12 + $0x154] sm:$0xf]
      %v2949 = vld [vmem:[%s12 + $0x158] sm:$0xf]
      %v2950 = vld [vmem:[%s12 + $0x15c] sm:$0xf]
      %v2951 = vld [vmem:[%s12 + $0x160] sm:$0xf]
      %v2952 = vld [vmem:[%s12 + $0x164] sm:$0xf]
      %v2953 = vld [vmem:[%s12 + $0x168] sm:$0xf]
      %v2954 = vld [vmem:[%s12 + $0x16c] sm:$0xf]
      %v2955 = vld [vmem:[%s12 + $0x170] sm:$0xf]
      %v2956 = vld [vmem:[%s12 + $0x174] sm:$0xf]
      %v2957 = vld [vmem:[%s12 + $0x178] sm:$0xf]
      %v2958 = vld [vmem:[%s12 + $0x17c] sm:$0xf]
      %v2991 = vunpack.c.l.b16 %v2927
      %v2992 = vunpack.c.l.b16 %v2928
      %v2993 = vunpack.c.l.b16 %v2929
      %v2994 = vunpack.c.l.b16 %v2930
      %v2995 = vunpack.c.l.b16 %v2931
      %v2996 = vunpack.c.l.b16 %v2932
      %v2997 = vunpack.c.l.b16 %v2933
      %v2998 = vunpack.c.l.b16 %v2934
      %v2999 = vunpack.c.l.b16 %v2935
      %v3000 = vunpack.c.l.b16 %v2936
      %v3001 = vunpack.c.l.b16 %v2937
      %v3002 = vunpack.c.l.b16 %v2938
      %v3003 = vunpack.c.l.b16 %v2939
      %v3004 = vunpack.c.l.b16 %v2940
      %v3005 = vunpack.c.l.b16 %v2941
      %v3006 = vunpack.c.l.b16 %v2942
      %v3007 = vunpack.c.l.b16 %v2943
      %v3008 = vunpack.c.l.b16 %v2944
      %v3009 = vunpack.c.l.b16 %v2945
      %v3010 = vunpack.c.l.b16 %v2946
      %v3011 = vunpack.c.l.b16 %v2947
      %v3012 = vunpack.c.l.b16 %v2948
      %v3013 = vunpack.c.l.b16 %v2949
      %v3014 = vunpack.c.l.b16 %v2950
      %v3015 = vunpack.c.l.b16 %v2951
      %v3016 = vunpack.c.l.b16 %v2952
      %v3017 = vunpack.c.l.b16 %v2953
      %v3018 = vunpack.c.l.b16 %v2954
      %v3019 = vunpack.c.l.b16 %v2955
      %v3020 = vunpack.c.l.b16 %v2956
      %v3021 = vunpack.c.l.b16 %v2957
      %v3022 = vunpack.c.l.b16 %v2958
      %v3023 = vpack.c.b16 %v2992, %v2991
      %v3024 = vpack.c.b16 %v2994, %v2993
      %v3025 = vpack.c.b16 %v2996, %v2995
      %v3026 = vpack.c.b16 %v2998, %v2997
      %v3027 = vpack.c.b16 %v3000, %v2999
      %v3028 = vpack.c.b16 %v3002, %v3001
      %v3029 = vpack.c.b16 %v3004, %v3003
      %v3030 = vpack.c.b16 %v3006, %v3005
      %v3031 = vpack.c.b16 %v3008, %v3007
      %v3032 = vpack.c.b16 %v3010, %v3009
      %v3033 = vpack.c.b16 %v3012, %v3011
      %v3034 = vpack.c.b16 %v3014, %v3013
      %v3035 = vpack.c.b16 %v3016, %v3015
      %v3036 = vpack.c.b16 %v3018, %v3017
      %v3037 = vpack.c.b16 %v3020, %v3019
      %v3038 = vpack.c.b16 %v3022, %v3021
      %3055 = vmatpush.bf16.msra.mxu0 %v3030
      %3056 = vmatpush.bf16.msra.mxu0 %v3029
      %3057 = vmatpush.bf16.msra.mxu0 %v3028
      %3058 = vmatpush.bf16.msra.mxu0 %v3027
      %3059 = vmatpush.bf16.msra.mxu0 %v3026
      %3060 = vmatpush.bf16.msra.mxu0 %v3025
      %3061 = vmatpush.bf16.msra.mxu0 %v3024
      %3062 = vmatpush.bf16.msra.mxu0 %v3023
      %3063 = vmatmul.bf16.gmra.mxu0 %v2919
      %v3064 = vpop.f32.mrf.mxu0
      %v3065 = vadd.f32 0.0, %v3064
      %v3066 = vpop.f32.mrf.mxu0
      %v3067 = vadd.f32 0.0, %v3066
      %3068 = vmatmul.bf16.gmra.mxu0 %v2921
      %v3069 = vpop.f32.mrf.mxu0
      %v3070 = vadd.f32 0.0, %v3069
      %v3071 = vpop.f32.mrf.mxu0
      %v3072 = vadd.f32 0.0, %v3071
      %3073 = vmatmul.bf16.gmra.mxu0 %v2923
      %v3074 = vpop.f32.mrf.mxu0
      %v3075 = vadd.f32 0.0, %v3074
      %v3076 = vpop.f32.mrf.mxu0
      %v3077 = vadd.f32 0.0, %v3076
      %3078 = vmatmul.bf16.gmra.mxu0 %v2925
      %v3079 = vpop.f32.mrf.mxu0
      %v3080 = vadd.f32 0.0, %v3079
      %v3081 = vpop.f32.mrf.mxu0
      %3082 = vdwg.mxu0
      %3083 = vmatpush.bf16.msra.mxu0 %v3038
      %3084 = vmatpush.bf16.msra.mxu0 %v3037
      %3085 = vmatpush.bf16.msra.mxu0 %v3036
      %3086 = vmatpush.bf16.msra.mxu0 %v3035
      %3087 = vmatpush.bf16.msra.mxu0 %v3034
      %3088 = vmatpush.bf16.msra.mxu0 %v3033
      %3089 = vmatpush.bf16.msra.mxu0 %v3032
      %3090 = vmatpush.bf16.msra.mxu0 %v3031
      %3091 = vmatmul.bf16.gmra.mxu0 %v2920
      %v3092 = vpop.f32.mrf.mxu0
      %v3093 = vadd.f32 %v3065, %v3092
      %v3094 = vpop.f32.mrf.mxu0
      %v3095 = vadd.f32 %v3067, %v3094
      %3096 = vmatmul.bf16.gmra.mxu0 %v2922
      %v3097 = vpop.f32.mrf.mxu0
      %v3098 = vadd.f32 %v3070, %v3097
      %v3099 = vpop.f32.mrf.mxu0
      %v3100 = vadd.f32 %v3072, %v3099
      %3101 = vmatmul.bf16.gmra.mxu0 %v2924
      %v3102 = vpop.f32.mrf.mxu0
      %v3103 = vadd.f32 %v3075, %v3102
      %v3104 = vpop.f32.mrf.mxu0
      %v3105 = vadd.f32 %v3077, %v3104
      %3106 = vmatmul.bf16.gmra.mxu0 %v2926
      %v3107 = vpop.f32.mrf.mxu0
      %v3108 = vadd.f32 %v3080, %v3107
      %v3109 = vpop.f32.mrf.mxu0
      %3110 = vdwg.mxu0
      %v3111 = vadd.f32 %v2813, %v3093
      %v3112 = vadd.f32 %v2815, %v3095
      %v3113 = vadd.f32 %v2818, %v3098
      %v3114 = vadd.f32 %v2820, %v3100
      %v3115 = vadd.f32 %v2823, %v3103
      %v3116 = vadd.f32 %v2825, %v3105
      %v3117 = vadd.f32 %v2828, %v3108
      %v3118 = vld [vmem:[%s10 + $0x18] sm:$0xff]
      %v3119 = vld [vmem:[%s10 + $0x58] sm:$0xff]
      %v3120 = vld [vmem:[%s11 + $0x6] sm:$0x3]
      %v3122 = vperm.slane %v3120, 0
      %v3123 = vperm.slane %v3120, 1
      %v3128 = vunpack.c.l.b16 %v3118
      %v3129 = vunpack.c.h.b16 %v3118
      %v3130 = vunpack.c.l.b16 %v3119
      %v3131 = vunpack.c.h.b16 %v3119
      %v3132 = vpack.c.b16 %v3130, %v3128
      %v3133 = vpack.c.b16 %v3131, %v3129
      %3136 = vmatpush.bf16.msra.mxu0 0
      %3137 = vmatpush.bf16.msra.mxu0 0
      %3138 = vmatpush.bf16.msra.mxu0 0
      %3139 = vmatpush.bf16.msra.mxu0 0
      %3140 = vmatpush.bf16.msra.mxu0 0
      %3141 = vmatpush.bf16.msra.mxu0 0
      %3142 = vmatpush.bf16.msra.mxu0 0
      %3143 = vmatpush.bf16.msra.mxu0 %v3132
      %3144 = vmatmul.bf16.gmra.mxu0 %v2278
      %v3145 = vpop.f32.mrf.mxu0
      %v3146 = vadd.f32 %v3122, %v3145
      %v3147 = vpop.f32.mrf.mxu0
      %v3148 = vadd.f32 %v3122, %v3147
      %3149 = vmatmul.bf16.gmra.mxu0 %v2281
      %v3150 = vpop.f32.mrf.mxu0
      %v3151 = vadd.f32 %v3122, %v3150
      %v3152 = vpop.f32.mrf.mxu0
      %v3153 = vadd.f32 %v3122, %v3152
      %3154 = vmatmul.bf16.gmra.mxu0 %v2284
      %v3155 = vpop.f32.mrf.mxu0
      %v3156 = vadd.f32 %v3122, %v3155
      %v3157 = vpop.f32.mrf.mxu0
      %v3158 = vadd.f32 %v3122, %v3157
      %3159 = vmatmul.bf16.gmra.mxu0 %v2287
      %v3160 = vpop.f32.mrf.mxu0
      %v3161 = vadd.f32 %v3122, %v3160
      %v3162 = vpop.f32.mrf.mxu0
      %3163 = vdwg.mxu0
      %3164 = vmatpush.bf16.msra.mxu0 0
      %3165 = vmatpush.bf16.msra.mxu0 0
      %3166 = vmatpush.bf16.msra.mxu0 0
      %3167 = vmatpush.bf16.msra.mxu0 0
      %3168 = vmatpush.bf16.msra.mxu0 0
      %3169 = vmatpush.bf16.msra.mxu0 0
      %3170 = vmatpush.bf16.msra.mxu0 0
      %3171 = vmatpush.bf16.msra.mxu0 %v3133
      %3172 = vmatmul.bf16.gmra.mxu0 %v2278
      %v3173 = vpop.f32.mrf.mxu0
      %v3174 = vadd.f32 %v3123, %v3173
      %v3175 = vpop.f32.mrf.mxu0
      %v3176 = vadd.f32 %v3123, %v3175
      %3177 = vmatmul.bf16.gmra.mxu0 %v2281
      %v3178 = vpop.f32.mrf.mxu0
      %v3179 = vadd.f32 %v3123, %v3178
      %v3180 = vpop.f32.mrf.mxu0
      %v3181 = vadd.f32 %v3123, %v3180
      %3182 = vmatmul.bf16.gmra.mxu0 %v2284
      %v3183 = vpop.f32.mrf.mxu0
      %v3184 = vadd.f32 %v3123, %v3183
      %v3185 = vpop.f32.mrf.mxu0
      %v3186 = vadd.f32 %v3123, %v3185
      %3187 = vmatmul.bf16.gmra.mxu0 %v2287
      %v3188 = vpop.f32.mrf.mxu0
      %v3189 = vadd.f32 %v3123, %v3188
      %v3190 = vpop.f32.mrf.mxu0
      %3191 = vdwg.mxu0
      %v3192 = vmax.f32 %v3146, 0.0
      %v3193 = vmax.f32 %v3174, 0.0
      %v3194 = vmax.f32 %v3148, 0.0
      %v3195 = vmax.f32 %v3176, 0.0
      %v3196 = vmax.f32 %v3151, 0.0
      %v3197 = vmax.f32 %v3179, 0.0
      %v3198 = vmax.f32 %v3153, 0.0
      %v3199 = vmax.f32 %v3181, 0.0
      %v3200 = vmax.f32 %v3156, 0.0
      %v3201 = vmax.f32 %v3184, 0.0
      %v3202 = vmax.f32 %v3158, 0.0
      %v3203 = vmax.f32 %v3186, 0.0
      %v3204 = vmax.f32 %v3161, 0.0
      %v3205 = vmax.f32 %v3189, 0.0
      %v3206 = vpack.c.bf16 %v3194, %v3192
      %v3207 = vpack.c.bf16 %v3195, %v3193
      %v3208 = vpack.c.bf16 %v3198, %v3196
      %v3209 = vpack.c.bf16 %v3199, %v3197
      %v3210 = vpack.c.bf16 %v3202, %v3200
      %v3211 = vpack.c.bf16 %v3203, %v3201
      %v3212 = vpack.c.bf16 %v3204, %v3204
      %v3213 = vpack.c.bf16 %v3205, %v3205
      %v3214 = vld [vmem:[%s12 + $0x180] sm:$0xf]
      %v3215 = vld [vmem:[%s12 + $0x184] sm:$0xf]
      %v3216 = vld [vmem:[%s12 + $0x188] sm:$0xf]
      %v3217 = vld [vmem:[%s12 + $0x18c] sm:$0xf]
      %v3218 = vld [vmem:[%s12 + $0x190] sm:$0xf]
      %v3219 = vld [vmem:[%s12 + $0x194] sm:$0xf]
      %v3220 = vld [vmem:[%s12 + $0x198] sm:$0xf]
      %v3221 = vld [vmem:[%s12 + $0x19c] sm:$0xf]
      %v3222 = vld [vmem:[%s12 + $0x1a0] sm:$0xf]
      %v3223 = vld [vmem:[%s12 + $0x1a4] sm:$0xf]
      %v3224 = vld [vmem:[%s12 + $0x1a8] sm:$0xf]
      %v3225 = vld [vmem:[%s12 + $0x1ac] sm:$0xf]
      %v3226 = vld [vmem:[%s12 + $0x1b0] sm:$0xf]
      %v3227 = vld [vmem:[%s12 + $0x1b4] sm:$0xf]
      %v3228 = vld [vmem:[%s12 + $0x1b8] sm:$0xf]
      %v3229 = vld [vmem:[%s12 + $0x1bc] sm:$0xf]
      %v3230 = vld [vmem:[%s12 + $0x1c0] sm:$0xf]
      %v3231 = vld [vmem:[%s12 + $0x1c4] sm:$0xf]
      %v3232 = vld [vmem:[%s12 + $0x1c8] sm:$0xf]
      %v3233 = vld [vmem:[%s12 + $0x1cc] sm:$0xf]
      %v3234 = vld [vmem:[%s12 + $0x1d0] sm:$0xf]
      %v3235 = vld [vmem:[%s12 + $0x1d4] sm:$0xf]
      %v3236 = vld [vmem:[%s12 + $0x1d8] sm:$0xf]
      %v3237 = vld [vmem:[%s12 + $0x1dc] sm:$0xf]
      %v3238 = vld [vmem:[%s12 + $0x1e0] sm:$0xf]
      %v3239 = vld [vmem:[%s12 + $0x1e4] sm:$0xf]
      %v3240 = vld [vmem:[%s12 + $0x1e8] sm:$0xf]
      %v3241 = vld [vmem:[%s12 + $0x1ec] sm:$0xf]
      %v3242 = vld [vmem:[%s12 + $0x1f0] sm:$0xf]
      %v3243 = vld [vmem:[%s12 + $0x1f4] sm:$0xf]
      %v3244 = vld [vmem:[%s12 + $0x1f8] sm:$0xf]
      %v3245 = vld [vmem:[%s12 + $0x1fc] sm:$0xf]
      %v3278 = vunpack.c.l.b16 %v3214
      %v3279 = vunpack.c.l.b16 %v3215
      %v3280 = vunpack.c.l.b16 %v3216
      %v3281 = vunpack.c.l.b16 %v3217
      %v3282 = vunpack.c.l.b16 %v3218
      %v3283 = vunpack.c.l.b16 %v3219
      %v3284 = vunpack.c.l.b16 %v3220
      %v3285 = vunpack.c.l.b16 %v3221
      %v3286 = vunpack.c.l.b16 %v3222
      %v3287 = vunpack.c.l.b16 %v3223
      %v3288 = vunpack.c.l.b16 %v3224
      %v3289 = vunpack.c.l.b16 %v3225
      %v3290 = vunpack.c.l.b16 %v3226
      %v3291 = vunpack.c.l.b16 %v3227
      %v3292 = vunpack.c.l.b16 %v3228
      %v3293 = vunpack.c.l.b16 %v3229
      %v3294 = vunpack.c.l.b16 %v3230
      %v3295 = vunpack.c.l.b16 %v3231
      %v3296 = vunpack.c.l.b16 %v3232
      %v3297 = vunpack.c.l.b16 %v3233
      %v3298 = vunpack.c.l.b16 %v3234
      %v3299 = vunpack.c.l.b16 %v3235
      %v3300 = vunpack.c.l.b16 %v3236
      %v3301 = vunpack.c.l.b16 %v3237
      %v3302 = vunpack.c.l.b16 %v3238
      %v3303 = vunpack.c.l.b16 %v3239
      %v3304 = vunpack.c.l.b16 %v3240
      %v3305 = vunpack.c.l.b16 %v3241
      %v3306 = vunpack.c.l.b16 %v3242
      %v3307 = vunpack.c.l.b16 %v3243
      %v3308 = vunpack.c.l.b16 %v3244
      %v3309 = vunpack.c.l.b16 %v3245
      %v3310 = vpack.c.b16 %v3279, %v3278
      %v3311 = vpack.c.b16 %v3281, %v3280
      %v3312 = vpack.c.b16 %v3283, %v3282
      %v3313 = vpack.c.b16 %v3285, %v3284
      %v3314 = vpack.c.b16 %v3287, %v3286
      %v3315 = vpack.c.b16 %v3289, %v3288
      %v3316 = vpack.c.b16 %v3291, %v3290
      %v3317 = vpack.c.b16 %v3293, %v3292
      %v3318 = vpack.c.b16 %v3295, %v3294
      %v3319 = vpack.c.b16 %v3297, %v3296
      %v3320 = vpack.c.b16 %v3299, %v3298
      %v3321 = vpack.c.b16 %v3301, %v3300
      %v3322 = vpack.c.b16 %v3303, %v3302
      %v3323 = vpack.c.b16 %v3305, %v3304
      %v3324 = vpack.c.b16 %v3307, %v3306
      %v3325 = vpack.c.b16 %v3309, %v3308
      %3342 = vmatpush.bf16.msra.mxu0 %v3317
      %3343 = vmatpush.bf16.msra.mxu0 %v3316
      %3344 = vmatpush.bf16.msra.mxu0 %v3315
      %3345 = vmatpush.bf16.msra.mxu0 %v3314
      %3346 = vmatpush.bf16.msra.mxu0 %v3313
      %3347 = vmatpush.bf16.msra.mxu0 %v3312
      %3348 = vmatpush.bf16.msra.mxu0 %v3311
      %3349 = vmatpush.bf16.msra.mxu0 %v3310
      %3350 = vmatmul.bf16.gmra.mxu0 %v3206
      %v3351 = vpop.f32.mrf.mxu0
      %v3352 = vadd.f32 0.0, %v3351
      %v3353 = vpop.f32.mrf.mxu0
      %v3354 = vadd.f32 0.0, %v3353
      %3355 = vmatmul.bf16.gmra.mxu0 %v3208
      %v3356 = vpop.f32.mrf.mxu0
      %v3357 = vadd.f32 0.0, %v3356
      %v3358 = vpop.f32.mrf.mxu0
      %v3359 = vadd.f32 0.0, %v3358
      %3360 = vmatmul.bf16.gmra.mxu0 %v3210
      %v3361 = vpop.f32.mrf.mxu0
      %v3362 = vadd.f32 0.0, %v3361
      %v3363 = vpop.f32.mrf.mxu0
      %v3364 = vadd.f32 0.0, %v3363
      %3365 = vmatmul.bf16.gmra.mxu0 %v3212
      %v3366 = vpop.f32.mrf.mxu0
      %v3367 = vadd.f32 0.0, %v3366
      %v3368 = vpop.f32.mrf.mxu0
      %3369 = vdwg.mxu0
      %3370 = vmatpush.bf16.msra.mxu0 %v3325
      %3371 = vmatpush.bf16.msra.mxu0 %v3324
      %3372 = vmatpush.bf16.msra.mxu0 %v3323
      %3373 = vmatpush.bf16.msra.mxu0 %v3322
      %3374 = vmatpush.bf16.msra.mxu0 %v3321
      %3375 = vmatpush.bf16.msra.mxu0 %v3320
      %3376 = vmatpush.bf16.msra.mxu0 %v3319
      %3377 = vmatpush.bf16.msra.mxu0 %v3318
      %3378 = vmatmul.bf16.gmra.mxu0 %v3207
      %v3379 = vpop.f32.mrf.mxu0
      %v3380 = vadd.f32 %v3352, %v3379
      %v3381 = vpop.f32.mrf.mxu0
      %v3382 = vadd.f32 %v3354, %v3381
      %3383 = vmatmul.bf16.gmra.mxu0 %v3209
      %v3384 = vpop.f32.mrf.mxu0
      %v3385 = vadd.f32 %v3357, %v3384
      %v3386 = vpop.f32.mrf.mxu0
      %v3387 = vadd.f32 %v3359, %v3386
      %3388 = vmatmul.bf16.gmra.mxu0 %v3211
      %v3389 = vpop.f32.mrf.mxu0
      %v3390 = vadd.f32 %v3362, %v3389
      %v3391 = vpop.f32.mrf.mxu0
      %v3392 = vadd.f32 %v3364, %v3391
      %3393 = vmatmul.bf16.gmra.mxu0 %v3213
      %v3394 = vpop.f32.mrf.mxu0
      %v3395 = vadd.f32 %v3367, %v3394
      %v3396 = vpop.f32.mrf.mxu0
      %3397 = vdwg.mxu0
      %v3398 = vadd.f32 %v3111, %v3380
      %v3399 = vadd.f32 %v3112, %v3382
      %v3400 = vadd.f32 %v3113, %v3385
      %v3401 = vadd.f32 %v3114, %v3387
      %v3402 = vadd.f32 %v3115, %v3390
      %v3403 = vadd.f32 %v3116, %v3392
      %v3404 = vadd.f32 %v3117, %v3395
      %v3405 = vld [vmem:[%s10 + $0x20] sm:$0xff]
      %v3406 = vld [vmem:[%s10 + $0x60] sm:$0xff]
      %v3407 = vld [vmem:[%s11 + $0x8] sm:$0x3]
      %v3409 = vperm.slane %v3407, 0
      %v3410 = vperm.slane %v3407, 1
      %v3415 = vunpack.c.l.b16 %v3405
      %v3416 = vunpack.c.h.b16 %v3405
      %v3417 = vunpack.c.l.b16 %v3406
      %v3418 = vunpack.c.h.b16 %v3406
      %v3419 = vpack.c.b16 %v3417, %v3415
      %v3420 = vpack.c.b16 %v3418, %v3416
      %3423 = vmatpush.bf16.msra.mxu0 0
      %3424 = vmatpush.bf16.msra.mxu0 0
      %3425 = vmatpush.bf16.msra.mxu0 0
      %3426 = vmatpush.bf16.msra.mxu0 0
      %3427 = vmatpush.bf16.msra.mxu0 0
      %3428 = vmatpush.bf16.msra.mxu0 0
      %3429 = vmatpush.bf16.msra.mxu0 0
      %3430 = vmatpush.bf16.msra.mxu0 %v3419
      %3431 = vmatmul.bf16.gmra.mxu0 %v2278
      %v3432 = vpop.f32.mrf.mxu0
      %v3433 = vadd.f32 %v3409, %v3432
      %v3434 = vpop.f32.mrf.mxu0
      %v3435 = vadd.f32 %v3409, %v3434
      %3436 = vmatmul.bf16.gmra.mxu0 %v2281
      %v3437 = vpop.f32.mrf.mxu0
      %v3438 = vadd.f32 %v3409, %v3437
      %v3439 = vpop.f32.mrf.mxu0
      %v3440 = vadd.f32 %v3409, %v3439
      %3441 = vmatmul.bf16.gmra.mxu0 %v2284
      %v3442 = vpop.f32.mrf.mxu0
      %v3443 = vadd.f32 %v3409, %v3442
      %v3444 = vpop.f32.mrf.mxu0
      %v3445 = vadd.f32 %v3409, %v3444
      %3446 = vmatmul.bf16.gmra.mxu0 %v2287
      %v3447 = vpop.f32.mrf.mxu0
      %v3448 = vadd.f32 %v3409, %v3447
      %v3449 = vpop.f32.mrf.mxu0
      %3450 = vdwg.mxu0
      %3451 = vmatpush.bf16.msra.mxu0 0
      %3452 = vmatpush.bf16.msra.mxu0 0
      %3453 = vmatpush.bf16.msra.mxu0 0
      %3454 = vmatpush.bf16.msra.mxu0 0
      %3455 = vmatpush.bf16.msra.mxu0 0
      %3456 = vmatpush.bf16.msra.mxu0 0
      %3457 = vmatpush.bf16.msra.mxu0 0
      %3458 = vmatpush.bf16.msra.mxu0 %v3420
      %3459 = vmatmul.bf16.gmra.mxu0 %v2278
      %v3460 = vpop.f32.mrf.mxu0
      %v3461 = vadd.f32 %v3410, %v3460
      %v3462 = vpop.f32.mrf.mxu0
      %v3463 = vadd.f32 %v3410, %v3462
      %3464 = vmatmul.bf16.gmra.mxu0 %v2281
      %v3465 = vpop.f32.mrf.mxu0
      %v3466 = vadd.f32 %v3410, %v3465
      %v3467 = vpop.f32.mrf.mxu0
      %v3468 = vadd.f32 %v3410, %v3467
      %3469 = vmatmul.bf16.gmra.mxu0 %v2284
      %v3470 = vpop.f32.mrf.mxu0
      %v3471 = vadd.f32 %v3410, %v3470
      %v3472 = vpop.f32.mrf.mxu0
      %v3473 = vadd.f32 %v3410, %v3472
      %3474 = vmatmul.bf16.gmra.mxu0 %v2287
      %v3475 = vpop.f32.mrf.mxu0
      %v3476 = vadd.f32 %v3410, %v3475
      %v3477 = vpop.f32.mrf.mxu0
      %3478 = vdwg.mxu0
      %v3479 = vmax.f32 %v3433, 0.0
      %v3480 = vmax.f32 %v3461, 0.0
      %v3481 = vmax.f32 %v3435, 0.0
      %v3482 = vmax.f32 %v3463, 0.0
      %v3483 = vmax.f32 %v3438, 0.0
      %v3484 = vmax.f32 %v3466, 0.0
      %v3485 = vmax.f32 %v3440, 0.0
      %v3486 = vmax.f32 %v3468, 0.0
      %v3487 = vmax.f32 %v3443, 0.0
      %v3488 = vmax.f32 %v3471, 0.0
      %v3489 = vmax.f32 %v3445, 0.0
      %v3490 = vmax.f32 %v3473, 0.0
      %v3491 = vmax.f32 %v3448, 0.0
      %v3492 = vmax.f32 %v3476, 0.0
      %v3493 = vpack.c.bf16 %v3481, %v3479
      %v3494 = vpack.c.bf16 %v3482, %v3480
      %v3495 = vpack.c.bf16 %v3485, %v3483
      %v3496 = vpack.c.bf16 %v3486, %v3484
      %v3497 = vpack.c.bf16 %v3489, %v3487
      %v3498 = vpack.c.bf16 %v3490, %v3488
      %v3499 = vpack.c.bf16 %v3491, %v3491
      %v3500 = vpack.c.bf16 %v3492, %v3492
      %v3501 = vld [vmem:[%s12 + $0x200] sm:$0xf]
      %v3502 = vld [vmem:[%s12 + $0x204] sm:$0xf]
      %v3503 = vld [vmem:[%s12 + $0x208] sm:$0xf]
      %v3504 = vld [vmem:[%s12 + $0x20c] sm:$0xf]
      %v3505 = vld [vmem:[%s12 + $0x210] sm:$0xf]
      %v3506 = vld [vmem:[%s12 + $0x214] sm:$0xf]
      %v3507 = vld [vmem:[%s12 + $0x218] sm:$0xf]
      %v3508 = vld [vmem:[%s12 + $0x21c] sm:$0xf]
      %v3509 = vld [vmem:[%s12 + $0x220] sm:$0xf]
      %v3510 = vld [vmem:[%s12 + $0x224] sm:$0xf]
      %v3511 = vld [vmem:[%s12 + $0x228] sm:$0xf]
      %v3512 = vld [vmem:[%s12 + $0x22c] sm:$0xf]
      %v3513 = vld [vmem:[%s12 + $0x230] sm:$0xf]
      %v3514 = vld [vmem:[%s12 + $0x234] sm:$0xf]
      %v3515 = vld [vmem:[%s12 + $0x238] sm:$0xf]
      %v3516 = vld [vmem:[%s12 + $0x23c] sm:$0xf]
      %v3517 = vld [vmem:[%s12 + $0x240] sm:$0xf]
      %v3518 = vld [vmem:[%s12 + $0x244] sm:$0xf]
      %v3519 = vld [vmem:[%s12 + $0x248] sm:$0xf]
      %v3520 = vld [vmem:[%s12 + $0x24c] sm:$0xf]
      %v3521 = vld [vmem:[%s12 + $0x250] sm:$0xf]
      %v3522 = vld [vmem:[%s12 + $0x254] sm:$0xf]
      %v3523 = vld [vmem:[%s12 + $0x258] sm:$0xf]
      %v3524 = vld [vmem:[%s12 + $0x25c] sm:$0xf]
      %v3525 = vld [vmem:[%s12 + $0x260] sm:$0xf]
      %v3526 = vld [vmem:[%s12 + $0x264] sm:$0xf]
      %v3527 = vld [vmem:[%s12 + $0x268] sm:$0xf]
      %v3528 = vld [vmem:[%s12 + $0x26c] sm:$0xf]
      %v3529 = vld [vmem:[%s12 + $0x270] sm:$0xf]
      %v3530 = vld [vmem:[%s12 + $0x274] sm:$0xf]
      %v3531 = vld [vmem:[%s12 + $0x278] sm:$0xf]
      %v3532 = vld [vmem:[%s12 + $0x27c] sm:$0xf]
      %v3565 = vunpack.c.l.b16 %v3501
      %v3566 = vunpack.c.l.b16 %v3502
      %v3567 = vunpack.c.l.b16 %v3503
      %v3568 = vunpack.c.l.b16 %v3504
      %v3569 = vunpack.c.l.b16 %v3505
      %v3570 = vunpack.c.l.b16 %v3506
      %v3571 = vunpack.c.l.b16 %v3507
      %v3572 = vunpack.c.l.b16 %v3508
      %v3573 = vunpack.c.l.b16 %v3509
      %v3574 = vunpack.c.l.b16 %v3510
      %v3575 = vunpack.c.l.b16 %v3511
      %v3576 = vunpack.c.l.b16 %v3512
      %v3577 = vunpack.c.l.b16 %v3513
      %v3578 = vunpack.c.l.b16 %v3514
      %v3579 = vunpack.c.l.b16 %v3515
      %v3580 = vunpack.c.l.b16 %v3516
      %v3581 = vunpack.c.l.b16 %v3517
      %v3582 = vunpack.c.l.b16 %v3518
      %v3583 = vunpack.c.l.b16 %v3519
      %v3584 = vunpack.c.l.b16 %v3520
      %v3585 = vunpack.c.l.b16 %v3521
      %v3586 = vunpack.c.l.b16 %v3522
      %v3587 = vunpack.c.l.b16 %v3523
      %v3588 = vunpack.c.l.b16 %v3524
      %v3589 = vunpack.c.l.b16 %v3525
      %v3590 = vunpack.c.l.b16 %v3526
      %v3591 = vunpack.c.l.b16 %v3527
      %v3592 = vunpack.c.l.b16 %v3528
      %v3593 = vunpack.c.l.b16 %v3529
      %v3594 = vunpack.c.l.b16 %v3530
      %v3595 = vunpack.c.l.b16 %v3531
      %v3596 = vunpack.c.l.b16 %v3532
      %v3597 = vpack.c.b16 %v3566, %v3565
      %v3598 = vpack.c.b16 %v3568, %v3567
      %v3599 = vpack.c.b16 %v3570, %v3569
      %v3600 = vpack.c.b16 %v3572, %v3571
      %v3601 = vpack.c.b16 %v3574, %v3573
      %v3602 = vpack.c.b16 %v3576, %v3575
      %v3603 = vpack.c.b16 %v3578, %v3577
      %v3604 = vpack.c.b16 %v3580, %v3579
      %v3605 = vpack.c.b16 %v3582, %v3581
      %v3606 = vpack.c.b16 %v3584, %v3583
      %v3607 = vpack.c.b16 %v3586, %v3585
      %v3608 = vpack.c.b16 %v3588, %v3587
      %v3609 = vpack.c.b16 %v3590, %v3589
      %v3610 = vpack.c.b16 %v3592, %v3591
      %v3611 = vpack.c.b16 %v3594, %v3593
      %v3612 = vpack.c.b16 %v3596, %v3595
      %3629 = vmatpush.bf16.msra.mxu0 %v3604
      %3630 = vmatpush.bf16.msra.mxu0 %v3603
      %3631 = vmatpush.bf16.msra.mxu0 %v3602
      %3632 = vmatpush.bf16.msra.mxu0 %v3601
      %3633 = vmatpush.bf16.msra.mxu0 %v3600
      %3634 = vmatpush.bf16.msra.mxu0 %v3599
      %3635 = vmatpush.bf16.msra.mxu0 %v3598
      %3636 = vmatpush.bf16.msra.mxu0 %v3597
      %3637 = vmatmul.bf16.gmra.mxu0 %v3493
      %v3638 = vpop.f32.mrf.mxu0
      %v3639 = vadd.f32 0.0, %v3638
      %v3640 = vpop.f32.mrf.mxu0
      %v3641 = vadd.f32 0.0, %v3640
      %3642 = vmatmul.bf16.gmra.mxu0 %v3495
      %v3643 = vpop.f32.mrf.mxu0
      %v3644 = vadd.f32 0.0, %v3643
      %v3645 = vpop.f32.mrf.mxu0
      %v3646 = vadd.f32 0.0, %v3645
      %3647 = vmatmul.bf16.gmra.mxu0 %v3497
      %v3648 = vpop.f32.mrf.mxu0
      %v3649 = vadd.f32 0.0, %v3648
      %v3650 = vpop.f32.mrf.mxu0
      %v3651 = vadd.f32 0.0, %v3650
      %3652 = vmatmul.bf16.gmra.mxu0 %v3499
      %v3653 = vpop.f32.mrf.mxu0
      %v3654 = vadd.f32 0.0, %v3653
      %v3655 = vpop.f32.mrf.mxu0
      %3656 = vdwg.mxu0
      %3657 = vmatpush.bf16.msra.mxu0 %v3612
      %3658 = vmatpush.bf16.msra.mxu0 %v3611
      %3659 = vmatpush.bf16.msra.mxu0 %v3610
      %3660 = vmatpush.bf16.msra.mxu0 %v3609
      %3661 = vmatpush.bf16.msra.mxu0 %v3608
      %3662 = vmatpush.bf16.msra.mxu0 %v3607
      %3663 = vmatpush.bf16.msra.mxu0 %v3606
      %3664 = vmatpush.bf16.msra.mxu0 %v3605
      %3665 = vmatmul.bf16.gmra.mxu0 %v3494
      %v3666 = vpop.f32.mrf.mxu0
      %v3667 = vadd.f32 %v3639, %v3666
      %v3668 = vpop.f32.mrf.mxu0
      %v3669 = vadd.f32 %v3641, %v3668
      %3670 = vmatmul.bf16.gmra.mxu0 %v3496
      %v3671 = vpop.f32.mrf.mxu0
      %v3672 = vadd.f32 %v3644, %v3671
      %v3673 = vpop.f32.mrf.mxu0
      %v3674 = vadd.f32 %v3646, %v3673
      %3675 = vmatmul.bf16.gmra.mxu0 %v3498
      %v3676 = vpop.f32.mrf.mxu0
      %v3677 = vadd.f32 %v3649, %v3676
      %v3678 = vpop.f32.mrf.mxu0
      %v3679 = vadd.f32 %v3651, %v3678
      %3680 = vmatmul.bf16.gmra.mxu0 %v3500
      %v3681 = vpop.f32.mrf.mxu0
      %v3682 = vadd.f32 %v3654, %v3681
      %v3683 = vpop.f32.mrf.mxu0
      %3684 = vdwg.mxu0
      %v3685 = vadd.f32 %v3398, %v3667
      %v3686 = vadd.f32 %v3399, %v3669
      %v3687 = vadd.f32 %v3400, %v3672
      %v3688 = vadd.f32 %v3401, %v3674
      %v3689 = vadd.f32 %v3402, %v3677
      %v3690 = vadd.f32 %v3403, %v3679
      %v3691 = vadd.f32 %v3404, %v3682
      %v3692 = vld [vmem:[%s10 + $0x28] sm:$0xff]
      %v3693 = vld [vmem:[%s10 + $0x68] sm:$0xff]
      %v3694 = vld [vmem:[%s11 + $0xa] sm:$0x3]
      %v3696 = vperm.slane %v3694, 0
      %v3697 = vperm.slane %v3694, 1
      %v3702 = vunpack.c.l.b16 %v3692
      %v3703 = vunpack.c.h.b16 %v3692
      %v3704 = vunpack.c.l.b16 %v3693
      %v3705 = vunpack.c.h.b16 %v3693
      %v3706 = vpack.c.b16 %v3704, %v3702
      %v3707 = vpack.c.b16 %v3705, %v3703
      %3710 = vmatpush.bf16.msra.mxu0 0
      %3711 = vmatpush.bf16.msra.mxu0 0
      %3712 = vmatpush.bf16.msra.mxu0 0
      %3713 = vmatpush.bf16.msra.mxu0 0
      %3714 = vmatpush.bf16.msra.mxu0 0
      %3715 = vmatpush.bf16.msra.mxu0 0
      %3716 = vmatpush.bf16.msra.mxu0 0
      %3717 = vmatpush.bf16.msra.mxu0 %v3706
      %3718 = vmatmul.bf16.gmra.mxu0 %v2278
      %v3719 = vpop.f32.mrf.mxu0
      %v3720 = vadd.f32 %v3696, %v3719
      %v3721 = vpop.f32.mrf.mxu0
      %v3722 = vadd.f32 %v3696, %v3721
      %3723 = vmatmul.bf16.gmra.mxu0 %v2281
      %v3724 = vpop.f32.mrf.mxu0
      %v3725 = vadd.f32 %v3696, %v3724
      %v3726 = vpop.f32.mrf.mxu0
      %v3727 = vadd.f32 %v3696, %v3726
      %3728 = vmatmul.bf16.gmra.mxu0 %v2284
      %v3729 = vpop.f32.mrf.mxu0
      %v3730 = vadd.f32 %v3696, %v3729
      %v3731 = vpop.f32.mrf.mxu0
      %v3732 = vadd.f32 %v3696, %v3731
      %3733 = vmatmul.bf16.gmra.mxu0 %v2287
      %v3734 = vpop.f32.mrf.mxu0
      %v3735 = vadd.f32 %v3696, %v3734
      %v3736 = vpop.f32.mrf.mxu0
      %3737 = vdwg.mxu0
      %3738 = vmatpush.bf16.msra.mxu0 0
      %3739 = vmatpush.bf16.msra.mxu0 0
      %3740 = vmatpush.bf16.msra.mxu0 0
      %3741 = vmatpush.bf16.msra.mxu0 0
      %3742 = vmatpush.bf16.msra.mxu0 0
      %3743 = vmatpush.bf16.msra.mxu0 0
      %3744 = vmatpush.bf16.msra.mxu0 0
      %3745 = vmatpush.bf16.msra.mxu0 %v3707
      %3746 = vmatmul.bf16.gmra.mxu0 %v2278
      %v3747 = vpop.f32.mrf.mxu0
      %v3748 = vadd.f32 %v3697, %v3747
      %v3749 = vpop.f32.mrf.mxu0
      %v3750 = vadd.f32 %v3697, %v3749
      %3751 = vmatmul.bf16.gmra.mxu0 %v2281
      %v3752 = vpop.f32.mrf.mxu0
      %v3753 = vadd.f32 %v3697, %v3752
      %v3754 = vpop.f32.mrf.mxu0
      %v3755 = vadd.f32 %v3697, %v3754
      %3756 = vmatmul.bf16.gmra.mxu0 %v2284
      %v3757 = vpop.f32.mrf.mxu0
      %v3758 = vadd.f32 %v3697, %v3757
      %v3759 = vpop.f32.mrf.mxu0
      %v3760 = vadd.f32 %v3697, %v3759
      %3761 = vmatmul.bf16.gmra.mxu0 %v2287
      %v3762 = vpop.f32.mrf.mxu0
      %v3763 = vadd.f32 %v3697, %v3762
      %v3764 = vpop.f32.mrf.mxu0
      %3765 = vdwg.mxu0
      %v3766 = vmax.f32 %v3720, 0.0
      %v3767 = vmax.f32 %v3748, 0.0
      %v3768 = vmax.f32 %v3722, 0.0
      %v3769 = vmax.f32 %v3750, 0.0
      %v3770 = vmax.f32 %v3725, 0.0
      %v3771 = vmax.f32 %v3753, 0.0
      %v3772 = vmax.f32 %v3727, 0.0
      %v3773 = vmax.f32 %v3755, 0.0
      %v3774 = vmax.f32 %v3730, 0.0
      %v3775 = vmax.f32 %v3758, 0.0
      %v3776 = vmax.f32 %v3732, 0.0
      %v3777 = vmax.f32 %v3760, 0.0
      %v3778 = vmax.f32 %v3735, 0.0
      %v3779 = vmax.f32 %v3763, 0.0
      %v3780 = vpack.c.bf16 %v3768, %v3766
      %v3781 = vpack.c.bf16 %v3769, %v3767
      %v3782 = vpack.c.bf16 %v3772, %v3770
      %v3783 = vpack.c.bf16 %v3773, %v3771
      %v3784 = vpack.c.bf16 %v3776, %v3774
      %v3785 = vpack.c.bf16 %v3777, %v3775
      %v3786 = vpack.c.bf16 %v3778, %v3778
      %v3787 = vpack.c.bf16 %v3779, %v3779
      %v3788 = vld [vmem:[%s12 + $0x280] sm:$0xf]
      %v3789 = vld [vmem:[%s12 + $0x284] sm:$0xf]
      %v3790 = vld [vmem:[%s12 + $0x288] sm:$0xf]
      %v3791 = vld [vmem:[%s12 + $0x28c] sm:$0xf]
      %v3792 = vld [vmem:[%s12 + $0x290] sm:$0xf]
      %v3793 = vld [vmem:[%s12 + $0x294] sm:$0xf]
      %v3794 = vld [vmem:[%s12 + $0x298] sm:$0xf]
      %v3795 = vld [vmem:[%s12 + $0x29c] sm:$0xf]
      %v3796 = vld [vmem:[%s12 + $0x2a0] sm:$0xf]
      %v3797 = vld [vmem:[%s12 + $0x2a4] sm:$0xf]
      %v3798 = vld [vmem:[%s12 + $0x2a8] sm:$0xf]
      %v3799 = vld [vmem:[%s12 + $0x2ac] sm:$0xf]
      %v3800 = vld [vmem:[%s12 + $0x2b0] sm:$0xf]
      %v3801 = vld [vmem:[%s12 + $0x2b4] sm:$0xf]
      %v3802 = vld [vmem:[%s12 + $0x2b8] sm:$0xf]
      %v3803 = vld [vmem:[%s12 + $0x2bc] sm:$0xf]
      %v3804 = vld [vmem:[%s12 + $0x2c0] sm:$0xf]
      %v3805 = vld [vmem:[%s12 + $0x2c4] sm:$0xf]
      %v3806 = vld [vmem:[%s12 + $0x2c8] sm:$0xf]
      %v3807 = vld [vmem:[%s12 + $0x2cc] sm:$0xf]
      %v3808 = vld [vmem:[%s12 + $0x2d0] sm:$0xf]
      %v3809 = vld [vmem:[%s12 + $0x2d4] sm:$0xf]
      %v3810 = vld [vmem:[%s12 + $0x2d8] sm:$0xf]
      %v3811 = vld [vmem:[%s12 + $0x2dc] sm:$0xf]
      %v3812 = vld [vmem:[%s12 + $0x2e0] sm:$0xf]
      %v3813 = vld [vmem:[%s12 + $0x2e4] sm:$0xf]
      %v3814 = vld [vmem:[%s12 + $0x2e8] sm:$0xf]
      %v3815 = vld [vmem:[%s12 + $0x2ec] sm:$0xf]
      %v3816 = vld [vmem:[%s12 + $0x2f0] sm:$0xf]
      %v3817 = vld [vmem:[%s12 + $0x2f4] sm:$0xf]
      %v3818 = vld [vmem:[%s12 + $0x2f8] sm:$0xf]
      %v3819 = vld [vmem:[%s12 + $0x2fc] sm:$0xf]
      %v3852 = vunpack.c.l.b16 %v3788
      %v3853 = vunpack.c.l.b16 %v3789
      %v3854 = vunpack.c.l.b16 %v3790
      %v3855 = vunpack.c.l.b16 %v3791
      %v3856 = vunpack.c.l.b16 %v3792
      %v3857 = vunpack.c.l.b16 %v3793
      %v3858 = vunpack.c.l.b16 %v3794
      %v3859 = vunpack.c.l.b16 %v3795
      %v3860 = vunpack.c.l.b16 %v3796
      %v3861 = vunpack.c.l.b16 %v3797
      %v3862 = vunpack.c.l.b16 %v3798
      %v3863 = vunpack.c.l.b16 %v3799
      %v3864 = vunpack.c.l.b16 %v3800
      %v3865 = vunpack.c.l.b16 %v3801
      %v3866 = vunpack.c.l.b16 %v3802
      %v3867 = vunpack.c.l.b16 %v3803
      %v3868 = vunpack.c.l.b16 %v3804
      %v3869 = vunpack.c.l.b16 %v3805
      %v3870 = vunpack.c.l.b16 %v3806
      %v3871 = vunpack.c.l.b16 %v3807
      %v3872 = vunpack.c.l.b16 %v3808
      %v3873 = vunpack.c.l.b16 %v3809
      %v3874 = vunpack.c.l.b16 %v3810
      %v3875 = vunpack.c.l.b16 %v3811
      %v3876 = vunpack.c.l.b16 %v3812
      %v3877 = vunpack.c.l.b16 %v3813
      %v3878 = vunpack.c.l.b16 %v3814
      %v3879 = vunpack.c.l.b16 %v3815
      %v3880 = vunpack.c.l.b16 %v3816
      %v3881 = vunpack.c.l.b16 %v3817
      %v3882 = vunpack.c.l.b16 %v3818
      %v3883 = vunpack.c.l.b16 %v3819
      %v3884 = vpack.c.b16 %v3853, %v3852
      %v3885 = vpack.c.b16 %v3855, %v3854
      %v3886 = vpack.c.b16 %v3857, %v3856
      %v3887 = vpack.c.b16 %v3859, %v3858
      %v3888 = vpack.c.b16 %v3861, %v3860
      %v3889 = vpack.c.b16 %v3863, %v3862
      %v3890 = vpack.c.b16 %v3865, %v3864
      %v3891 = vpack.c.b16 %v3867, %v3866
      %v3892 = vpack.c.b16 %v3869, %v3868
      %v3893 = vpack.c.b16 %v3871, %v3870
      %v3894 = vpack.c.b16 %v3873, %v3872
      %v3895 = vpack.c.b16 %v3875, %v3874
      %v3896 = vpack.c.b16 %v3877, %v3876
      %v3897 = vpack.c.b16 %v3879, %v3878
      %v3898 = vpack.c.b16 %v3881, %v3880
      %v3899 = vpack.c.b16 %v3883, %v3882
      %3916 = vmatpush.bf16.msra.mxu0 %v3891
      %3917 = vmatpush.bf16.msra.mxu0 %v3890
      %3918 = vmatpush.bf16.msra.mxu0 %v3889
      %3919 = vmatpush.bf16.msra.mxu0 %v3888
      %3920 = vmatpush.bf16.msra.mxu0 %v3887
      %3921 = vmatpush.bf16.msra.mxu0 %v3886
      %3922 = vmatpush.bf16.msra.mxu0 %v3885
      %3923 = vmatpush.bf16.msra.mxu0 %v3884
      %3924 = vmatmul.bf16.gmra.mxu0 %v3780
      %v3925 = vpop.f32.mrf.mxu0
      %v3926 = vadd.f32 0.0, %v3925
      %v3927 = vpop.f32.mrf.mxu0
      %v3928 = vadd.f32 0.0, %v3927
      %3929 = vmatmul.bf16.gmra.mxu0 %v3782
      %v3930 = vpop.f32.mrf.mxu0
      %v3931 = vadd.f32 0.0, %v3930
      %v3932 = vpop.f32.mrf.mxu0
      %v3933 = vadd.f32 0.0, %v3932
      %3934 = vmatmul.bf16.gmra.mxu0 %v3784
      %v3935 = vpop.f32.mrf.mxu0
      %v3936 = vadd.f32 0.0, %v3935
      %v3937 = vpop.f32.mrf.mxu0
      %v3938 = vadd.f32 0.0, %v3937
      %3939 = vmatmul.bf16.gmra.mxu0 %v3786
      %v3940 = vpop.f32.mrf.mxu0
      %v3941 = vadd.f32 0.0, %v3940
      %v3942 = vpop.f32.mrf.mxu0
      %3943 = vdwg.mxu0
      %3944 = vmatpush.bf16.msra.mxu0 %v3899
      %3945 = vmatpush.bf16.msra.mxu0 %v3898
      %3946 = vmatpush.bf16.msra.mxu0 %v3897
      %3947 = vmatpush.bf16.msra.mxu0 %v3896
      %3948 = vmatpush.bf16.msra.mxu0 %v3895
      %3949 = vmatpush.bf16.msra.mxu0 %v3894
      %3950 = vmatpush.bf16.msra.mxu0 %v3893
      %3951 = vmatpush.bf16.msra.mxu0 %v3892
      %3952 = vmatmul.bf16.gmra.mxu0 %v3781
      %v3953 = vpop.f32.mrf.mxu0
      %v3954 = vadd.f32 %v3926, %v3953
      %v3955 = vpop.f32.mrf.mxu0
      %v3956 = vadd.f32 %v3928, %v3955
      %3957 = vmatmul.bf16.gmra.mxu0 %v3783
      %v3958 = vpop.f32.mrf.mxu0
      %v3959 = vadd.f32 %v3931, %v3958
      %v3960 = vpop.f32.mrf.mxu0
      %v3961 = vadd.f32 %v3933, %v3960
      %3962 = vmatmul.bf16.gmra.mxu0 %v3785
      %v3963 = vpop.f32.mrf.mxu0
      %v3964 = vadd.f32 %v3936, %v3963
      %v3965 = vpop.f32.mrf.mxu0
      %v3966 = vadd.f32 %v3938, %v3965
      %3967 = vmatmul.bf16.gmra.mxu0 %v3787
      %v3968 = vpop.f32.mrf.mxu0
      %v3969 = vadd.f32 %v3941, %v3968
      %v3970 = vpop.f32.mrf.mxu0
      %3971 = vdwg.mxu0
      %v3972 = vadd.f32 %v3685, %v3954
      %v3973 = vadd.f32 %v3686, %v3956
      %v3974 = vadd.f32 %v3687, %v3959
      %v3975 = vadd.f32 %v3688, %v3961
      %v3976 = vadd.f32 %v3689, %v3964
      %v3977 = vadd.f32 %v3690, %v3966
      %v3978 = vadd.f32 %v3691, %v3969
      %v3979 = vld [vmem:[%s10 + $0x30] sm:$0xff]
      %v3980 = vld [vmem:[%s10 + $0x70] sm:$0xff]
      %v3981 = vld [vmem:[%s11 + $0xc] sm:$0x3]
      %v3983 = vperm.slane %v3981, 0
      %v3984 = vperm.slane %v3981, 1
      %v3989 = vunpack.c.l.b16 %v3979
      %v3990 = vunpack.c.h.b16 %v3979
      %v3991 = vunpack.c.l.b16 %v3980
      %v3992 = vunpack.c.h.b16 %v3980
      %v3993 = vpack.c.b16 %v3991, %v3989
      %v3994 = vpack.c.b16 %v3992, %v3990
      %3997 = vmatpush.bf16.msra.mxu0 0
      %3998 = vmatpush.bf16.msra.mxu0 0
      %3999 = vmatpush.bf16.msra.mxu0 0
      %4000 = vmatpush.bf16.msra.mxu0 0
      %4001 = vmatpush.bf16.msra.mxu0 0
      %4002 = vmatpush.bf16.msra.mxu0 0
      %4003 = vmatpush.bf16.msra.mxu0 0
      %4004 = vmatpush.bf16.msra.mxu0 %v3993
      %4005 = vmatmul.bf16.gmra.mxu0 %v2278
      %v4006 = vpop.f32.mrf.mxu0
      %v4007 = vadd.f32 %v3983, %v4006
      %v4008 = vpop.f32.mrf.mxu0
      %v4009 = vadd.f32 %v3983, %v4008
      %4010 = vmatmul.bf16.gmra.mxu0 %v2281
      %v4011 = vpop.f32.mrf.mxu0
      %v4012 = vadd.f32 %v3983, %v4011
      %v4013 = vpop.f32.mrf.mxu0
      %v4014 = vadd.f32 %v3983, %v4013
      %4015 = vmatmul.bf16.gmra.mxu0 %v2284
      %v4016 = vpop.f32.mrf.mxu0
      %v4017 = vadd.f32 %v3983, %v4016
      %v4018 = vpop.f32.mrf.mxu0
      %v4019 = vadd.f32 %v3983, %v4018
      %4020 = vmatmul.bf16.gmra.mxu0 %v2287
      %v4021 = vpop.f32.mrf.mxu0
      %v4022 = vadd.f32 %v3983, %v4021
      %v4023 = vpop.f32.mrf.mxu0
      %4024 = vdwg.mxu0
      %4025 = vmatpush.bf16.msra.mxu0 0
      %4026 = vmatpush.bf16.msra.mxu0 0
      %4027 = vmatpush.bf16.msra.mxu0 0
      %4028 = vmatpush.bf16.msra.mxu0 0
      %4029 = vmatpush.bf16.msra.mxu0 0
      %4030 = vmatpush.bf16.msra.mxu0 0
      %4031 = vmatpush.bf16.msra.mxu0 0
      %4032 = vmatpush.bf16.msra.mxu0 %v3994
      %4033 = vmatmul.bf16.gmra.mxu0 %v2278
      %v4034 = vpop.f32.mrf.mxu0
      %v4035 = vadd.f32 %v3984, %v4034
      %v4036 = vpop.f32.mrf.mxu0
      %v4037 = vadd.f32 %v3984, %v4036
      %4038 = vmatmul.bf16.gmra.mxu0 %v2281
      %v4039 = vpop.f32.mrf.mxu0
      %v4040 = vadd.f32 %v3984, %v4039
      %v4041 = vpop.f32.mrf.mxu0
      %v4042 = vadd.f32 %v3984, %v4041
      %4043 = vmatmul.bf16.gmra.mxu0 %v2284
      %v4044 = vpop.f32.mrf.mxu0
      %v4045 = vadd.f32 %v3984, %v4044
      %v4046 = vpop.f32.mrf.mxu0
      %v4047 = vadd.f32 %v3984, %v4046
      %4048 = vmatmul.bf16.gmra.mxu0 %v2287
      %v4049 = vpop.f32.mrf.mxu0
      %v4050 = vadd.f32 %v3984, %v4049
      %v4051 = vpop.f32.mrf.mxu0
      %4052 = vdwg.mxu0
      %v4053 = vmax.f32 %v4007, 0.0
      %v4054 = vmax.f32 %v4035, 0.0
      %v4055 = vmax.f32 %v4009, 0.0
      %v4056 = vmax.f32 %v4037, 0.0
      %v4057 = vmax.f32 %v4012, 0.0
      %v4058 = vmax.f32 %v4040, 0.0
      %v4059 = vmax.f32 %v4014, 0.0
      %v4060 = vmax.f32 %v4042, 0.0
      %v4061 = vmax.f32 %v4017, 0.0
      %v4062 = vmax.f32 %v4045, 0.0
      %v4063 = vmax.f32 %v4019, 0.0
      %v4064 = vmax.f32 %v4047, 0.0
      %v4065 = vmax.f32 %v4022, 0.0
      %v4066 = vmax.f32 %v4050, 0.0
      %v4067 = vpack.c.bf16 %v4055, %v4053
      %v4068 = vpack.c.bf16 %v4056, %v4054
      %v4069 = vpack.c.bf16 %v4059, %v4057
      %v4070 = vpack.c.bf16 %v4060, %v4058
      %v4071 = vpack.c.bf16 %v4063, %v4061
      %v4072 = vpack.c.bf16 %v4064, %v4062
      %v4073 = vpack.c.bf16 %v4065, %v4065
      %v4074 = vpack.c.bf16 %v4066, %v4066
      %v4075 = vld [vmem:[%s12 + $0x300] sm:$0xf]
      %v4076 = vld [vmem:[%s12 + $0x304] sm:$0xf]
      %v4077 = vld [vmem:[%s12 + $0x308] sm:$0xf]
      %v4078 = vld [vmem:[%s12 + $0x30c] sm:$0xf]
      %v4079 = vld [vmem:[%s12 + $0x310] sm:$0xf]
      %v4080 = vld [vmem:[%s12 + $0x314] sm:$0xf]
      %v4081 = vld [vmem:[%s12 + $0x318] sm:$0xf]
      %v4082 = vld [vmem:[%s12 + $0x31c] sm:$0xf]
      %v4083 = vld [vmem:[%s12 + $0x320] sm:$0xf]
      %v4084 = vld [vmem:[%s12 + $0x324] sm:$0xf]
      %v4085 = vld [vmem:[%s12 + $0x328] sm:$0xf]
      %v4086 = vld [vmem:[%s12 + $0x32c] sm:$0xf]
      %v4087 = vld [vmem:[%s12 + $0x330] sm:$0xf]
      %v4088 = vld [vmem:[%s12 + $0x334] sm:$0xf]
      %v4089 = vld [vmem:[%s12 + $0x338] sm:$0xf]
      %v4090 = vld [vmem:[%s12 + $0x33c] sm:$0xf]
      %v4091 = vld [vmem:[%s12 + $0x340] sm:$0xf]
      %v4092 = vld [vmem:[%s12 + $0x344] sm:$0xf]
      %v4093 = vld [vmem:[%s12 + $0x348] sm:$0xf]
      %v4094 = vld [vmem:[%s12 + $0x34c] sm:$0xf]
      %v4095 = vld [vmem:[%s12 + $0x350] sm:$0xf]
      %v4096 = vld [vmem:[%s12 + $0x354] sm:$0xf]
      %v4097 = vld [vmem:[%s12 + $0x358] sm:$0xf]
      %v4098 = vld [vmem:[%s12 + $0x35c] sm:$0xf]
      %v4099 = vld [vmem:[%s12 + $0x360] sm:$0xf]
      %v4100 = vld [vmem:[%s12 + $0x364] sm:$0xf]
      %v4101 = vld [vmem:[%s12 + $0x368] sm:$0xf]
      %v4102 = vld [vmem:[%s12 + $0x36c] sm:$0xf]
      %v4103 = vld [vmem:[%s12 + $0x370] sm:$0xf]
      %v4104 = vld [vmem:[%s12 + $0x374] sm:$0xf]
      %v4105 = vld [vmem:[%s12 + $0x378] sm:$0xf]
      %v4106 = vld [vmem:[%s12 + $0x37c] sm:$0xf]
      %v4139 = vunpack.c.l.b16 %v4075
      %v4140 = vunpack.c.l.b16 %v4076
      %v4141 = vunpack.c.l.b16 %v4077
      %v4142 = vunpack.c.l.b16 %v4078
      %v4143 = vunpack.c.l.b16 %v4079
      %v4144 = vunpack.c.l.b16 %v4080
      %v4145 = vunpack.c.l.b16 %v4081
      %v4146 = vunpack.c.l.b16 %v4082
      %v4147 = vunpack.c.l.b16 %v4083
      %v4148 = vunpack.c.l.b16 %v4084
      %v4149 = vunpack.c.l.b16 %v4085
      %v4150 = vunpack.c.l.b16 %v4086
      %v4151 = vunpack.c.l.b16 %v4087
      %v4152 = vunpack.c.l.b16 %v4088
      %v4153 = vunpack.c.l.b16 %v4089
      %v4154 = vunpack.c.l.b16 %v4090
      %v4155 = vunpack.c.l.b16 %v4091
      %v4156 = vunpack.c.l.b16 %v4092
      %v4157 = vunpack.c.l.b16 %v4093
      %v4158 = vunpack.c.l.b16 %v4094
      %v4159 = vunpack.c.l.b16 %v4095
      %v4160 = vunpack.c.l.b16 %v4096
      %v4161 = vunpack.c.l.b16 %v4097
      %v4162 = vunpack.c.l.b16 %v4098
      %v4163 = vunpack.c.l.b16 %v4099
      %v4164 = vunpack.c.l.b16 %v4100
      %v4165 = vunpack.c.l.b16 %v4101
      %v4166 = vunpack.c.l.b16 %v4102
      %v4167 = vunpack.c.l.b16 %v4103
      %v4168 = vunpack.c.l.b16 %v4104
      %v4169 = vunpack.c.l.b16 %v4105
      %v4170 = vunpack.c.l.b16 %v4106
      %v4171 = vpack.c.b16 %v4140, %v4139
      %v4172 = vpack.c.b16 %v4142, %v4141
      %v4173 = vpack.c.b16 %v4144, %v4143
      %v4174 = vpack.c.b16 %v4146, %v4145
      %v4175 = vpack.c.b16 %v4148, %v4147
      %v4176 = vpack.c.b16 %v4150, %v4149
      %v4177 = vpack.c.b16 %v4152, %v4151
      %v4178 = vpack.c.b16 %v4154, %v4153
      %v4179 = vpack.c.b16 %v4156, %v4155
      %v4180 = vpack.c.b16 %v4158, %v4157
      %v4181 = vpack.c.b16 %v4160, %v4159
      %v4182 = vpack.c.b16 %v4162, %v4161
      %v4183 = vpack.c.b16 %v4164, %v4163
      %v4184 = vpack.c.b16 %v4166, %v4165
      %v4185 = vpack.c.b16 %v4168, %v4167
      %v4186 = vpack.c.b16 %v4170, %v4169
      %4203 = vmatpush.bf16.msra.mxu0 %v4178
      %4204 = vmatpush.bf16.msra.mxu0 %v4177
      %4205 = vmatpush.bf16.msra.mxu0 %v4176
      %4206 = vmatpush.bf16.msra.mxu0 %v4175
      %4207 = vmatpush.bf16.msra.mxu0 %v4174
      %4208 = vmatpush.bf16.msra.mxu0 %v4173
      %4209 = vmatpush.bf16.msra.mxu0 %v4172
      %4210 = vmatpush.bf16.msra.mxu0 %v4171
      %4211 = vmatmul.bf16.gmra.mxu0 %v4067
      %v4212 = vpop.f32.mrf.mxu0
      %v4213 = vadd.f32 0.0, %v4212
      %v4214 = vpop.f32.mrf.mxu0
      %v4215 = vadd.f32 0.0, %v4214
      %4216 = vmatmul.bf16.gmra.mxu0 %v4069
      %v4217 = vpop.f32.mrf.mxu0
      %v4218 = vadd.f32 0.0, %v4217
      %v4219 = vpop.f32.mrf.mxu0
      %v4220 = vadd.f32 0.0, %v4219
      %4221 = vmatmul.bf16.gmra.mxu0 %v4071
      %v4222 = vpop.f32.mrf.mxu0
      %v4223 = vadd.f32 0.0, %v4222
      %v4224 = vpop.f32.mrf.mxu0
      %v4225 = vadd.f32 0.0, %v4224
      %4226 = vmatmul.bf16.gmra.mxu0 %v4073
      %v4227 = vpop.f32.mrf.mxu0
      %v4228 = vadd.f32 0.0, %v4227
      %v4229 = vpop.f32.mrf.mxu0
      %4230 = vdwg.mxu0
      %4231 = vmatpush.bf16.msra.mxu0 %v4186
      %4232 = vmatpush.bf16.msra.mxu0 %v4185
      %4233 = vmatpush.bf16.msra.mxu0 %v4184
      %4234 = vmatpush.bf16.msra.mxu0 %v4183
      %4235 = vmatpush.bf16.msra.mxu0 %v4182
      %4236 = vmatpush.bf16.msra.mxu0 %v4181
      %4237 = vmatpush.bf16.msra.mxu0 %v4180
      %4238 = vmatpush.bf16.msra.mxu0 %v4179
      %4239 = vmatmul.bf16.gmra.mxu0 %v4068
      %v4240 = vpop.f32.mrf.mxu0
      %v4241 = vadd.f32 %v4213, %v4240
      %v4242 = vpop.f32.mrf.mxu0
      %v4243 = vadd.f32 %v4215, %v4242
      %4244 = vmatmul.bf16.gmra.mxu0 %v4070
      %v4245 = vpop.f32.mrf.mxu0
      %v4246 = vadd.f32 %v4218, %v4245
      %v4247 = vpop.f32.mrf.mxu0
      %v4248 = vadd.f32 %v4220, %v4247
      %4249 = vmatmul.bf16.gmra.mxu0 %v4072
      %v4250 = vpop.f32.mrf.mxu0
      %v4251 = vadd.f32 %v4223, %v4250
      %v4252 = vpop.f32.mrf.mxu0
      %v4253 = vadd.f32 %v4225, %v4252
      %4254 = vmatmul.bf16.gmra.mxu0 %v4074
      %v4255 = vpop.f32.mrf.mxu0
      %v4256 = vadd.f32 %v4228, %v4255
      %v4257 = vpop.f32.mrf.mxu0
      %4258 = vdwg.mxu0
      %v4259 = vadd.f32 %v3972, %v4241
      %v4260 = vadd.f32 %v3973, %v4243
      %v4261 = vadd.f32 %v3974, %v4246
      %v4262 = vadd.f32 %v3975, %v4248
      %v4263 = vadd.f32 %v3976, %v4251
      %v4264 = vadd.f32 %v3977, %v4253
      %v4265 = vadd.f32 %v3978, %v4256
      %v4266 = vld [vmem:[%s10 + $0x38] sm:$0xff]
      %v4267 = vld [vmem:[%s10 + $0x78] sm:$0xff]
      %v4268 = vld [vmem:[%s11 + $0xe] sm:$0x3]
      %v4270 = vperm.slane %v4268, 0
      %v4271 = vperm.slane %v4268, 1
      %v4276 = vunpack.c.l.b16 %v4266
      %v4277 = vunpack.c.h.b16 %v4266
      %v4278 = vunpack.c.l.b16 %v4267
      %v4279 = vunpack.c.h.b16 %v4267
      %v4280 = vpack.c.b16 %v4278, %v4276
      %v4281 = vpack.c.b16 %v4279, %v4277
      %4284 = vmatpush.bf16.msra.mxu0 0
      %4285 = vmatpush.bf16.msra.mxu0 0
      %4286 = vmatpush.bf16.msra.mxu0 0
      %4287 = vmatpush.bf16.msra.mxu0 0
      %4288 = vmatpush.bf16.msra.mxu0 0
      %4289 = vmatpush.bf16.msra.mxu0 0
      %4290 = vmatpush.bf16.msra.mxu0 0
      %4291 = vmatpush.bf16.msra.mxu0 %v4280
      %4292 = vmatmul.bf16.gmra.mxu0 %v2278
      %v4293 = vpop.f32.mrf.mxu0
      %v4294 = vadd.f32 %v4270, %v4293
      %v4295 = vpop.f32.mrf.mxu0
      %v4296 = vadd.f32 %v4270, %v4295
      %4297 = vmatmul.bf16.gmra.mxu0 %v2281
      %v4298 = vpop.f32.mrf.mxu0
      %v4299 = vadd.f32 %v4270, %v4298
      %v4300 = vpop.f32.mrf.mxu0
      %v4301 = vadd.f32 %v4270, %v4300
      %4302 = vmatmul.bf16.gmra.mxu0 %v2284
      %v4303 = vpop.f32.mrf.mxu0
      %v4304 = vadd.f32 %v4270, %v4303
      %v4305 = vpop.f32.mrf.mxu0
      %v4306 = vadd.f32 %v4270, %v4305
      %4307 = vmatmul.bf16.gmra.mxu0 %v2287
      %v4308 = vpop.f32.mrf.mxu0
      %v4309 = vadd.f32 %v4270, %v4308
      %v4310 = vpop.f32.mrf.mxu0
      %4311 = vdwg.mxu0
      %4312 = vmatpush.bf16.msra.mxu0 0
      %4313 = vmatpush.bf16.msra.mxu0 0
      %4314 = vmatpush.bf16.msra.mxu0 0
      %4315 = vmatpush.bf16.msra.mxu0 0
      %4316 = vmatpush.bf16.msra.mxu0 0
      %4317 = vmatpush.bf16.msra.mxu0 0
      %4318 = vmatpush.bf16.msra.mxu0 0
      %4319 = vmatpush.bf16.msra.mxu0 %v4281
      %4320 = vmatmul.bf16.gmra.mxu0 %v2278
      %v4321 = vpop.f32.mrf.mxu0
      %v4322 = vadd.f32 %v4271, %v4321
      %v4323 = vpop.f32.mrf.mxu0
      %v4324 = vadd.f32 %v4271, %v4323
      %4325 = vmatmul.bf16.gmra.mxu0 %v2281
      %v4326 = vpop.f32.mrf.mxu0
      %v4327 = vadd.f32 %v4271, %v4326
      %v4328 = vpop.f32.mrf.mxu0
      %v4329 = vadd.f32 %v4271, %v4328
      %4330 = vmatmul.bf16.gmra.mxu0 %v2284
      %v4331 = vpop.f32.mrf.mxu0
      %v4332 = vadd.f32 %v4271, %v4331
      %v4333 = vpop.f32.mrf.mxu0
      %v4334 = vadd.f32 %v4271, %v4333
      %4335 = vmatmul.bf16.gmra.mxu0 %v2287
      %v4336 = vpop.f32.mrf.mxu0
      %v4337 = vadd.f32 %v4271, %v4336
      %v4338 = vpop.f32.mrf.mxu0
      %4339 = vdwg.mxu0
      %v4340 = vmax.f32 %v4294, 0.0
      %v4341 = vmax.f32 %v4322, 0.0
      %v4342 = vmax.f32 %v4296, 0.0
      %v4343 = vmax.f32 %v4324, 0.0
      %v4344 = vmax.f32 %v4299, 0.0
      %v4345 = vmax.f32 %v4327, 0.0
      %v4346 = vmax.f32 %v4301, 0.0
      %v4347 = vmax.f32 %v4329, 0.0
      %v4348 = vmax.f32 %v4304, 0.0
      %v4349 = vmax.f32 %v4332, 0.0
      %v4350 = vmax.f32 %v4306, 0.0
      %v4351 = vmax.f32 %v4334, 0.0
      %v4352 = vmax.f32 %v4309, 0.0
      %v4353 = vmax.f32 %v4337, 0.0
      %v4354 = vpack.c.bf16 %v4342, %v4340
      %v4355 = vpack.c.bf16 %v4343, %v4341
      %v4356 = vpack.c.bf16 %v4346, %v4344
      %v4357 = vpack.c.bf16 %v4347, %v4345
      %v4358 = vpack.c.bf16 %v4350, %v4348
      %v4359 = vpack.c.bf16 %v4351, %v4349
      %v4360 = vpack.c.bf16 %v4352, %v4352
      %v4361 = vpack.c.bf16 %v4353, %v4353
      %v4362 = vld [vmem:[%s12 + $0x380] sm:$0xf]
      %v4363 = vld [vmem:[%s12 + $0x384] sm:$0xf]
      %v4364 = vld [vmem:[%s12 + $0x388] sm:$0xf]
      %v4365 = vld [vmem:[%s12 + $0x38c] sm:$0xf]
      %v4366 = vld [vmem:[%s12 + $0x390] sm:$0xf]
      %v4367 = vld [vmem:[%s12 + $0x394] sm:$0xf]
      %v4368 = vld [vmem:[%s12 + $0x398] sm:$0xf]
      %v4369 = vld [vmem:[%s12 + $0x39c] sm:$0xf]
      %v4370 = vld [vmem:[%s12 + $0x3a0] sm:$0xf]
      %v4371 = vld [vmem:[%s12 + $0x3a4] sm:$0xf]
      %v4372 = vld [vmem:[%s12 + $0x3a8] sm:$0xf]
      %v4373 = vld [vmem:[%s12 + $0x3ac] sm:$0xf]
      %v4374 = vld [vmem:[%s12 + $0x3b0] sm:$0xf]
      %v4375 = vld [vmem:[%s12 + $0x3b4] sm:$0xf]
      %v4376 = vld [vmem:[%s12 + $0x3b8] sm:$0xf]
      %v4377 = vld [vmem:[%s12 + $0x3bc] sm:$0xf]
      %v4378 = vld [vmem:[%s12 + $0x3c0] sm:$0xf]
      %v4379 = vld [vmem:[%s12 + $0x3c4] sm:$0xf]
      %v4380 = vld [vmem:[%s12 + $0x3c8] sm:$0xf]
      %v4381 = vld [vmem:[%s12 + $0x3cc] sm:$0xf]
      %v4382 = vld [vmem:[%s12 + $0x3d0] sm:$0xf]
      %v4383 = vld [vmem:[%s12 + $0x3d4] sm:$0xf]
      %v4384 = vld [vmem:[%s12 + $0x3d8] sm:$0xf]
      %v4385 = vld [vmem:[%s12 + $0x3dc] sm:$0xf]
      %v4386 = vld [vmem:[%s12 + $0x3e0] sm:$0xf]
      %v4387 = vld [vmem:[%s12 + $0x3e4] sm:$0xf]
      %v4388 = vld [vmem:[%s12 + $0x3e8] sm:$0xf]
      %v4389 = vld [vmem:[%s12 + $0x3ec] sm:$0xf]
      %v4390 = vld [vmem:[%s12 + $0x3f0] sm:$0xf]
      %v4391 = vld [vmem:[%s12 + $0x3f4] sm:$0xf]
      %v4392 = vld [vmem:[%s12 + $0x3f8] sm:$0xf]
      %v4393 = vld [vmem:[%s12 + $0x3fc] sm:$0xf]
      %v4426 = vunpack.c.l.b16 %v4362
      %v4427 = vunpack.c.l.b16 %v4363
      %v4428 = vunpack.c.l.b16 %v4364
      %v4429 = vunpack.c.l.b16 %v4365
      %v4430 = vunpack.c.l.b16 %v4366
      %v4431 = vunpack.c.l.b16 %v4367
      %v4432 = vunpack.c.l.b16 %v4368
      %v4433 = vunpack.c.l.b16 %v4369
      %v4434 = vunpack.c.l.b16 %v4370
      %v4435 = vunpack.c.l.b16 %v4371
      %v4436 = vunpack.c.l.b16 %v4372
      %v4437 = vunpack.c.l.b16 %v4373
      %v4438 = vunpack.c.l.b16 %v4374
      %v4439 = vunpack.c.l.b16 %v4375
      %v4440 = vunpack.c.l.b16 %v4376
      %v4441 = vunpack.c.l.b16 %v4377
      %v4442 = vunpack.c.l.b16 %v4378
      %v4443 = vunpack.c.l.b16 %v4379
      %v4444 = vunpack.c.l.b16 %v4380
      %v4445 = vunpack.c.l.b16 %v4381
      %v4446 = vunpack.c.l.b16 %v4382
      %v4447 = vunpack.c.l.b16 %v4383
      %v4448 = vunpack.c.l.b16 %v4384
      %v4449 = vunpack.c.l.b16 %v4385
      %v4450 = vunpack.c.l.b16 %v4386
      %v4451 = vunpack.c.l.b16 %v4387
      %v4452 = vunpack.c.l.b16 %v4388
      %v4453 = vunpack.c.l.b16 %v4389
      %v4454 = vunpack.c.l.b16 %v4390
      %v4455 = vunpack.c.l.b16 %v4391
      %v4456 = vunpack.c.l.b16 %v4392
      %v4457 = vunpack.c.l.b16 %v4393
      %v4458 = vpack.c.b16 %v4427, %v4426
      %v4459 = vpack.c.b16 %v4429, %v4428
      %v4460 = vpack.c.b16 %v4431, %v4430
      %v4461 = vpack.c.b16 %v4433, %v4432
      %v4462 = vpack.c.b16 %v4435, %v4434
      %v4463 = vpack.c.b16 %v4437, %v4436
      %v4464 = vpack.c.b16 %v4439, %v4438
      %v4465 = vpack.c.b16 %v4441, %v4440
      %v4466 = vpack.c.b16 %v4443, %v4442
      %v4467 = vpack.c.b16 %v4445, %v4444
      %v4468 = vpack.c.b16 %v4447, %v4446
      %v4469 = vpack.c.b16 %v4449, %v4448
      %v4470 = vpack.c.b16 %v4451, %v4450
      %v4471 = vpack.c.b16 %v4453, %v4452
      %v4472 = vpack.c.b16 %v4455, %v4454
      %v4473 = vpack.c.b16 %v4457, %v4456
      %4490 = vmatpush.bf16.msra.mxu0 %v4465
      %4491 = vmatpush.bf16.msra.mxu0 %v4464
      %4492 = vmatpush.bf16.msra.mxu0 %v4463
      %4493 = vmatpush.bf16.msra.mxu0 %v4462
      %4494 = vmatpush.bf16.msra.mxu0 %v4461
      %4495 = vmatpush.bf16.msra.mxu0 %v4460
      %4496 = vmatpush.bf16.msra.mxu0 %v4459
      %4497 = vmatpush.bf16.msra.mxu0 %v4458
      %4498 = vmatmul.bf16.gmra.mxu0 %v4354
      %v4499 = vpop.f32.mrf.mxu0
      %v4500 = vadd.f32 0.0, %v4499
      %v4501 = vpop.f32.mrf.mxu0
      %v4502 = vadd.f32 0.0, %v4501
      %4503 = vmatmul.bf16.gmra.mxu0 %v4356
      %v4504 = vpop.f32.mrf.mxu0
      %v4505 = vadd.f32 0.0, %v4504
      %v4506 = vpop.f32.mrf.mxu0
      %v4507 = vadd.f32 0.0, %v4506
      %4508 = vmatmul.bf16.gmra.mxu0 %v4358
      %v4509 = vpop.f32.mrf.mxu0
      %v4510 = vadd.f32 0.0, %v4509
      %v4511 = vpop.f32.mrf.mxu0
      %v4512 = vadd.f32 0.0, %v4511
      %4513 = vmatmul.bf16.gmra.mxu0 %v4360
      %v4514 = vpop.f32.mrf.mxu0
      %v4515 = vadd.f32 0.0, %v4514
      %v4516 = vpop.f32.mrf.mxu0
      %4517 = vdwg.mxu0
      %4518 = vmatpush.bf16.msra.mxu0 %v4473
      %4519 = vmatpush.bf16.msra.mxu0 %v4472
      %4520 = vmatpush.bf16.msra.mxu0 %v4471
      %4521 = vmatpush.bf16.msra.mxu0 %v4470
      %4522 = vmatpush.bf16.msra.mxu0 %v4469
      %4523 = vmatpush.bf16.msra.mxu0 %v4468
      %4524 = vmatpush.bf16.msra.mxu0 %v4467
      %4525 = vmatpush.bf16.msra.mxu0 %v4466
      %4526 = vmatmul.bf16.gmra.mxu0 %v4355
      %v4527 = vpop.f32.mrf.mxu0
      %v4528 = vadd.f32 %v4500, %v4527
      %v4529 = vpop.f32.mrf.mxu0
      %v4530 = vadd.f32 %v4502, %v4529
      %4531 = vmatmul.bf16.gmra.mxu0 %v4357
      %v4532 = vpop.f32.mrf.mxu0
      %v4533 = vadd.f32 %v4505, %v4532
      %v4534 = vpop.f32.mrf.mxu0
      %v4535 = vadd.f32 %v4507, %v4534
      %4536 = vmatmul.bf16.gmra.mxu0 %v4359
      %v4537 = vpop.f32.mrf.mxu0
      %v4538 = vadd.f32 %v4510, %v4537
      %v4539 = vpop.f32.mrf.mxu0
      %v4540 = vadd.f32 %v4512, %v4539
      %4541 = vmatmul.bf16.gmra.mxu0 %v4361
      %v4542 = vpop.f32.mrf.mxu0
      %v4543 = vadd.f32 %v4515, %v4542
      %v4544 = vpop.f32.mrf.mxu0
      %4545 = vdwg.mxu0
      %v4546 = vadd.f32 %v4259, %v4528
      %v4547 = vadd.f32 %v4260, %v4530
      %v4548 = vadd.f32 %v4261, %v4533
      %v4549 = vadd.f32 %v4262, %v4535
      %v4550 = vadd.f32 %v4263, %v4538
      %v4551 = vadd.f32 %v4264, %v4540
      %v4552 = vadd.f32 %v4265, %v4543
      %v4553 = vadd.f32 %v2248, %v4546
      %v4554 = vadd.f32 %v2249, %v4547
      %v4555 = vadd.f32 %v2250, %v4548
      %v4556 = vadd.f32 %v2251, %v4549
      %v4557 = vadd.f32 %v2252, %v4550
      %v4558 = vadd.f32 %v2253, %v4551
      %v4559 = vadd.f32 %v2254, %v4552
      %v4560 = vld [vmem:[%s13] sm:$0x1]
      %v4562 = vperm.slane %v4560, 0
      %v4564 = vadd.f32 %v4553, %v4562
      %v4565 = vadd.f32 %v4554, %v4562
      %v4566 = vadd.f32 %v4555, %v4562
      %v4567 = vadd.f32 %v4556, %v4562
      %v4568 = vadd.f32 %v4557, %v4562
      %v4569 = vadd.f32 %v4558, %v4562
      %v4570 = vadd.f32 %v4559, %v4562
      %v4571 = vld [vmem:[%s14] sm:$0x1]
      %v4572 = vld [vmem:[%s15] sm:$0x1]
      %v4573 = vsel %vm866, %v4564, 0.0
      %4574 = vadd.xlane.f32.xlu0 %v4573
      %v4575 = vpop.xlane.xlu0 %4574
      %v4576 = vsel %vm866, %v4565, 0.0
      %4577 = vadd.xlane.f32.xlu0 %v4576
      %v4578 = vpop.xlane.xlu0 %4577
      %v4579 = vsel %vm866, %v4566, 0.0
      %4580 = vadd.xlane.f32.xlu0 %v4579
      %v4581 = vpop.xlane.xlu0 %4580
      %v4582 = vsel %vm866, %v4567, 0.0
      %4583 = vadd.xlane.f32.xlu0 %v4582
      %v4584 = vpop.xlane.xlu0 %4583
      %v4585 = vsel %vm866, %v4568, 0.0
      %4586 = vadd.xlane.f32.xlu0 %v4585
      %v4587 = vpop.xlane.xlu0 %4586
      %v4588 = vsel %vm866, %v4569, 0.0
      %4589 = vadd.xlane.f32.xlu0 %v4588
      %v4590 = vpop.xlane.xlu0 %4589
      %v4591 = vsel %vm2091, %v4570, 0.0
      %4592 = vadd.xlane.f32.xlu0 %v4591
      %v4593 = vpop.xlane.xlu0 %4592
      %v4594 = vmul.f32 %v4575, %v2101
      %v4595 = vmul.f32 %v4578, %v2101
      %v4596 = vmul.f32 %v4581, %v2101
      %v4597 = vmul.f32 %v4584, %v2101
      %v4598 = vmul.f32 %v4587, %v2101
      %v4599 = vmul.f32 %v4590, %v2101
      %v4600 = vmul.f32 %v4593, %v2101
      %v4601 = vsub.f32 %v4564, %v4594
      %v4602 = vsub.f32 %v4565, %v4595
      %v4603 = vsub.f32 %v4566, %v4596
      %v4604 = vsub.f32 %v4567, %v4597
      %v4605 = vsub.f32 %v4568, %v4598
      %v4606 = vsub.f32 %v4569, %v4599
      %v4607 = vsub.f32 %v4570, %v4600
      %v4608 = vmul.f32 %v4601, %v4601
      %v4609 = vmul.f32 %v4602, %v4602
      %v4610 = vmul.f32 %v4603, %v4603
      %v4611 = vmul.f32 %v4604, %v4604
      %v4612 = vmul.f32 %v4605, %v4605
      %v4613 = vmul.f32 %v4606, %v4606
      %v4614 = vmul.f32 %v4607, %v4607
      %v4615 = vsel %vm866, %v4608, 0.0
      %4616 = vadd.xlane.f32.xlu0 %v4615
      %v4617 = vpop.xlane.xlu0 %4616
      %v4618 = vsel %vm866, %v4609, 0.0
      %4619 = vadd.xlane.f32.xlu0 %v4618
      %v4620 = vpop.xlane.xlu0 %4619
      %v4621 = vsel %vm866, %v4610, 0.0
      %4622 = vadd.xlane.f32.xlu0 %v4621
      %v4623 = vpop.xlane.xlu0 %4622
      %v4624 = vsel %vm866, %v4611, 0.0
      %4625 = vadd.xlane.f32.xlu0 %v4624
      %v4626 = vpop.xlane.xlu0 %4625
      %v4627 = vsel %vm866, %v4612, 0.0
      %4628 = vadd.xlane.f32.xlu0 %v4627
      %v4629 = vpop.xlane.xlu0 %4628
      %v4630 = vsel %vm866, %v4613, 0.0
      %4631 = vadd.xlane.f32.xlu0 %v4630
      %v4632 = vpop.xlane.xlu0 %4631
      %v4633 = vsel %vm2091, %v4614, 0.0
      %4634 = vadd.xlane.f32.xlu0 %v4633
      %v4635 = vpop.xlane.xlu0 %4634
      %v4636 = vmul.f32 %v4617, %v2101
      %v4637 = vmul.f32 %v4620, %v2101
      %v4638 = vmul.f32 %v4623, %v2101
      %v4639 = vmul.f32 %v4626, %v2101
      %v4640 = vmul.f32 %v4629, %v2101
      %v4641 = vmul.f32 %v4632, %v2101
      %v4642 = vmul.f32 %v4635, %v2101
      %v4643 = vadd.f32 %v4636, 1e-05
      %v4644 = vadd.f32 %v4637, 1e-05
      %v4645 = vadd.f32 %v4638, 1e-05
      %v4646 = vadd.f32 %v4639, 1e-05
      %v4647 = vadd.f32 %v4640, 1e-05
      %v4648 = vadd.f32 %v4641, 1e-05
      %v4649 = vadd.f32 %v4642, 1e-05
      %v4650 = vrsqrt.pop %v4643
      %v4651 = vmul.f32 %v4650, %v4643
      %v4652 = vmul.f32 %v4651, %v4650
      %v4653 = vmul.f32 0.5, %v4652
      %v4654 = vsub.f32 1.5, %v4653
      %v4655 = vmul.f32 %v4650, %v4654
      %vm4656 = vweird.f32 %v4643
      %vm4657 = vweird.f32 %v4650
      %vm4658 = vmor %vm4656, %vm4657
      %v4659 = vsel %vm4658, %v4650, %v4655
      %v4660 = vrsqrt.pop %v4644
      %v4661 = vmul.f32 %v4660, %v4644
      %v4662 = vmul.f32 %v4661, %v4660
      %v4663 = vmul.f32 0.5, %v4662
      %v4664 = vsub.f32 1.5, %v4663
      %v4665 = vmul.f32 %v4660, %v4664
      %vm4666 = vweird.f32 %v4644
      %vm4667 = vweird.f32 %v4660
      %vm4668 = vmor %vm4666, %vm4667
      %v4669 = vsel %vm4668, %v4660, %v4665
      %v4670 = vrsqrt.pop %v4645
      %v4671 = vmul.f32 %v4670, %v4645
      %v4672 = vmul.f32 %v4671, %v4670
      %v4673 = vmul.f32 0.5, %v4672
      %v4674 = vsub.f32 1.5, %v4673
      %v4675 = vmul.f32 %v4670, %v4674
      %vm4676 = vweird.f32 %v4645
      %vm4677 = vweird.f32 %v4670
      %vm4678 = vmor %vm4676, %vm4677
      %v4679 = vsel %vm4678, %v4670, %v4675
      %v4680 = vrsqrt.pop %v4646
      %v4681 = vmul.f32 %v4680, %v4646
      %v4682 = vmul.f32 %v4681, %v4680
      %v4683 = vmul.f32 0.5, %v4682
      %v4684 = vsub.f32 1.5, %v4683
      %v4685 = vmul.f32 %v4680, %v4684
      %vm4686 = vweird.f32 %v4646
      %vm4687 = vweird.f32 %v4680
      %vm4688 = vmor %vm4686, %vm4687
      %v4689 = vsel %vm4688, %v4680, %v4685
      %v4690 = vrsqrt.pop %v4647
      %v4691 = vmul.f32 %v4690, %v4647
      %v4692 = vmul.f32 %v4691, %v4690
      %v4693 = vmul.f32 0.5, %v4692
      %v4694 = vsub.f32 1.5, %v4693
      %v4695 = vmul.f32 %v4690, %v4694
      %vm4696 = vweird.f32 %v4647
      %vm4697 = vweird.f32 %v4690
      %vm4698 = vmor %vm4696, %vm4697
      %v4699 = vsel %vm4698, %v4690, %v4695
      %v4700 = vrsqrt.pop %v4648
      %v4701 = vmul.f32 %v4700, %v4648
      %v4702 = vmul.f32 %v4701, %v4700
      %v4703 = vmul.f32 0.5, %v4702
      %v4704 = vsub.f32 1.5, %v4703
      %v4705 = vmul.f32 %v4700, %v4704
      %vm4706 = vweird.f32 %v4648
      %vm4707 = vweird.f32 %v4700
      %vm4708 = vmor %vm4706, %vm4707
      %v4709 = vsel %vm4708, %v4700, %v4705
      %v4710 = vrsqrt.pop %v4649
      %v4711 = vmul.f32 %v4710, %v4649
      %v4712 = vmul.f32 %v4711, %v4710
      %v4713 = vmul.f32 0.5, %v4712
      %v4714 = vsub.f32 1.5, %v4713
      %v4715 = vmul.f32 %v4710, %v4714
      %vm4716 = vweird.f32 %v4649
      %vm4717 = vweird.f32 %v4710
      %vm4718 = vmor %vm4716, %vm4717
      %v4719 = vsel %vm4718, %v4710, %v4715
      %v4720 = vmul.f32 %v4601, %v4659
      %v4721 = vmul.f32 %v4602, %v4669
      %v4722 = vmul.f32 %v4603, %v4679
      %v4723 = vmul.f32 %v4604, %v4689
      %v4724 = vmul.f32 %v4605, %v4699
      %v4725 = vmul.f32 %v4606, %v4709
      %v4726 = vmul.f32 %v4607, %v4719
      %v4728 = vperm.slane %v4571, 0
      %v4730 = vmul.f32 %v4720, %v4728
      %v4731 = vmul.f32 %v4721, %v4728
      %v4732 = vmul.f32 %v4722, %v4728
      %v4733 = vmul.f32 %v4723, %v4728
      %v4734 = vmul.f32 %v4724, %v4728
      %v4735 = vmul.f32 %v4725, %v4728
      %v4736 = vmul.f32 %v4726, %v4728
      %v4738 = vperm.slane %v4572, 0
      %v4740 = vadd.f32 %v4730, %v4738
      %v4741 = vadd.f32 %v4731, %v4738
      %v4742 = vadd.f32 %v4732, %v4738
      %v4743 = vadd.f32 %v4733, %v4738
      %v4744 = vadd.f32 %v4734, %v4738
      %v4745 = vadd.f32 %v4735, %v4738
      %v4746 = vadd.f32 %v4736, %v4738
      %s4747 = scalar_lea.vmem %s4, 8
      %v4748 = vld [vmem:[%s4747] sm:$0xf]
      %v4749 = vld [vmem:[%s4747 + $0x4] sm:$0xf]
      %s4750 = scalar_lea.vmem %s5, 1
      %v4751 = vld [vmem:[%s4750] sm:$0x1]
      %v4752 = vpack.c.bf16 %v4741, %v4740
      %v4753 = vpack.c.bf16 %v4743, %v4742
      %v4754 = vpack.c.bf16 %v4745, %v4744
      %v4755 = vpack.c.bf16 %v4746, %v4746
      %v4757 = vperm.slane %v4751, 0
      %v4761 = vunpack.c.l.b16 %v4748
      %v4762 = vunpack.c.l.b16 %v4749
      %v4763 = vpack.c.b16 %v4762, %v4761
      %v4766 = vsel %vm866, %v4752, 0
      %v4769 = vsel %vm866, %v4753, 0
      %v4772 = vsel %vm866, %v4754, 0
      %v4775 = vsel %vm866, %v4755, 0
      %4777 = vmatpush.bf16.msra.mxu0 0
      %4778 = vmatpush.bf16.msra.mxu0 0
      %4779 = vmatpush.bf16.msra.mxu0 0
      %4780 = vmatpush.bf16.msra.mxu0 0
      %4781 = vmatpush.bf16.msra.mxu0 0
      %4782 = vmatpush.bf16.msra.mxu0 0
      %4783 = vmatpush.bf16.msra.mxu0 0
      %4784 = vmatpush.bf16.msra.mxu0 %v4763
      %4785 = vmatmul.bf16.gmra.mxu0 %v4766
      %v4786 = vpop.f32.mrf.mxu0
      %v4787 = vadd.f32 %v4757, %v4786
      %v4788 = vpop.f32.mrf.mxu0
      %v4789 = vadd.f32 %v4757, %v4788
      %4790 = vmatmul.bf16.gmra.mxu0 %v4769
      %v4791 = vpop.f32.mrf.mxu0
      %v4792 = vadd.f32 %v4757, %v4791
      %v4793 = vpop.f32.mrf.mxu0
      %v4794 = vadd.f32 %v4757, %v4793
      %4795 = vmatmul.bf16.gmra.mxu0 %v4772
      %v4796 = vpop.f32.mrf.mxu0
      %v4797 = vadd.f32 %v4757, %v4796
      %v4798 = vpop.f32.mrf.mxu0
      %v4799 = vadd.f32 %v4757, %v4798
      %4800 = vmatmul.bf16.gmra.mxu0 %v4775
      %v4801 = vpop.f32.mrf.mxu0
      %v4802 = vadd.f32 %v4757, %v4801
      %v4803 = vpop.f32.mrf.mxu0
      %4804 = vdwg.mxu0
      %v4805 = vmul.f32 %v4787, %v909
      %v4806 = vmul.f32 %v4789, %v909
      %v4807 = vmul.f32 %v4792, %v909
      %v4808 = vmul.f32 %v4794, %v909
      %v4809 = vmul.f32 %v4797, %v909
      %v4810 = vmul.f32 %v4799, %v909
      %v4811 = vmul.f32 %v4802, %v909
      %4819 = vrot.lane.b32.xlu0 %v4805, 112
      %v4820 = vpop.permute.xlu0 %4819
      %4821 = vrot.lane.b32.xlu0 %v4806, 112
      %v4822 = vpop.permute.xlu0 %4821
      %4823 = vrot.lane.b32.xlu0 %v4807, 112
      %v4824 = vpop.permute.xlu0 %4823
      %4825 = vrot.lane.b32.xlu0 %v4808, 112
      %v4826 = vpop.permute.xlu0 %4825
      %4827 = vrot.lane.b32.xlu0 %v4809, 112
      %v4828 = vpop.permute.xlu0 %4827
      %4829 = vrot.lane.b32.xlu0 %v4810, 112
      %v4830 = vpop.permute.xlu0 %4829
      %4831 = vrot.lane.b32.xlu0 %v4811, 112
      %v4832 = vpop.permute.xlu0 %4831
      %v4834 = vsel %vm866, %v4787, 0
      %v4837 = vsel %vm866, %v4789, 0
      %v4840 = vsel %vm866, %v4792, 0
      %v4843 = vsel %vm866, %v4794, 0
      %v4846 = vsel %vm866, %v4797, 0
      %v4849 = vsel %vm866, %v4799, 0
      %v4852 = vsel %vm866, %v4802, 0
      %v4854 = vsel %vm866, %v4820, 0
      %v4856 = vsel %vm866, %v4822, 0
      %v4858 = vsel %vm866, %v4824, 0
      %v4860 = vsel %vm866, %v4826, 0
      %v4862 = vsel %vm866, %v4828, 0
      %v4864 = vsel %vm866, %v4830, 0
      %v4866 = vsel %vm866, %v4832, 0
      %4868 = vmatpush.xpose.msra.mxu0 0.0
      %4869 = vmatpush.xpose.msra.mxu0 0.0
      %4870 = vmatpush.xpose.msra.mxu0 0.0
      %4871 = vmatpush.xpose.msra.mxu0 0.0
      %4872 = vmatpush.xpose.msra.mxu0 0.0
      %4873 = vmatpush.xpose.msra.mxu0 0.0
      %4874 = vmatpush.xpose.msra.mxu0 0.0
      %4875 = vmatpush.xpose.msra.mxu0 0.0
      %4876 = vmatpush.xpose.msra.mxu0 0.0
      %4877 = vmatpush.xpose.msra.mxu0 %v4866
      %4878 = vmatpush.xpose.msra.mxu0 %v4864
      %4879 = vmatpush.xpose.msra.mxu0 %v4862
      %4880 = vmatpush.xpose.msra.mxu0 %v4860
      %4881 = vmatpush.xpose.msra.mxu0 %v4858
      %4882 = vmatpush.xpose.msra.mxu0 %v4856
      %4883 = vmatpush.xpose.msra.mxu0 %v4854
      %4884 = vmatmul.f32.gmra.mxu0 %v4834
      %v4885 = vpop.f32.mrf.mxu0
      %v4886 = vadd.f32 0.0, %v4885
      %4887 = vmatmul.f32.gmra.mxu0 %v4837
      %v4888 = vpop.f32.mrf.mxu0
      %v4889 = vadd.f32 0.0, %v4888
      %4890 = vmatmul.f32.gmra.mxu0 %v4840
      %v4891 = vpop.f32.mrf.mxu0
      %v4892 = vadd.f32 0.0, %v4891
      %4893 = vmatmul.f32.gmra.mxu0 %v4843
      %v4894 = vpop.f32.mrf.mxu0
      %v4895 = vadd.f32 0.0, %v4894
      %4896 = vmatmul.f32.gmra.mxu0 %v4846
      %v4897 = vpop.f32.mrf.mxu0
      %v4898 = vadd.f32 0.0, %v4897
      %4899 = vmatmul.f32.gmra.mxu0 %v4849
      %v4900 = vpop.f32.mrf.mxu0
      %v4901 = vadd.f32 0.0, %v4900
      %4902 = vmatmul.f32.gmra.mxu0 %v4852
      %v4903 = vpop.f32.mrf.mxu0
      %v4904 = vadd.f32 0.0, %v4903
      %4905 = vdwg.mxu0
      %v4906 = vmul.f32 %v4886, 0.5
      %v4907 = vmul.f32 %v4889, 0.5
      %v4908 = vmul.f32 %v4892, 0.5
      %v4909 = vmul.f32 %v4895, 0.5
      %v4910 = vmul.f32 %v4898, 0.5
      %v4911 = vmul.f32 %v4901, 0.5
      %v4912 = vmul.f32 %v4904, 0.5
      %v4913 = vsel %vm1019, %v4906, -inf
      %4914 = vmax.xlane.f32.xlu0 %v4913
      %v4915 = vpop.xlane.xlu0 %4914
      %v4916 = vsel %vm1019, %v4907, -inf
      %4917 = vmax.xlane.f32.xlu0 %v4916
      %v4918 = vpop.xlane.xlu0 %4917
      %v4919 = vsel %vm1019, %v4908, -inf
      %4920 = vmax.xlane.f32.xlu0 %v4919
      %v4921 = vpop.xlane.xlu0 %4920
      %v4922 = vsel %vm1019, %v4909, -inf
      %4923 = vmax.xlane.f32.xlu0 %v4922
      %v4924 = vpop.xlane.xlu0 %4923
      %v4925 = vsel %vm1019, %v4910, -inf
      %4926 = vmax.xlane.f32.xlu0 %v4925
      %v4927 = vpop.xlane.xlu0 %4926
      %v4928 = vsel %vm1019, %v4911, -inf
      %4929 = vmax.xlane.f32.xlu0 %v4928
      %v4930 = vpop.xlane.xlu0 %4929
      %v4931 = vsel %vm1038, %v4912, -inf
      %4932 = vmax.xlane.f32.xlu0 %v4931
      %v4933 = vpop.xlane.xlu0 %4932
      %v4934 = vsub.f32 %v4906, %v4915
      %v4935 = vsub.f32 %v4907, %v4918
      %v4936 = vsub.f32 %v4908, %v4921
      %v4937 = vsub.f32 %v4909, %v4924
      %v4938 = vsub.f32 %v4910, %v4927
      %v4939 = vsub.f32 %v4911, %v4930
      %v4940 = vsub.f32 %v4912, %v4933
      %v4941 = vmul.f32 %v4934, 1.442695
      %v4942 = vpow.pop %v4941
      %v4943 = vmul.f32 %v4935, 1.442695
      %v4944 = vpow.pop %v4943
      %v4945 = vmul.f32 %v4936, 1.442695
      %v4946 = vpow.pop %v4945
      %v4947 = vmul.f32 %v4937, 1.442695
      %v4948 = vpow.pop %v4947
      %v4949 = vmul.f32 %v4938, 1.442695
      %v4950 = vpow.pop %v4949
      %v4951 = vmul.f32 %v4939, 1.442695
      %v4952 = vpow.pop %v4951
      %v4953 = vmul.f32 %v4940, 1.442695
      %v4954 = vpow.pop %v4953
      %v4955 = vsel %vm1019, %v4942, 0.0
      %4956 = vadd.xlane.f32.xlu0 %v4955
      %v4957 = vpop.xlane.xlu0 %4956
      %v4958 = vsel %vm1019, %v4944, 0.0
      %4959 = vadd.xlane.f32.xlu0 %v4958
      %v4960 = vpop.xlane.xlu0 %4959
      %v4961 = vsel %vm1019, %v4946, 0.0
      %4962 = vadd.xlane.f32.xlu0 %v4961
      %v4963 = vpop.xlane.xlu0 %4962
      %v4964 = vsel %vm1019, %v4948, 0.0
      %4965 = vadd.xlane.f32.xlu0 %v4964
      %v4966 = vpop.xlane.xlu0 %4965
      %v4967 = vsel %vm1019, %v4950, 0.0
      %4968 = vadd.xlane.f32.xlu0 %v4967
      %v4969 = vpop.xlane.xlu0 %4968
      %v4970 = vsel %vm1019, %v4952, 0.0
      %4971 = vadd.xlane.f32.xlu0 %v4970
      %v4972 = vpop.xlane.xlu0 %4971
      %v4973 = vsel %vm1038, %v4954, 0.0
      %4974 = vadd.xlane.f32.xlu0 %v4973
      %v4975 = vpop.xlane.xlu0 %4974
      %v4976 = vrcp.pop %v4957
      %v4977 = vrcp.pop %v4960
      %v4978 = vrcp.pop %v4963
      %v4979 = vrcp.pop %v4966
      %v4980 = vrcp.pop %v4969
      %v4981 = vrcp.pop %v4972
      %v4982 = vrcp.pop %v4975
      %v4983 = vmul.f32 %v4942, %v4976
      %v4984 = vmul.f32 %v4944, %v4977
      %v4985 = vmul.f32 %v4946, %v4978
      %v4986 = vmul.f32 %v4948, %v4979
      %v4987 = vmul.f32 %v4950, %v4980
      %v4988 = vmul.f32 %v4952, %v4981
      %v4989 = vmul.f32 %v4954, %v4982
      %v4990 = vmul.f32 %v4787, %v1099
      %v4991 = vmul.f32 %v4789, %v1099
      %v4992 = vmul.f32 %v4792, %v1099
      %v4993 = vmul.f32 %v4794, %v1099
      %v4994 = vmul.f32 %v4797, %v1099
      %v4995 = vmul.f32 %v4799, %v1099
      %v4996 = vmul.f32 %v4802, %v1099
      %v4997 = vmul.f32 %v4787, %v1110
      %v4998 = vmul.f32 %v4789, %v1110
      %v4999 = vmul.f32 %v4792, %v1110
      %v5000 = vmul.f32 %v4794, %v1110
      %v5001 = vmul.f32 %v4797, %v1110
      %v5002 = vmul.f32 %v4799, %v1110
      %v5003 = vmul.f32 %v4802, %v1110
      %5011 = vrot.lane.b32.xlu0 %v4997, 112
      %v5012 = vpop.permute.xlu0 %5011
      %5013 = vrot.lane.b32.xlu0 %v4998, 112
      %v5014 = vpop.permute.xlu0 %5013
      %5015 = vrot.lane.b32.xlu0 %v4999, 112
      %v5016 = vpop.permute.xlu0 %5015
      %5017 = vrot.lane.b32.xlu0 %v5000, 112
      %v5018 = vpop.permute.xlu0 %5017
      %5019 = vrot.lane.b32.xlu0 %v5001, 112
      %v5020 = vpop.permute.xlu0 %5019
      %5021 = vrot.lane.b32.xlu0 %v5002, 112
      %v5022 = vpop.permute.xlu0 %5021
      %5023 = vrot.lane.b32.xlu0 %v5003, 112
      %v5024 = vpop.permute.xlu0 %5023
      %v5025 = vsel %vm866, %v5012, 0
      %v5027 = vsel %vm866, %v5014, 0
      %v5029 = vsel %vm866, %v5016, 0
      %v5031 = vsel %vm866, %v5018, 0
      %v5033 = vsel %vm866, %v5020, 0
      %v5035 = vsel %vm866, %v5022, 0
      %v5037 = vsel %vm866, %v5024, 0
      %5039 = vmatpush.xpose.msra.mxu0 0.0
      %5040 = vmatpush.xpose.msra.mxu0 0.0
      %5041 = vmatpush.xpose.msra.mxu0 0.0
      %5042 = vmatpush.xpose.msra.mxu0 0.0
      %5043 = vmatpush.xpose.msra.mxu0 0.0
      %5044 = vmatpush.xpose.msra.mxu0 0.0
      %5045 = vmatpush.xpose.msra.mxu0 0.0
      %5046 = vmatpush.xpose.msra.mxu0 0.0
      %5047 = vmatpush.xpose.msra.mxu0 0.0
      %5048 = vmatpush.xpose.msra.mxu0 %v5037
      %5049 = vmatpush.xpose.msra.mxu0 %v5035
      %5050 = vmatpush.xpose.msra.mxu0 %v5033
      %5051 = vmatpush.xpose.msra.mxu0 %v5031
      %5052 = vmatpush.xpose.msra.mxu0 %v5029
      %5053 = vmatpush.xpose.msra.mxu0 %v5027
      %5054 = vmatpush.xpose.msra.mxu0 %v5025
      %5055 = vmatmul.f32.gmra.mxu0 %v4834
      %v5056 = vpop.f32.mrf.mxu0
      %v5057 = vadd.f32 0.0, %v5056
      %5058 = vmatmul.f32.gmra.mxu0 %v4837
      %v5059 = vpop.f32.mrf.mxu0
      %v5060 = vadd.f32 0.0, %v5059
      %5061 = vmatmul.f32.gmra.mxu0 %v4840
      %v5062 = vpop.f32.mrf.mxu0
      %v5063 = vadd.f32 0.0, %v5062
      %5064 = vmatmul.f32.gmra.mxu0 %v4843
      %v5065 = vpop.f32.mrf.mxu0
      %v5066 = vadd.f32 0.0, %v5065
      %5067 = vmatmul.f32.gmra.mxu0 %v4846
      %v5068 = vpop.f32.mrf.mxu0
      %v5069 = vadd.f32 0.0, %v5068
      %5070 = vmatmul.f32.gmra.mxu0 %v4849
      %v5071 = vpop.f32.mrf.mxu0
      %v5072 = vadd.f32 0.0, %v5071
      %5073 = vmatmul.f32.gmra.mxu0 %v4852
      %v5074 = vpop.f32.mrf.mxu0
      %v5075 = vadd.f32 0.0, %v5074
      %5076 = vdwg.mxu0
      %v5077 = vmul.f32 %v5057, 0.5
      %v5078 = vmul.f32 %v5060, 0.5
      %v5079 = vmul.f32 %v5063, 0.5
      %v5080 = vmul.f32 %v5066, 0.5
      %v5081 = vmul.f32 %v5069, 0.5
      %v5082 = vmul.f32 %v5072, 0.5
      %v5083 = vmul.f32 %v5075, 0.5
      %v5084 = vsel %vm1019, %v5077, -inf
      %5085 = vmax.xlane.f32.xlu0 %v5084
      %v5086 = vpop.xlane.xlu0 %5085
      %v5087 = vsel %vm1019, %v5078, -inf
      %5088 = vmax.xlane.f32.xlu0 %v5087
      %v5089 = vpop.xlane.xlu0 %5088
      %v5090 = vsel %vm1019, %v5079, -inf
      %5091 = vmax.xlane.f32.xlu0 %v5090
      %v5092 = vpop.xlane.xlu0 %5091
      %v5093 = vsel %vm1019, %v5080, -inf
      %5094 = vmax.xlane.f32.xlu0 %v5093
      %v5095 = vpop.xlane.xlu0 %5094
      %v5096 = vsel %vm1019, %v5081, -inf
      %5097 = vmax.xlane.f32.xlu0 %v5096
      %v5098 = vpop.xlane.xlu0 %5097
      %v5099 = vsel %vm1019, %v5082, -inf
      %5100 = vmax.xlane.f32.xlu0 %v5099
      %v5101 = vpop.xlane.xlu0 %5100
      %v5102 = vsel %vm1038, %v5083, -inf
      %5103 = vmax.xlane.f32.xlu0 %v5102
      %v5104 = vpop.xlane.xlu0 %5103
      %v5105 = vsub.f32 %v5077, %v5086
      %v5106 = vsub.f32 %v5078, %v5089
      %v5107 = vsub.f32 %v5079, %v5092
      %v5108 = vsub.f32 %v5080, %v5095
      %v5109 = vsub.f32 %v5081, %v5098
      %v5110 = vsub.f32 %v5082, %v5101
      %v5111 = vsub.f32 %v5083, %v5104
      %v5112 = vmul.f32 %v5105, 1.442695
      %v5113 = vpow.pop %v5112
      %v5114 = vmul.f32 %v5106, 1.442695
      %v5115 = vpow.pop %v5114
      %v5116 = vmul.f32 %v5107, 1.442695
      %v5117 = vpow.pop %v5116
      %v5118 = vmul.f32 %v5108, 1.442695
      %v5119 = vpow.pop %v5118
      %v5120 = vmul.f32 %v5109, 1.442695
      %v5121 = vpow.pop %v5120
      %v5122 = vmul.f32 %v5110, 1.442695
      %v5123 = vpow.pop %v5122
      %v5124 = vmul.f32 %v5111, 1.442695
      %v5125 = vpow.pop %v5124
      %v5126 = vsel %vm1019, %v5113, 0.0
      %5127 = vadd.xlane.f32.xlu0 %v5126
      %v5128 = vpop.xlane.xlu0 %5127
      %v5129 = vsel %vm1019, %v5115, 0.0
      %5130 = vadd.xlane.f32.xlu0 %v5129
      %v5131 = vpop.xlane.xlu0 %5130
      %v5132 = vsel %vm1019, %v5117, 0.0
      %5133 = vadd.xlane.f32.xlu0 %v5132
      %v5134 = vpop.xlane.xlu0 %5133
      %v5135 = vsel %vm1019, %v5119, 0.0
      %5136 = vadd.xlane.f32.xlu0 %v5135
      %v5137 = vpop.xlane.xlu0 %5136
      %v5138 = vsel %vm1019, %v5121, 0.0
      %5139 = vadd.xlane.f32.xlu0 %v5138
      %v5140 = vpop.xlane.xlu0 %5139
      %v5141 = vsel %vm1019, %v5123, 0.0
      %5142 = vadd.xlane.f32.xlu0 %v5141
      %v5143 = vpop.xlane.xlu0 %5142
      %v5144 = vsel %vm1038, %v5125, 0.0
      %5145 = vadd.xlane.f32.xlu0 %v5144
      %v5146 = vpop.xlane.xlu0 %5145
      %v5147 = vrcp.pop %v5128
      %v5148 = vrcp.pop %v5131
      %v5149 = vrcp.pop %v5134
      %v5150 = vrcp.pop %v5137
      %v5151 = vrcp.pop %v5140
      %v5152 = vrcp.pop %v5143
      %v5153 = vrcp.pop %v5146
      %v5154 = vmul.f32 %v5113, %v5147
      %v5155 = vmul.f32 %v5115, %v5148
      %v5156 = vmul.f32 %v5117, %v5149
      %v5157 = vmul.f32 %v5119, %v5150
      %v5158 = vmul.f32 %v5121, %v5151
      %v5159 = vmul.f32 %v5123, %v5152
      %v5160 = vmul.f32 %v5125, %v5153
      %v5161 = vmul.f32 %v4787, %v1277
      %v5162 = vmul.f32 %v4789, %v1277
      %v5163 = vmul.f32 %v4792, %v1277
      %v5164 = vmul.f32 %v4794, %v1277
      %v5165 = vmul.f32 %v4797, %v1277
      %v5166 = vmul.f32 %v4799, %v1277
      %v5167 = vmul.f32 %v4802, %v1277
      %5175 = vrot.lane.b32.xlu0 %v5161, 96
      %v5176 = vpop.permute.xlu0 %5175
      %5177 = vrot.lane.b32.xlu0 %v5162, 96
      %v5178 = vpop.permute.xlu0 %5177
      %5179 = vrot.lane.b32.xlu0 %v5163, 96
      %v5180 = vpop.permute.xlu0 %5179
      %5181 = vrot.lane.b32.xlu0 %v5164, 96
      %v5182 = vpop.permute.xlu0 %5181
      %5183 = vrot.lane.b32.xlu0 %v5165, 96
      %v5184 = vpop.permute.xlu0 %5183
      %5185 = vrot.lane.b32.xlu0 %v5166, 96
      %v5186 = vpop.permute.xlu0 %5185
      %5187 = vrot.lane.b32.xlu0 %v5167, 96
      %v5188 = vpop.permute.xlu0 %5187
      %v5196 = vsel %vm1019, %v5154, 0
      %v5199 = vsel %vm1019, %v5155, 0
      %v5202 = vsel %vm1019, %v5156, 0
      %v5205 = vsel %vm1019, %v5157, 0
      %v5208 = vsel %vm1019, %v5158, 0
      %v5211 = vsel %vm1019, %v5159, 0
      %v5214 = vsel %vm1019, %v5160, 0
      %v5216 = vsel %vm794, %v5188, 0
      %5218 = vmatpush.msra.mxu0 0.0
      %5219 = vmatpush.msra.mxu0 0.0
      %5220 = vmatpush.msra.mxu0 0.0
      %5221 = vmatpush.msra.mxu0 0.0
      %5222 = vmatpush.msra.mxu0 0.0
      %5223 = vmatpush.msra.mxu0 0.0
      %5224 = vmatpush.msra.mxu0 0.0
      %5225 = vmatpush.msra.mxu0 0.0
      %5226 = vmatpush.msra.mxu0 0.0
      %5227 = vmatpush.msra.mxu0 %v5216
      %5228 = vmatpush.msra.mxu0 %v5186
      %5229 = vmatpush.msra.mxu0 %v5184
      %5230 = vmatpush.msra.mxu0 %v5182
      %5231 = vmatpush.msra.mxu0 %v5180
      %5232 = vmatpush.msra.mxu0 %v5178
      %5233 = vmatpush.msra.mxu0 %v5176
      %5234 = vmatmul.f32.gmra.mxu0 %v5196
      %v5235 = vpop.f32.mrf.mxu0
      %v5236 = vadd.f32 0.0, %v5235
      %5237 = vmatmul.f32.gmra.mxu0 %v5199
      %v5238 = vpop.f32.mrf.mxu0
      %v5239 = vadd.f32 0.0, %v5238
      %5240 = vmatmul.f32.gmra.mxu0 %v5202
      %v5241 = vpop.f32.mrf.mxu0
      %v5242 = vadd.f32 0.0, %v5241
      %5243 = vmatmul.f32.gmra.mxu0 %v5205
      %v5244 = vpop.f32.mrf.mxu0
      %v5245 = vadd.f32 0.0, %v5244
      %5246 = vmatmul.f32.gmra.mxu0 %v5208
      %v5247 = vpop.f32.mrf.mxu0
      %v5248 = vadd.f32 0.0, %v5247
      %5249 = vmatmul.f32.gmra.mxu0 %v5211
      %v5250 = vpop.f32.mrf.mxu0
      %v5251 = vadd.f32 0.0, %v5250
      %5252 = vmatmul.f32.gmra.mxu0 %v5214
      %v5253 = vpop.f32.mrf.mxu0
      %v5254 = vadd.f32 0.0, %v5253
      %5255 = vdwg.mxu0
      %5263 = vrot.lane.b32.xlu0 %v4990, 96
      %v5264 = vpop.permute.xlu0 %5263
      %5265 = vrot.lane.b32.xlu0 %v4991, 96
      %v5266 = vpop.permute.xlu0 %5265
      %5267 = vrot.lane.b32.xlu0 %v4992, 96
      %v5268 = vpop.permute.xlu0 %5267
      %5269 = vrot.lane.b32.xlu0 %v4993, 96
      %v5270 = vpop.permute.xlu0 %5269
      %5271 = vrot.lane.b32.xlu0 %v4994, 96
      %v5272 = vpop.permute.xlu0 %5271
      %5273 = vrot.lane.b32.xlu0 %v4995, 96
      %v5274 = vpop.permute.xlu0 %5273
      %5275 = vrot.lane.b32.xlu0 %v4996, 96
      %v5276 = vpop.permute.xlu0 %5275
      %v5284 = vsel %vm1019, %v4983, 0
      %v5287 = vsel %vm1019, %v4984, 0
      %v5290 = vsel %vm1019, %v4985, 0
      %v5293 = vsel %vm1019, %v4986, 0
      %v5296 = vsel %vm1019, %v4987, 0
      %v5299 = vsel %vm1019, %v4988, 0
      %v5302 = vsel %vm1019, %v4989, 0
      %v5304 = vsel %vm794, %v5276, 0
      %5306 = vmatpush.msra.mxu0 0.0
      %5307 = vmatpush.msra.mxu0 0.0
      %5308 = vmatpush.msra.mxu0 0.0
      %5309 = vmatpush.msra.mxu0 0.0
      %5310 = vmatpush.msra.mxu0 0.0
      %5311 = vmatpush.msra.mxu0 0.0
      %5312 = vmatpush.msra.mxu0 0.0
      %5313 = vmatpush.msra.mxu0 0.0
      %5314 = vmatpush.msra.mxu0 0.0
      %5315 = vmatpush.msra.mxu0 %v5304
      %5316 = vmatpush.msra.mxu0 %v5274
      %5317 = vmatpush.msra.mxu0 %v5272
      %5318 = vmatpush.msra.mxu0 %v5270
      %5319 = vmatpush.msra.mxu0 %v5268
      %5320 = vmatpush.msra.mxu0 %v5266
      %5321 = vmatpush.msra.mxu0 %v5264
      %5322 = vmatmul.f32.gmra.mxu0 %v5284
      %v5323 = vpop.f32.mrf.mxu0
      %v5324 = vadd.f32 %v5236, %v5323
      %5325 = vmatmul.f32.gmra.mxu0 %v5287
      %v5326 = vpop.f32.mrf.mxu0
      %v5327 = vadd.f32 %v5239, %v5326
      %5328 = vmatmul.f32.gmra.mxu0 %v5290
      %v5329 = vpop.f32.mrf.mxu0
      %v5330 = vadd.f32 %v5242, %v5329
      %5331 = vmatmul.f32.gmra.mxu0 %v5293
      %v5332 = vpop.f32.mrf.mxu0
      %v5333 = vadd.f32 %v5245, %v5332
      %5334 = vmatmul.f32.gmra.mxu0 %v5296
      %v5335 = vpop.f32.mrf.mxu0
      %v5336 = vadd.f32 %v5248, %v5335
      %5337 = vmatmul.f32.gmra.mxu0 %v5299
      %v5338 = vpop.f32.mrf.mxu0
      %v5339 = vadd.f32 %v5251, %v5338
      %5340 = vmatmul.f32.gmra.mxu0 %v5302
      %v5341 = vpop.f32.mrf.mxu0
      %v5342 = vadd.f32 %v5254, %v5341
      %5343 = vdwg.mxu0
      %v5344 = vmul.f32 %v4787, %v1464
      %v5345 = vmul.f32 %v4789, %v1464
      %v5346 = vmul.f32 %v4792, %v1464
      %v5347 = vmul.f32 %v4794, %v1464
      %v5348 = vmul.f32 %v4797, %v1464
      %v5349 = vmul.f32 %v4799, %v1464
      %v5350 = vmul.f32 %v4802, %v1464
      %5358 = vrot.lane.b32.xlu0 %v5344, 112
      %v5359 = vpop.permute.xlu0 %5358
      %5360 = vrot.lane.b32.xlu0 %v5345, 112
      %v5361 = vpop.permute.xlu0 %5360
      %5362 = vrot.lane.b32.xlu0 %v5346, 112
      %v5363 = vpop.permute.xlu0 %5362
      %5364 = vrot.lane.b32.xlu0 %v5347, 112
      %v5365 = vpop.permute.xlu0 %5364
      %5366 = vrot.lane.b32.xlu0 %v5348, 112
      %v5367 = vpop.permute.xlu0 %5366
      %5368 = vrot.lane.b32.xlu0 %v5349, 112
      %v5369 = vpop.permute.xlu0 %5368
      %5370 = vrot.lane.b32.xlu0 %v5350, 112
      %v5371 = vpop.permute.xlu0 %5370
      %v5372 = vsel %vm866, %v5359, 0
      %v5374 = vsel %vm866, %v5361, 0
      %v5376 = vsel %vm866, %v5363, 0
      %v5378 = vsel %vm866, %v5365, 0
      %v5380 = vsel %vm866, %v5367, 0
      %v5382 = vsel %vm866, %v5369, 0
      %v5384 = vsel %vm866, %v5371, 0
      %5386 = vmatpush.xpose.msra.mxu0 0.0
      %5387 = vmatpush.xpose.msra.mxu0 0.0
      %5388 = vmatpush.xpose.msra.mxu0 0.0
      %5389 = vmatpush.xpose.msra.mxu0 0.0
      %5390 = vmatpush.xpose.msra.mxu0 0.0
      %5391 = vmatpush.xpose.msra.mxu0 0.0
      %5392 = vmatpush.xpose.msra.mxu0 0.0
      %5393 = vmatpush.xpose.msra.mxu0 0.0
      %5394 = vmatpush.xpose.msra.mxu0 0.0
      %5395 = vmatpush.xpose.msra.mxu0 %v5384
      %5396 = vmatpush.xpose.msra.mxu0 %v5382
      %5397 = vmatpush.xpose.msra.mxu0 %v5380
      %5398 = vmatpush.xpose.msra.mxu0 %v5378
      %5399 = vmatpush.xpose.msra.mxu0 %v5376
      %5400 = vmatpush.xpose.msra.mxu0 %v5374
      %5401 = vmatpush.xpose.msra.mxu0 %v5372
      %5402 = vmatmul.f32.gmra.mxu0 %v4834
      %v5403 = vpop.f32.mrf.mxu0
      %v5404 = vadd.f32 0.0, %v5403
      %5405 = vmatmul.f32.gmra.mxu0 %v4837
      %v5406 = vpop.f32.mrf.mxu0
      %v5407 = vadd.f32 0.0, %v5406
      %5408 = vmatmul.f32.gmra.mxu0 %v4840
      %v5409 = vpop.f32.mrf.mxu0
      %v5410 = vadd.f32 0.0, %v5409
      %5411 = vmatmul.f32.gmra.mxu0 %v4843
      %v5412 = vpop.f32.mrf.mxu0
      %v5413 = vadd.f32 0.0, %v5412
      %5414 = vmatmul.f32.gmra.mxu0 %v4846
      %v5415 = vpop.f32.mrf.mxu0
      %v5416 = vadd.f32 0.0, %v5415
      %5417 = vmatmul.f32.gmra.mxu0 %v4849
      %v5418 = vpop.f32.mrf.mxu0
      %v5419 = vadd.f32 0.0, %v5418
      %5420 = vmatmul.f32.gmra.mxu0 %v4852
      %v5421 = vpop.f32.mrf.mxu0
      %v5422 = vadd.f32 0.0, %v5421
      %5423 = vdwg.mxu0
      %v5424 = vmul.f32 %v5404, 0.5
      %v5425 = vmul.f32 %v5407, 0.5
      %v5426 = vmul.f32 %v5410, 0.5
      %v5427 = vmul.f32 %v5413, 0.5
      %v5428 = vmul.f32 %v5416, 0.5
      %v5429 = vmul.f32 %v5419, 0.5
      %v5430 = vmul.f32 %v5422, 0.5
      %v5431 = vsel %vm1019, %v5424, -inf
      %5432 = vmax.xlane.f32.xlu0 %v5431
      %v5433 = vpop.xlane.xlu0 %5432
      %v5434 = vsel %vm1019, %v5425, -inf
      %5435 = vmax.xlane.f32.xlu0 %v5434
      %v5436 = vpop.xlane.xlu0 %5435
      %v5437 = vsel %vm1019, %v5426, -inf
      %5438 = vmax.xlane.f32.xlu0 %v5437
      %v5439 = vpop.xlane.xlu0 %5438
      %v5440 = vsel %vm1019, %v5427, -inf
      %5441 = vmax.xlane.f32.xlu0 %v5440
      %v5442 = vpop.xlane.xlu0 %5441
      %v5443 = vsel %vm1019, %v5428, -inf
      %5444 = vmax.xlane.f32.xlu0 %v5443
      %v5445 = vpop.xlane.xlu0 %5444
      %v5446 = vsel %vm1019, %v5429, -inf
      %5447 = vmax.xlane.f32.xlu0 %v5446
      %v5448 = vpop.xlane.xlu0 %5447
      %v5449 = vsel %vm1038, %v5430, -inf
      %5450 = vmax.xlane.f32.xlu0 %v5449
      %v5451 = vpop.xlane.xlu0 %5450
      %v5452 = vsub.f32 %v5424, %v5433
      %v5453 = vsub.f32 %v5425, %v5436
      %v5454 = vsub.f32 %v5426, %v5439
      %v5455 = vsub.f32 %v5427, %v5442
      %v5456 = vsub.f32 %v5428, %v5445
      %v5457 = vsub.f32 %v5429, %v5448
      %v5458 = vsub.f32 %v5430, %v5451
      %v5459 = vmul.f32 %v5452, 1.442695
      %v5460 = vpow.pop %v5459
      %v5461 = vmul.f32 %v5453, 1.442695
      %v5462 = vpow.pop %v5461
      %v5463 = vmul.f32 %v5454, 1.442695
      %v5464 = vpow.pop %v5463
      %v5465 = vmul.f32 %v5455, 1.442695
      %v5466 = vpow.pop %v5465
      %v5467 = vmul.f32 %v5456, 1.442695
      %v5468 = vpow.pop %v5467
      %v5469 = vmul.f32 %v5457, 1.442695
      %v5470 = vpow.pop %v5469
      %v5471 = vmul.f32 %v5458, 1.442695
      %v5472 = vpow.pop %v5471
      %v5473 = vsel %vm1019, %v5460, 0.0
      %5474 = vadd.xlane.f32.xlu0 %v5473
      %v5475 = vpop.xlane.xlu0 %5474
      %v5476 = vsel %vm1019, %v5462, 0.0
      %5477 = vadd.xlane.f32.xlu0 %v5476
      %v5478 = vpop.xlane.xlu0 %5477
      %v5479 = vsel %vm1019, %v5464, 0.0
      %5480 = vadd.xlane.f32.xlu0 %v5479
      %v5481 = vpop.xlane.xlu0 %5480
      %v5482 = vsel %vm1019, %v5466, 0.0
      %5483 = vadd.xlane.f32.xlu0 %v5482
      %v5484 = vpop.xlane.xlu0 %5483
      %v5485 = vsel %vm1019, %v5468, 0.0
      %5486 = vadd.xlane.f32.xlu0 %v5485
      %v5487 = vpop.xlane.xlu0 %5486
      %v5488 = vsel %vm1019, %v5470, 0.0
      %5489 = vadd.xlane.f32.xlu0 %v5488
      %v5490 = vpop.xlane.xlu0 %5489
      %v5491 = vsel %vm1038, %v5472, 0.0
      %5492 = vadd.xlane.f32.xlu0 %v5491
      %v5493 = vpop.xlane.xlu0 %5492
      %v5494 = vrcp.pop %v5475
      %v5495 = vrcp.pop %v5478
      %v5496 = vrcp.pop %v5481
      %v5497 = vrcp.pop %v5484
      %v5498 = vrcp.pop %v5487
      %v5499 = vrcp.pop %v5490
      %v5500 = vrcp.pop %v5493
      %v5501 = vmul.f32 %v5460, %v5494
      %v5502 = vmul.f32 %v5462, %v5495
      %v5503 = vmul.f32 %v5464, %v5496
      %v5504 = vmul.f32 %v5466, %v5497
      %v5505 = vmul.f32 %v5468, %v5498
      %v5506 = vmul.f32 %v5470, %v5499
      %v5507 = vmul.f32 %v5472, %v5500
      %v5508 = vmul.f32 %v4787, %v1631
      %v5509 = vmul.f32 %v4789, %v1631
      %v5510 = vmul.f32 %v4792, %v1631
      %v5511 = vmul.f32 %v4794, %v1631
      %v5512 = vmul.f32 %v4797, %v1631
      %v5513 = vmul.f32 %v4799, %v1631
      %v5514 = vmul.f32 %v4802, %v1631
      %5522 = vrot.lane.b32.xlu0 %v5508, 96
      %v5523 = vpop.permute.xlu0 %5522
      %5524 = vrot.lane.b32.xlu0 %v5509, 96
      %v5525 = vpop.permute.xlu0 %5524
      %5526 = vrot.lane.b32.xlu0 %v5510, 96
      %v5527 = vpop.permute.xlu0 %5526
      %5528 = vrot.lane.b32.xlu0 %v5511, 96
      %v5529 = vpop.permute.xlu0 %5528
      %5530 = vrot.lane.b32.xlu0 %v5512, 96
      %v5531 = vpop.permute.xlu0 %5530
      %5532 = vrot.lane.b32.xlu0 %v5513, 96
      %v5533 = vpop.permute.xlu0 %5532
      %5534 = vrot.lane.b32.xlu0 %v5514, 96
      %v5535 = vpop.permute.xlu0 %5534
      %v5543 = vsel %vm1019, %v5501, 0
      %v5546 = vsel %vm1019, %v5502, 0
      %v5549 = vsel %vm1019, %v5503, 0
      %v5552 = vsel %vm1019, %v5504, 0
      %v5555 = vsel %vm1019, %v5505, 0
      %v5558 = vsel %vm1019, %v5506, 0
      %v5561 = vsel %vm1019, %v5507, 0
      %v5563 = vsel %vm794, %v5535, 0
      %5565 = vmatpush.msra.mxu0 0.0
      %5566 = vmatpush.msra.mxu0 0.0
      %5567 = vmatpush.msra.mxu0 0.0
      %5568 = vmatpush.msra.mxu0 0.0
      %5569 = vmatpush.msra.mxu0 0.0
      %5570 = vmatpush.msra.mxu0 0.0
      %5571 = vmatpush.msra.mxu0 0.0
      %5572 = vmatpush.msra.mxu0 0.0
      %5573 = vmatpush.msra.mxu0 0.0
      %5574 = vmatpush.msra.mxu0 %v5563
      %5575 = vmatpush.msra.mxu0 %v5533
      %5576 = vmatpush.msra.mxu0 %v5531
      %5577 = vmatpush.msra.mxu0 %v5529
      %5578 = vmatpush.msra.mxu0 %v5527
      %5579 = vmatpush.msra.mxu0 %v5525
      %5580 = vmatpush.msra.mxu0 %v5523
      %5581 = vmatmul.f32.gmra.mxu0 %v5543
      %v5582 = vpop.f32.mrf.mxu0
      %v5583 = vadd.f32 0.0, %v5582
      %5584 = vmatmul.f32.gmra.mxu0 %v5546
      %v5585 = vpop.f32.mrf.mxu0
      %v5586 = vadd.f32 0.0, %v5585
      %5587 = vmatmul.f32.gmra.mxu0 %v5549
      %v5588 = vpop.f32.mrf.mxu0
      %v5589 = vadd.f32 0.0, %v5588
      %5590 = vmatmul.f32.gmra.mxu0 %v5552
      %v5591 = vpop.f32.mrf.mxu0
      %v5592 = vadd.f32 0.0, %v5591
      %5593 = vmatmul.f32.gmra.mxu0 %v5555
      %v5594 = vpop.f32.mrf.mxu0
      %v5595 = vadd.f32 0.0, %v5594
      %5596 = vmatmul.f32.gmra.mxu0 %v5558
      %v5597 = vpop.f32.mrf.mxu0
      %v5598 = vadd.f32 0.0, %v5597
      %5599 = vmatmul.f32.gmra.mxu0 %v5561
      %v5600 = vpop.f32.mrf.mxu0
      %v5601 = vadd.f32 0.0, %v5600
      %5602 = vdwg.mxu0
      %v5603 = vadd.f32 %v5324, %v5583
      %v5604 = vadd.f32 %v5327, %v5586
      %v5605 = vadd.f32 %v5330, %v5589
      %v5606 = vadd.f32 %v5333, %v5592
      %v5607 = vadd.f32 %v5336, %v5595
      %v5608 = vadd.f32 %v5339, %v5598
      %v5609 = vadd.f32 %v5342, %v5601
      %v5610 = vmul.f32 %v4787, %v1737
      %v5611 = vmul.f32 %v4789, %v1737
      %v5612 = vmul.f32 %v4792, %v1737
      %v5613 = vmul.f32 %v4794, %v1737
      %v5614 = vmul.f32 %v4797, %v1737
      %v5615 = vmul.f32 %v4799, %v1737
      %v5616 = vmul.f32 %v4802, %v1737
      %5624 = vrot.lane.b32.xlu0 %v5610, 112
      %v5625 = vpop.permute.xlu0 %5624
      %5626 = vrot.lane.b32.xlu0 %v5611, 112
      %v5627 = vpop.permute.xlu0 %5626
      %5628 = vrot.lane.b32.xlu0 %v5612, 112
      %v5629 = vpop.permute.xlu0 %5628
      %5630 = vrot.lane.b32.xlu0 %v5613, 112
      %v5631 = vpop.permute.xlu0 %5630
      %5632 = vrot.lane.b32.xlu0 %v5614, 112
      %v5633 = vpop.permute.xlu0 %5632
      %5634 = vrot.lane.b32.xlu0 %v5615, 112
      %v5635 = vpop.permute.xlu0 %5634
      %5636 = vrot.lane.b32.xlu0 %v5616, 112
      %v5637 = vpop.permute.xlu0 %5636
      %v5638 = vsel %vm866, %v5625, 0
      %v5640 = vsel %vm866, %v5627, 0
      %v5642 = vsel %vm866, %v5629, 0
      %v5644 = vsel %vm866, %v5631, 0
      %v5646 = vsel %vm866, %v5633, 0
      %v5648 = vsel %vm866, %v5635, 0
      %v5650 = vsel %vm866, %v5637, 0
      %5652 = vmatpush.xpose.msra.mxu0 0.0
      %5653 = vmatpush.xpose.msra.mxu0 0.0
      %5654 = vmatpush.xpose.msra.mxu0 0.0
      %5655 = vmatpush.xpose.msra.mxu0 0.0
      %5656 = vmatpush.xpose.msra.mxu0 0.0
      %5657 = vmatpush.xpose.msra.mxu0 0.0
      %5658 = vmatpush.xpose.msra.mxu0 0.0
      %5659 = vmatpush.xpose.msra.mxu0 0.0
      %5660 = vmatpush.xpose.msra.mxu0 0.0
      %5661 = vmatpush.xpose.msra.mxu0 %v5650
      %5662 = vmatpush.xpose.msra.mxu0 %v5648
      %5663 = vmatpush.xpose.msra.mxu0 %v5646
      %5664 = vmatpush.xpose.msra.mxu0 %v5644
      %5665 = vmatpush.xpose.msra.mxu0 %v5642
      %5666 = vmatpush.xpose.msra.mxu0 %v5640
      %5667 = vmatpush.xpose.msra.mxu0 %v5638
      %5668 = vmatmul.f32.gmra.mxu0 %v4834
      %v5669 = vpop.f32.mrf.mxu0
      %v5670 = vadd.f32 0.0, %v5669
      %5671 = vmatmul.f32.gmra.mxu0 %v4837
      %v5672 = vpop.f32.mrf.mxu0
      %v5673 = vadd.f32 0.0, %v5672
      %5674 = vmatmul.f32.gmra.mxu0 %v4840
      %v5675 = vpop.f32.mrf.mxu0
      %v5676 = vadd.f32 0.0, %v5675
      %5677 = vmatmul.f32.gmra.mxu0 %v4843
      %v5678 = vpop.f32.mrf.mxu0
      %v5679 = vadd.f32 0.0, %v5678
      %5680 = vmatmul.f32.gmra.mxu0 %v4846
      %v5681 = vpop.f32.mrf.mxu0
      %v5682 = vadd.f32 0.0, %v5681
      %5683 = vmatmul.f32.gmra.mxu0 %v4849
      %v5684 = vpop.f32.mrf.mxu0
      %v5685 = vadd.f32 0.0, %v5684
      %5686 = vmatmul.f32.gmra.mxu0 %v4852
      %v5687 = vpop.f32.mrf.mxu0
      %v5688 = vadd.f32 0.0, %v5687
      %5689 = vdwg.mxu0
      %v5690 = vmul.f32 %v5670, 0.5
      %v5691 = vmul.f32 %v5673, 0.5
      %v5692 = vmul.f32 %v5676, 0.5
      %v5693 = vmul.f32 %v5679, 0.5
      %v5694 = vmul.f32 %v5682, 0.5
      %v5695 = vmul.f32 %v5685, 0.5
      %v5696 = vmul.f32 %v5688, 0.5
      %v5697 = vsel %vm1019, %v5690, -inf
      %5698 = vmax.xlane.f32.xlu0 %v5697
      %v5699 = vpop.xlane.xlu0 %5698
      %v5700 = vsel %vm1019, %v5691, -inf
      %5701 = vmax.xlane.f32.xlu0 %v5700
      %v5702 = vpop.xlane.xlu0 %5701
      %v5703 = vsel %vm1019, %v5692, -inf
      %5704 = vmax.xlane.f32.xlu0 %v5703
      %v5705 = vpop.xlane.xlu0 %5704
      %v5706 = vsel %vm1019, %v5693, -inf
      %5707 = vmax.xlane.f32.xlu0 %v5706
      %v5708 = vpop.xlane.xlu0 %5707
      %v5709 = vsel %vm1019, %v5694, -inf
      %5710 = vmax.xlane.f32.xlu0 %v5709
      %v5711 = vpop.xlane.xlu0 %5710
      %v5712 = vsel %vm1019, %v5695, -inf
      %5713 = vmax.xlane.f32.xlu0 %v5712
      %v5714 = vpop.xlane.xlu0 %5713
      %v5715 = vsel %vm1038, %v5696, -inf
      %5716 = vmax.xlane.f32.xlu0 %v5715
      %v5717 = vpop.xlane.xlu0 %5716
      %v5718 = vsub.f32 %v5690, %v5699
      %v5719 = vsub.f32 %v5691, %v5702
      %v5720 = vsub.f32 %v5692, %v5705
      %v5721 = vsub.f32 %v5693, %v5708
      %v5722 = vsub.f32 %v5694, %v5711
      %v5723 = vsub.f32 %v5695, %v5714
      %v5724 = vsub.f32 %v5696, %v5717
      %v5725 = vmul.f32 %v5718, 1.442695
      %v5726 = vpow.pop %v5725
      %v5727 = vmul.f32 %v5719, 1.442695
      %v5728 = vpow.pop %v5727
      %v5729 = vmul.f32 %v5720, 1.442695
      %v5730 = vpow.pop %v5729
      %v5731 = vmul.f32 %v5721, 1.442695
      %v5732 = vpow.pop %v5731
      %v5733 = vmul.f32 %v5722, 1.442695
      %v5734 = vpow.pop %v5733
      %v5735 = vmul.f32 %v5723, 1.442695
      %v5736 = vpow.pop %v5735
      %v5737 = vmul.f32 %v5724, 1.442695
      %v5738 = vpow.pop %v5737
      %v5739 = vsel %vm1019, %v5726, 0.0
      %5740 = vadd.xlane.f32.xlu0 %v5739
      %v5741 = vpop.xlane.xlu0 %5740
      %v5742 = vsel %vm1019, %v5728, 0.0
      %5743 = vadd.xlane.f32.xlu0 %v5742
      %v5744 = vpop.xlane.xlu0 %5743
      %v5745 = vsel %vm1019, %v5730, 0.0
      %5746 = vadd.xlane.f32.xlu0 %v5745
      %v5747 = vpop.xlane.xlu0 %5746
      %v5748 = vsel %vm1019, %v5732, 0.0
      %5749 = vadd.xlane.f32.xlu0 %v5748
      %v5750 = vpop.xlane.xlu0 %5749
      %v5751 = vsel %vm1019, %v5734, 0.0
      %5752 = vadd.xlane.f32.xlu0 %v5751
      %v5753 = vpop.xlane.xlu0 %5752
      %v5754 = vsel %vm1019, %v5736, 0.0
      %5755 = vadd.xlane.f32.xlu0 %v5754
      %v5756 = vpop.xlane.xlu0 %5755
      %v5757 = vsel %vm1038, %v5738, 0.0
      %5758 = vadd.xlane.f32.xlu0 %v5757
      %v5759 = vpop.xlane.xlu0 %5758
      %v5760 = vrcp.pop %v5741
      %v5761 = vrcp.pop %v5744
      %v5762 = vrcp.pop %v5747
      %v5763 = vrcp.pop %v5750
      %v5764 = vrcp.pop %v5753
      %v5765 = vrcp.pop %v5756
      %v5766 = vrcp.pop %v5759
      %v5767 = vmul.f32 %v5726, %v5760
      %v5768 = vmul.f32 %v5728, %v5761
      %v5769 = vmul.f32 %v5730, %v5762
      %v5770 = vmul.f32 %v5732, %v5763
      %v5771 = vmul.f32 %v5734, %v5764
      %v5772 = vmul.f32 %v5736, %v5765
      %v5773 = vmul.f32 %v5738, %v5766
      %v5774 = vmul.f32 %v4787, %v1904
      %v5775 = vmul.f32 %v4789, %v1904
      %v5776 = vmul.f32 %v4792, %v1904
      %v5777 = vmul.f32 %v4794, %v1904
      %v5778 = vmul.f32 %v4797, %v1904
      %v5779 = vmul.f32 %v4799, %v1904
      %v5780 = vmul.f32 %v4802, %v1904
      %5788 = vrot.lane.b32.xlu0 %v5774, 96
      %v5789 = vpop.permute.xlu0 %5788
      %5790 = vrot.lane.b32.xlu0 %v5775, 96
      %v5791 = vpop.permute.xlu0 %5790
      %5792 = vrot.lane.b32.xlu0 %v5776, 96
      %v5793 = vpop.permute.xlu0 %5792
      %5794 = vrot.lane.b32.xlu0 %v5777, 96
      %v5795 = vpop.permute.xlu0 %5794
      %5796 = vrot.lane.b32.xlu0 %v5778, 96
      %v5797 = vpop.permute.xlu0 %5796
      %5798 = vrot.lane.b32.xlu0 %v5779, 96
      %v5799 = vpop.permute.xlu0 %5798
      %5800 = vrot.lane.b32.xlu0 %v5780, 96
      %v5801 = vpop.permute.xlu0 %5800
      %v5809 = vsel %vm1019, %v5767, 0
      %v5812 = vsel %vm1019, %v5768, 0
      %v5815 = vsel %vm1019, %v5769, 0
      %v5818 = vsel %vm1019, %v5770, 0
      %v5821 = vsel %vm1019, %v5771, 0
      %v5824 = vsel %vm1019, %v5772, 0
      %v5827 = vsel %vm1019, %v5773, 0
      %v5829 = vsel %vm794, %v5801, 0
      %5831 = vmatpush.msra.mxu0 0.0
      %5832 = vmatpush.msra.mxu0 0.0
      %5833 = vmatpush.msra.mxu0 0.0
      %5834 = vmatpush.msra.mxu0 0.0
      %5835 = vmatpush.msra.mxu0 0.0
      %5836 = vmatpush.msra.mxu0 0.0
      %5837 = vmatpush.msra.mxu0 0.0
      %5838 = vmatpush.msra.mxu0 0.0
      %5839 = vmatpush.msra.mxu0 0.0
      %5840 = vmatpush.msra.mxu0 %v5829
      %5841 = vmatpush.msra.mxu0 %v5799
      %5842 = vmatpush.msra.mxu0 %v5797
      %5843 = vmatpush.msra.mxu0 %v5795
      %5844 = vmatpush.msra.mxu0 %v5793
      %5845 = vmatpush.msra.mxu0 %v5791
      %5846 = vmatpush.msra.mxu0 %v5789
      %5847 = vmatmul.f32.gmra.mxu0 %v5809
      %v5848 = vpop.f32.mrf.mxu0
      %v5849 = vadd.f32 0.0, %v5848
      %5850 = vmatmul.f32.gmra.mxu0 %v5812
      %v5851 = vpop.f32.mrf.mxu0
      %v5852 = vadd.f32 0.0, %v5851
      %5853 = vmatmul.f32.gmra.mxu0 %v5815
      %v5854 = vpop.f32.mrf.mxu0
      %v5855 = vadd.f32 0.0, %v5854
      %5856 = vmatmul.f32.gmra.mxu0 %v5818
      %v5857 = vpop.f32.mrf.mxu0
      %v5858 = vadd.f32 0.0, %v5857
      %5859 = vmatmul.f32.gmra.mxu0 %v5821
      %v5860 = vpop.f32.mrf.mxu0
      %v5861 = vadd.f32 0.0, %v5860
      %5862 = vmatmul.f32.gmra.mxu0 %v5824
      %v5863 = vpop.f32.mrf.mxu0
      %v5864 = vadd.f32 0.0, %v5863
      %5865 = vmatmul.f32.gmra.mxu0 %v5827
      %v5866 = vpop.f32.mrf.mxu0
      %v5867 = vadd.f32 0.0, %v5866
      %5868 = vdwg.mxu0
      %v5869 = vadd.f32 %v5603, %v5849
      %v5870 = vadd.f32 %v5604, %v5852
      %v5871 = vadd.f32 %v5605, %v5855
      %v5872 = vadd.f32 %v5606, %v5858
      %v5873 = vadd.f32 %v5607, %v5861
      %v5874 = vadd.f32 %v5608, %v5864
      %v5875 = vadd.f32 %v5609, %v5867
      %s5876 = scalar_lea.vmem %s6, 8
      %v5877 = vld [vmem:[%s5876] sm:$0xf]
      %v5878 = vld [vmem:[%s5876 + $0x4] sm:$0xf]
      %s5879 = scalar_lea.vmem %s7, 1
      %v5880 = vld [vmem:[%s5879] sm:$0x1]
      %v5881 = vpack.c.bf16 %v5870, %v5869
      %v5882 = vpack.c.bf16 %v5872, %v5871
      %v5883 = vpack.c.bf16 %v5874, %v5873
      %v5884 = vpack.c.bf16 %v5875, %v5875
      %v5886 = vperm.slane %v5880, 0
      %v5890 = vunpack.c.l.b16 %v5877
      %v5891 = vunpack.c.l.b16 %v5878
      %v5892 = vpack.c.b16 %v5891, %v5890
      %v5895 = vsel %vm866, %v5881, 0
      %v5898 = vsel %vm866, %v5882, 0
      %v5901 = vsel %vm866, %v5883, 0
      %v5904 = vsel %vm866, %v5884, 0
      %5906 = vmatpush.bf16.msra.mxu0 0
      %5907 = vmatpush.bf16.msra.mxu0 0
      %5908 = vmatpush.bf16.msra.mxu0 0
      %5909 = vmatpush.bf16.msra.mxu0 0
      %5910 = vmatpush.bf16.msra.mxu0 0
      %5911 = vmatpush.bf16.msra.mxu0 0
      %5912 = vmatpush.bf16.msra.mxu0 0
      %5913 = vmatpush.bf16.msra.mxu0 %v5892
      %5914 = vmatmul.bf16.gmra.mxu0 %v5895
      %v5915 = vpop.f32.mrf.mxu0
      %v5916 = vadd.f32 %v5886, %v5915
      %v5917 = vpop.f32.mrf.mxu0
      %v5918 = vadd.f32 %v5886, %v5917
      %5919 = vmatmul.bf16.gmra.mxu0 %v5898
      %v5920 = vpop.f32.mrf.mxu0
      %v5921 = vadd.f32 %v5886, %v5920
      %v5922 = vpop.f32.mrf.mxu0
      %v5923 = vadd.f32 %v5886, %v5922
      %5924 = vmatmul.bf16.gmra.mxu0 %v5901
      %v5925 = vpop.f32.mrf.mxu0
      %v5926 = vadd.f32 %v5886, %v5925
      %v5927 = vpop.f32.mrf.mxu0
      %v5928 = vadd.f32 %v5886, %v5927
      %5929 = vmatmul.bf16.gmra.mxu0 %v5904
      %v5930 = vpop.f32.mrf.mxu0
      %v5931 = vadd.f32 %v5886, %v5930
      %v5932 = vpop.f32.mrf.mxu0
      %5933 = vdwg.mxu0
      %v5934 = vadd.f32 %v4740, %v5916
      %v5935 = vadd.f32 %v4741, %v5918
      %v5936 = vadd.f32 %v4742, %v5921
      %v5937 = vadd.f32 %v4743, %v5923
      %v5938 = vadd.f32 %v4744, %v5926
      %v5939 = vadd.f32 %v4745, %v5928
      %v5940 = vadd.f32 %v4746, %v5931
      %s5941 = scalar_lea.vmem %s8, 1
      %v5942 = vld [vmem:[%s5941] sm:$0x1]
      %s5943 = scalar_lea.vmem %s9, 1
      %v5944 = vld [vmem:[%s5943] sm:$0x1]
      %v5945 = vsel %vm866, %v5934, 0.0
      %5946 = vadd.xlane.f32.xlu0 %v5945
      %v5947 = vpop.xlane.xlu0 %5946
      %v5948 = vsel %vm866, %v5935, 0.0
      %5949 = vadd.xlane.f32.xlu0 %v5948
      %v5950 = vpop.xlane.xlu0 %5949
      %v5951 = vsel %vm866, %v5936, 0.0
      %5952 = vadd.xlane.f32.xlu0 %v5951
      %v5953 = vpop.xlane.xlu0 %5952
      %v5954 = vsel %vm866, %v5937, 0.0
      %5955 = vadd.xlane.f32.xlu0 %v5954
      %v5956 = vpop.xlane.xlu0 %5955
      %v5957 = vsel %vm866, %v5938, 0.0
      %5958 = vadd.xlane.f32.xlu0 %v5957
      %v5959 = vpop.xlane.xlu0 %5958
      %v5960 = vsel %vm866, %v5939, 0.0
      %5961 = vadd.xlane.f32.xlu0 %v5960
      %v5962 = vpop.xlane.xlu0 %5961
      %v5963 = vsel %vm2091, %v5940, 0.0
      %5964 = vadd.xlane.f32.xlu0 %v5963
      %v5965 = vpop.xlane.xlu0 %5964
      %v5966 = vmul.f32 %v5947, %v2101
      %v5967 = vmul.f32 %v5950, %v2101
      %v5968 = vmul.f32 %v5953, %v2101
      %v5969 = vmul.f32 %v5956, %v2101
      %v5970 = vmul.f32 %v5959, %v2101
      %v5971 = vmul.f32 %v5962, %v2101
      %v5972 = vmul.f32 %v5965, %v2101
      %v5973 = vsub.f32 %v5934, %v5966
      %v5974 = vsub.f32 %v5935, %v5967
      %v5975 = vsub.f32 %v5936, %v5968
      %v5976 = vsub.f32 %v5937, %v5969
      %v5977 = vsub.f32 %v5938, %v5970
      %v5978 = vsub.f32 %v5939, %v5971
      %v5979 = vsub.f32 %v5940, %v5972
      %v5980 = vmul.f32 %v5973, %v5973
      %v5981 = vmul.f32 %v5974, %v5974
      %v5982 = vmul.f32 %v5975, %v5975
      %v5983 = vmul.f32 %v5976, %v5976
      %v5984 = vmul.f32 %v5977, %v5977
      %v5985 = vmul.f32 %v5978, %v5978
      %v5986 = vmul.f32 %v5979, %v5979
      %v5987 = vsel %vm866, %v5980, 0.0
      %5988 = vadd.xlane.f32.xlu0 %v5987
      %v5989 = vpop.xlane.xlu0 %5988
      %v5990 = vsel %vm866, %v5981, 0.0
      %5991 = vadd.xlane.f32.xlu0 %v5990
      %v5992 = vpop.xlane.xlu0 %5991
      %v5993 = vsel %vm866, %v5982, 0.0
      %5994 = vadd.xlane.f32.xlu0 %v5993
      %v5995 = vpop.xlane.xlu0 %5994
      %v5996 = vsel %vm866, %v5983, 0.0
      %5997 = vadd.xlane.f32.xlu0 %v5996
      %v5998 = vpop.xlane.xlu0 %5997
      %v5999 = vsel %vm866, %v5984, 0.0
      %6000 = vadd.xlane.f32.xlu0 %v5999
      %v6001 = vpop.xlane.xlu0 %6000
      %v6002 = vsel %vm866, %v5985, 0.0
      %6003 = vadd.xlane.f32.xlu0 %v6002
      %v6004 = vpop.xlane.xlu0 %6003
      %v6005 = vsel %vm2091, %v5986, 0.0
      %6006 = vadd.xlane.f32.xlu0 %v6005
      %v6007 = vpop.xlane.xlu0 %6006
      %v6008 = vmul.f32 %v5989, %v2101
      %v6009 = vmul.f32 %v5992, %v2101
      %v6010 = vmul.f32 %v5995, %v2101
      %v6011 = vmul.f32 %v5998, %v2101
      %v6012 = vmul.f32 %v6001, %v2101
      %v6013 = vmul.f32 %v6004, %v2101
      %v6014 = vmul.f32 %v6007, %v2101
      %v6015 = vadd.f32 %v6008, 1e-05
      %v6016 = vadd.f32 %v6009, 1e-05
      %v6017 = vadd.f32 %v6010, 1e-05
      %v6018 = vadd.f32 %v6011, 1e-05
      %v6019 = vadd.f32 %v6012, 1e-05
      %v6020 = vadd.f32 %v6013, 1e-05
      %v6021 = vadd.f32 %v6014, 1e-05
      %v6022 = vrsqrt.pop %v6015
      %v6023 = vmul.f32 %v6022, %v6015
      %v6024 = vmul.f32 %v6023, %v6022
      %v6025 = vmul.f32 0.5, %v6024
      %v6026 = vsub.f32 1.5, %v6025
      %v6027 = vmul.f32 %v6022, %v6026
      %vm6028 = vweird.f32 %v6015
      %vm6029 = vweird.f32 %v6022
      %vm6030 = vmor %vm6028, %vm6029
      %v6031 = vsel %vm6030, %v6022, %v6027
      %v6032 = vrsqrt.pop %v6016
      %v6033 = vmul.f32 %v6032, %v6016
      %v6034 = vmul.f32 %v6033, %v6032
      %v6035 = vmul.f32 0.5, %v6034
      %v6036 = vsub.f32 1.5, %v6035
      %v6037 = vmul.f32 %v6032, %v6036
      %vm6038 = vweird.f32 %v6016
      %vm6039 = vweird.f32 %v6032
      %vm6040 = vmor %vm6038, %vm6039
      %v6041 = vsel %vm6040, %v6032, %v6037
      %v6042 = vrsqrt.pop %v6017
      %v6043 = vmul.f32 %v6042, %v6017
      %v6044 = vmul.f32 %v6043, %v6042
      %v6045 = vmul.f32 0.5, %v6044
      %v6046 = vsub.f32 1.5, %v6045
      %v6047 = vmul.f32 %v6042, %v6046
      %vm6048 = vweird.f32 %v6017
      %vm6049 = vweird.f32 %v6042
      %vm6050 = vmor %vm6048, %vm6049
      %v6051 = vsel %vm6050, %v6042, %v6047
      %v6052 = vrsqrt.pop %v6018
      %v6053 = vmul.f32 %v6052, %v6018
      %v6054 = vmul.f32 %v6053, %v6052
      %v6055 = vmul.f32 0.5, %v6054
      %v6056 = vsub.f32 1.5, %v6055
      %v6057 = vmul.f32 %v6052, %v6056
      %vm6058 = vweird.f32 %v6018
      %vm6059 = vweird.f32 %v6052
      %vm6060 = vmor %vm6058, %vm6059
      %v6061 = vsel %vm6060, %v6052, %v6057
      %v6062 = vrsqrt.pop %v6019
      %v6063 = vmul.f32 %v6062, %v6019
      %v6064 = vmul.f32 %v6063, %v6062
      %v6065 = vmul.f32 0.5, %v6064
      %v6066 = vsub.f32 1.5, %v6065
      %v6067 = vmul.f32 %v6062, %v6066
      %vm6068 = vweird.f32 %v6019
      %vm6069 = vweird.f32 %v6062
      %vm6070 = vmor %vm6068, %vm6069
      %v6071 = vsel %vm6070, %v6062, %v6067
      %v6072 = vrsqrt.pop %v6020
      %v6073 = vmul.f32 %v6072, %v6020
      %v6074 = vmul.f32 %v6073, %v6072
      %v6075 = vmul.f32 0.5, %v6074
      %v6076 = vsub.f32 1.5, %v6075
      %v6077 = vmul.f32 %v6072, %v6076
      %vm6078 = vweird.f32 %v6020
      %vm6079 = vweird.f32 %v6072
      %vm6080 = vmor %vm6078, %vm6079
      %v6081 = vsel %vm6080, %v6072, %v6077
      %v6082 = vrsqrt.pop %v6021
      %v6083 = vmul.f32 %v6082, %v6021
      %v6084 = vmul.f32 %v6083, %v6082
      %v6085 = vmul.f32 0.5, %v6084
      %v6086 = vsub.f32 1.5, %v6085
      %v6087 = vmul.f32 %v6082, %v6086
      %vm6088 = vweird.f32 %v6021
      %vm6089 = vweird.f32 %v6082
      %vm6090 = vmor %vm6088, %vm6089
      %v6091 = vsel %vm6090, %v6082, %v6087
      %v6092 = vmul.f32 %v5973, %v6031
      %v6093 = vmul.f32 %v5974, %v6041
      %v6094 = vmul.f32 %v5975, %v6051
      %v6095 = vmul.f32 %v5976, %v6061
      %v6096 = vmul.f32 %v5977, %v6071
      %v6097 = vmul.f32 %v5978, %v6081
      %v6098 = vmul.f32 %v5979, %v6091
      %v6100 = vperm.slane %v5942, 0
      %v6102 = vmul.f32 %v6092, %v6100
      %v6103 = vmul.f32 %v6093, %v6100
      %v6104 = vmul.f32 %v6094, %v6100
      %v6105 = vmul.f32 %v6095, %v6100
      %v6106 = vmul.f32 %v6096, %v6100
      %v6107 = vmul.f32 %v6097, %v6100
      %v6108 = vmul.f32 %v6098, %v6100
      %v6110 = vperm.slane %v5944, 0
      %v6112 = vadd.f32 %v6102, %v6110
      %v6113 = vadd.f32 %v6103, %v6110
      %v6114 = vadd.f32 %v6104, %v6110
      %v6115 = vadd.f32 %v6105, %v6110
      %v6116 = vadd.f32 %v6106, %v6110
      %v6117 = vadd.f32 %v6107, %v6110
      %v6118 = vadd.f32 %v6108, %v6110
      %v6119 = vpack.c.bf16 %v6113, %v6112
      %v6120 = vpack.c.bf16 %v6115, %v6114
      %v6121 = vpack.c.bf16 %v6117, %v6116
      %v6122 = vpack.c.bf16 %v6118, %v6118
      %s6123 = scalar_lea.vmem %s10, 128
      %v6124 = vld [vmem:[%s6123] sm:$0xff]
      %v6125 = vld [vmem:[%s6123 + $0x40] sm:$0xff]
      %s6126 = scalar_lea.vmem %s11, 16
      %v6127 = vld [vmem:[%s6126] sm:$0x3]
      %v6129 = vperm.slane %v6127, 0
      %v6130 = vperm.slane %v6127, 1
      %v6135 = vunpack.c.l.b16 %v6124
      %v6136 = vunpack.c.h.b16 %v6124
      %v6137 = vunpack.c.l.b16 %v6125
      %v6138 = vunpack.c.h.b16 %v6125
      %v6139 = vpack.c.b16 %v6137, %v6135
      %v6140 = vpack.c.b16 %v6138, %v6136
      %v6144 = vsel %vm866, %v6119, 0
      %v6147 = vsel %vm866, %v6120, 0
      %v6150 = vsel %vm866, %v6121, 0
      %v6153 = vsel %vm866, %v6122, 0
      %6155 = vmatpush.bf16.msra.mxu0 0
      %6156 = vmatpush.bf16.msra.mxu0 0
      %6157 = vmatpush.bf16.msra.mxu0 0
      %6158 = vmatpush.bf16.msra.mxu0 0
      %6159 = vmatpush.bf16.msra.mxu0 0
      %6160 = vmatpush.bf16.msra.mxu0 0
      %6161 = vmatpush.bf16.msra.mxu0 0
      %6162 = vmatpush.bf16.msra.mxu0 %v6139
      %6163 = vmatmul.bf16.gmra.mxu0 %v6144
      %v6164 = vpop.f32.mrf.mxu0
      %v6165 = vadd.f32 %v6129, %v6164
      %v6166 = vpop.f32.mrf.mxu0
      %v6167 = vadd.f32 %v6129, %v6166
      %6168 = vmatmul.bf16.gmra.mxu0 %v6147
      %v6169 = vpop.f32.mrf.mxu0
      %v6170 = vadd.f32 %v6129, %v6169
      %v6171 = vpop.f32.mrf.mxu0
      %v6172 = vadd.f32 %v6129, %v6171
      %6173 = vmatmul.bf16.gmra.mxu0 %v6150
      %v6174 = vpop.f32.mrf.mxu0
      %v6175 = vadd.f32 %v6129, %v6174
      %v6176 = vpop.f32.mrf.mxu0
      %v6177 = vadd.f32 %v6129, %v6176
      %6178 = vmatmul.bf16.gmra.mxu0 %v6153
      %v6179 = vpop.f32.mrf.mxu0
      %v6180 = vadd.f32 %v6129, %v6179
      %v6181 = vpop.f32.mrf.mxu0
      %6182 = vdwg.mxu0
      %6183 = vmatpush.bf16.msra.mxu0 0
      %6184 = vmatpush.bf16.msra.mxu0 0
      %6185 = vmatpush.bf16.msra.mxu0 0
      %6186 = vmatpush.bf16.msra.mxu0 0
      %6187 = vmatpush.bf16.msra.mxu0 0
      %6188 = vmatpush.bf16.msra.mxu0 0
      %6189 = vmatpush.bf16.msra.mxu0 0
      %6190 = vmatpush.bf16.msra.mxu0 %v6140
      %6191 = vmatmul.bf16.gmra.mxu0 %v6144
      %v6192 = vpop.f32.mrf.mxu0
      %v6193 = vadd.f32 %v6130, %v6192
      %v6194 = vpop.f32.mrf.mxu0
      %v6195 = vadd.f32 %v6130, %v6194
      %6196 = vmatmul.bf16.gmra.mxu0 %v6147
      %v6197 = vpop.f32.mrf.mxu0
      %v6198 = vadd.f32 %v6130, %v6197
      %v6199 = vpop.f32.mrf.mxu0
      %v6200 = vadd.f32 %v6130, %v6199
      %6201 = vmatmul.bf16.gmra.mxu0 %v6150
      %v6202 = vpop.f32.mrf.mxu0
      %v6203 = vadd.f32 %v6130, %v6202
      %v6204 = vpop.f32.mrf.mxu0
      %v6205 = vadd.f32 %v6130, %v6204
      %6206 = vmatmul.bf16.gmra.mxu0 %v6153
      %v6207 = vpop.f32.mrf.mxu0
      %v6208 = vadd.f32 %v6130, %v6207
      %v6209 = vpop.f32.mrf.mxu0
      %6210 = vdwg.mxu0
      %v6211 = vmax.f32 %v6165, 0.0
      %v6212 = vmax.f32 %v6193, 0.0
      %v6213 = vmax.f32 %v6167, 0.0
      %v6214 = vmax.f32 %v6195, 0.0
      %v6215 = vmax.f32 %v6170, 0.0
      %v6216 = vmax.f32 %v6198, 0.0
      %v6217 = vmax.f32 %v6172, 0.0
      %v6218 = vmax.f32 %v6200, 0.0
      %v6219 = vmax.f32 %v6175, 0.0
      %v6220 = vmax.f32 %v6203, 0.0
      %v6221 = vmax.f32 %v6177, 0.0
      %v6222 = vmax.f32 %v6205, 0.0
      %v6223 = vmax.f32 %v6180, 0.0
      %v6224 = vmax.f32 %v6208, 0.0
      %v6225 = vpack.c.bf16 %v6213, %v6211
      %v6226 = vpack.c.bf16 %v6214, %v6212
      %v6227 = vpack.c.bf16 %v6217, %v6215
      %v6228 = vpack.c.bf16 %v6218, %v6216
      %v6229 = vpack.c.bf16 %v6221, %v6219
      %v6230 = vpack.c.bf16 %v6222, %v6220
      %v6231 = vpack.c.bf16 %v6223, %v6223
      %v6232 = vpack.c.bf16 %v6224, %v6224
      %s6233 = scalar_lea.vmem %s12, 1024
      %v6234 = vld [vmem:[%s6233] sm:$0xf]
      %v6235 = vld [vmem:[%s6233 + $0x4] sm:$0xf]
      %v6236 = vld [vmem:[%s6233 + $0x8] sm:$0xf]
      %v6237 = vld [vmem:[%s6233 + $0xc] sm:$0xf]
      %v6238 = vld [vmem:[%s6233 + $0x10] sm:$0xf]
      %v6239 = vld [vmem:[%s6233 + $0x14] sm:$0xf]
      %v6240 = vld [vmem:[%s6233 + $0x18] sm:$0xf]
      %v6241 = vld [vmem:[%s6233 + $0x1c] sm:$0xf]
      %v6242 = vld [vmem:[%s6233 + $0x20] sm:$0xf]
      %v6243 = vld [vmem:[%s6233 + $0x24] sm:$0xf]
      %v6244 = vld [vmem:[%s6233 + $0x28] sm:$0xf]
      %v6245 = vld [vmem:[%s6233 + $0x2c] sm:$0xf]
      %v6246 = vld [vmem:[%s6233 + $0x30] sm:$0xf]
      %v6247 = vld [vmem:[%s6233 + $0x34] sm:$0xf]
      %v6248 = vld [vmem:[%s6233 + $0x38] sm:$0xf]
      %v6249 = vld [vmem:[%s6233 + $0x3c] sm:$0xf]
      %v6250 = vld [vmem:[%s6233 + $0x40] sm:$0xf]
      %v6251 = vld [vmem:[%s6233 + $0x44] sm:$0xf]
      %v6252 = vld [vmem:[%s6233 + $0x48] sm:$0xf]
      %v6253 = vld [vmem:[%s6233 + $0x4c] sm:$0xf]
      %v6254 = vld [vmem:[%s6233 + $0x50] sm:$0xf]
      %v6255 = vld [vmem:[%s6233 + $0x54] sm:$0xf]
      %v6256 = vld [vmem:[%s6233 + $0x58] sm:$0xf]
      %v6257 = vld [vmem:[%s6233 + $0x5c] sm:$0xf]
      %v6258 = vld [vmem:[%s6233 + $0x60] sm:$0xf]
      %v6259 = vld [vmem:[%s6233 + $0x64] sm:$0xf]
      %v6260 = vld [vmem:[%s6233 + $0x68] sm:$0xf]
      %v6261 = vld [vmem:[%s6233 + $0x6c] sm:$0xf]
      %v6262 = vld [vmem:[%s6233 + $0x70] sm:$0xf]
      %v6263 = vld [vmem:[%s6233 + $0x74] sm:$0xf]
      %v6264 = vld [vmem:[%s6233 + $0x78] sm:$0xf]
      %v6265 = vld [vmem:[%s6233 + $0x7c] sm:$0xf]
      %v6266 = vld [vmem:[%s6123 + $0x8] sm:$0xff]
      %v6267 = vld [vmem:[%s6123 + $0x48] sm:$0xff]
      %v6268 = vld [vmem:[%s6126 + $0x2] sm:$0x3]
      %v6270 = vperm.slane %v6268, 0
      %v6271 = vperm.slane %v6268, 1
      %v6276 = vunpack.c.l.b16 %v6266
      %v6277 = vunpack.c.h.b16 %v6266
      %v6278 = vunpack.c.l.b16 %v6267
      %v6279 = vunpack.c.h.b16 %v6267
      %v6280 = vpack.c.b16 %v6278, %v6276
      %v6281 = vpack.c.b16 %v6279, %v6277
      %6284 = vmatpush.bf16.msra.mxu0 0
      %6285 = vmatpush.bf16.msra.mxu0 0
      %6286 = vmatpush.bf16.msra.mxu0 0
      %6287 = vmatpush.bf16.msra.mxu0 0
      %6288 = vmatpush.bf16.msra.mxu0 0
      %6289 = vmatpush.bf16.msra.mxu0 0
      %6290 = vmatpush.bf16.msra.mxu0 0
      %6291 = vmatpush.bf16.msra.mxu0 %v6280
      %6292 = vmatmul.bf16.gmra.mxu0 %v6144
      %v6293 = vpop.f32.mrf.mxu0
      %v6294 = vadd.f32 %v6270, %v6293
      %v6295 = vpop.f32.mrf.mxu0
      %v6296 = vadd.f32 %v6270, %v6295
      %6297 = vmatmul.bf16.gmra.mxu0 %v6147
      %v6298 = vpop.f32.mrf.mxu0
      %v6299 = vadd.f32 %v6270, %v6298
      %v6300 = vpop.f32.mrf.mxu0
      %v6301 = vadd.f32 %v6270, %v6300
      %6302 = vmatmul.bf16.gmra.mxu0 %v6150
      %v6303 = vpop.f32.mrf.mxu0
      %v6304 = vadd.f32 %v6270, %v6303
      %v6305 = vpop.f32.mrf.mxu0
      %v6306 = vadd.f32 %v6270, %v6305
      %6307 = vmatmul.bf16.gmra.mxu0 %v6153
      %v6308 = vpop.f32.mrf.mxu0
      %v6309 = vadd.f32 %v6270, %v6308
      %v6310 = vpop.f32.mrf.mxu0
      %6311 = vdwg.mxu0
      %6312 = vmatpush.bf16.msra.mxu0 0
      %6313 = vmatpush.bf16.msra.mxu0 0
      %6314 = vmatpush.bf16.msra.mxu0 0
      %6315 = vmatpush.bf16.msra.mxu0 0
      %6316 = vmatpush.bf16.msra.mxu0 0
      %6317 = vmatpush.bf16.msra.mxu0 0
      %6318 = vmatpush.bf16.msra.mxu0 0
      %6319 = vmatpush.bf16.msra.mxu0 %v6281
      %6320 = vmatmul.bf16.gmra.mxu0 %v6144
      %v6321 = vpop.f32.mrf.mxu0
      %v6322 = vadd.f32 %v6271, %v6321
      %v6323 = vpop.f32.mrf.mxu0
      %v6324 = vadd.f32 %v6271, %v6323
      %6325 = vmatmul.bf16.gmra.mxu0 %v6147
      %v6326 = vpop.f32.mrf.mxu0
      %v6327 = vadd.f32 %v6271, %v6326
      %v6328 = vpop.f32.mrf.mxu0
      %v6329 = vadd.f32 %v6271, %v6328
      %6330 = vmatmul.bf16.gmra.mxu0 %v6150
      %v6331 = vpop.f32.mrf.mxu0
      %v6332 = vadd.f32 %v6271, %v6331
      %v6333 = vpop.f32.mrf.mxu0
      %v6334 = vadd.f32 %v6271, %v6333
      %6335 = vmatmul.bf16.gmra.mxu0 %v6153
      %v6336 = vpop.f32.mrf.mxu0
      %v6337 = vadd.f32 %v6271, %v6336
      %v6338 = vpop.f32.mrf.mxu0
      %6339 = vdwg.mxu0
      %v6340 = vmax.f32 %v6294, 0.0
      %v6341 = vmax.f32 %v6322, 0.0
      %v6342 = vmax.f32 %v6296, 0.0
      %v6343 = vmax.f32 %v6324, 0.0
      %v6344 = vmax.f32 %v6299, 0.0
      %v6345 = vmax.f32 %v6327, 0.0
      %v6346 = vmax.f32 %v6301, 0.0
      %v6347 = vmax.f32 %v6329, 0.0
      %v6348 = vmax.f32 %v6304, 0.0
      %v6349 = vmax.f32 %v6332, 0.0
      %v6350 = vmax.f32 %v6306, 0.0
      %v6351 = vmax.f32 %v6334, 0.0
      %v6352 = vmax.f32 %v6309, 0.0
      %v6353 = vmax.f32 %v6337, 0.0
      %v6354 = vpack.c.bf16 %v6342, %v6340
      %v6355 = vpack.c.bf16 %v6343, %v6341
      %v6356 = vpack.c.bf16 %v6346, %v6344
      %v6357 = vpack.c.bf16 %v6347, %v6345
      %v6358 = vpack.c.bf16 %v6350, %v6348
      %v6359 = vpack.c.bf16 %v6351, %v6349
      %v6360 = vpack.c.bf16 %v6352, %v6352
      %v6361 = vpack.c.bf16 %v6353, %v6353
      %v6362 = vld [vmem:[%s6233 + $0x80] sm:$0xf]
      %v6363 = vld [vmem:[%s6233 + $0x84] sm:$0xf]
      %v6364 = vld [vmem:[%s6233 + $0x88] sm:$0xf]
      %v6365 = vld [vmem:[%s6233 + $0x8c] sm:$0xf]
      %v6366 = vld [vmem:[%s6233 + $0x90] sm:$0xf]
      %v6367 = vld [vmem:[%s6233 + $0x94] sm:$0xf]
      %v6368 = vld [vmem:[%s6233 + $0x98] sm:$0xf]
      %v6369 = vld [vmem:[%s6233 + $0x9c] sm:$0xf]
      %v6370 = vld [vmem:[%s6233 + $0xa0] sm:$0xf]
      %v6371 = vld [vmem:[%s6233 + $0xa4] sm:$0xf]
      %v6372 = vld [vmem:[%s6233 + $0xa8] sm:$0xf]
      %v6373 = vld [vmem:[%s6233 + $0xac] sm:$0xf]
      %v6374 = vld [vmem:[%s6233 + $0xb0] sm:$0xf]
      %v6375 = vld [vmem:[%s6233 + $0xb4] sm:$0xf]
      %v6376 = vld [vmem:[%s6233 + $0xb8] sm:$0xf]
      %v6377 = vld [vmem:[%s6233 + $0xbc] sm:$0xf]
      %v6378 = vld [vmem:[%s6233 + $0xc0] sm:$0xf]
      %v6379 = vld [vmem:[%s6233 + $0xc4] sm:$0xf]
      %v6380 = vld [vmem:[%s6233 + $0xc8] sm:$0xf]
      %v6381 = vld [vmem:[%s6233 + $0xcc] sm:$0xf]
      %v6382 = vld [vmem:[%s6233 + $0xd0] sm:$0xf]
      %v6383 = vld [vmem:[%s6233 + $0xd4] sm:$0xf]
      %v6384 = vld [vmem:[%s6233 + $0xd8] sm:$0xf]
      %v6385 = vld [vmem:[%s6233 + $0xdc] sm:$0xf]
      %v6386 = vld [vmem:[%s6233 + $0xe0] sm:$0xf]
      %v6387 = vld [vmem:[%s6233 + $0xe4] sm:$0xf]
      %v6388 = vld [vmem:[%s6233 + $0xe8] sm:$0xf]
      %v6389 = vld [vmem:[%s6233 + $0xec] sm:$0xf]
      %v6390 = vld [vmem:[%s6233 + $0xf0] sm:$0xf]
      %v6391 = vld [vmem:[%s6233 + $0xf4] sm:$0xf]
      %v6392 = vld [vmem:[%s6233 + $0xf8] sm:$0xf]
      %v6393 = vld [vmem:[%s6233 + $0xfc] sm:$0xf]
      %v6426 = vunpack.c.l.b16 %v6362
      %v6427 = vunpack.c.l.b16 %v6363
      %v6428 = vunpack.c.l.b16 %v6364
      %v6429 = vunpack.c.l.b16 %v6365
      %v6430 = vunpack.c.l.b16 %v6366
      %v6431 = vunpack.c.l.b16 %v6367
      %v6432 = vunpack.c.l.b16 %v6368
      %v6433 = vunpack.c.l.b16 %v6369
      %v6434 = vunpack.c.l.b16 %v6370
      %v6435 = vunpack.c.l.b16 %v6371
      %v6436 = vunpack.c.l.b16 %v6372
      %v6437 = vunpack.c.l.b16 %v6373
      %v6438 = vunpack.c.l.b16 %v6374
      %v6439 = vunpack.c.l.b16 %v6375
      %v6440 = vunpack.c.l.b16 %v6376
      %v6441 = vunpack.c.l.b16 %v6377
      %v6442 = vunpack.c.l.b16 %v6378
      %v6443 = vunpack.c.l.b16 %v6379
      %v6444 = vunpack.c.l.b16 %v6380
      %v6445 = vunpack.c.l.b16 %v6381
      %v6446 = vunpack.c.l.b16 %v6382
      %v6447 = vunpack.c.l.b16 %v6383
      %v6448 = vunpack.c.l.b16 %v6384
      %v6449 = vunpack.c.l.b16 %v6385
      %v6450 = vunpack.c.l.b16 %v6386
      %v6451 = vunpack.c.l.b16 %v6387
      %v6452 = vunpack.c.l.b16 %v6388
      %v6453 = vunpack.c.l.b16 %v6389
      %v6454 = vunpack.c.l.b16 %v6390
      %v6455 = vunpack.c.l.b16 %v6391
      %v6456 = vunpack.c.l.b16 %v6392
      %v6457 = vunpack.c.l.b16 %v6393
      %v6458 = vpack.c.b16 %v6427, %v6426
      %v6459 = vpack.c.b16 %v6429, %v6428
      %v6460 = vpack.c.b16 %v6431, %v6430
      %v6461 = vpack.c.b16 %v6433, %v6432
      %v6462 = vpack.c.b16 %v6435, %v6434
      %v6463 = vpack.c.b16 %v6437, %v6436
      %v6464 = vpack.c.b16 %v6439, %v6438
      %v6465 = vpack.c.b16 %v6441, %v6440
      %v6466 = vpack.c.b16 %v6443, %v6442
      %v6467 = vpack.c.b16 %v6445, %v6444
      %v6468 = vpack.c.b16 %v6447, %v6446
      %v6469 = vpack.c.b16 %v6449, %v6448
      %v6470 = vpack.c.b16 %v6451, %v6450
      %v6471 = vpack.c.b16 %v6453, %v6452
      %v6472 = vpack.c.b16 %v6455, %v6454
      %v6473 = vpack.c.b16 %v6457, %v6456
      %6490 = vmatpush.bf16.msra.mxu0 %v6465
      %6491 = vmatpush.bf16.msra.mxu0 %v6464
      %6492 = vmatpush.bf16.msra.mxu0 %v6463
      %6493 = vmatpush.bf16.msra.mxu0 %v6462
      %6494 = vmatpush.bf16.msra.mxu0 %v6461
      %6495 = vmatpush.bf16.msra.mxu0 %v6460
      %6496 = vmatpush.bf16.msra.mxu0 %v6459
      %6497 = vmatpush.bf16.msra.mxu0 %v6458
      %6498 = vmatmul.bf16.gmra.mxu0 %v6354
      %v6499 = vpop.f32.mrf.mxu0
      %v6500 = vadd.f32 0.0, %v6499
      %v6501 = vpop.f32.mrf.mxu0
      %v6502 = vadd.f32 0.0, %v6501
      %6503 = vmatmul.bf16.gmra.mxu0 %v6356
      %v6504 = vpop.f32.mrf.mxu0
      %v6505 = vadd.f32 0.0, %v6504
      %v6506 = vpop.f32.mrf.mxu0
      %v6507 = vadd.f32 0.0, %v6506
      %6508 = vmatmul.bf16.gmra.mxu0 %v6358
      %v6509 = vpop.f32.mrf.mxu0
      %v6510 = vadd.f32 0.0, %v6509
      %v6511 = vpop.f32.mrf.mxu0
      %v6512 = vadd.f32 0.0, %v6511
      %6513 = vmatmul.bf16.gmra.mxu0 %v6360
      %v6514 = vpop.f32.mrf.mxu0
      %v6515 = vadd.f32 0.0, %v6514
      %v6516 = vpop.f32.mrf.mxu0
      %6517 = vdwg.mxu0
      %6518 = vmatpush.bf16.msra.mxu0 %v6473
      %6519 = vmatpush.bf16.msra.mxu0 %v6472
      %6520 = vmatpush.bf16.msra.mxu0 %v6471
      %6521 = vmatpush.bf16.msra.mxu0 %v6470
      %6522 = vmatpush.bf16.msra.mxu0 %v6469
      %6523 = vmatpush.bf16.msra.mxu0 %v6468
      %6524 = vmatpush.bf16.msra.mxu0 %v6467
      %6525 = vmatpush.bf16.msra.mxu0 %v6466
      %6526 = vmatmul.bf16.gmra.mxu0 %v6355
      %v6527 = vpop.f32.mrf.mxu0
      %v6528 = vadd.f32 %v6500, %v6527
      %v6529 = vpop.f32.mrf.mxu0
      %v6530 = vadd.f32 %v6502, %v6529
      %6531 = vmatmul.bf16.gmra.mxu0 %v6357
      %v6532 = vpop.f32.mrf.mxu0
      %v6533 = vadd.f32 %v6505, %v6532
      %v6534 = vpop.f32.mrf.mxu0
      %v6535 = vadd.f32 %v6507, %v6534
      %6536 = vmatmul.bf16.gmra.mxu0 %v6359
      %v6537 = vpop.f32.mrf.mxu0
      %v6538 = vadd.f32 %v6510, %v6537
      %v6539 = vpop.f32.mrf.mxu0
      %v6540 = vadd.f32 %v6512, %v6539
      %6541 = vmatmul.bf16.gmra.mxu0 %v6361
      %v6542 = vpop.f32.mrf.mxu0
      %v6543 = vadd.f32 %v6515, %v6542
      %v6544 = vpop.f32.mrf.mxu0
      %6545 = vdwg.mxu0
      %v6578 = vunpack.c.l.b16 %v6234
      %v6579 = vunpack.c.l.b16 %v6235
      %v6580 = vunpack.c.l.b16 %v6236
      %v6581 = vunpack.c.l.b16 %v6237
      %v6582 = vunpack.c.l.b16 %v6238
      %v6583 = vunpack.c.l.b16 %v6239
      %v6584 = vunpack.c.l.b16 %v6240
      %v6585 = vunpack.c.l.b16 %v6241
      %v6586 = vunpack.c.l.b16 %v6242
      %v6587 = vunpack.c.l.b16 %v6243
      %v6588 = vunpack.c.l.b16 %v6244
      %v6589 = vunpack.c.l.b16 %v6245
      %v6590 = vunpack.c.l.b16 %v6246
      %v6591 = vunpack.c.l.b16 %v6247
      %v6592 = vunpack.c.l.b16 %v6248
      %v6593 = vunpack.c.l.b16 %v6249
      %v6594 = vunpack.c.l.b16 %v6250
      %v6595 = vunpack.c.l.b16 %v6251
      %v6596 = vunpack.c.l.b16 %v6252
      %v6597 = vunpack.c.l.b16 %v6253
      %v6598 = vunpack.c.l.b16 %v6254
      %v6599 = vunpack.c.l.b16 %v6255
      %v6600 = vunpack.c.l.b16 %v6256
      %v6601 = vunpack.c.l.b16 %v6257
      %v6602 = vunpack.c.l.b16 %v6258
      %v6603 = vunpack.c.l.b16 %v6259
      %v6604 = vunpack.c.l.b16 %v6260
      %v6605 = vunpack.c.l.b16 %v6261
      %v6606 = vunpack.c.l.b16 %v6262
      %v6607 = vunpack.c.l.b16 %v6263
      %v6608 = vunpack.c.l.b16 %v6264
      %v6609 = vunpack.c.l.b16 %v6265
      %v6610 = vpack.c.b16 %v6579, %v6578
      %v6611 = vpack.c.b16 %v6581, %v6580
      %v6612 = vpack.c.b16 %v6583, %v6582
      %v6613 = vpack.c.b16 %v6585, %v6584
      %v6614 = vpack.c.b16 %v6587, %v6586
      %v6615 = vpack.c.b16 %v6589, %v6588
      %v6616 = vpack.c.b16 %v6591, %v6590
      %v6617 = vpack.c.b16 %v6593, %v6592
      %v6618 = vpack.c.b16 %v6595, %v6594
      %v6619 = vpack.c.b16 %v6597, %v6596
      %v6620 = vpack.c.b16 %v6599, %v6598
      %v6621 = vpack.c.b16 %v6601, %v6600
      %v6622 = vpack.c.b16 %v6603, %v6602
      %v6623 = vpack.c.b16 %v6605, %v6604
      %v6624 = vpack.c.b16 %v6607, %v6606
      %v6625 = vpack.c.b16 %v6609, %v6608
      %6642 = vmatpush.bf16.msra.mxu0 %v6617
      %6643 = vmatpush.bf16.msra.mxu0 %v6616
      %6644 = vmatpush.bf16.msra.mxu0 %v6615
      %6645 = vmatpush.bf16.msra.mxu0 %v6614
      %6646 = vmatpush.bf16.msra.mxu0 %v6613
      %6647 = vmatpush.bf16.msra.mxu0 %v6612
      %6648 = vmatpush.bf16.msra.mxu0 %v6611
      %6649 = vmatpush.bf16.msra.mxu0 %v6610
      %6650 = vmatmul.bf16.gmra.mxu0 %v6225
      %v6651 = vpop.f32.mrf.mxu0
      %v6652 = vadd.f32 %v6528, %v6651
      %v6653 = vpop.f32.mrf.mxu0
      %v6654 = vadd.f32 %v6530, %v6653
      %6655 = vmatmul.bf16.gmra.mxu0 %v6227
      %v6656 = vpop.f32.mrf.mxu0
      %v6657 = vadd.f32 %v6533, %v6656
      %v6658 = vpop.f32.mrf.mxu0
      %v6659 = vadd.f32 %v6535, %v6658
      %6660 = vmatmul.bf16.gmra.mxu0 %v6229
      %v6661 = vpop.f32.mrf.mxu0
      %v6662 = vadd.f32 %v6538, %v6661
      %v6663 = vpop.f32.mrf.mxu0
      %v6664 = vadd.f32 %v6540, %v6663
      %6665 = vmatmul.bf16.gmra.mxu0 %v6231
      %v6666 = vpop.f32.mrf.mxu0
      %v6667 = vadd.f32 %v6543, %v6666
      %v6668 = vpop.f32.mrf.mxu0
      %6669 = vdwg.mxu0
      %6670 = vmatpush.bf16.msra.mxu0 %v6625
      %6671 = vmatpush.bf16.msra.mxu0 %v6624
      %6672 = vmatpush.bf16.msra.mxu0 %v6623
      %6673 = vmatpush.bf16.msra.mxu0 %v6622
      %6674 = vmatpush.bf16.msra.mxu0 %v6621
      %6675 = vmatpush.bf16.msra.mxu0 %v6620
      %6676 = vmatpush.bf16.msra.mxu0 %v6619
      %6677 = vmatpush.bf16.msra.mxu0 %v6618
      %6678 = vmatmul.bf16.gmra.mxu0 %v6226
      %v6679 = vpop.f32.mrf.mxu0
      %v6680 = vadd.f32 %v6652, %v6679
      %v6681 = vpop.f32.mrf.mxu0
      %v6682 = vadd.f32 %v6654, %v6681
      %6683 = vmatmul.bf16.gmra.mxu0 %v6228
      %v6684 = vpop.f32.mrf.mxu0
      %v6685 = vadd.f32 %v6657, %v6684
      %v6686 = vpop.f32.mrf.mxu0
      %v6687 = vadd.f32 %v6659, %v6686
      %6688 = vmatmul.bf16.gmra.mxu0 %v6230
      %v6689 = vpop.f32.mrf.mxu0
      %v6690 = vadd.f32 %v6662, %v6689
      %v6691 = vpop.f32.mrf.mxu0
      %v6692 = vadd.f32 %v6664, %v6691
      %6693 = vmatmul.bf16.gmra.mxu0 %v6232
      %v6694 = vpop.f32.mrf.mxu0
      %v6695 = vadd.f32 %v6667, %v6694
      %v6696 = vpop.f32.mrf.mxu0
      %6697 = vdwg.mxu0
      %v6698 = vld [vmem:[%s6123 + $0x10] sm:$0xff]
      %v6699 = vld [vmem:[%s6123 + $0x50] sm:$0xff]
      %v6700 = vld [vmem:[%s6126 + $0x4] sm:$0x3]
      %v6702 = vperm.slane %v6700, 0
      %v6703 = vperm.slane %v6700, 1
      %v6708 = vunpack.c.l.b16 %v6698
      %v6709 = vunpack.c.h.b16 %v6698
      %v6710 = vunpack.c.l.b16 %v6699
      %v6711 = vunpack.c.h.b16 %v6699
      %v6712 = vpack.c.b16 %v6710, %v6708
      %v6713 = vpack.c.b16 %v6711, %v6709
      %6716 = vmatpush.bf16.msra.mxu0 0
      %6717 = vmatpush.bf16.msra.mxu0 0
      %6718 = vmatpush.bf16.msra.mxu0 0
      %6719 = vmatpush.bf16.msra.mxu0 0
      %6720 = vmatpush.bf16.msra.mxu0 0
      %6721 = vmatpush.bf16.msra.mxu0 0
      %6722 = vmatpush.bf16.msra.mxu0 0
      %6723 = vmatpush.bf16.msra.mxu0 %v6712
      %6724 = vmatmul.bf16.gmra.mxu0 %v6144
      %v6725 = vpop.f32.mrf.mxu0
      %v6726 = vadd.f32 %v6702, %v6725
      %v6727 = vpop.f32.mrf.mxu0
      %v6728 = vadd.f32 %v6702, %v6727
      %6729 = vmatmul.bf16.gmra.mxu0 %v6147
      %v6730 = vpop.f32.mrf.mxu0
      %v6731 = vadd.f32 %v6702, %v6730
      %v6732 = vpop.f32.mrf.mxu0
      %v6733 = vadd.f32 %v6702, %v6732
      %6734 = vmatmul.bf16.gmra.mxu0 %v6150
      %v6735 = vpop.f32.mrf.mxu0
      %v6736 = vadd.f32 %v6702, %v6735
      %v6737 = vpop.f32.mrf.mxu0
      %v6738 = vadd.f32 %v6702, %v6737
      %6739 = vmatmul.bf16.gmra.mxu0 %v6153
      %v6740 = vpop.f32.mrf.mxu0
      %v6741 = vadd.f32 %v6702, %v6740
      %v6742 = vpop.f32.mrf.mxu0
      %6743 = vdwg.mxu0
      %6744 = vmatpush.bf16.msra.mxu0 0
      %6745 = vmatpush.bf16.msra.mxu0 0
      %6746 = vmatpush.bf16.msra.mxu0 0
      %6747 = vmatpush.bf16.msra.mxu0 0
      %6748 = vmatpush.bf16.msra.mxu0 0
      %6749 = vmatpush.bf16.msra.mxu0 0
      %6750 = vmatpush.bf16.msra.mxu0 0
      %6751 = vmatpush.bf16.msra.mxu0 %v6713
      %6752 = vmatmul.bf16.gmra.mxu0 %v6144
      %v6753 = vpop.f32.mrf.mxu0
      %v6754 = vadd.f32 %v6703, %v6753
      %v6755 = vpop.f32.mrf.mxu0
      %v6756 = vadd.f32 %v6703, %v6755
      %6757 = vmatmul.bf16.gmra.mxu0 %v6147
      %v6758 = vpop.f32.mrf.mxu0
      %v6759 = vadd.f32 %v6703, %v6758
      %v6760 = vpop.f32.mrf.mxu0
      %v6761 = vadd.f32 %v6703, %v6760
      %6762 = vmatmul.bf16.gmra.mxu0 %v6150
      %v6763 = vpop.f32.mrf.mxu0
      %v6764 = vadd.f32 %v6703, %v6763
      %v6765 = vpop.f32.mrf.mxu0
      %v6766 = vadd.f32 %v6703, %v6765
      %6767 = vmatmul.bf16.gmra.mxu0 %v6153
      %v6768 = vpop.f32.mrf.mxu0
      %v6769 = vadd.f32 %v6703, %v6768
      %v6770 = vpop.f32.mrf.mxu0
      %6771 = vdwg.mxu0
      %v6772 = vmax.f32 %v6726, 0.0
      %v6773 = vmax.f32 %v6754, 0.0
      %v6774 = vmax.f32 %v6728, 0.0
      %v6775 = vmax.f32 %v6756, 0.0
      %v6776 = vmax.f32 %v6731, 0.0
      %v6777 = vmax.f32 %v6759, 0.0
      %v6778 = vmax.f32 %v6733, 0.0
      %v6779 = vmax.f32 %v6761, 0.0
      %v6780 = vmax.f32 %v6736, 0.0
      %v6781 = vmax.f32 %v6764, 0.0
      %v6782 = vmax.f32 %v6738, 0.0
      %v6783 = vmax.f32 %v6766, 0.0
      %v6784 = vmax.f32 %v6741, 0.0
      %v6785 = vmax.f32 %v6769, 0.0
      %v6786 = vpack.c.bf16 %v6774, %v6772
      %v6787 = vpack.c.bf16 %v6775, %v6773
      %v6788 = vpack.c.bf16 %v6778, %v6776
      %v6789 = vpack.c.bf16 %v6779, %v6777
      %v6790 = vpack.c.bf16 %v6782, %v6780
      %v6791 = vpack.c.bf16 %v6783, %v6781
      %v6792 = vpack.c.bf16 %v6784, %v6784
      %v6793 = vpack.c.bf16 %v6785, %v6785
      %v6794 = vld [vmem:[%s6233 + $0x100] sm:$0xf]
      %v6795 = vld [vmem:[%s6233 + $0x104] sm:$0xf]
      %v6796 = vld [vmem:[%s6233 + $0x108] sm:$0xf]
      %v6797 = vld [vmem:[%s6233 + $0x10c] sm:$0xf]
      %v6798 = vld [vmem:[%s6233 + $0x110] sm:$0xf]
      %v6799 = vld [vmem:[%s6233 + $0x114] sm:$0xf]
      %v6800 = vld [vmem:[%s6233 + $0x118] sm:$0xf]
      %v6801 = vld [vmem:[%s6233 + $0x11c] sm:$0xf]
      %v6802 = vld [vmem:[%s6233 + $0x120] sm:$0xf]
      %v6803 = vld [vmem:[%s6233 + $0x124] sm:$0xf]
      %v6804 = vld [vmem:[%s6233 + $0x128] sm:$0xf]
      %v6805 = vld [vmem:[%s6233 + $0x12c] sm:$0xf]
      %v6806 = vld [vmem:[%s6233 + $0x130] sm:$0xf]
      %v6807 = vld [vmem:[%s6233 + $0x134] sm:$0xf]
      %v6808 = vld [vmem:[%s6233 + $0x138] sm:$0xf]
      %v6809 = vld [vmem:[%s6233 + $0x13c] sm:$0xf]
      %v6810 = vld [vmem:[%s6233 + $0x140] sm:$0xf]
      %v6811 = vld [vmem:[%s6233 + $0x144] sm:$0xf]
      %v6812 = vld [vmem:[%s6233 + $0x148] sm:$0xf]
      %v6813 = vld [vmem:[%s6233 + $0x14c] sm:$0xf]
      %v6814 = vld [vmem:[%s6233 + $0x150] sm:$0xf]
      %v6815 = vld [vmem:[%s6233 + $0x154] sm:$0xf]
      %v6816 = vld [vmem:[%s6233 + $0x158] sm:$0xf]
      %v6817 = vld [vmem:[%s6233 + $0x15c] sm:$0xf]
      %v6818 = vld [vmem:[%s6233 + $0x160] sm:$0xf]
      %v6819 = vld [vmem:[%s6233 + $0x164] sm:$0xf]
      %v6820 = vld [vmem:[%s6233 + $0x168] sm:$0xf]
      %v6821 = vld [vmem:[%s6233 + $0x16c] sm:$0xf]
      %v6822 = vld [vmem:[%s6233 + $0x170] sm:$0xf]
      %v6823 = vld [vmem:[%s6233 + $0x174] sm:$0xf]
      %v6824 = vld [vmem:[%s6233 + $0x178] sm:$0xf]
      %v6825 = vld [vmem:[%s6233 + $0x17c] sm:$0xf]
      %v6858 = vunpack.c.l.b16 %v6794
      %v6859 = vunpack.c.l.b16 %v6795
      %v6860 = vunpack.c.l.b16 %v6796
      %v6861 = vunpack.c.l.b16 %v6797
      %v6862 = vunpack.c.l.b16 %v6798
      %v6863 = vunpack.c.l.b16 %v6799
      %v6864 = vunpack.c.l.b16 %v6800
      %v6865 = vunpack.c.l.b16 %v6801
      %v6866 = vunpack.c.l.b16 %v6802
      %v6867 = vunpack.c.l.b16 %v6803
      %v6868 = vunpack.c.l.b16 %v6804
      %v6869 = vunpack.c.l.b16 %v6805
      %v6870 = vunpack.c.l.b16 %v6806
      %v6871 = vunpack.c.l.b16 %v6807
      %v6872 = vunpack.c.l.b16 %v6808
      %v6873 = vunpack.c.l.b16 %v6809
      %v6874 = vunpack.c.l.b16 %v6810
      %v6875 = vunpack.c.l.b16 %v6811
      %v6876 = vunpack.c.l.b16 %v6812
      %v6877 = vunpack.c.l.b16 %v6813
      %v6878 = vunpack.c.l.b16 %v6814
      %v6879 = vunpack.c.l.b16 %v6815
      %v6880 = vunpack.c.l.b16 %v6816
      %v6881 = vunpack.c.l.b16 %v6817
      %v6882 = vunpack.c.l.b16 %v6818
      %v6883 = vunpack.c.l.b16 %v6819
      %v6884 = vunpack.c.l.b16 %v6820
      %v6885 = vunpack.c.l.b16 %v6821
      %v6886 = vunpack.c.l.b16 %v6822
      %v6887 = vunpack.c.l.b16 %v6823
      %v6888 = vunpack.c.l.b16 %v6824
      %v6889 = vunpack.c.l.b16 %v6825
      %v6890 = vpack.c.b16 %v6859, %v6858
      %v6891 = vpack.c.b16 %v6861, %v6860
      %v6892 = vpack.c.b16 %v6863, %v6862
      %v6893 = vpack.c.b16 %v6865, %v6864
      %v6894 = vpack.c.b16 %v6867, %v6866
      %v6895 = vpack.c.b16 %v6869, %v6868
      %v6896 = vpack.c.b16 %v6871, %v6870
      %v6897 = vpack.c.b16 %v6873, %v6872
      %v6898 = vpack.c.b16 %v6875, %v6874
      %v6899 = vpack.c.b16 %v6877, %v6876
      %v6900 = vpack.c.b16 %v6879, %v6878
      %v6901 = vpack.c.b16 %v6881, %v6880
      %v6902 = vpack.c.b16 %v6883, %v6882
      %v6903 = vpack.c.b16 %v6885, %v6884
      %v6904 = vpack.c.b16 %v6887, %v6886
      %v6905 = vpack.c.b16 %v6889, %v6888
      %6922 = vmatpush.bf16.msra.mxu0 %v6897
      %6923 = vmatpush.bf16.msra.mxu0 %v6896
      %6924 = vmatpush.bf16.msra.mxu0 %v6895
      %6925 = vmatpush.bf16.msra.mxu0 %v6894
      %6926 = vmatpush.bf16.msra.mxu0 %v6893
      %6927 = vmatpush.bf16.msra.mxu0 %v6892
      %6928 = vmatpush.bf16.msra.mxu0 %v6891
      %6929 = vmatpush.bf16.msra.mxu0 %v6890
      %6930 = vmatmul.bf16.gmra.mxu0 %v6786
      %v6931 = vpop.f32.mrf.mxu0
      %v6932 = vadd.f32 0.0, %v6931
      %v6933 = vpop.f32.mrf.mxu0
      %v6934 = vadd.f32 0.0, %v6933
      %6935 = vmatmul.bf16.gmra.mxu0 %v6788
      %v6936 = vpop.f32.mrf.mxu0
      %v6937 = vadd.f32 0.0, %v6936
      %v6938 = vpop.f32.mrf.mxu0
      %v6939 = vadd.f32 0.0, %v6938
      %6940 = vmatmul.bf16.gmra.mxu0 %v6790
      %v6941 = vpop.f32.mrf.mxu0
      %v6942 = vadd.f32 0.0, %v6941
      %v6943 = vpop.f32.mrf.mxu0
      %v6944 = vadd.f32 0.0, %v6943
      %6945 = vmatmul.bf16.gmra.mxu0 %v6792
      %v6946 = vpop.f32.mrf.mxu0
      %v6947 = vadd.f32 0.0, %v6946
      %v6948 = vpop.f32.mrf.mxu0
      %6949 = vdwg.mxu0
      %6950 = vmatpush.bf16.msra.mxu0 %v6905
      %6951 = vmatpush.bf16.msra.mxu0 %v6904
      %6952 = vmatpush.bf16.msra.mxu0 %v6903
      %6953 = vmatpush.bf16.msra.mxu0 %v6902
      %6954 = vmatpush.bf16.msra.mxu0 %v6901
      %6955 = vmatpush.bf16.msra.mxu0 %v6900
      %6956 = vmatpush.bf16.msra.mxu0 %v6899
      %6957 = vmatpush.bf16.msra.mxu0 %v6898
      %6958 = vmatmul.bf16.gmra.mxu0 %v6787
      %v6959 = vpop.f32.mrf.mxu0
      %v6960 = vadd.f32 %v6932, %v6959
      %v6961 = vpop.f32.mrf.mxu0
      %v6962 = vadd.f32 %v6934, %v6961
      %6963 = vmatmul.bf16.gmra.mxu0 %v6789
      %v6964 = vpop.f32.mrf.mxu0
      %v6965 = vadd.f32 %v6937, %v6964
      %v6966 = vpop.f32.mrf.mxu0
      %v6967 = vadd.f32 %v6939, %v6966
      %6968 = vmatmul.bf16.gmra.mxu0 %v6791
      %v6969 = vpop.f32.mrf.mxu0
      %v6970 = vadd.f32 %v6942, %v6969
      %v6971 = vpop.f32.mrf.mxu0
      %v6972 = vadd.f32 %v6944, %v6971
      %6973 = vmatmul.bf16.gmra.mxu0 %v6793
      %v6974 = vpop.f32.mrf.mxu0
      %v6975 = vadd.f32 %v6947, %v6974
      %v6976 = vpop.f32.mrf.mxu0
      %6977 = vdwg.mxu0
      %v6978 = vadd.f32 %v6680, %v6960
      %v6979 = vadd.f32 %v6682, %v6962
      %v6980 = vadd.f32 %v6685, %v6965
      %v6981 = vadd.f32 %v6687, %v6967
      %v6982 = vadd.f32 %v6690, %v6970
      %v6983 = vadd.f32 %v6692, %v6972
      %v6984 = vadd.f32 %v6695, %v6975
      %v6985 = vld [vmem:[%s6123 + $0x18] sm:$0xff]
      %v6986 = vld [vmem:[%s6123 + $0x58] sm:$0xff]
      %v6987 = vld [vmem:[%s6126 + $0x6] sm:$0x3]
      %v6989 = vperm.slane %v6987, 0
      %v6990 = vperm.slane %v6987, 1
      %v6995 = vunpack.c.l.b16 %v6985
      %v6996 = vunpack.c.h.b16 %v6985
      %v6997 = vunpack.c.l.b16 %v6986
      %v6998 = vunpack.c.h.b16 %v6986
      %v6999 = vpack.c.b16 %v6997, %v6995
      %v7000 = vpack.c.b16 %v6998, %v6996
      %7003 = vmatpush.bf16.msra.mxu0 0
      %7004 = vmatpush.bf16.msra.mxu0 0
      %7005 = vmatpush.bf16.msra.mxu0 0
      %7006 = vmatpush.bf16.msra.mxu0 0
      %7007 = vmatpush.bf16.msra.mxu0 0
      %7008 = vmatpush.bf16.msra.mxu0 0
      %7009 = vmatpush.bf16.msra.mxu0 0
      %7010 = vmatpush.bf16.msra.mxu0 %v6999
      %7011 = vmatmul.bf16.gmra.mxu0 %v6144
      %v7012 = vpop.f32.mrf.mxu0
      %v7013 = vadd.f32 %v6989, %v7012
      %v7014 = vpop.f32.mrf.mxu0
      %v7015 = vadd.f32 %v6989, %v7014
      %7016 = vmatmul.bf16.gmra.mxu0 %v6147
      %v7017 = vpop.f32.mrf.mxu0
      %v7018 = vadd.f32 %v6989, %v7017
      %v7019 = vpop.f32.mrf.mxu0
      %v7020 = vadd.f32 %v6989, %v7019
      %7021 = vmatmul.bf16.gmra.mxu0 %v6150
      %v7022 = vpop.f32.mrf.mxu0
      %v7023 = vadd.f32 %v6989, %v7022
      %v7024 = vpop.f32.mrf.mxu0
      %v7025 = vadd.f32 %v6989, %v7024
      %7026 = vmatmul.bf16.gmra.mxu0 %v6153
      %v7027 = vpop.f32.mrf.mxu0
      %v7028 = vadd.f32 %v6989, %v7027
      %v7029 = vpop.f32.mrf.mxu0
      %7030 = vdwg.mxu0
      %7031 = vmatpush.bf16.msra.mxu0 0
      %7032 = vmatpush.bf16.msra.mxu0 0
      %7033 = vmatpush.bf16.msra.mxu0 0
      %7034 = vmatpush.bf16.msra.mxu0 0
      %7035 = vmatpush.bf16.msra.mxu0 0
      %7036 = vmatpush.bf16.msra.mxu0 0
      %7037 = vmatpush.bf16.msra.mxu0 0
      %7038 = vmatpush.bf16.msra.mxu0 %v7000
      %7039 = vmatmul.bf16.gmra.mxu0 %v6144
      %v7040 = vpop.f32.mrf.mxu0
      %v7041 = vadd.f32 %v6990, %v7040
      %v7042 = vpop.f32.mrf.mxu0
      %v7043 = vadd.f32 %v6990, %v7042
      %7044 = vmatmul.bf16.gmra.mxu0 %v6147
      %v7045 = vpop.f32.mrf.mxu0
      %v7046 = vadd.f32 %v6990, %v7045
      %v7047 = vpop.f32.mrf.mxu0
      %v7048 = vadd.f32 %v6990, %v7047
      %7049 = vmatmul.bf16.gmra.mxu0 %v6150
      %v7050 = vpop.f32.mrf.mxu0
      %v7051 = vadd.f32 %v6990, %v7050
      %v7052 = vpop.f32.mrf.mxu0
      %v7053 = vadd.f32 %v6990, %v7052
      %7054 = vmatmul.bf16.gmra.mxu0 %v6153
      %v7055 = vpop.f32.mrf.mxu0
      %v7056 = vadd.f32 %v6990, %v7055
      %v7057 = vpop.f32.mrf.mxu0
      %7058 = vdwg.mxu0
      %v7059 = vmax.f32 %v7013, 0.0
      %v7060 = vmax.f32 %v7041, 0.0
      %v7061 = vmax.f32 %v7015, 0.0
      %v7062 = vmax.f32 %v7043, 0.0
      %v7063 = vmax.f32 %v7018, 0.0
      %v7064 = vmax.f32 %v7046, 0.0
      %v7065 = vmax.f32 %v7020, 0.0
      %v7066 = vmax.f32 %v7048, 0.0
      %v7067 = vmax.f32 %v7023, 0.0
      %v7068 = vmax.f32 %v7051, 0.0
      %v7069 = vmax.f32 %v7025, 0.0
      %v7070 = vmax.f32 %v7053, 0.0
      %v7071 = vmax.f32 %v7028, 0.0
      %v7072 = vmax.f32 %v7056, 0.0
      %v7073 = vpack.c.bf16 %v7061, %v7059
      %v7074 = vpack.c.bf16 %v7062, %v7060
      %v7075 = vpack.c.bf16 %v7065, %v7063
      %v7076 = vpack.c.bf16 %v7066, %v7064
      %v7077 = vpack.c.bf16 %v7069, %v7067
      %v7078 = vpack.c.bf16 %v7070, %v7068
      %v7079 = vpack.c.bf16 %v7071, %v7071
      %v7080 = vpack.c.bf16 %v7072, %v7072
      %v7081 = vld [vmem:[%s6233 + $0x180] sm:$0xf]
      %v7082 = vld [vmem:[%s6233 + $0x184] sm:$0xf]
      %v7083 = vld [vmem:[%s6233 + $0x188] sm:$0xf]
      %v7084 = vld [vmem:[%s6233 + $0x18c] sm:$0xf]
      %v7085 = vld [vmem:[%s6233 + $0x190] sm:$0xf]
      %v7086 = vld [vmem:[%s6233 + $0x194] sm:$0xf]
      %v7087 = vld [vmem:[%s6233 + $0x198] sm:$0xf]
      %v7088 = vld [vmem:[%s6233 + $0x19c] sm:$0xf]
      %v7089 = vld [vmem:[%s6233 + $0x1a0] sm:$0xf]
      %v7090 = vld [vmem:[%s6233 + $0x1a4] sm:$0xf]
      %v7091 = vld [vmem:[%s6233 + $0x1a8] sm:$0xf]
      %v7092 = vld [vmem:[%s6233 + $0x1ac] sm:$0xf]
      %v7093 = vld [vmem:[%s6233 + $0x1b0] sm:$0xf]
      %v7094 = vld [vmem:[%s6233 + $0x1b4] sm:$0xf]
      %v7095 = vld [vmem:[%s6233 + $0x1b8] sm:$0xf]
      %v7096 = vld [vmem:[%s6233 + $0x1bc] sm:$0xf]
      %v7097 = vld [vmem:[%s6233 + $0x1c0] sm:$0xf]
      %v7098 = vld [vmem:[%s6233 + $0x1c4] sm:$0xf]
      %v7099 = vld [vmem:[%s6233 + $0x1c8] sm:$0xf]
      %v7100 = vld [vmem:[%s6233 + $0x1cc] sm:$0xf]
      %v7101 = vld [vmem:[%s6233 + $0x1d0] sm:$0xf]
      %v7102 = vld [vmem:[%s6233 + $0x1d4] sm:$0xf]
      %v7103 = vld [vmem:[%s6233 + $0x1d8] sm:$0xf]
      %v7104 = vld [vmem:[%s6233 + $0x1dc] sm:$0xf]
      %v7105 = vld [vmem:[%s6233 + $0x1e0] sm:$0xf]
      %v7106 = vld [vmem:[%s6233 + $0x1e4] sm:$0xf]
      %v7107 = vld [vmem:[%s6233 + $0x1e8] sm:$0xf]
      %v7108 = vld [vmem:[%s6233 + $0x1ec] sm:$0xf]
      %v7109 = vld [vmem:[%s6233 + $0x1f0] sm:$0xf]
      %v7110 = vld [vmem:[%s6233 + $0x1f4] sm:$0xf]
      %v7111 = vld [vmem:[%s6233 + $0x1f8] sm:$0xf]
      %v7112 = vld [vmem:[%s6233 + $0x1fc] sm:$0xf]
      %v7145 = vunpack.c.l.b16 %v7081
      %v7146 = vunpack.c.l.b16 %v7082
      %v7147 = vunpack.c.l.b16 %v7083
      %v7148 = vunpack.c.l.b16 %v7084
      %v7149 = vunpack.c.l.b16 %v7085
      %v7150 = vunpack.c.l.b16 %v7086
      %v7151 = vunpack.c.l.b16 %v7087
      %v7152 = vunpack.c.l.b16 %v7088
      %v7153 = vunpack.c.l.b16 %v7089
      %v7154 = vunpack.c.l.b16 %v7090
      %v7155 = vunpack.c.l.b16 %v7091
      %v7156 = vunpack.c.l.b16 %v7092
      %v7157 = vunpack.c.l.b16 %v7093
      %v7158 = vunpack.c.l.b16 %v7094
      %v7159 = vunpack.c.l.b16 %v7095
      %v7160 = vunpack.c.l.b16 %v7096
      %v7161 = vunpack.c.l.b16 %v7097
      %v7162 = vunpack.c.l.b16 %v7098
      %v7163 = vunpack.c.l.b16 %v7099
      %v7164 = vunpack.c.l.b16 %v7100
      %v7165 = vunpack.c.l.b16 %v7101
      %v7166 = vunpack.c.l.b16 %v7102
      %v7167 = vunpack.c.l.b16 %v7103
      %v7168 = vunpack.c.l.b16 %v7104
      %v7169 = vunpack.c.l.b16 %v7105
      %v7170 = vunpack.c.l.b16 %v7106
      %v7171 = vunpack.c.l.b16 %v7107
      %v7172 = vunpack.c.l.b16 %v7108
      %v7173 = vunpack.c.l.b16 %v7109
      %v7174 = vunpack.c.l.b16 %v7110
      %v7175 = vunpack.c.l.b16 %v7111
      %v7176 = vunpack.c.l.b16 %v7112
      %v7177 = vpack.c.b16 %v7146, %v7145
      %v7178 = vpack.c.b16 %v7148, %v7147
      %v7179 = vpack.c.b16 %v7150, %v7149
      %v7180 = vpack.c.b16 %v7152, %v7151
      %v7181 = vpack.c.b16 %v7154, %v7153
      %v7182 = vpack.c.b16 %v7156, %v7155
      %v7183 = vpack.c.b16 %v7158, %v7157
      %v7184 = vpack.c.b16 %v7160, %v7159
      %v7185 = vpack.c.b16 %v7162, %v7161
      %v7186 = vpack.c.b16 %v7164, %v7163
      %v7187 = vpack.c.b16 %v7166, %v7165
      %v7188 = vpack.c.b16 %v7168, %v7167
      %v7189 = vpack.c.b16 %v7170, %v7169
      %v7190 = vpack.c.b16 %v7172, %v7171
      %v7191 = vpack.c.b16 %v7174, %v7173
      %v7192 = vpack.c.b16 %v7176, %v7175
      %7209 = vmatpush.bf16.msra.mxu0 %v7184
      %7210 = vmatpush.bf16.msra.mxu0 %v7183
      %7211 = vmatpush.bf16.msra.mxu0 %v7182
      %7212 = vmatpush.bf16.msra.mxu0 %v7181
      %7213 = vmatpush.bf16.msra.mxu0 %v7180
      %7214 = vmatpush.bf16.msra.mxu0 %v7179
      %7215 = vmatpush.bf16.msra.mxu0 %v7178
      %7216 = vmatpush.bf16.msra.mxu0 %v7177
      %7217 = vmatmul.bf16.gmra.mxu0 %v7073
      %v7218 = vpop.f32.mrf.mxu0
      %v7219 = vadd.f32 0.0, %v7218
      %v7220 = vpop.f32.mrf.mxu0
      %v7221 = vadd.f32 0.0, %v7220
      %7222 = vmatmul.bf16.gmra.mxu0 %v7075
      %v7223 = vpop.f32.mrf.mxu0
      %v7224 = vadd.f32 0.0, %v7223
      %v7225 = vpop.f32.mrf.mxu0
      %v7226 = vadd.f32 0.0, %v7225
      %7227 = vmatmul.bf16.gmra.mxu0 %v7077
      %v7228 = vpop.f32.mrf.mxu0
      %v7229 = vadd.f32 0.0, %v7228
      %v7230 = vpop.f32.mrf.mxu0
      %v7231 = vadd.f32 0.0, %v7230
      %7232 = vmatmul.bf16.gmra.mxu0 %v7079
      %v7233 = vpop.f32.mrf.mxu0
      %v7234 = vadd.f32 0.0, %v7233
      %v7235 = vpop.f32.mrf.mxu0
      %7236 = vdwg.mxu0
      %7237 = vmatpush.bf16.msra.mxu0 %v7192
      %7238 = vmatpush.bf16.msra.mxu0 %v7191
      %7239 = vmatpush.bf16.msra.mxu0 %v7190
      %7240 = vmatpush.bf16.msra.mxu0 %v7189
      %7241 = vmatpush.bf16.msra.mxu0 %v7188
      %7242 = vmatpush.bf16.msra.mxu0 %v7187
      %7243 = vmatpush.bf16.msra.mxu0 %v7186
      %7244 = vmatpush.bf16.msra.mxu0 %v7185
      %7245 = vmatmul.bf16.gmra.mxu0 %v7074
      %v7246 = vpop.f32.mrf.mxu0
      %v7247 = vadd.f32 %v7219, %v7246
      %v7248 = vpop.f32.mrf.mxu0
      %v7249 = vadd.f32 %v7221, %v7248
      %7250 = vmatmul.bf16.gmra.mxu0 %v7076
      %v7251 = vpop.f32.mrf.mxu0
      %v7252 = vadd.f32 %v7224, %v7251
      %v7253 = vpop.f32.mrf.mxu0
      %v7254 = vadd.f32 %v7226, %v7253
      %7255 = vmatmul.bf16.gmra.mxu0 %v7078
      %v7256 = vpop.f32.mrf.mxu0
      %v7257 = vadd.f32 %v7229, %v7256
      %v7258 = vpop.f32.mrf.mxu0
      %v7259 = vadd.f32 %v7231, %v7258
      %7260 = vmatmul.bf16.gmra.mxu0 %v7080
      %v7261 = vpop.f32.mrf.mxu0
      %v7262 = vadd.f32 %v7234, %v7261
      %v7263 = vpop.f32.mrf.mxu0
      %7264 = vdwg.mxu0
      %v7265 = vadd.f32 %v6978, %v7247
      %v7266 = vadd.f32 %v6979, %v7249
      %v7267 = vadd.f32 %v6980, %v7252
      %v7268 = vadd.f32 %v6981, %v7254
      %v7269 = vadd.f32 %v6982, %v7257
      %v7270 = vadd.f32 %v6983, %v7259
      %v7271 = vadd.f32 %v6984, %v7262
      %v7272 = vld [vmem:[%s6123 + $0x20] sm:$0xff]
      %v7273 = vld [vmem:[%s6123 + $0x60] sm:$0xff]
      %v7274 = vld [vmem:[%s6126 + $0x8] sm:$0x3]
      %v7276 = vperm.slane %v7274, 0
      %v7277 = vperm.slane %v7274, 1
      %v7282 = vunpack.c.l.b16 %v7272
      %v7283 = vunpack.c.h.b16 %v7272
      %v7284 = vunpack.c.l.b16 %v7273
      %v7285 = vunpack.c.h.b16 %v7273
      %v7286 = vpack.c.b16 %v7284, %v7282
      %v7287 = vpack.c.b16 %v7285, %v7283
      %7290 = vmatpush.bf16.msra.mxu0 0
      %7291 = vmatpush.bf16.msra.mxu0 0
      %7292 = vmatpush.bf16.msra.mxu0 0
      %7293 = vmatpush.bf16.msra.mxu0 0
      %7294 = vmatpush.bf16.msra.mxu0 0
      %7295 = vmatpush.bf16.msra.mxu0 0
      %7296 = vmatpush.bf16.msra.mxu0 0
      %7297 = vmatpush.bf16.msra.mxu0 %v7286
      %7298 = vmatmul.bf16.gmra.mxu0 %v6144
      %v7299 = vpop.f32.mrf.mxu0
      %v7300 = vadd.f32 %v7276, %v7299
      %v7301 = vpop.f32.mrf.mxu0
      %v7302 = vadd.f32 %v7276, %v7301
      %7303 = vmatmul.bf16.gmra.mxu0 %v6147
      %v7304 = vpop.f32.mrf.mxu0
      %v7305 = vadd.f32 %v7276, %v7304
      %v7306 = vpop.f32.mrf.mxu0
      %v7307 = vadd.f32 %v7276, %v7306
      %7308 = vmatmul.bf16.gmra.mxu0 %v6150
      %v7309 = vpop.f32.mrf.mxu0
      %v7310 = vadd.f32 %v7276, %v7309
      %v7311 = vpop.f32.mrf.mxu0
      %v7312 = vadd.f32 %v7276, %v7311
      %7313 = vmatmul.bf16.gmra.mxu0 %v6153
      %v7314 = vpop.f32.mrf.mxu0
      %v7315 = vadd.f32 %v7276, %v7314
      %v7316 = vpop.f32.mrf.mxu0
      %7317 = vdwg.mxu0
      %7318 = vmatpush.bf16.msra.mxu0 0
      %7319 = vmatpush.bf16.msra.mxu0 0
      %7320 = vmatpush.bf16.msra.mxu0 0
      %7321 = vmatpush.bf16.msra.mxu0 0
      %7322 = vmatpush.bf16.msra.mxu0 0
      %7323 = vmatpush.bf16.msra.mxu0 0
      %7324 = vmatpush.bf16.msra.mxu0 0
      %7325 = vmatpush.bf16.msra.mxu0 %v7287
      %7326 = vmatmul.bf16.gmra.mxu0 %v6144
      %v7327 = vpop.f32.mrf.mxu0
      %v7328 = vadd.f32 %v7277, %v7327
      %v7329 = vpop.f32.mrf.mxu0
      %v7330 = vadd.f32 %v7277, %v7329
      %7331 = vmatmul.bf16.gmra.mxu0 %v6147
      %v7332 = vpop.f32.mrf.mxu0
      %v7333 = vadd.f32 %v7277, %v7332
      %v7334 = vpop.f32.mrf.mxu0
      %v7335 = vadd.f32 %v7277, %v7334
      %7336 = vmatmul.bf16.gmra.mxu0 %v6150
      %v7337 = vpop.f32.mrf.mxu0
      %v7338 = vadd.f32 %v7277, %v7337
      %v7339 = vpop.f32.mrf.mxu0
      %v7340 = vadd.f32 %v7277, %v7339
      %7341 = vmatmul.bf16.gmra.mxu0 %v6153
      %v7342 = vpop.f32.mrf.mxu0
      %v7343 = vadd.f32 %v7277, %v7342
      %v7344 = vpop.f32.mrf.mxu0
      %7345 = vdwg.mxu0
      %v7346 = vmax.f32 %v7300, 0.0
      %v7347 = vmax.f32 %v7328, 0.0
      %v7348 = vmax.f32 %v7302, 0.0
      %v7349 = vmax.f32 %v7330, 0.0
      %v7350 = vmax.f32 %v7305, 0.0
      %v7351 = vmax.f32 %v7333, 0.0
      %v7352 = vmax.f32 %v7307, 0.0
      %v7353 = vmax.f32 %v7335, 0.0
      %v7354 = vmax.f32 %v7310, 0.0
      %v7355 = vmax.f32 %v7338, 0.0
      %v7356 = vmax.f32 %v7312, 0.0
      %v7357 = vmax.f32 %v7340, 0.0
      %v7358 = vmax.f32 %v7315, 0.0
      %v7359 = vmax.f32 %v7343, 0.0
      %v7360 = vpack.c.bf16 %v7348, %v7346
      %v7361 = vpack.c.bf16 %v7349, %v7347
      %v7362 = vpack.c.bf16 %v7352, %v7350
      %v7363 = vpack.c.bf16 %v7353, %v7351
      %v7364 = vpack.c.bf16 %v7356, %v7354
      %v7365 = vpack.c.bf16 %v7357, %v7355
      %v7366 = vpack.c.bf16 %v7358, %v7358
      %v7367 = vpack.c.bf16 %v7359, %v7359
      %v7368 = vld [vmem:[%s6233 + $0x200] sm:$0xf]
      %v7369 = vld [vmem:[%s6233 + $0x204] sm:$0xf]
      %v7370 = vld [vmem:[%s6233 + $0x208] sm:$0xf]
      %v7371 = vld [vmem:[%s6233 + $0x20c] sm:$0xf]
      %v7372 = vld [vmem:[%s6233 + $0x210] sm:$0xf]
      %v7373 = vld [vmem:[%s6233 + $0x214] sm:$0xf]
      %v7374 = vld [vmem:[%s6233 + $0x218] sm:$0xf]
      %v7375 = vld [vmem:[%s6233 + $0x21c] sm:$0xf]
      %v7376 = vld [vmem:[%s6233 + $0x220] sm:$0xf]
      %v7377 = vld [vmem:[%s6233 + $0x224] sm:$0xf]
      %v7378 = vld [vmem:[%s6233 + $0x228] sm:$0xf]
      %v7379 = vld [vmem:[%s6233 + $0x22c] sm:$0xf]
      %v7380 = vld [vmem:[%s6233 + $0x230] sm:$0xf]
      %v7381 = vld [vmem:[%s6233 + $0x234] sm:$0xf]
      %v7382 = vld [vmem:[%s6233 + $0x238] sm:$0xf]
      %v7383 = vld [vmem:[%s6233 + $0x23c] sm:$0xf]
      %v7384 = vld [vmem:[%s6233 + $0x240] sm:$0xf]
      %v7385 = vld [vmem:[%s6233 + $0x244] sm:$0xf]
      %v7386 = vld [vmem:[%s6233 + $0x248] sm:$0xf]
      %v7387 = vld [vmem:[%s6233 + $0x24c] sm:$0xf]
      %v7388 = vld [vmem:[%s6233 + $0x250] sm:$0xf]
      %v7389 = vld [vmem:[%s6233 + $0x254] sm:$0xf]
      %v7390 = vld [vmem:[%s6233 + $0x258] sm:$0xf]
      %v7391 = vld [vmem:[%s6233 + $0x25c] sm:$0xf]
      %v7392 = vld [vmem:[%s6233 + $0x260] sm:$0xf]
      %v7393 = vld [vmem:[%s6233 + $0x264] sm:$0xf]
      %v7394 = vld [vmem:[%s6233 + $0x268] sm:$0xf]
      %v7395 = vld [vmem:[%s6233 + $0x26c] sm:$0xf]
      %v7396 = vld [vmem:[%s6233 + $0x270] sm:$0xf]
      %v7397 = vld [vmem:[%s6233 + $0x274] sm:$0xf]
      %v7398 = vld [vmem:[%s6233 + $0x278] sm:$0xf]
      %v7399 = vld [vmem:[%s6233 + $0x27c] sm:$0xf]
      %v7432 = vunpack.c.l.b16 %v7368
      %v7433 = vunpack.c.l.b16 %v7369
      %v7434 = vunpack.c.l.b16 %v7370
      %v7435 = vunpack.c.l.b16 %v7371
      %v7436 = vunpack.c.l.b16 %v7372
      %v7437 = vunpack.c.l.b16 %v7373
      %v7438 = vunpack.c.l.b16 %v7374
      %v7439 = vunpack.c.l.b16 %v7375
      %v7440 = vunpack.c.l.b16 %v7376
      %v7441 = vunpack.c.l.b16 %v7377
      %v7442 = vunpack.c.l.b16 %v7378
      %v7443 = vunpack.c.l.b16 %v7379
      %v7444 = vunpack.c.l.b16 %v7380
      %v7445 = vunpack.c.l.b16 %v7381
      %v7446 = vunpack.c.l.b16 %v7382
      %v7447 = vunpack.c.l.b16 %v7383
      %v7448 = vunpack.c.l.b16 %v7384
      %v7449 = vunpack.c.l.b16 %v7385
      %v7450 = vunpack.c.l.b16 %v7386
      %v7451 = vunpack.c.l.b16 %v7387
      %v7452 = vunpack.c.l.b16 %v7388
      %v7453 = vunpack.c.l.b16 %v7389
      %v7454 = vunpack.c.l.b16 %v7390
      %v7455 = vunpack.c.l.b16 %v7391
      %v7456 = vunpack.c.l.b16 %v7392
      %v7457 = vunpack.c.l.b16 %v7393
      %v7458 = vunpack.c.l.b16 %v7394
      %v7459 = vunpack.c.l.b16 %v7395
      %v7460 = vunpack.c.l.b16 %v7396
      %v7461 = vunpack.c.l.b16 %v7397
      %v7462 = vunpack.c.l.b16 %v7398
      %v7463 = vunpack.c.l.b16 %v7399
      %v7464 = vpack.c.b16 %v7433, %v7432
      %v7465 = vpack.c.b16 %v7435, %v7434
      %v7466 = vpack.c.b16 %v7437, %v7436
      %v7467 = vpack.c.b16 %v7439, %v7438
      %v7468 = vpack.c.b16 %v7441, %v7440
      %v7469 = vpack.c.b16 %v7443, %v7442
      %v7470 = vpack.c.b16 %v7445, %v7444
      %v7471 = vpack.c.b16 %v7447, %v7446
      %v7472 = vpack.c.b16 %v7449, %v7448
      %v7473 = vpack.c.b16 %v7451, %v7450
      %v7474 = vpack.c.b16 %v7453, %v7452
      %v7475 = vpack.c.b16 %v7455, %v7454
      %v7476 = vpack.c.b16 %v7457, %v7456
      %v7477 = vpack.c.b16 %v7459, %v7458
      %v7478 = vpack.c.b16 %v7461, %v7460
      %v7479 = vpack.c.b16 %v7463, %v7462
      %7496 = vmatpush.bf16.msra.mxu0 %v7471
      %7497 = vmatpush.bf16.msra.mxu0 %v7470
      %7498 = vmatpush.bf16.msra.mxu0 %v7469
      %7499 = vmatpush.bf16.msra.mxu0 %v7468
      %7500 = vmatpush.bf16.msra.mxu0 %v7467
      %7501 = vmatpush.bf16.msra.mxu0 %v7466
      %7502 = vmatpush.bf16.msra.mxu0 %v7465
      %7503 = vmatpush.bf16.msra.mxu0 %v7464
      %7504 = vmatmul.bf16.gmra.mxu0 %v7360
      %v7505 = vpop.f32.mrf.mxu0
      %v7506 = vadd.f32 0.0, %v7505
      %v7507 = vpop.f32.mrf.mxu0
      %v7508 = vadd.f32 0.0, %v7507
      %7509 = vmatmul.bf16.gmra.mxu0 %v7362
      %v7510 = vpop.f32.mrf.mxu0
      %v7511 = vadd.f32 0.0, %v7510
      %v7512 = vpop.f32.mrf.mxu0
      %v7513 = vadd.f32 0.0, %v7512
      %7514 = vmatmul.bf16.gmra.mxu0 %v7364
      %v7515 = vpop.f32.mrf.mxu0
      %v7516 = vadd.f32 0.0, %v7515
      %v7517 = vpop.f32.mrf.mxu0
      %v7518 = vadd.f32 0.0, %v7517
      %7519 = vmatmul.bf16.gmra.mxu0 %v7366
      %v7520 = vpop.f32.mrf.mxu0
      %v7521 = vadd.f32 0.0, %v7520
      %v7522 = vpop.f32.mrf.mxu0
      %7523 = vdwg.mxu0
      %7524 = vmatpush.bf16.msra.mxu0 %v7479
      %7525 = vmatpush.bf16.msra.mxu0 %v7478
      %7526 = vmatpush.bf16.msra.mxu0 %v7477
      %7527 = vmatpush.bf16.msra.mxu0 %v7476
      %7528 = vmatpush.bf16.msra.mxu0 %v7475
      %7529 = vmatpush.bf16.msra.mxu0 %v7474
      %7530 = vmatpush.bf16.msra.mxu0 %v7473
      %7531 = vmatpush.bf16.msra.mxu0 %v7472
      %7532 = vmatmul.bf16.gmra.mxu0 %v7361
      %v7533 = vpop.f32.mrf.mxu0
      %v7534 = vadd.f32 %v7506, %v7533
      %v7535 = vpop.f32.mrf.mxu0
      %v7536 = vadd.f32 %v7508, %v7535
      %7537 = vmatmul.bf16.gmra.mxu0 %v7363
      %v7538 = vpop.f32.mrf.mxu0
      %v7539 = vadd.f32 %v7511, %v7538
      %v7540 = vpop.f32.mrf.mxu0
      %v7541 = vadd.f32 %v7513, %v7540
      %7542 = vmatmul.bf16.gmra.mxu0 %v7365
      %v7543 = vpop.f32.mrf.mxu0
      %v7544 = vadd.f32 %v7516, %v7543
      %v7545 = vpop.f32.mrf.mxu0
      %v7546 = vadd.f32 %v7518, %v7545
      %7547 = vmatmul.bf16.gmra.mxu0 %v7367
      %v7548 = vpop.f32.mrf.mxu0
      %v7549 = vadd.f32 %v7521, %v7548
      %v7550 = vpop.f32.mrf.mxu0
      %7551 = vdwg.mxu0
      %v7552 = vadd.f32 %v7265, %v7534
      %v7553 = vadd.f32 %v7266, %v7536
      %v7554 = vadd.f32 %v7267, %v7539
      %v7555 = vadd.f32 %v7268, %v7541
      %v7556 = vadd.f32 %v7269, %v7544
      %v7557 = vadd.f32 %v7270, %v7546
      %v7558 = vadd.f32 %v7271, %v7549
      %v7559 = vld [vmem:[%s6123 + $0x28] sm:$0xff]
      %v7560 = vld [vmem:[%s6123 + $0x68] sm:$0xff]
      %v7561 = vld [vmem:[%s6126 + $0xa] sm:$0x3]
      %v7563 = vperm.slane %v7561, 0
      %v7564 = vperm.slane %v7561, 1
      %v7569 = vunpack.c.l.b16 %v7559
      %v7570 = vunpack.c.h.b16 %v7559
      %v7571 = vunpack.c.l.b16 %v7560
      %v7572 = vunpack.c.h.b16 %v7560
      %v7573 = vpack.c.b16 %v7571, %v7569
      %v7574 = vpack.c.b16 %v7572, %v7570
      %7577 = vmatpush.bf16.msra.mxu0 0
      %7578 = vmatpush.bf16.msra.mxu0 0
      %7579 = vmatpush.bf16.msra.mxu0 0
      %7580 = vmatpush.bf16.msra.mxu0 0
      %7581 = vmatpush.bf16.msra.mxu0 0
      %7582 = vmatpush.bf16.msra.mxu0 0
      %7583 = vmatpush.bf16.msra.mxu0 0
      %7584 = vmatpush.bf16.msra.mxu0 %v7573
      %7585 = vmatmul.bf16.gmra.mxu0 %v6144
      %v7586 = vpop.f32.mrf.mxu0
      %v7587 = vadd.f32 %v7563, %v7586
      %v7588 = vpop.f32.mrf.mxu0
      %v7589 = vadd.f32 %v7563, %v7588
      %7590 = vmatmul.bf16.gmra.mxu0 %v6147
      %v7591 = vpop.f32.mrf.mxu0
      %v7592 = vadd.f32 %v7563, %v7591
      %v7593 = vpop.f32.mrf.mxu0
      %v7594 = vadd.f32 %v7563, %v7593
      %7595 = vmatmul.bf16.gmra.mxu0 %v6150
      %v7596 = vpop.f32.mrf.mxu0
      %v7597 = vadd.f32 %v7563, %v7596
      %v7598 = vpop.f32.mrf.mxu0
      %v7599 = vadd.f32 %v7563, %v7598
      %7600 = vmatmul.bf16.gmra.mxu0 %v6153
      %v7601 = vpop.f32.mrf.mxu0
      %v7602 = vadd.f32 %v7563, %v7601
      %v7603 = vpop.f32.mrf.mxu0
      %7604 = vdwg.mxu0
      %7605 = vmatpush.bf16.msra.mxu0 0
      %7606 = vmatpush.bf16.msra.mxu0 0
      %7607 = vmatpush.bf16.msra.mxu0 0
      %7608 = vmatpush.bf16.msra.mxu0 0
      %7609 = vmatpush.bf16.msra.mxu0 0
      %7610 = vmatpush.bf16.msra.mxu0 0
      %7611 = vmatpush.bf16.msra.mxu0 0
      %7612 = vmatpush.bf16.msra.mxu0 %v7574
      %7613 = vmatmul.bf16.gmra.mxu0 %v6144
      %v7614 = vpop.f32.mrf.mxu0
      %v7615 = vadd.f32 %v7564, %v7614
      %v7616 = vpop.f32.mrf.mxu0
      %v7617 = vadd.f32 %v7564, %v7616
      %7618 = vmatmul.bf16.gmra.mxu0 %v6147
      %v7619 = vpop.f32.mrf.mxu0
      %v7620 = vadd.f32 %v7564, %v7619
      %v7621 = vpop.f32.mrf.mxu0
      %v7622 = vadd.f32 %v7564, %v7621
      %7623 = vmatmul.bf16.gmra.mxu0 %v6150
      %v7624 = vpop.f32.mrf.mxu0
      %v7625 = vadd.f32 %v7564, %v7624
      %v7626 = vpop.f32.mrf.mxu0
      %v7627 = vadd.f32 %v7564, %v7626
      %7628 = vmatmul.bf16.gmra.mxu0 %v6153
      %v7629 = vpop.f32.mrf.mxu0
      %v7630 = vadd.f32 %v7564, %v7629
      %v7631 = vpop.f32.mrf.mxu0
      %7632 = vdwg.mxu0
      %v7633 = vmax.f32 %v7587, 0.0
      %v7634 = vmax.f32 %v7615, 0.0
      %v7635 = vmax.f32 %v7589, 0.0
      %v7636 = vmax.f32 %v7617, 0.0
      %v7637 = vmax.f32 %v7592, 0.0
      %v7638 = vmax.f32 %v7620, 0.0
      %v7639 = vmax.f32 %v7594, 0.0
      %v7640 = vmax.f32 %v7622, 0.0
      %v7641 = vmax.f32 %v7597, 0.0
      %v7642 = vmax.f32 %v7625, 0.0
      %v7643 = vmax.f32 %v7599, 0.0
      %v7644 = vmax.f32 %v7627, 0.0
      %v7645 = vmax.f32 %v7602, 0.0
      %v7646 = vmax.f32 %v7630, 0.0
      %v7647 = vpack.c.bf16 %v7635, %v7633
      %v7648 = vpack.c.bf16 %v7636, %v7634
      %v7649 = vpack.c.bf16 %v7639, %v7637
      %v7650 = vpack.c.bf16 %v7640, %v7638
      %v7651 = vpack.c.bf16 %v7643, %v7641
      %v7652 = vpack.c.bf16 %v7644, %v7642
      %v7653 = vpack.c.bf16 %v7645, %v7645
      %v7654 = vpack.c.bf16 %v7646, %v7646
      %v7655 = vld [vmem:[%s6233 + $0x280] sm:$0xf]
      %v7656 = vld [vmem:[%s6233 + $0x284] sm:$0xf]
      %v7657 = vld [vmem:[%s6233 + $0x288] sm:$0xf]
      %v7658 = vld [vmem:[%s6233 + $0x28c] sm:$0xf]
      %v7659 = vld [vmem:[%s6233 + $0x290] sm:$0xf]
      %v7660 = vld [vmem:[%s6233 + $0x294] sm:$0xf]
      %v7661 = vld [vmem:[%s6233 + $0x298] sm:$0xf]
      %v7662 = vld [vmem:[%s6233 + $0x29c] sm:$0xf]
      %v7663 = vld [vmem:[%s6233 + $0x2a0] sm:$0xf]
      %v7664 = vld [vmem:[%s6233 + $0x2a4] sm:$0xf]
      %v7665 = vld [vmem:[%s6233 + $0x2a8] sm:$0xf]
      %v7666 = vld [vmem:[%s6233 + $0x2ac] sm:$0xf]
      %v7667 = vld [vmem:[%s6233 + $0x2b0] sm:$0xf]
      %v7668 = vld [vmem:[%s6233 + $0x2b4] sm:$0xf]
      %v7669 = vld [vmem:[%s6233 + $0x2b8] sm:$0xf]
      %v7670 = vld [vmem:[%s6233 + $0x2bc] sm:$0xf]
      %v7671 = vld [vmem:[%s6233 + $0x2c0] sm:$0xf]
      %v7672 = vld [vmem:[%s6233 + $0x2c4] sm:$0xf]
      %v7673 = vld [vmem:[%s6233 + $0x2c8] sm:$0xf]
      %v7674 = vld [vmem:[%s6233 + $0x2cc] sm:$0xf]
      %v7675 = vld [vmem:[%s6233 + $0x2d0] sm:$0xf]
      %v7676 = vld [vmem:[%s6233 + $0x2d4] sm:$0xf]
      %v7677 = vld [vmem:[%s6233 + $0x2d8] sm:$0xf]
      %v7678 = vld [vmem:[%s6233 + $0x2dc] sm:$0xf]
      %v7679 = vld [vmem:[%s6233 + $0x2e0] sm:$0xf]
      %v7680 = vld [vmem:[%s6233 + $0x2e4] sm:$0xf]
      %v7681 = vld [vmem:[%s6233 + $0x2e8] sm:$0xf]
      %v7682 = vld [vmem:[%s6233 + $0x2ec] sm:$0xf]
      %v7683 = vld [vmem:[%s6233 + $0x2f0] sm:$0xf]
      %v7684 = vld [vmem:[%s6233 + $0x2f4] sm:$0xf]
      %v7685 = vld [vmem:[%s6233 + $0x2f8] sm:$0xf]
      %v7686 = vld [vmem:[%s6233 + $0x2fc] sm:$0xf]
      %v7719 = vunpack.c.l.b16 %v7655
      %v7720 = vunpack.c.l.b16 %v7656
      %v7721 = vunpack.c.l.b16 %v7657
      %v7722 = vunpack.c.l.b16 %v7658
      %v7723 = vunpack.c.l.b16 %v7659
      %v7724 = vunpack.c.l.b16 %v7660
      %v7725 = vunpack.c.l.b16 %v7661
      %v7726 = vunpack.c.l.b16 %v7662
      %v7727 = vunpack.c.l.b16 %v7663
      %v7728 = vunpack.c.l.b16 %v7664
      %v7729 = vunpack.c.l.b16 %v7665
      %v7730 = vunpack.c.l.b16 %v7666
      %v7731 = vunpack.c.l.b16 %v7667
      %v7732 = vunpack.c.l.b16 %v7668
      %v7733 = vunpack.c.l.b16 %v7669
      %v7734 = vunpack.c.l.b16 %v7670
      %v7735 = vunpack.c.l.b16 %v7671
      %v7736 = vunpack.c.l.b16 %v7672
      %v7737 = vunpack.c.l.b16 %v7673
      %v7738 = vunpack.c.l.b16 %v7674
      %v7739 = vunpack.c.l.b16 %v7675
      %v7740 = vunpack.c.l.b16 %v7676
      %v7741 = vunpack.c.l.b16 %v7677
      %v7742 = vunpack.c.l.b16 %v7678
      %v7743 = vunpack.c.l.b16 %v7679
      %v7744 = vunpack.c.l.b16 %v7680
      %v7745 = vunpack.c.l.b16 %v7681
      %v7746 = vunpack.c.l.b16 %v7682
      %v7747 = vunpack.c.l.b16 %v7683
      %v7748 = vunpack.c.l.b16 %v7684
      %v7749 = vunpack.c.l.b16 %v7685
      %v7750 = vunpack.c.l.b16 %v7686
      %v7751 = vpack.c.b16 %v7720, %v7719
      %v7752 = vpack.c.b16 %v7722, %v7721
      %v7753 = vpack.c.b16 %v7724, %v7723
      %v7754 = vpack.c.b16 %v7726, %v7725
      %v7755 = vpack.c.b16 %v7728, %v7727
      %v7756 = vpack.c.b16 %v7730, %v7729
      %v7757 = vpack.c.b16 %v7732, %v7731
      %v7758 = vpack.c.b16 %v7734, %v7733
      %v7759 = vpack.c.b16 %v7736, %v7735
      %v7760 = vpack.c.b16 %v7738, %v7737
      %v7761 = vpack.c.b16 %v7740, %v7739
      %v7762 = vpack.c.b16 %v7742, %v7741
      %v7763 = vpack.c.b16 %v7744, %v7743
      %v7764 = vpack.c.b16 %v7746, %v7745
      %v7765 = vpack.c.b16 %v7748, %v7747
      %v7766 = vpack.c.b16 %v7750, %v7749
      %7783 = vmatpush.bf16.msra.mxu0 %v7758
      %7784 = vmatpush.bf16.msra.mxu0 %v7757
      %7785 = vmatpush.bf16.msra.mxu0 %v7756
      %7786 = vmatpush.bf16.msra.mxu0 %v7755
      %7787 = vmatpush.bf16.msra.mxu0 %v7754
      %7788 = vmatpush.bf16.msra.mxu0 %v7753
      %7789 = vmatpush.bf16.msra.mxu0 %v7752
      %7790 = vmatpush.bf16.msra.mxu0 %v7751
      %7791 = vmatmul.bf16.gmra.mxu0 %v7647
      %v7792 = vpop.f32.mrf.mxu0
      %v7793 = vadd.f32 0.0, %v7792
      %v7794 = vpop.f32.mrf.mxu0
      %v7795 = vadd.f32 0.0, %v7794
      %7796 = vmatmul.bf16.gmra.mxu0 %v7649
      %v7797 = vpop.f32.mrf.mxu0
      %v7798 = vadd.f32 0.0, %v7797
      %v7799 = vpop.f32.mrf.mxu0
      %v7800 = vadd.f32 0.0, %v7799
      %7801 = vmatmul.bf16.gmra.mxu0 %v7651
      %v7802 = vpop.f32.mrf.mxu0
      %v7803 = vadd.f32 0.0, %v7802
      %v7804 = vpop.f32.mrf.mxu0
      %v7805 = vadd.f32 0.0, %v7804
      %7806 = vmatmul.bf16.gmra.mxu0 %v7653
      %v7807 = vpop.f32.mrf.mxu0
      %v7808 = vadd.f32 0.0, %v7807
      %v7809 = vpop.f32.mrf.mxu0
      %7810 = vdwg.mxu0
      %7811 = vmatpush.bf16.msra.mxu0 %v7766
      %7812 = vmatpush.bf16.msra.mxu0 %v7765
      %7813 = vmatpush.bf16.msra.mxu0 %v7764
      %7814 = vmatpush.bf16.msra.mxu0 %v7763
      %7815 = vmatpush.bf16.msra.mxu0 %v7762
      %7816 = vmatpush.bf16.msra.mxu0 %v7761
      %7817 = vmatpush.bf16.msra.mxu0 %v7760
      %7818 = vmatpush.bf16.msra.mxu0 %v7759
      %7819 = vmatmul.bf16.gmra.mxu0 %v7648
      %v7820 = vpop.f32.mrf.mxu0
      %v7821 = vadd.f32 %v7793, %v7820
      %v7822 = vpop.f32.mrf.mxu0
      %v7823 = vadd.f32 %v7795, %v7822
      %7824 = vmatmul.bf16.gmra.mxu0 %v7650
      %v7825 = vpop.f32.mrf.mxu0
      %v7826 = vadd.f32 %v7798, %v7825
      %v7827 = vpop.f32.mrf.mxu0
      %v7828 = vadd.f32 %v7800, %v7827
      %7829 = vmatmul.bf16.gmra.mxu0 %v7652
      %v7830 = vpop.f32.mrf.mxu0
      %v7831 = vadd.f32 %v7803, %v7830
      %v7832 = vpop.f32.mrf.mxu0
      %v7833 = vadd.f32 %v7805, %v7832
      %7834 = vmatmul.bf16.gmra.mxu0 %v7654
      %v7835 = vpop.f32.mrf.mxu0
      %v7836 = vadd.f32 %v7808, %v7835
      %v7837 = vpop.f32.mrf.mxu0
      %7838 = vdwg.mxu0
      %v7839 = vadd.f32 %v7552, %v7821
      %v7840 = vadd.f32 %v7553, %v7823
      %v7841 = vadd.f32 %v7554, %v7826
      %v7842 = vadd.f32 %v7555, %v7828
      %v7843 = vadd.f32 %v7556, %v7831
      %v7844 = vadd.f32 %v7557, %v7833
      %v7845 = vadd.f32 %v7558, %v7836
      %v7846 = vld [vmem:[%s6123 + $0x30] sm:$0xff]
      %v7847 = vld [vmem:[%s6123 + $0x70] sm:$0xff]
      %v7848 = vld [vmem:[%s6126 + $0xc] sm:$0x3]
      %v7850 = vperm.slane %v7848, 0
      %v7851 = vperm.slane %v7848, 1
      %v7856 = vunpack.c.l.b16 %v7846
      %v7857 = vunpack.c.h.b16 %v7846
      %v7858 = vunpack.c.l.b16 %v7847
      %v7859 = vunpack.c.h.b16 %v7847
      %v7860 = vpack.c.b16 %v7858, %v7856
      %v7861 = vpack.c.b16 %v7859, %v7857
      %7864 = vmatpush.bf16.msra.mxu0 0
      %7865 = vmatpush.bf16.msra.mxu0 0
      %7866 = vmatpush.bf16.msra.mxu0 0
      %7867 = vmatpush.bf16.msra.mxu0 0
      %7868 = vmatpush.bf16.msra.mxu0 0
      %7869 = vmatpush.bf16.msra.mxu0 0
      %7870 = vmatpush.bf16.msra.mxu0 0
      %7871 = vmatpush.bf16.msra.mxu0 %v7860
      %7872 = vmatmul.bf16.gmra.mxu0 %v6144
      %v7873 = vpop.f32.mrf.mxu0
      %v7874 = vadd.f32 %v7850, %v7873
      %v7875 = vpop.f32.mrf.mxu0
      %v7876 = vadd.f32 %v7850, %v7875
      %7877 = vmatmul.bf16.gmra.mxu0 %v6147
      %v7878 = vpop.f32.mrf.mxu0
      %v7879 = vadd.f32 %v7850, %v7878
      %v7880 = vpop.f32.mrf.mxu0
      %v7881 = vadd.f32 %v7850, %v7880
      %7882 = vmatmul.bf16.gmra.mxu0 %v6150
      %v7883 = vpop.f32.mrf.mxu0
      %v7884 = vadd.f32 %v7850, %v7883
      %v7885 = vpop.f32.mrf.mxu0
      %v7886 = vadd.f32 %v7850, %v7885
      %7887 = vmatmul.bf16.gmra.mxu0 %v6153
      %v7888 = vpop.f32.mrf.mxu0
      %v7889 = vadd.f32 %v7850, %v7888
      %v7890 = vpop.f32.mrf.mxu0
      %7891 = vdwg.mxu0
      %7892 = vmatpush.bf16.msra.mxu0 0
      %7893 = vmatpush.bf16.msra.mxu0 0
      %7894 = vmatpush.bf16.msra.mxu0 0
      %7895 = vmatpush.bf16.msra.mxu0 0
      %7896 = vmatpush.bf16.msra.mxu0 0
      %7897 = vmatpush.bf16.msra.mxu0 0
      %7898 = vmatpush.bf16.msra.mxu0 0
      %7899 = vmatpush.bf16.msra.mxu0 %v7861
      %7900 = vmatmul.bf16.gmra.mxu0 %v6144
      %v7901 = vpop.f32.mrf.mxu0
      %v7902 = vadd.f32 %v7851, %v7901
      %v7903 = vpop.f32.mrf.mxu0
      %v7904 = vadd.f32 %v7851, %v7903
      %7905 = vmatmul.bf16.gmra.mxu0 %v6147
      %v7906 = vpop.f32.mrf.mxu0
      %v7907 = vadd.f32 %v7851, %v7906
      %v7908 = vpop.f32.mrf.mxu0
      %v7909 = vadd.f32 %v7851, %v7908
      %7910 = vmatmul.bf16.gmra.mxu0 %v6150
      %v7911 = vpop.f32.mrf.mxu0
      %v7912 = vadd.f32 %v7851, %v7911
      %v7913 = vpop.f32.mrf.mxu0
      %v7914 = vadd.f32 %v7851, %v7913
      %7915 = vmatmul.bf16.gmra.mxu0 %v6153
      %v7916 = vpop.f32.mrf.mxu0
      %v7917 = vadd.f32 %v7851, %v7916
      %v7918 = vpop.f32.mrf.mxu0
      %7919 = vdwg.mxu0
      %v7920 = vmax.f32 %v7874, 0.0
      %v7921 = vmax.f32 %v7902, 0.0
      %v7922 = vmax.f32 %v7876, 0.0
      %v7923 = vmax.f32 %v7904, 0.0
      %v7924 = vmax.f32 %v7879, 0.0
      %v7925 = vmax.f32 %v7907, 0.0
      %v7926 = vmax.f32 %v7881, 0.0
      %v7927 = vmax.f32 %v7909, 0.0
      %v7928 = vmax.f32 %v7884, 0.0
      %v7929 = vmax.f32 %v7912, 0.0
      %v7930 = vmax.f32 %v7886, 0.0
      %v7931 = vmax.f32 %v7914, 0.0
      %v7932 = vmax.f32 %v7889, 0.0
      %v7933 = vmax.f32 %v7917, 0.0
      %v7934 = vpack.c.bf16 %v7922, %v7920
      %v7935 = vpack.c.bf16 %v7923, %v7921
      %v7936 = vpack.c.bf16 %v7926, %v7924
      %v7937 = vpack.c.bf16 %v7927, %v7925
      %v7938 = vpack.c.bf16 %v7930, %v7928
      %v7939 = vpack.c.bf16 %v7931, %v7929
      %v7940 = vpack.c.bf16 %v7932, %v7932
      %v7941 = vpack.c.bf16 %v7933, %v7933
      %v7942 = vld [vmem:[%s6233 + $0x300] sm:$0xf]
      %v7943 = vld [vmem:[%s6233 + $0x304] sm:$0xf]
      %v7944 = vld [vmem:[%s6233 + $0x308] sm:$0xf]
      %v7945 = vld [vmem:[%s6233 + $0x30c] sm:$0xf]
      %v7946 = vld [vmem:[%s6233 + $0x310] sm:$0xf]
      %v7947 = vld [vmem:[%s6233 + $0x314] sm:$0xf]
      %v7948 = vld [vmem:[%s6233 + $0x318] sm:$0xf]
      %v7949 = vld [vmem:[%s6233 + $0x31c] sm:$0xf]
      %v7950 = vld [vmem:[%s6233 + $0x320] sm:$0xf]
      %v7951 = vld [vmem:[%s6233 + $0x324] sm:$0xf]
      %v7952 = vld [vmem:[%s6233 + $0x328] sm:$0xf]
      %v7953 = vld [vmem:[%s6233 + $0x32c] sm:$0xf]
      %v7954 = vld [vmem:[%s6233 + $0x330] sm:$0xf]
      %v7955 = vld [vmem:[%s6233 + $0x334] sm:$0xf]
      %v7956 = vld [vmem:[%s6233 + $0x338] sm:$0xf]
      %v7957 = vld [vmem:[%s6233 + $0x33c] sm:$0xf]
      %v7958 = vld [vmem:[%s6233 + $0x340] sm:$0xf]
      %v7959 = vld [vmem:[%s6233 + $0x344] sm:$0xf]
      %v7960 = vld [vmem:[%s6233 + $0x348] sm:$0xf]
      %v7961 = vld [vmem:[%s6233 + $0x34c] sm:$0xf]
      %v7962 = vld [vmem:[%s6233 + $0x350] sm:$0xf]
      %v7963 = vld [vmem:[%s6233 + $0x354] sm:$0xf]
      %v7964 = vld [vmem:[%s6233 + $0x358] sm:$0xf]
      %v7965 = vld [vmem:[%s6233 + $0x35c] sm:$0xf]
      %v7966 = vld [vmem:[%s6233 + $0x360] sm:$0xf]
      %v7967 = vld [vmem:[%s6233 + $0x364] sm:$0xf]
      %v7968 = vld [vmem:[%s6233 + $0x368] sm:$0xf]
      %v7969 = vld [vmem:[%s6233 + $0x36c] sm:$0xf]
      %v7970 = vld [vmem:[%s6233 + $0x370] sm:$0xf]
      %v7971 = vld [vmem:[%s6233 + $0x374] sm:$0xf]
      %v7972 = vld [vmem:[%s6233 + $0x378] sm:$0xf]
      %v7973 = vld [vmem:[%s6233 + $0x37c] sm:$0xf]
      %v8006 = vunpack.c.l.b16 %v7942
      %v8007 = vunpack.c.l.b16 %v7943
      %v8008 = vunpack.c.l.b16 %v7944
      %v8009 = vunpack.c.l.b16 %v7945
      %v8010 = vunpack.c.l.b16 %v7946
      %v8011 = vunpack.c.l.b16 %v7947
      %v8012 = vunpack.c.l.b16 %v7948
      %v8013 = vunpack.c.l.b16 %v7949
      %v8014 = vunpack.c.l.b16 %v7950
      %v8015 = vunpack.c.l.b16 %v7951
      %v8016 = vunpack.c.l.b16 %v7952
      %v8017 = vunpack.c.l.b16 %v7953
      %v8018 = vunpack.c.l.b16 %v7954
      %v8019 = vunpack.c.l.b16 %v7955
      %v8020 = vunpack.c.l.b16 %v7956
      %v8021 = vunpack.c.l.b16 %v7957
      %v8022 = vunpack.c.l.b16 %v7958
      %v8023 = vunpack.c.l.b16 %v7959
      %v8024 = vunpack.c.l.b16 %v7960
      %v8025 = vunpack.c.l.b16 %v7961
      %v8026 = vunpack.c.l.b16 %v7962
      %v8027 = vunpack.c.l.b16 %v7963
      %v8028 = vunpack.c.l.b16 %v7964
      %v8029 = vunpack.c.l.b16 %v7965
      %v8030 = vunpack.c.l.b16 %v7966
      %v8031 = vunpack.c.l.b16 %v7967
      %v8032 = vunpack.c.l.b16 %v7968
      %v8033 = vunpack.c.l.b16 %v7969
      %v8034 = vunpack.c.l.b16 %v7970
      %v8035 = vunpack.c.l.b16 %v7971
      %v8036 = vunpack.c.l.b16 %v7972
      %v8037 = vunpack.c.l.b16 %v7973
      %v8038 = vpack.c.b16 %v8007, %v8006
      %v8039 = vpack.c.b16 %v8009, %v8008
      %v8040 = vpack.c.b16 %v8011, %v8010
      %v8041 = vpack.c.b16 %v8013, %v8012
      %v8042 = vpack.c.b16 %v8015, %v8014
      %v8043 = vpack.c.b16 %v8017, %v8016
      %v8044 = vpack.c.b16 %v8019, %v8018
      %v8045 = vpack.c.b16 %v8021, %v8020
      %v8046 = vpack.c.b16 %v8023, %v8022
      %v8047 = vpack.c.b16 %v8025, %v8024
      %v8048 = vpack.c.b16 %v8027, %v8026
      %v8049 = vpack.c.b16 %v8029, %v8028
      %v8050 = vpack.c.b16 %v8031, %v8030
      %v8051 = vpack.c.b16 %v8033, %v8032
      %v8052 = vpack.c.b16 %v8035, %v8034
      %v8053 = vpack.c.b16 %v8037, %v8036
      %8070 = vmatpush.bf16.msra.mxu0 %v8045
      %8071 = vmatpush.bf16.msra.mxu0 %v8044
      %8072 = vmatpush.bf16.msra.mxu0 %v8043
      %8073 = vmatpush.bf16.msra.mxu0 %v8042
      %8074 = vmatpush.bf16.msra.mxu0 %v8041
      %8075 = vmatpush.bf16.msra.mxu0 %v8040
      %8076 = vmatpush.bf16.msra.mxu0 %v8039
      %8077 = vmatpush.bf16.msra.mxu0 %v8038
      %8078 = vmatmul.bf16.gmra.mxu0 %v7934
      %v8079 = vpop.f32.mrf.mxu0
      %v8080 = vadd.f32 0.0, %v8079
      %v8081 = vpop.f32.mrf.mxu0
      %v8082 = vadd.f32 0.0, %v8081
      %8083 = vmatmul.bf16.gmra.mxu0 %v7936
      %v8084 = vpop.f32.mrf.mxu0
      %v8085 = vadd.f32 0.0, %v8084
      %v8086 = vpop.f32.mrf.mxu0
      %v8087 = vadd.f32 0.0, %v8086
      %8088 = vmatmul.bf16.gmra.mxu0 %v7938
      %v8089 = vpop.f32.mrf.mxu0
      %v8090 = vadd.f32 0.0, %v8089
      %v8091 = vpop.f32.mrf.mxu0
      %v8092 = vadd.f32 0.0, %v8091
      %8093 = vmatmul.bf16.gmra.mxu0 %v7940
      %v8094 = vpop.f32.mrf.mxu0
      %v8095 = vadd.f32 0.0, %v8094
      %v8096 = vpop.f32.mrf.mxu0
      %8097 = vdwg.mxu0
      %8098 = vmatpush.bf16.msra.mxu0 %v8053
      %8099 = vmatpush.bf16.msra.mxu0 %v8052
      %8100 = vmatpush.bf16.msra.mxu0 %v8051
      %8101 = vmatpush.bf16.msra.mxu0 %v8050
      %8102 = vmatpush.bf16.msra.mxu0 %v8049
      %8103 = vmatpush.bf16.msra.mxu0 %v8048
      %8104 = vmatpush.bf16.msra.mxu0 %v8047
      %8105 = vmatpush.bf16.msra.mxu0 %v8046
      %8106 = vmatmul.bf16.gmra.mxu0 %v7935
      %v8107 = vpop.f32.mrf.mxu0
      %v8108 = vadd.f32 %v8080, %v8107
      %v8109 = vpop.f32.mrf.mxu0
      %v8110 = vadd.f32 %v8082, %v8109
      %8111 = vmatmul.bf16.gmra.mxu0 %v7937
      %v8112 = vpop.f32.mrf.mxu0
      %v8113 = vadd.f32 %v8085, %v8112
      %v8114 = vpop.f32.mrf.mxu0
      %v8115 = vadd.f32 %v8087, %v8114
      %8116 = vmatmul.bf16.gmra.mxu0 %v7939
      %v8117 = vpop.f32.mrf.mxu0
      %v8118 = vadd.f32 %v8090, %v8117
      %v8119 = vpop.f32.mrf.mxu0
      %v8120 = vadd.f32 %v8092, %v8119
      %8121 = vmatmul.bf16.gmra.mxu0 %v7941
      %v8122 = vpop.f32.mrf.mxu0
      %v8123 = vadd.f32 %v8095, %v8122
      %v8124 = vpop.f32.mrf.mxu0
      %8125 = vdwg.mxu0
      %v8126 = vadd.f32 %v7839, %v8108
      %v8127 = vadd.f32 %v7840, %v8110
      %v8128 = vadd.f32 %v7841, %v8113
      %v8129 = vadd.f32 %v7842, %v8115
      %v8130 = vadd.f32 %v7843, %v8118
      %v8131 = vadd.f32 %v7844, %v8120
      %v8132 = vadd.f32 %v7845, %v8123
      %v8133 = vld [vmem:[%s6123 + $0x38] sm:$0xff]
      %v8134 = vld [vmem:[%s6123 + $0x78] sm:$0xff]
      %v8135 = vld [vmem:[%s6126 + $0xe] sm:$0x3]
      %v8137 = vperm.slane %v8135, 0
      %v8138 = vperm.slane %v8135, 1
      %v8143 = vunpack.c.l.b16 %v8133
      %v8144 = vunpack.c.h.b16 %v8133
      %v8145 = vunpack.c.l.b16 %v8134
      %v8146 = vunpack.c.h.b16 %v8134
      %v8147 = vpack.c.b16 %v8145, %v8143
      %v8148 = vpack.c.b16 %v8146, %v8144
      %8151 = vmatpush.bf16.msra.mxu0 0
      %8152 = vmatpush.bf16.msra.mxu0 0
      %8153 = vmatpush.bf16.msra.mxu0 0
      %8154 = vmatpush.bf16.msra.mxu0 0
      %8155 = vmatpush.bf16.msra.mxu0 0
      %8156 = vmatpush.bf16.msra.mxu0 0
      %8157 = vmatpush.bf16.msra.mxu0 0
      %8158 = vmatpush.bf16.msra.mxu0 %v8147
      %8159 = vmatmul.bf16.gmra.mxu0 %v6144
      %v8160 = vpop.f32.mrf.mxu0
      %v8161 = vadd.f32 %v8137, %v8160
      %v8162 = vpop.f32.mrf.mxu0
      %v8163 = vadd.f32 %v8137, %v8162
      %8164 = vmatmul.bf16.gmra.mxu0 %v6147
      %v8165 = vpop.f32.mrf.mxu0
      %v8166 = vadd.f32 %v8137, %v8165
      %v8167 = vpop.f32.mrf.mxu0
      %v8168 = vadd.f32 %v8137, %v8167
      %8169 = vmatmul.bf16.gmra.mxu0 %v6150
      %v8170 = vpop.f32.mrf.mxu0
      %v8171 = vadd.f32 %v8137, %v8170
      %v8172 = vpop.f32.mrf.mxu0
      %v8173 = vadd.f32 %v8137, %v8172
      %8174 = vmatmul.bf16.gmra.mxu0 %v6153
      %v8175 = vpop.f32.mrf.mxu0
      %v8176 = vadd.f32 %v8137, %v8175
      %v8177 = vpop.f32.mrf.mxu0
      %8178 = vdwg.mxu0
      %8179 = vmatpush.bf16.msra.mxu0 0
      %8180 = vmatpush.bf16.msra.mxu0 0
      %8181 = vmatpush.bf16.msra.mxu0 0
      %8182 = vmatpush.bf16.msra.mxu0 0
      %8183 = vmatpush.bf16.msra.mxu0 0
      %8184 = vmatpush.bf16.msra.mxu0 0
      %8185 = vmatpush.bf16.msra.mxu0 0
      %8186 = vmatpush.bf16.msra.mxu0 %v8148
      %8187 = vmatmul.bf16.gmra.mxu0 %v6144
      %v8188 = vpop.f32.mrf.mxu0
      %v8189 = vadd.f32 %v8138, %v8188
      %v8190 = vpop.f32.mrf.mxu0
      %v8191 = vadd.f32 %v8138, %v8190
      %8192 = vmatmul.bf16.gmra.mxu0 %v6147
      %v8193 = vpop.f32.mrf.mxu0
      %v8194 = vadd.f32 %v8138, %v8193
      %v8195 = vpop.f32.mrf.mxu0
      %v8196 = vadd.f32 %v8138, %v8195
      %8197 = vmatmul.bf16.gmra.mxu0 %v6150
      %v8198 = vpop.f32.mrf.mxu0
      %v8199 = vadd.f32 %v8138, %v8198
      %v8200 = vpop.f32.mrf.mxu0
      %v8201 = vadd.f32 %v8138, %v8200
      %8202 = vmatmul.bf16.gmra.mxu0 %v6153
      %v8203 = vpop.f32.mrf.mxu0
      %v8204 = vadd.f32 %v8138, %v8203
      %v8205 = vpop.f32.mrf.mxu0
      %8206 = vdwg.mxu0
      %v8207 = vmax.f32 %v8161, 0.0
      %v8208 = vmax.f32 %v8189, 0.0
      %v8209 = vmax.f32 %v8163, 0.0
      %v8210 = vmax.f32 %v8191, 0.0
      %v8211 = vmax.f32 %v8166, 0.0
      %v8212 = vmax.f32 %v8194, 0.0
      %v8213 = vmax.f32 %v8168, 0.0
      %v8214 = vmax.f32 %v8196, 0.0
      %v8215 = vmax.f32 %v8171, 0.0
      %v8216 = vmax.f32 %v8199, 0.0
      %v8217 = vmax.f32 %v8173, 0.0
      %v8218 = vmax.f32 %v8201, 0.0
      %v8219 = vmax.f32 %v8176, 0.0
      %v8220 = vmax.f32 %v8204, 0.0
      %v8221 = vpack.c.bf16 %v8209, %v8207
      %v8222 = vpack.c.bf16 %v8210, %v8208
      %v8223 = vpack.c.bf16 %v8213, %v8211
      %v8224 = vpack.c.bf16 %v8214, %v8212
      %v8225 = vpack.c.bf16 %v8217, %v8215
      %v8226 = vpack.c.bf16 %v8218, %v8216
      %v8227 = vpack.c.bf16 %v8219, %v8219
      %v8228 = vpack.c.bf16 %v8220, %v8220
      %v8229 = vld [vmem:[%s6233 + $0x380] sm:$0xf]
      %v8230 = vld [vmem:[%s6233 + $0x384] sm:$0xf]
      %v8231 = vld [vmem:[%s6233 + $0x388] sm:$0xf]
      %v8232 = vld [vmem:[%s6233 + $0x38c] sm:$0xf]
      %v8233 = vld [vmem:[%s6233 + $0x390] sm:$0xf]
      %v8234 = vld [vmem:[%s6233 + $0x394] sm:$0xf]
      %v8235 = vld [vmem:[%s6233 + $0x398] sm:$0xf]
      %v8236 = vld [vmem:[%s6233 + $0x39c] sm:$0xf]
      %v8237 = vld [vmem:[%s6233 + $0x3a0] sm:$0xf]
      %v8238 = vld [vmem:[%s6233 + $0x3a4] sm:$0xf]
      %v8239 = vld [vmem:[%s6233 + $0x3a8] sm:$0xf]
      %v8240 = vld [vmem:[%s6233 + $0x3ac] sm:$0xf]
      %v8241 = vld [vmem:[%s6233 + $0x3b0] sm:$0xf]
      %v8242 = vld [vmem:[%s6233 + $0x3b4] sm:$0xf]
      %v8243 = vld [vmem:[%s6233 + $0x3b8] sm:$0xf]
      %v8244 = vld [vmem:[%s6233 + $0x3bc] sm:$0xf]
      %v8245 = vld [vmem:[%s6233 + $0x3c0] sm:$0xf]
      %v8246 = vld [vmem:[%s6233 + $0x3c4] sm:$0xf]
      %v8247 = vld [vmem:[%s6233 + $0x3c8] sm:$0xf]
      %v8248 = vld [vmem:[%s6233 + $0x3cc] sm:$0xf]
      %v8249 = vld [vmem:[%s6233 + $0x3d0] sm:$0xf]
      %v8250 = vld [vmem:[%s6233 + $0x3d4] sm:$0xf]
      %v8251 = vld [vmem:[%s6233 + $0x3d8] sm:$0xf]
      %v8252 = vld [vmem:[%s6233 + $0x3dc] sm:$0xf]
      %v8253 = vld [vmem:[%s6233 + $0x3e0] sm:$0xf]
      %v8254 = vld [vmem:[%s6233 + $0x3e4] sm:$0xf]
      %v8255 = vld [vmem:[%s6233 + $0x3e8] sm:$0xf]
      %v8256 = vld [vmem:[%s6233 + $0x3ec] sm:$0xf]
      %v8257 = vld [vmem:[%s6233 + $0x3f0] sm:$0xf]
      %v8258 = vld [vmem:[%s6233 + $0x3f4] sm:$0xf]
      %v8259 = vld [vmem:[%s6233 + $0x3f8] sm:$0xf]
      %v8260 = vld [vmem:[%s6233 + $0x3fc] sm:$0xf]
      %v8293 = vunpack.c.l.b16 %v8229
      %v8294 = vunpack.c.l.b16 %v8230
      %v8295 = vunpack.c.l.b16 %v8231
      %v8296 = vunpack.c.l.b16 %v8232
      %v8297 = vunpack.c.l.b16 %v8233
      %v8298 = vunpack.c.l.b16 %v8234
      %v8299 = vunpack.c.l.b16 %v8235
      %v8300 = vunpack.c.l.b16 %v8236
      %v8301 = vunpack.c.l.b16 %v8237
      %v8302 = vunpack.c.l.b16 %v8238
      %v8303 = vunpack.c.l.b16 %v8239
      %v8304 = vunpack.c.l.b16 %v8240
      %v8305 = vunpack.c.l.b16 %v8241
      %v8306 = vunpack.c.l.b16 %v8242
      %v8307 = vunpack.c.l.b16 %v8243
      %v8308 = vunpack.c.l.b16 %v8244
      %v8309 = vunpack.c.l.b16 %v8245
      %v8310 = vunpack.c.l.b16 %v8246
      %v8311 = vunpack.c.l.b16 %v8247
      %v8312 = vunpack.c.l.b16 %v8248
      %v8313 = vunpack.c.l.b16 %v8249
      %v8314 = vunpack.c.l.b16 %v8250
      %v8315 = vunpack.c.l.b16 %v8251
      %v8316 = vunpack.c.l.b16 %v8252
      %v8317 = vunpack.c.l.b16 %v8253
      %v8318 = vunpack.c.l.b16 %v8254
      %v8319 = vunpack.c.l.b16 %v8255
      %v8320 = vunpack.c.l.b16 %v8256
      %v8321 = vunpack.c.l.b16 %v8257
      %v8322 = vunpack.c.l.b16 %v8258
      %v8323 = vunpack.c.l.b16 %v8259
      %v8324 = vunpack.c.l.b16 %v8260
      %v8325 = vpack.c.b16 %v8294, %v8293
      %v8326 = vpack.c.b16 %v8296, %v8295
      %v8327 = vpack.c.b16 %v8298, %v8297
      %v8328 = vpack.c.b16 %v8300, %v8299
      %v8329 = vpack.c.b16 %v8302, %v8301
      %v8330 = vpack.c.b16 %v8304, %v8303
      %v8331 = vpack.c.b16 %v8306, %v8305
      %v8332 = vpack.c.b16 %v8308, %v8307
      %v8333 = vpack.c.b16 %v8310, %v8309
      %v8334 = vpack.c.b16 %v8312, %v8311
      %v8335 = vpack.c.b16 %v8314, %v8313
      %v8336 = vpack.c.b16 %v8316, %v8315
      %v8337 = vpack.c.b16 %v8318, %v8317
      %v8338 = vpack.c.b16 %v8320, %v8319
      %v8339 = vpack.c.b16 %v8322, %v8321
      %v8340 = vpack.c.b16 %v8324, %v8323
      %8357 = vmatpush.bf16.msra.mxu0 %v8332
      %8358 = vmatpush.bf16.msra.mxu0 %v8331
      %8359 = vmatpush.bf16.msra.mxu0 %v8330
      %8360 = vmatpush.bf16.msra.mxu0 %v8329
      %8361 = vmatpush.bf16.msra.mxu0 %v8328
      %8362 = vmatpush.bf16.msra.mxu0 %v8327
      %8363 = vmatpush.bf16.msra.mxu0 %v8326
      %8364 = vmatpush.bf16.msra.mxu0 %v8325
      %8365 = vmatmul.bf16.gmra.mxu0 %v8221
      %v8366 = vpop.f32.mrf.mxu0
      %v8367 = vadd.f32 0.0, %v8366
      %v8368 = vpop.f32.mrf.mxu0
      %v8369 = vadd.f32 0.0, %v8368
      %8370 = vmatmul.bf16.gmra.mxu0 %v8223
      %v8371 = vpop.f32.mrf.mxu0
      %v8372 = vadd.f32 0.0, %v8371
      %v8373 = vpop.f32.mrf.mxu0
      %v8374 = vadd.f32 0.0, %v8373
      %8375 = vmatmul.bf16.gmra.mxu0 %v8225
      %v8376 = vpop.f32.mrf.mxu0
      %v8377 = vadd.f32 0.0, %v8376
      %v8378 = vpop.f32.mrf.mxu0
      %v8379 = vadd.f32 0.0, %v8378
      %8380 = vmatmul.bf16.gmra.mxu0 %v8227
      %v8381 = vpop.f32.mrf.mxu0
      %v8382 = vadd.f32 0.0, %v8381
      %v8383 = vpop.f32.mrf.mxu0
      %8384 = vdwg.mxu0
      %8385 = vmatpush.bf16.msra.mxu0 %v8340
      %8386 = vmatpush.bf16.msra.mxu0 %v8339
      %8387 = vmatpush.bf16.msra.mxu0 %v8338
      %8388 = vmatpush.bf16.msra.mxu0 %v8337
      %8389 = vmatpush.bf16.msra.mxu0 %v8336
      %8390 = vmatpush.bf16.msra.mxu0 %v8335
      %8391 = vmatpush.bf16.msra.mxu0 %v8334
      %8392 = vmatpush.bf16.msra.mxu0 %v8333
      %8393 = vmatmul.bf16.gmra.mxu0 %v8222
      %v8394 = vpop.f32.mrf.mxu0
      %v8395 = vadd.f32 %v8367, %v8394
      %v8396 = vpop.f32.mrf.mxu0
      %v8397 = vadd.f32 %v8369, %v8396
      %8398 = vmatmul.bf16.gmra.mxu0 %v8224
      %v8399 = vpop.f32.mrf.mxu0
      %v8400 = vadd.f32 %v8372, %v8399
      %v8401 = vpop.f32.mrf.mxu0
      %v8402 = vadd.f32 %v8374, %v8401
      %8403 = vmatmul.bf16.gmra.mxu0 %v8226
      %v8404 = vpop.f32.mrf.mxu0
      %v8405 = vadd.f32 %v8377, %v8404
      %v8406 = vpop.f32.mrf.mxu0
      %v8407 = vadd.f32 %v8379, %v8406
      %8408 = vmatmul.bf16.gmra.mxu0 %v8228
      %v8409 = vpop.f32.mrf.mxu0
      %v8410 = vadd.f32 %v8382, %v8409
      %v8411 = vpop.f32.mrf.mxu0
      %8412 = vdwg.mxu0
      %v8413 = vadd.f32 %v8126, %v8395
      %v8414 = vadd.f32 %v8127, %v8397
      %v8415 = vadd.f32 %v8128, %v8400
      %v8416 = vadd.f32 %v8129, %v8402
      %v8417 = vadd.f32 %v8130, %v8405
      %v8418 = vadd.f32 %v8131, %v8407
      %v8419 = vadd.f32 %v8132, %v8410
      %v8420 = vadd.f32 %v6112, %v8413
      %v8421 = vadd.f32 %v6113, %v8414
      %v8422 = vadd.f32 %v6114, %v8415
      %v8423 = vadd.f32 %v6115, %v8416
      %v8424 = vadd.f32 %v6116, %v8417
      %v8425 = vadd.f32 %v6117, %v8418
      %v8426 = vadd.f32 %v6118, %v8419
      %s8427 = scalar_lea.vmem %s13, 1
      %v8428 = vld [vmem:[%s8427] sm:$0x1]
      %v8430 = vperm.slane %v8428, 0
      %v8432 = vadd.f32 %v8420, %v8430
      %v8433 = vadd.f32 %v8421, %v8430
      %v8434 = vadd.f32 %v8422, %v8430
      %v8435 = vadd.f32 %v8423, %v8430
      %v8436 = vadd.f32 %v8424, %v8430
      %v8437 = vadd.f32 %v8425, %v8430
      %v8438 = vadd.f32 %v8426, %v8430
      %s8439 = scalar_lea.vmem %s14, 1
      %v8440 = vld [vmem:[%s8439] sm:$0x1]
      %s8441 = scalar_lea.vmem %s15, 1
      %v8442 = vld [vmem:[%s8441] sm:$0x1]
      %v8443 = vsel %vm866, %v8432, 0.0
      %8444 = vadd.xlane.f32.xlu0 %v8443
      %v8445 = vpop.xlane.xlu0 %8444
      %v8446 = vsel %vm866, %v8433, 0.0
      %8447 = vadd.xlane.f32.xlu0 %v8446
      %v8448 = vpop.xlane.xlu0 %8447
      %v8449 = vsel %vm866, %v8434, 0.0
      %8450 = vadd.xlane.f32.xlu0 %v8449
      %v8451 = vpop.xlane.xlu0 %8450
      %v8452 = vsel %vm866, %v8435, 0.0
      %8453 = vadd.xlane.f32.xlu0 %v8452
      %v8454 = vpop.xlane.xlu0 %8453
      %v8455 = vsel %vm866, %v8436, 0.0
      %8456 = vadd.xlane.f32.xlu0 %v8455
      %v8457 = vpop.xlane.xlu0 %8456
      %v8458 = vsel %vm866, %v8437, 0.0
      %8459 = vadd.xlane.f32.xlu0 %v8458
      %v8460 = vpop.xlane.xlu0 %8459
      %v8461 = vsel %vm2091, %v8438, 0.0
      %8462 = vadd.xlane.f32.xlu0 %v8461
      %v8463 = vpop.xlane.xlu0 %8462
      %v8464 = vmul.f32 %v8445, %v2101
      %v8465 = vmul.f32 %v8448, %v2101
      %v8466 = vmul.f32 %v8451, %v2101
      %v8467 = vmul.f32 %v8454, %v2101
      %v8468 = vmul.f32 %v8457, %v2101
      %v8469 = vmul.f32 %v8460, %v2101
      %v8470 = vmul.f32 %v8463, %v2101
      %v8471 = vsub.f32 %v8432, %v8464
      %v8472 = vsub.f32 %v8433, %v8465
      %v8473 = vsub.f32 %v8434, %v8466
      %v8474 = vsub.f32 %v8435, %v8467
      %v8475 = vsub.f32 %v8436, %v8468
      %v8476 = vsub.f32 %v8437, %v8469
      %v8477 = vsub.f32 %v8438, %v8470
      %v8478 = vmul.f32 %v8471, %v8471
      %v8479 = vmul.f32 %v8472, %v8472
      %v8480 = vmul.f32 %v8473, %v8473
      %v8481 = vmul.f32 %v8474, %v8474
      %v8482 = vmul.f32 %v8475, %v8475
      %v8483 = vmul.f32 %v8476, %v8476
      %v8484 = vmul.f32 %v8477, %v8477
      %v8485 = vsel %vm866, %v8478, 0.0
      %8486 = vadd.xlane.f32.xlu0 %v8485
      %v8487 = vpop.xlane.xlu0 %8486
      %v8488 = vsel %vm866, %v8479, 0.0
      %8489 = vadd.xlane.f32.xlu0 %v8488
      %v8490 = vpop.xlane.xlu0 %8489
      %v8491 = vsel %vm866, %v8480, 0.0
      %8492 = vadd.xlane.f32.xlu0 %v8491
      %v8493 = vpop.xlane.xlu0 %8492
      %v8494 = vsel %vm866, %v8481, 0.0
      %8495 = vadd.xlane.f32.xlu0 %v8494
      %v8496 = vpop.xlane.xlu0 %8495
      %v8497 = vsel %vm866, %v8482, 0.0
      %8498 = vadd.xlane.f32.xlu0 %v8497
      %v8499 = vpop.xlane.xlu0 %8498
      %v8500 = vsel %vm866, %v8483, 0.0
      %8501 = vadd.xlane.f32.xlu0 %v8500
      %v8502 = vpop.xlane.xlu0 %8501
      %v8503 = vsel %vm2091, %v8484, 0.0
      %8504 = vadd.xlane.f32.xlu0 %v8503
      %v8505 = vpop.xlane.xlu0 %8504
      %v8506 = vmul.f32 %v8487, %v2101
      %v8507 = vmul.f32 %v8490, %v2101
      %v8508 = vmul.f32 %v8493, %v2101
      %v8509 = vmul.f32 %v8496, %v2101
      %v8510 = vmul.f32 %v8499, %v2101
      %v8511 = vmul.f32 %v8502, %v2101
      %v8512 = vmul.f32 %v8505, %v2101
      %v8513 = vadd.f32 %v8506, 1e-05
      %v8514 = vadd.f32 %v8507, 1e-05
      %v8515 = vadd.f32 %v8508, 1e-05
      %v8516 = vadd.f32 %v8509, 1e-05
      %v8517 = vadd.f32 %v8510, 1e-05
      %v8518 = vadd.f32 %v8511, 1e-05
      %v8519 = vadd.f32 %v8512, 1e-05
      %v8520 = vrsqrt.pop %v8513
      %v8521 = vmul.f32 %v8520, %v8513
      %v8522 = vmul.f32 %v8521, %v8520
      %v8523 = vmul.f32 0.5, %v8522
      %v8524 = vsub.f32 1.5, %v8523
      %v8525 = vmul.f32 %v8520, %v8524
      %vm8526 = vweird.f32 %v8513
      %vm8527 = vweird.f32 %v8520
      %vm8528 = vmor %vm8526, %vm8527
      %v8529 = vsel %vm8528, %v8520, %v8525
      %v8530 = vrsqrt.pop %v8514
      %v8531 = vmul.f32 %v8530, %v8514
      %v8532 = vmul.f32 %v8531, %v8530
      %v8533 = vmul.f32 0.5, %v8532
      %v8534 = vsub.f32 1.5, %v8533
      %v8535 = vmul.f32 %v8530, %v8534
      %vm8536 = vweird.f32 %v8514
      %vm8537 = vweird.f32 %v8530
      %vm8538 = vmor %vm8536, %vm8537
      %v8539 = vsel %vm8538, %v8530, %v8535
      %v8540 = vrsqrt.pop %v8515
      %v8541 = vmul.f32 %v8540, %v8515
      %v8542 = vmul.f32 %v8541, %v8540
      %v8543 = vmul.f32 0.5, %v8542
      %v8544 = vsub.f32 1.5, %v8543
      %v8545 = vmul.f32 %v8540, %v8544
      %vm8546 = vweird.f32 %v8515
      %vm8547 = vweird.f32 %v8540
      %vm8548 = vmor %vm8546, %vm8547
      %v8549 = vsel %vm8548, %v8540, %v8545
      %v8550 = vrsqrt.pop %v8516
      %v8551 = vmul.f32 %v8550, %v8516
      %v8552 = vmul.f32 %v8551, %v8550
      %v8553 = vmul.f32 0.5, %v8552
      %v8554 = vsub.f32 1.5, %v8553
      %v8555 = vmul.f32 %v8550, %v8554
      %vm8556 = vweird.f32 %v8516
      %vm8557 = vweird.f32 %v8550
      %vm8558 = vmor %vm8556, %vm8557
      %v8559 = vsel %vm8558, %v8550, %v8555
      %v8560 = vrsqrt.pop %v8517
      %v8561 = vmul.f32 %v8560, %v8517
      %v8562 = vmul.f32 %v8561, %v8560
      %v8563 = vmul.f32 0.5, %v8562
      %v8564 = vsub.f32 1.5, %v8563
      %v8565 = vmul.f32 %v8560, %v8564
      %vm8566 = vweird.f32 %v8517
      %vm8567 = vweird.f32 %v8560
      %vm8568 = vmor %vm8566, %vm8567
      %v8569 = vsel %vm8568, %v8560, %v8565
      %v8570 = vrsqrt.pop %v8518
      %v8571 = vmul.f32 %v8570, %v8518
      %v8572 = vmul.f32 %v8571, %v8570
      %v8573 = vmul.f32 0.5, %v8572
      %v8574 = vsub.f32 1.5, %v8573
      %v8575 = vmul.f32 %v8570, %v8574
      %vm8576 = vweird.f32 %v8518
      %vm8577 = vweird.f32 %v8570
      %vm8578 = vmor %vm8576, %vm8577
      %v8579 = vsel %vm8578, %v8570, %v8575
      %v8580 = vrsqrt.pop %v8519
      %v8581 = vmul.f32 %v8580, %v8519
      %v8582 = vmul.f32 %v8581, %v8580
      %v8583 = vmul.f32 0.5, %v8582
      %v8584 = vsub.f32 1.5, %v8583
      %v8585 = vmul.f32 %v8580, %v8584
      %vm8586 = vweird.f32 %v8519
      %vm8587 = vweird.f32 %v8580
      %vm8588 = vmor %vm8586, %vm8587
      %v8589 = vsel %vm8588, %v8580, %v8585
      %v8590 = vmul.f32 %v8471, %v8529
      %v8591 = vmul.f32 %v8472, %v8539
      %v8592 = vmul.f32 %v8473, %v8549
      %v8593 = vmul.f32 %v8474, %v8559
      %v8594 = vmul.f32 %v8475, %v8569
      %v8595 = vmul.f32 %v8476, %v8579
      %v8596 = vmul.f32 %v8477, %v8589
      %v8598 = vperm.slane %v8440, 0
      %v8600 = vmul.f32 %v8590, %v8598
      %v8601 = vmul.f32 %v8591, %v8598
      %v8602 = vmul.f32 %v8592, %v8598
      %v8603 = vmul.f32 %v8593, %v8598
      %v8604 = vmul.f32 %v8594, %v8598
      %v8605 = vmul.f32 %v8595, %v8598
      %v8606 = vmul.f32 %v8596, %v8598
      %v8608 = vperm.slane %v8442, 0
      %v8610 = vadd.f32 %v8600, %v8608
      %v8611 = vadd.f32 %v8601, %v8608
      %v8612 = vadd.f32 %v8602, %v8608
      %v8613 = vadd.f32 %v8603, %v8608
      %v8614 = vadd.f32 %v8604, %v8608
      %v8615 = vadd.f32 %v8605, %v8608
      %v8616 = vadd.f32 %v8606, %v8608
      %v8617 = vld [vmem:[%s16] sm:$0xff]
      %v8618 = vld [vmem:[%s16 + $0x8] sm:$0x3]
      %v8619 = vld [vmem:[%s753] sm:$0x1]
      %v8620 = vld [vmem:[%s17] sm:$0xf]
      %v8621 = vld [vmem:[%s17 + $0x4] sm:$0xf]
      %v8622 = vld [vmem:[%s17 + $0x8] sm:$0xf]
      %v8623 = vld [vmem:[%s17 + $0xc] sm:$0xf]
      %v8624 = vld [vmem:[%s17 + $0x10] sm:$0xf]
      %v8625 = vld [vmem:[%s17 + $0x14] sm:$0xf]
      %v8626 = vld [vmem:[%s17 + $0x18] sm:$0xf]
      %v8627 = vld [vmem:[%s17 + $0x1c] sm:$0xf]
      %v8628 = vld [vmem:[%s17 + $0x20] sm:$0xf]
      %v8629 = vld [vmem:[%s17 + $0x24] sm:$0xf]
      %v8630 = vld [vmem:[%s17 + $0x28] sm:$0xf]
      %v8631 = vld [vmem:[%s17 + $0x2c] sm:$0xf]
      %v8632 = vld [vmem:[%s17 + $0x30] sm:$0xf]
      %v8633 = vld [vmem:[%s17 + $0x34] sm:$0xf]
      %v8634 = vld [vmem:[%s17 + $0x38] sm:$0xf]
      %v8635 = vld [vmem:[%s17 + $0x3c] sm:$0xf]
      %v8636 = vld [vmem:[%s17 + $0x40] sm:$0xf]
      %v8637 = vld [vmem:[%s17 + $0x44] sm:$0xf]
      %v8638 = vld [vmem:[%s17 + $0x48] sm:$0xf]
      %v8639 = vld [vmem:[%s17 + $0x4c] sm:$0xf]
      %v8640 = vld [vmem:[%s17 + $0x50] sm:$0xf]
      %v8641 = vld [vmem:[%s17 + $0x54] sm:$0xf]
      %v8642 = vld [vmem:[%s17 + $0x58] sm:$0xf]
      %v8643 = vld [vmem:[%s17 + $0x5c] sm:$0xf]
      %v8644 = vld [vmem:[%s17 + $0x60] sm:$0xf]
      %v8645 = vld [vmem:[%s17 + $0x64] sm:$0xf]
      %v8646 = vld [vmem:[%s17 + $0x68] sm:$0xf]
      %v8647 = vld [vmem:[%s17 + $0x6c] sm:$0xf]
      %v8648 = vld [vmem:[%s17 + $0x70] sm:$0xf]
      %v8649 = vld [vmem:[%s17 + $0x74] sm:$0xf]
      %v8650 = vld [vmem:[%s17 + $0x78] sm:$0xf]
      %v8651 = vld [vmem:[%s17 + $0x7c] sm:$0xf]
      %v8652 = vld [vmem:[%s17 + $0x80] sm:$0xf]
      %v8653 = vld [vmem:[%s17 + $0x84] sm:$0xf]
      %v8654 = vld [vmem:[%s17 + $0x88] sm:$0xf]
      %v8655 = vld [vmem:[%s17 + $0x8c] sm:$0xf]
      %v8656 = vld [vmem:[%s17 + $0x90] sm:$0xf]
      %v8657 = vld [vmem:[%s17 + $0x94] sm:$0xf]
      %v8658 = vld [vmem:[%s17 + $0x98] sm:$0xf]
      %v8659 = vld [vmem:[%s17 + $0x9c] sm:$0xf]
      %v8660 = vld [vmem:[%s17 + $0xa0] sm:$0xf]
      %v8661 = vld [vmem:[%s17 + $0xa4] sm:$0xf]
      %v8662 = vld [vmem:[%s17 + $0xa8] sm:$0xf]
      %v8663 = vld [vmem:[%s17 + $0xac] sm:$0xf]
      %v8664 = vld [vmem:[%s17 + $0xb0] sm:$0xf]
      %v8665 = vld [vmem:[%s17 + $0xb4] sm:$0xf]
      %v8666 = vld [vmem:[%s17 + $0xb8] sm:$0xf]
      %v8667 = vld [vmem:[%s17 + $0xbc] sm:$0xf]
      %v8668 = vld [vmem:[%s17 + $0xc0] sm:$0xf]
      %v8669 = vld [vmem:[%s17 + $0xc4] sm:$0xf]
      %v8670 = vld [vmem:[%s17 + $0xc8] sm:$0xf]
      %v8671 = vld [vmem:[%s17 + $0xcc] sm:$0xf]
      %v8672 = vld [vmem:[%s17 + $0xd0] sm:$0xf]
      %v8673 = vld [vmem:[%s17 + $0xd4] sm:$0xf]
      %v8674 = vld [vmem:[%s17 + $0xd8] sm:$0xf]
      %v8675 = vld [vmem:[%s17 + $0xdc] sm:$0xf]
      %v8676 = vld [vmem:[%s17 + $0xe0] sm:$0xf]
      %v8677 = vld [vmem:[%s17 + $0xe4] sm:$0xf]
      %v8678 = vld [vmem:[%s17 + $0xe8] sm:$0xf]
      %v8679 = vld [vmem:[%s17 + $0xec] sm:$0xf]
      %v8680 = vld [vmem:[%s17 + $0xf0] sm:$0xf]
      %v8681 = vld [vmem:[%s17 + $0xf4] sm:$0xf]
      %v8682 = vld [vmem:[%s17 + $0xf8] sm:$0xf]
      %v8683 = vld [vmem:[%s17 + $0xfc] sm:$0xf]
      %v8684 = vld [vmem:[%s17 + $0x100] sm:$0xf]
      %v8685 = vld [vmem:[%s17 + $0x104] sm:$0xf]
      %v8686 = vld [vmem:[%s17 + $0x108] sm:$0xf]
      %v8687 = vld [vmem:[%s17 + $0x10c] sm:$0xf]
      %v8688 = vld [vmem:[%s17 + $0x110] sm:$0xf]
      %v8689 = vld [vmem:[%s17 + $0x114] sm:$0xf]
      %v8690 = vld [vmem:[%s17 + $0x118] sm:$0xf]
      %v8691 = vld [vmem:[%s17 + $0x11c] sm:$0xf]
      %v8692 = vld [vmem:[%s17 + $0x120] sm:$0xf]
      %v8693 = vld [vmem:[%s17 + $0x124] sm:$0xf]
      %v8694 = vld [vmem:[%s17 + $0x128] sm:$0xf]
      %v8695 = vld [vmem:[%s17 + $0x12c] sm:$0xf]
      %v8696 = vld [vmem:[%s17 + $0x130] sm:$0xf]
      %v8697 = vld [vmem:[%s17 + $0x134] sm:$0xf]
      %v8698 = vld [vmem:[%s17 + $0x138] sm:$0xf]
      %v8699 = vld [vmem:[%s17 + $0x13c] sm:$0xf]
      %v8700 = vld [vmem:[%s17 + $0x140] sm:$0xf]
      %v8701 = vld [vmem:[%s17 + $0x144] sm:$0xf]
      %v8702 = vld [vmem:[%s17 + $0x148] sm:$0xf]
      %v8703 = vld [vmem:[%s17 + $0x14c] sm:$0xf]
      %v8704 = vld [vmem:[%s17 + $0x150] sm:$0xf]
      %v8705 = vld [vmem:[%s17 + $0x154] sm:$0xf]
      %v8706 = vld [vmem:[%s17 + $0x158] sm:$0xf]
      %v8707 = vld [vmem:[%s17 + $0x15c] sm:$0xf]
      %v8708 = vld [vmem:[%s17 + $0x160] sm:$0xf]
      %v8709 = vld [vmem:[%s17 + $0x164] sm:$0xf]
      %v8710 = vld [vmem:[%s17 + $0x168] sm:$0xf]
      %v8711 = vld [vmem:[%s17 + $0x16c] sm:$0xf]
      %v8712 = vld [vmem:[%s17 + $0x170] sm:$0xf]
      %v8713 = vld [vmem:[%s17 + $0x174] sm:$0xf]
      %v8714 = vld [vmem:[%s17 + $0x178] sm:$0xf]
      %v8715 = vld [vmem:[%s17 + $0x17c] sm:$0xf]
      %v8716 = vld [vmem:[%s17 + $0x180] sm:$0xf]
      %v8717 = vld [vmem:[%s17 + $0x184] sm:$0xf]
      %v8718 = vld [vmem:[%s17 + $0x188] sm:$0xf]
      %v8719 = vld [vmem:[%s17 + $0x18c] sm:$0xf]
      %v8720 = vld [vmem:[%s17 + $0x190] sm:$0xf]
      %v8721 = vld [vmem:[%s17 + $0x194] sm:$0xf]
      %v8722 = vld [vmem:[%s17 + $0x198] sm:$0xf]
      %v8723 = vld [vmem:[%s17 + $0x19c] sm:$0xf]
      %v8724 = vld [vmem:[%s17 + $0x1a0] sm:$0xf]
      %v8725 = vld [vmem:[%s17 + $0x1a4] sm:$0xf]
      %v8726 = vld [vmem:[%s17 + $0x1a8] sm:$0xf]
      %v8727 = vld [vmem:[%s17 + $0x1ac] sm:$0xf]
      %v8728 = vld [vmem:[%s17 + $0x1b0] sm:$0xf]
      %v8729 = vld [vmem:[%s17 + $0x1b4] sm:$0xf]
      %v8730 = vld [vmem:[%s17 + $0x1b8] sm:$0xf]
      %v8731 = vld [vmem:[%s17 + $0x1bc] sm:$0xf]
      %v8732 = vld [vmem:[%s17 + $0x1c0] sm:$0xf]
      %v8733 = vld [vmem:[%s17 + $0x1c4] sm:$0xf]
      %v8734 = vld [vmem:[%s17 + $0x1c8] sm:$0xf]
      %v8735 = vld [vmem:[%s17 + $0x1cc] sm:$0xf]
      %v8736 = vld [vmem:[%s17 + $0x1d0] sm:$0xf]
      %v8737 = vld [vmem:[%s17 + $0x1d4] sm:$0xf]
      %v8738 = vld [vmem:[%s17 + $0x1d8] sm:$0xf]
      %v8739 = vld [vmem:[%s17 + $0x1dc] sm:$0xf]
      %v8740 = vld [vmem:[%s17 + $0x1e0] sm:$0xf]
      %v8741 = vld [vmem:[%s17 + $0x1e4] sm:$0xf]
      %v8742 = vld [vmem:[%s17 + $0x1e8] sm:$0xf]
      %v8743 = vld [vmem:[%s17 + $0x1ec] sm:$0xf]
      %v8744 = vld [vmem:[%s17 + $0x1f0] sm:$0xf]
      %v8745 = vld [vmem:[%s17 + $0x1f4] sm:$0xf]
      %v8746 = vld [vmem:[%s17 + $0x1f8] sm:$0xf]
      %v8747 = vld [vmem:[%s17 + $0x1fc] sm:$0xf]
      %v8748 = vld [vmem:[%s17 + $0x200] sm:$0xf]
      %v8749 = vld [vmem:[%s17 + $0x204] sm:$0xf]
      %v8750 = vld [vmem:[%s17 + $0x208] sm:$0xf]
      %v8751 = vld [vmem:[%s17 + $0x20c] sm:$0xf]
      %v8752 = vld [vmem:[%s17 + $0x210] sm:$0xf]
      %v8753 = vld [vmem:[%s17 + $0x214] sm:$0xf]
      %v8754 = vld [vmem:[%s17 + $0x218] sm:$0xf]
      %v8755 = vld [vmem:[%s17 + $0x21c] sm:$0xf]
      %v8756 = vld [vmem:[%s17 + $0x220] sm:$0xf]
      %v8757 = vld [vmem:[%s17 + $0x224] sm:$0xf]
      %v8758 = vld [vmem:[%s17 + $0x228] sm:$0xf]
      %v8759 = vld [vmem:[%s17 + $0x22c] sm:$0xf]
      %v8760 = vld [vmem:[%s17 + $0x230] sm:$0xf]
      %v8761 = vld [vmem:[%s17 + $0x234] sm:$0xf]
      %v8762 = vld [vmem:[%s17 + $0x238] sm:$0xf]
      %v8763 = vld [vmem:[%s17 + $0x23c] sm:$0xf]
      %v8764 = vld [vmem:[%s17 + $0x240] sm:$0xf]
      %v8765 = vld [vmem:[%s17 + $0x244] sm:$0xf]
      %v8766 = vld [vmem:[%s17 + $0x248] sm:$0xf]
      %v8767 = vld [vmem:[%s17 + $0x24c] sm:$0xf]
      %v8768 = vld [vmem:[%s17 + $0x250] sm:$0xf]
      %v8769 = vld [vmem:[%s17 + $0x254] sm:$0xf]
      %v8770 = vld [vmem:[%s17 + $0x258] sm:$0xf]
      %v8771 = vld [vmem:[%s17 + $0x25c] sm:$0xf]
      %v8772 = vld [vmem:[%s17 + $0x260] sm:$0xf]
      %v8773 = vld [vmem:[%s17 + $0x264] sm:$0xf]
      %v8774 = vld [vmem:[%s17 + $0x268] sm:$0xf]
      %v8775 = vld [vmem:[%s17 + $0x26c] sm:$0xf]
      %v8776 = vld [vmem:[%s17 + $0x270] sm:$0xf]
      %v8777 = vld [vmem:[%s17 + $0x274] sm:$0xf]
      %v8778 = vld [vmem:[%s17 + $0x278] sm:$0xf]
      %v8779 = vld [vmem:[%s17 + $0x27c] sm:$0xf]
      %v8780 = vld [vmem:[%s17 + $0x280] sm:$0xf]
      %v8781 = vld [vmem:[%s17 + $0x284] sm:$0xf]
      %v8782 = vld [vmem:[%s17 + $0x288] sm:$0xf]
      %v8783 = vld [vmem:[%s17 + $0x28c] sm:$0xf]
      %v8784 = vld [vmem:[%s17 + $0x290] sm:$0xf]
      %v8785 = vld [vmem:[%s17 + $0x294] sm:$0xf]
      %v8786 = vld [vmem:[%s17 + $0x298] sm:$0xf]
      %v8787 = vld [vmem:[%s17 + $0x29c] sm:$0xf]
      %v8788 = vld [vmem:[%s17 + $0x2a0] sm:$0xf]
      %v8789 = vld [vmem:[%s17 + $0x2a4] sm:$0xf]
      %v8790 = vld [vmem:[%s17 + $0x2a8] sm:$0xf]
      %v8791 = vld [vmem:[%s17 + $0x2ac] sm:$0xf]
      %v8792 = vld [vmem:[%s17 + $0x2b0] sm:$0xf]
      %v8793 = vld [vmem:[%s17 + $0x2b4] sm:$0xf]
      %v8794 = vld [vmem:[%s17 + $0x2b8] sm:$0xf]
      %v8795 = vld [vmem:[%s17 + $0x2bc] sm:$0xf]
      %v8796 = vld [vmem:[%s17 + $0x2c0] sm:$0xf]
      %v8797 = vld [vmem:[%s17 + $0x2c4] sm:$0xf]
      %v8798 = vld [vmem:[%s17 + $0x2c8] sm:$0xf]
      %v8799 = vld [vmem:[%s17 + $0x2cc] sm:$0xf]
      %v8800 = vld [vmem:[%s17 + $0x2d0] sm:$0xf]
      %v8801 = vld [vmem:[%s17 + $0x2d4] sm:$0xf]
      %v8802 = vld [vmem:[%s17 + $0x2d8] sm:$0xf]
      %v8803 = vld [vmem:[%s17 + $0x2dc] sm:$0xf]
      %v8804 = vld [vmem:[%s17 + $0x2e0] sm:$0xf]
      %v8805 = vld [vmem:[%s17 + $0x2e4] sm:$0xf]
      %v8806 = vld [vmem:[%s17 + $0x2e8] sm:$0xf]
      %v8807 = vld [vmem:[%s17 + $0x2ec] sm:$0xf]
      %v8808 = vld [vmem:[%s17 + $0x2f0] sm:$0xf]
      %v8809 = vld [vmem:[%s17 + $0x2f4] sm:$0xf]
      %v8810 = vld [vmem:[%s17 + $0x2f8] sm:$0xf]
      %v8811 = vld [vmem:[%s17 + $0x2fc] sm:$0xf]
      %v8812 = vld [vmem:[%s17 + $0x300] sm:$0xf]
      %v8813 = vld [vmem:[%s17 + $0x304] sm:$0xf]
      %v8814 = vld [vmem:[%s17 + $0x308] sm:$0xf]
      %v8815 = vld [vmem:[%s17 + $0x30c] sm:$0xf]
      %v8816 = vld [vmem:[%s17 + $0x310] sm:$0xf]
      %v8817 = vld [vmem:[%s17 + $0x314] sm:$0xf]
      %v8818 = vld [vmem:[%s17 + $0x318] sm:$0xf]
      %v8819 = vld [vmem:[%s17 + $0x31c] sm:$0xf]
      %v8820 = vld [vmem:[%s18] sm:$0x1]
      %v8821 = vld [vmem:[%s19] sm:$0xff]
      %v8822 = vld [vmem:[%s19 + $0x8] sm:$0xff]
      %v8823 = vld [vmem:[%s20] sm:$0x3]
      %v8824 = vld [vmem:[%s21] sm:$0xff]
      %v8825 = vld [vmem:[%s21 + $0x8] sm:$0xff]
      %v8826 = vld [vmem:[%s21 + $0x10] sm:$0xff]
      %v8827 = vld [vmem:[%s21 + $0x18] sm:$0xff]
      %v8828 = vld [vmem:[%s21 + $0x20] sm:$0xff]
      %v8829 = vld [vmem:[%s21 + $0x28] sm:$0xff]
      %v8830 = vld [vmem:[%s21 + $0x30] sm:$0xff]
      %v8831 = vld [vmem:[%s21 + $0x38] sm:$0xff]
      %v8832 = vld [vmem:[%s21 + $0x40] sm:$0xff]
      %v8833 = vld [vmem:[%s21 + $0x48] sm:$0xff]
      %v8834 = vld [vmem:[%s21 + $0x50] sm:$0xff]
      %v8835 = vld [vmem:[%s21 + $0x58] sm:$0xff]
      %v8836 = vld [vmem:[%s21 + $0x60] sm:$0xff]
      %v8837 = vld [vmem:[%s21 + $0x68] sm:$0xff]
      %v8838 = vld [vmem:[%s21 + $0x70] sm:$0xff]
      %v8839 = vld [vmem:[%s21 + $0x78] sm:$0xff]
      %v8840 = vld [vmem:[%s21 + $0x80] sm:$0xff]
      %v8841 = vld [vmem:[%s21 + $0x88] sm:$0xff]
      %v8842 = vld [vmem:[%s21 + $0x90] sm:$0x77]
      %v8843 = vld [vmem:[%s22] sm:$0x3]
      %v8845 = vsel %vm866, %v8610, 0
      %v8848 = vsel %vm866, %v8611, 0
      %v8851 = vsel %vm866, %v8612, 0
      %v8854 = vsel %vm866, %v8613, 0
      %v8857 = vsel %vm866, %v8614, 0
      %v8860 = vsel %vm866, %v8615, 0
      %v8863 = vsel %vm866, %v8616, 0
      %v8866 = vsel %vm866, %v8617, 0
      %v8869 = vsel %vm866, %v8618, 0
      %8871 = vmatpush.xpose.msra.mxu0 0.0
      %8872 = vmatpush.xpose.msra.mxu0 0.0
      %8873 = vmatpush.xpose.msra.mxu0 0.0
      %8874 = vmatpush.xpose.msra.mxu0 0.0
      %8875 = vmatpush.xpose.msra.mxu0 0.0
      %8876 = vmatpush.xpose.msra.mxu0 0.0
      %8877 = vmatpush.xpose.msra.mxu0 0.0
      %8878 = vmatpush.xpose.msra.mxu0 0.0
      %8879 = vmatpush.xpose.msra.mxu0 0.0
      %8880 = vmatpush.xpose.msra.mxu0 0.0
      %8881 = vmatpush.xpose.msra.mxu0 0.0
      %8882 = vmatpush.xpose.msra.mxu0 0.0
      %8883 = vmatpush.xpose.msra.mxu0 0.0
      %8884 = vmatpush.xpose.msra.mxu0 0.0
      %8885 = vmatpush.xpose.msra.mxu0 %v8869
      %8886 = vmatpush.xpose.msra.mxu0 %v8866
      %8887 = vmatmul.f32.gmra.mxu0 %v8845
      %v8888 = vpop.f32.mrf.mxu0
      %v8889 = vadd.f32 0.0, %v8888
      %8890 = vmatmul.f32.gmra.mxu0 %v8848
      %v8891 = vpop.f32.mrf.mxu0
      %v8892 = vadd.f32 0.0, %v8891
      %8893 = vmatmul.f32.gmra.mxu0 %v8851
      %v8894 = vpop.f32.mrf.mxu0
      %v8895 = vadd.f32 0.0, %v8894
      %8896 = vmatmul.f32.gmra.mxu0 %v8854
      %v8897 = vpop.f32.mrf.mxu0
      %v8898 = vadd.f32 0.0, %v8897
      %8899 = vmatmul.f32.gmra.mxu0 %v8857
      %v8900 = vpop.f32.mrf.mxu0
      %v8901 = vadd.f32 0.0, %v8900
      %8902 = vmatmul.f32.gmra.mxu0 %v8860
      %v8903 = vpop.f32.mrf.mxu0
      %v8904 = vadd.f32 0.0, %v8903
      %8905 = vmatmul.f32.gmra.mxu0 %v8863
      %v8906 = vpop.f32.mrf.mxu0
      %v8907 = vadd.f32 0.0, %v8906
      %8908 = vdwg.mxu0
      %v8909 = vmul.f32 %v8889, 10.0
      %v8910 = vmul.f32 %v8892, 10.0
      %v8911 = vmul.f32 %v8895, 10.0
      %v8912 = vmul.f32 %v8898, 10.0
      %v8913 = vmul.f32 %v8901, 10.0
      %v8914 = vmul.f32 %v8904, 10.0
      %v8915 = vmul.f32 %v8907, 10.0
      %vm8916 = vcmask 80896
      %v8917 = vsel %vm8916, %v8909, -inf
      %8918 = vmax.xlane.f32.xlu0 %v8917
      %v8919 = vpop.xlane.xlu0 %8918
      %v8920 = vsel %vm8916, %v8910, -inf
      %8921 = vmax.xlane.f32.xlu0 %v8920
      %v8922 = vpop.xlane.xlu0 %8921
      %v8923 = vsel %vm8916, %v8911, -inf
      %8924 = vmax.xlane.f32.xlu0 %v8923
      %v8925 = vpop.xlane.xlu0 %8924
      %v8926 = vsel %vm8916, %v8912, -inf
      %8927 = vmax.xlane.f32.xlu0 %v8926
      %v8928 = vpop.xlane.xlu0 %8927
      %v8929 = vsel %vm8916, %v8913, -inf
      %8930 = vmax.xlane.f32.xlu0 %v8929
      %v8931 = vpop.xlane.xlu0 %8930
      %v8932 = vsel %vm8916, %v8914, -inf
      %8933 = vmax.xlane.f32.xlu0 %v8932
      %v8934 = vpop.xlane.xlu0 %8933
      %vm8935 = vcmask 74752
      %v8936 = vsel %vm8935, %v8915, -inf
      %8937 = vmax.xlane.f32.xlu0 %v8936
      %v8938 = vpop.xlane.xlu0 %8937
      %v8939 = vsub.f32 %v8909, %v8919
      %v8940 = vsub.f32 %v8910, %v8922
      %v8941 = vsub.f32 %v8911, %v8925
      %v8942 = vsub.f32 %v8912, %v8928
      %v8943 = vsub.f32 %v8913, %v8931
      %v8944 = vsub.f32 %v8914, %v8934
      %v8945 = vsub.f32 %v8915, %v8938
      %v8946 = vmul.f32 %v8939, 1.442695
      %v8947 = vpow.pop %v8946
      %v8948 = vmul.f32 %v8940, 1.442695
      %v8949 = vpow.pop %v8948
      %v8950 = vmul.f32 %v8941, 1.442695
      %v8951 = vpow.pop %v8950
      %v8952 = vmul.f32 %v8942, 1.442695
      %v8953 = vpow.pop %v8952
      %v8954 = vmul.f32 %v8943, 1.442695
      %v8955 = vpow.pop %v8954
      %v8956 = vmul.f32 %v8944, 1.442695
      %v8957 = vpow.pop %v8956
      %v8958 = vmul.f32 %v8945, 1.442695
      %v8959 = vpow.pop %v8958
      %v8960 = vsel %vm8916, %v8947, 0.0
      %8961 = vadd.xlane.f32.xlu0 %v8960
      %v8962 = vpop.xlane.xlu0 %8961
      %v8963 = vsel %vm8916, %v8949, 0.0
      %8964 = vadd.xlane.f32.xlu0 %v8963
      %v8965 = vpop.xlane.xlu0 %8964
      %v8966 = vsel %vm8916, %v8951, 0.0
      %8967 = vadd.xlane.f32.xlu0 %v8966
      %v8968 = vpop.xlane.xlu0 %8967
      %v8969 = vsel %vm8916, %v8953, 0.0
      %8970 = vadd.xlane.f32.xlu0 %v8969
      %v8971 = vpop.xlane.xlu0 %8970
      %v8972 = vsel %vm8916, %v8955, 0.0
      %8973 = vadd.xlane.f32.xlu0 %v8972
      %v8974 = vpop.xlane.xlu0 %8973
      %v8975 = vsel %vm8916, %v8957, 0.0
      %8976 = vadd.xlane.f32.xlu0 %v8975
      %v8977 = vpop.xlane.xlu0 %8976
      %v8978 = vsel %vm8935, %v8959, 0.0
      %8979 = vadd.xlane.f32.xlu0 %v8978
      %v8980 = vpop.xlane.xlu0 %8979
      %v8981 = vrcp.pop %v8962
      %v8982 = vmul.f32 %v8962, %v8981
      %v8983 = vsub.f32 1.0, %v8982
      %v8984 = vmul.f32 %v8981, %v8983
      %v8985 = vadd.f32 %v8981, %v8984
      %vm8986 = vweird.f32 %v8962
      %vm8987 = vweird.f32 %v8981
      %vm8988 = vmor %vm8986, %vm8987
      %v8989 = vsel %vm8988, %v8981, %v8985
      %v8990 = vand.u32 2147483647, %v8962
      %vm8991 = vcmp.eq.f32.partialorder %v8990, 8.507059e+37
      %v8992 = vand.u32 %v8962, 2147483648
      %v8993 = vor.u32 1.1754944e-38, %v8992
      %v8994 = vsel %vm8991, %v8993, %v8989
      %v8995 = vmul.f32 %v8947, %v8994
      %v8996 = vrcp.pop %v8965
      %v8997 = vmul.f32 %v8965, %v8996
      %v8998 = vsub.f32 1.0, %v8997
      %v8999 = vmul.f32 %v8996, %v8998
      %v9000 = vadd.f32 %v8996, %v8999
      %vm9001 = vweird.f32 %v8965
      %vm9002 = vweird.f32 %v8996
      %vm9003 = vmor %vm9001, %vm9002
      %v9004 = vsel %vm9003, %v8996, %v9000
      %v9005 = vand.u32 2147483647, %v8965
      %vm9006 = vcmp.eq.f32.partialorder %v9005, 8.507059e+37
      %v9007 = vand.u32 %v8965, 2147483648
      %v9008 = vor.u32 1.1754944e-38, %v9007
      %v9009 = vsel %vm9006, %v9008, %v9004
      %v9010 = vmul.f32 %v8949, %v9009
      %v9011 = vrcp.pop %v8968
      %v9012 = vmul.f32 %v8968, %v9011
      %v9013 = vsub.f32 1.0, %v9012
      %v9014 = vmul.f32 %v9011, %v9013
      %v9015 = vadd.f32 %v9011, %v9014
      %vm9016 = vweird.f32 %v8968
      %vm9017 = vweird.f32 %v9011
      %vm9018 = vmor %vm9016, %vm9017
      %v9019 = vsel %vm9018, %v9011, %v9015
      %v9020 = vand.u32 2147483647, %v8968
      %vm9021 = vcmp.eq.f32.partialorder %v9020, 8.507059e+37
      %v9022 = vand.u32 %v8968, 2147483648
      %v9023 = vor.u32 1.1754944e-38, %v9022
      %v9024 = vsel %vm9021, %v9023, %v9019
      %v9025 = vmul.f32 %v8951, %v9024
      %v9026 = vrcp.pop %v8971
      %v9027 = vmul.f32 %v8971, %v9026
      %v9028 = vsub.f32 1.0, %v9027
      %v9029 = vmul.f32 %v9026, %v9028
      %v9030 = vadd.f32 %v9026, %v9029
      %vm9031 = vweird.f32 %v8971
      %vm9032 = vweird.f32 %v9026
      %vm9033 = vmor %vm9031, %vm9032
      %v9034 = vsel %vm9033, %v9026, %v9030
      %v9035 = vand.u32 2147483647, %v8971
      %vm9036 = vcmp.eq.f32.partialorder %v9035, 8.507059e+37
      %v9037 = vand.u32 %v8971, 2147483648
      %v9038 = vor.u32 1.1754944e-38, %v9037
      %v9039 = vsel %vm9036, %v9038, %v9034
      %v9040 = vmul.f32 %v8953, %v9039
      %v9041 = vrcp.pop %v8974
      %v9042 = vmul.f32 %v8974, %v9041
      %v9043 = vsub.f32 1.0, %v9042
      %v9044 = vmul.f32 %v9041, %v9043
      %v9045 = vadd.f32 %v9041, %v9044
      %vm9046 = vweird.f32 %v8974
      %vm9047 = vweird.f32 %v9041
      %vm9048 = vmor %vm9046, %vm9047
      %v9049 = vsel %vm9048, %v9041, %v9045
      %v9050 = vand.u32 2147483647, %v8974
      %vm9051 = vcmp.eq.f32.partialorder %v9050, 8.507059e+37
      %v9052 = vand.u32 %v8974, 2147483648
      %v9053 = vor.u32 1.1754944e-38, %v9052
      %v9054 = vsel %vm9051, %v9053, %v9049
      %v9055 = vmul.f32 %v8955, %v9054
      %v9056 = vrcp.pop %v8977
      %v9057 = vmul.f32 %v8977, %v9056
      %v9058 = vsub.f32 1.0, %v9057
      %v9059 = vmul.f32 %v9056, %v9058
      %v9060 = vadd.f32 %v9056, %v9059
      %vm9061 = vweird.f32 %v8977
      %vm9062 = vweird.f32 %v9056
      %vm9063 = vmor %vm9061, %vm9062
      %v9064 = vsel %vm9063, %v9056, %v9060
      %v9065 = vand.u32 2147483647, %v8977
      %vm9066 = vcmp.eq.f32.partialorder %v9065, 8.507059e+37
      %v9067 = vand.u32 %v8977, 2147483648
      %v9068 = vor.u32 1.1754944e-38, %v9067
      %v9069 = vsel %vm9066, %v9068, %v9064
      %v9070 = vmul.f32 %v8957, %v9069
      %v9071 = vrcp.pop %v8980
      %v9072 = vmul.f32 %v8980, %v9071
      %v9073 = vsub.f32 1.0, %v9072
      %v9074 = vmul.f32 %v9071, %v9073
      %v9075 = vadd.f32 %v9071, %v9074
      %vm9076 = vweird.f32 %v8980
      %vm9077 = vweird.f32 %v9071
      %vm9078 = vmor %vm9076, %vm9077
      %v9079 = vsel %vm9078, %v9071, %v9075
      %v9080 = vand.u32 2147483647, %v8980
      %vm9081 = vcmp.eq.f32.partialorder %v9080, 8.507059e+37
      %v9082 = vand.u32 %v8980, 2147483648
      %v9083 = vor.u32 1.1754944e-38, %v9082
      %v9084 = vsel %vm9081, %v9083, %v9079
      %v9085 = vmul.f32 %v8959, %v9084
      %v9087 = vsel %vm8916, %v8995, 0
      %v9090 = vsel %vm8916, %v9010, 0
      %v9093 = vsel %vm8916, %v9025, 0
      %v9096 = vsel %vm8916, %v9040, 0
      %v9099 = vsel %vm8916, %v9055, 0
      %v9102 = vsel %vm8916, %v9070, 0
      %v9105 = vsel %vm8916, %v9085, 0
      %v9107 = vsel %vm794, %v8618, 0
      %9109 = vmatpush.msra.mxu0 0.0
      %9110 = vmatpush.msra.mxu0 0.0
      %9111 = vmatpush.msra.mxu0 0.0
      %9112 = vmatpush.msra.mxu0 0.0
      %9113 = vmatpush.msra.mxu0 0.0
      %9114 = vmatpush.msra.mxu0 0.0
      %9115 = vmatpush.msra.mxu0 0.0
      %9116 = vmatpush.msra.mxu0 0.0
      %9117 = vmatpush.msra.mxu0 0.0
      %9118 = vmatpush.msra.mxu0 0.0
      %9119 = vmatpush.msra.mxu0 0.0
      %9120 = vmatpush.msra.mxu0 0.0
      %9121 = vmatpush.msra.mxu0 0.0
      %9122 = vmatpush.msra.mxu0 0.0
      %9123 = vmatpush.msra.mxu0 %v9107
      %9124 = vmatpush.msra.mxu0 %v8617
      %9125 = vmatmul.f32.gmra.mxu0 %v9087
      %v9126 = vpop.f32.mrf.mxu0
      %v9127 = vadd.f32 0.0, %v9126
      %9128 = vmatmul.f32.gmra.mxu0 %v9090
      %v9129 = vpop.f32.mrf.mxu0
      %v9130 = vadd.f32 0.0, %v9129
      %9131 = vmatmul.f32.gmra.mxu0 %v9093
      %v9132 = vpop.f32.mrf.mxu0
      %v9133 = vadd.f32 0.0, %v9132
      %9134 = vmatmul.f32.gmra.mxu0 %v9096
      %v9135 = vpop.f32.mrf.mxu0
      %v9136 = vadd.f32 0.0, %v9135
      %9137 = vmatmul.f32.gmra.mxu0 %v9099
      %v9138 = vpop.f32.mrf.mxu0
      %v9139 = vadd.f32 0.0, %v9138
      %9140 = vmatmul.f32.gmra.mxu0 %v9102
      %v9141 = vpop.f32.mrf.mxu0
      %v9142 = vadd.f32 0.0, %v9141
      %9143 = vmatmul.f32.gmra.mxu0 %v9105
      %v9144 = vpop.f32.mrf.mxu0
      %v9145 = vadd.f32 0.0, %v9144
      %9146 = vdwg.mxu0
      %9154 = vrot.lane.b32.xlu0 %v9127, 16
      %v9155 = vpop.permute.xlu0 %9154
      %9156 = vrot.lane.b32.xlu0 %v9130, 16
      %v9157 = vpop.permute.xlu0 %9156
      %9158 = vrot.lane.b32.xlu0 %v9133, 16
      %v9159 = vpop.permute.xlu0 %9158
      %9160 = vrot.lane.b32.xlu0 %v9136, 16
      %v9161 = vpop.permute.xlu0 %9160
      %9162 = vrot.lane.b32.xlu0 %v9139, 16
      %v9163 = vpop.permute.xlu0 %9162
      %9164 = vrot.lane.b32.xlu0 %v9142, 16
      %v9165 = vpop.permute.xlu0 %9164
      %9166 = vrot.lane.b32.xlu0 %v9145, 16
      %v9167 = vpop.permute.xlu0 %9166
      %v9175 = vsel %vm866, %v8610, %v9155
      %v9176 = vsel %vm866, %v8611, %v9157
      %v9177 = vsel %vm866, %v8612, %v9159
      %v9178 = vsel %vm866, %v8613, %v9161
      %v9179 = vsel %vm866, %v8614, %v9163
      %v9180 = vsel %vm866, %v8615, %v9165
      %v9181 = vsel %vm866, %v8616, %v9167
      %v9182 = vlaneseq
      %vm9183 = vcmp.ge.s32.totalorder %v9182, 0
      %vm9184 = vcmp.lt.s32.totalorder %v9182, 32
      %vm9185 = vmand %vm9183, %vm9184
      %9186 = vst.msk [vmem:[#allocation2] sm:$0x1] %vm9185, %v9175
      %9188 = vst [vmem:[#allocation1] sm:$0xff] %v9175
      %s9189 = scalar_lea.vmem [#allocation1], 1
      %v9190 = vld [vmem:[%s9189] ss:$9 sm:$0xff]
      %9191 = vrot.lane.b32.xlu0 %v9190, 32
      %v9192 = vpop.permute.xlu0 %9191
      %vm9194 = vcmp.ge.s32.totalorder %v9182, 32
      %vm9195 = vcmp.lt.s32.totalorder %v9182, 64
      %vm9196 = vmand %vm9194, %vm9195
      %9197 = vst.msk [vmem:[#allocation2] sm:$0x1] %vm9196, %v9192
      %9198 = vst [vmem:[#allocation1] sm:$0xff] %v9175
      %s9199 = scalar_lea.vmem [#allocation1], 2
      %v9200 = vld [vmem:[%s9199] ss:$9 sm:$0xff]
      %9201 = vrot.lane.b32.xlu0 %v9200, 64
      %v9202 = vpop.permute.xlu0 %9201
      %vm9204 = vcmp.ge.s32.totalorder %v9182, 64
      %vm9205 = vcmp.lt.s32.totalorder %v9182, 96
      %vm9206 = vmand %vm9204, %vm9205
      %9207 = vst.msk [vmem:[#allocation2] sm:$0x1] %vm9206, %v9202
      %9208 = vst [vmem:[#allocation1] sm:$0xff] %v9175
      %s9209 = scalar_lea.vmem [#allocation1], 3
      %v9210 = vld [vmem:[%s9209] ss:$9 sm:$0xff]
      %9211 = vrot.lane.b32.xlu0 %v9210, 96
      %v9212 = vpop.permute.xlu0 %9211
      %vm9214 = vcmp.ge.s32.totalorder %v9182, 96
      %vm9215 = vcmp.lt.s32.totalorder %v9182, 128
      %vm9216 = vmand %vm9214, %vm9215
      %9217 = vst.msk [vmem:[#allocation2] sm:$0x1] %vm9216, %v9212
      %9218 = vst [vmem:[#allocation1] sm:$0xff] %v9175
      %s9219 = scalar_lea.vmem [#allocation1], 4
      %v9220 = vld [vmem:[%s9219] ss:$9 sm:$0xff]
      %9222 = vst.msk [vmem:[#allocation2 + $0x1] sm:$0x1] %vm9185, %v9220
      %9223 = vst [vmem:[#allocation1] sm:$0xff] %v9175
      %s9224 = scalar_lea.vmem [#allocation1], 5
      %v9225 = vld [vmem:[%s9224] ss:$9 sm:$0xff]
      %9226 = vrot.lane.b32.xlu0 %v9225, 32
      %v9227 = vpop.permute.xlu0 %9226
      %9229 = vst.msk [vmem:[#allocation2 + $0x1] sm:$0x1] %vm9196, %v9227
      %9230 = vst [vmem:[#allocation1] sm:$0xff] %v9175
      %s9231 = scalar_lea.vmem [#allocation1], 6
      %v9232 = vld [vmem:[%s9231] ss:$9 sm:$0xff]
      %9233 = vrot.lane.b32.xlu0 %v9232, 64
      %v9234 = vpop.permute.xlu0 %9233
      %9236 = vst.msk [vmem:[#allocation2 + $0x1] sm:$0x1] %vm9206, %v9234
      %9237 = vst [vmem:[#allocation1] sm:$0xff] %v9175
      %s9238 = scalar_lea.vmem [#allocation1], 7
      %v9239 = vld [vmem:[%s9238] ss:$9 sm:$0xff]
      %9240 = vrot.lane.b32.xlu0 %v9239, 96
      %v9241 = vpop.permute.xlu0 %9240
      %9243 = vst.msk [vmem:[#allocation2 + $0x1] sm:$0x1] %vm9216, %v9241
      %9244 = vst.msk [vmem:[#allocation2 + $0x2] sm:$0x1] %vm9185, %v9176
      %9246 = vst [vmem:[#allocation1] sm:$0xff] %v9176
      %s9247 = scalar_lea.vmem [#allocation1], 1
      %v9248 = vld [vmem:[%s9247] ss:$9 sm:$0xff]
      %9249 = vrot.lane.b32.xlu0 %v9248, 32
      %v9250 = vpop.permute.xlu0 %9249
      %9252 = vst.msk [vmem:[#allocation2 + $0x2] sm:$0x1] %vm9196, %v9250
      %9253 = vst [vmem:[#allocation1] sm:$0xff] %v9176
      %s9254 = scalar_lea.vmem [#allocation1], 2
      %v9255 = vld [vmem:[%s9254] ss:$9 sm:$0xff]
      %9256 = vrot.lane.b32.xlu0 %v9255, 64
      %v9257 = vpop.permute.xlu0 %9256
      %9259 = vst.msk [vmem:[#allocation2 + $0x2] sm:$0x1] %vm9206, %v9257
      %9260 = vst [vmem:[#allocation1] sm:$0xff] %v9176
      %s9261 = scalar_lea.vmem [#allocation1], 3
      %v9262 = vld [vmem:[%s9261] ss:$9 sm:$0xff]
      %9263 = vrot.lane.b32.xlu0 %v9262, 96
      %v9264 = vpop.permute.xlu0 %9263
      %9266 = vst.msk [vmem:[#allocation2 + $0x2] sm:$0x1] %vm9216, %v9264
      %9267 = vst [vmem:[#allocation1] sm:$0xff] %v9176
      %s9268 = scalar_lea.vmem [#allocation1], 4
      %v9269 = vld [vmem:[%s9268] ss:$9 sm:$0xff]
      %9271 = vst.msk [vmem:[#allocation2 + $0x3] sm:$0x1] %vm9185, %v9269
      %9272 = vst [vmem:[#allocation1] sm:$0xff] %v9176
      %s9273 = scalar_lea.vmem [#allocation1], 5
      %v9274 = vld [vmem:[%s9273] ss:$9 sm:$0xff]
      %9275 = vrot.lane.b32.xlu0 %v9274, 32
      %v9276 = vpop.permute.xlu0 %9275
      %9278 = vst.msk [vmem:[#allocation2 + $0x3] sm:$0x1] %vm9196, %v9276
      %9279 = vst [vmem:[#allocation1] sm:$0xff] %v9176
      %s9280 = scalar_lea.vmem [#allocation1], 6
      %v9281 = vld [vmem:[%s9280] ss:$9 sm:$0xff]
      %9282 = vrot.lane.b32.xlu0 %v9281, 64
      %v9283 = vpop.permute.xlu0 %9282
      %9285 = vst.msk [vmem:[#allocation2 + $0x3] sm:$0x1] %vm9206, %v9283
      %9286 = vst [vmem:[#allocation1] sm:$0xff] %v9176
      %s9287 = scalar_lea.vmem [#allocation1], 7
      %v9288 = vld [vmem:[%s9287] ss:$9 sm:$0xff]
      %9289 = vrot.lane.b32.xlu0 %v9288, 96
      %v9290 = vpop.permute.xlu0 %9289
      %9292 = vst.msk [vmem:[#allocation2 + $0x3] sm:$0x1] %vm9216, %v9290
      %9293 = vst.msk [vmem:[#allocation2 + $0x4] sm:$0x1] %vm9185, %v9177
      %9295 = vst [vmem:[#allocation1] sm:$0xff] %v9177
      %s9296 = scalar_lea.vmem [#allocation1], 1
      %v9297 = vld [vmem:[%s9296] ss:$9 sm:$0xff]
      %9298 = vrot.lane.b32.xlu0 %v9297, 32
      %v9299 = vpop.permute.xlu0 %9298
      %9301 = vst.msk [vmem:[#allocation2 + $0x4] sm:$0x1] %vm9196, %v9299
      %9302 = vst [vmem:[#allocation1] sm:$0xff] %v9177
      %s9303 = scalar_lea.vmem [#allocation1], 2
      %v9304 = vld [vmem:[%s9303] ss:$9 sm:$0xff]
      %9305 = vrot.lane.b32.xlu0 %v9304, 64
      %v9306 = vpop.permute.xlu0 %9305
      %9308 = vst.msk [vmem:[#allocation2 + $0x4] sm:$0x1] %vm9206, %v9306
      %9309 = vst [vmem:[#allocation1] sm:$0xff] %v9177
      %s9310 = scalar_lea.vmem [#allocation1], 3
      %v9311 = vld [vmem:[%s9310] ss:$9 sm:$0xff]
      %9312 = vrot.lane.b32.xlu0 %v9311, 96
      %v9313 = vpop.permute.xlu0 %9312
      %9315 = vst.msk [vmem:[#allocation2 + $0x4] sm:$0x1] %vm9216, %v9313
      %9316 = vst [vmem:[#allocation1] sm:$0xff] %v9177
      %s9317 = scalar_lea.vmem [#allocation1], 4
      %v9318 = vld [vmem:[%s9317] ss:$9 sm:$0xff]
      %9320 = vst.msk [vmem:[#allocation2 + $0x5] sm:$0x1] %vm9185, %v9318
      %9321 = vst [vmem:[#allocation1] sm:$0xff] %v9177
      %s9322 = scalar_lea.vmem [#allocation1], 5
      %v9323 = vld [vmem:[%s9322] ss:$9 sm:$0xff]
      %9324 = vrot.lane.b32.xlu0 %v9323, 32
      %v9325 = vpop.permute.xlu0 %9324
      %9327 = vst.msk [vmem:[#allocation2 + $0x5] sm:$0x1] %vm9196, %v9325
      %9328 = vst [vmem:[#allocation1] sm:$0xff] %v9177
      %s9329 = scalar_lea.vmem [#allocation1], 6
      %v9330 = vld [vmem:[%s9329] ss:$9 sm:$0xff]
      %9331 = vrot.lane.b32.xlu0 %v9330, 64
      %v9332 = vpop.permute.xlu0 %9331
      %9334 = vst.msk [vmem:[#allocation2 + $0x5] sm:$0x1] %vm9206, %v9332
      %9335 = vst [vmem:[#allocation1] sm:$0xff] %v9177
      %s9336 = scalar_lea.vmem [#allocation1], 7
      %v9337 = vld [vmem:[%s9336] ss:$9 sm:$0xff]
      %9338 = vrot.lane.b32.xlu0 %v9337, 96
      %v9339 = vpop.permute.xlu0 %9338
      %9341 = vst.msk [vmem:[#allocation2 + $0x5] sm:$0x1] %vm9216, %v9339
      %9342 = vst.msk [vmem:[#allocation2 + $0x6] sm:$0x1] %vm9185, %v9178
      %9344 = vst [vmem:[#allocation1] sm:$0xff] %v9178
      %s9345 = scalar_lea.vmem [#allocation1], 1
      %v9346 = vld [vmem:[%s9345] ss:$9 sm:$0xff]
      %9347 = vrot.lane.b32.xlu0 %v9346, 32
      %v9348 = vpop.permute.xlu0 %9347
      %9350 = vst.msk [vmem:[#allocation2 + $0x6] sm:$0x1] %vm9196, %v9348
      %9351 = vst [vmem:[#allocation1] sm:$0xff] %v9178
      %s9352 = scalar_lea.vmem [#allocation1], 2
      %v9353 = vld [vmem:[%s9352] ss:$9 sm:$0xff]
      %9354 = vrot.lane.b32.xlu0 %v9353, 64
      %v9355 = vpop.permute.xlu0 %9354
      %9357 = vst.msk [vmem:[#allocation2 + $0x6] sm:$0x1] %vm9206, %v9355
      %9358 = vst [vmem:[#allocation1] sm:$0xff] %v9178
      %s9359 = scalar_lea.vmem [#allocation1], 3
      %v9360 = vld [vmem:[%s9359] ss:$9 sm:$0xff]
      %9361 = vrot.lane.b32.xlu0 %v9360, 96
      %v9362 = vpop.permute.xlu0 %9361
      %9364 = vst.msk [vmem:[#allocation2 + $0x6] sm:$0x1] %vm9216, %v9362
      %9365 = vst [vmem:[#allocation1] sm:$0xff] %v9178
      %s9366 = scalar_lea.vmem [#allocation1], 4
      %v9367 = vld [vmem:[%s9366] ss:$9 sm:$0xff]
      %9369 = vst.msk [vmem:[#allocation2 + $0x7] sm:$0x1] %vm9185, %v9367
      %9370 = vst [vmem:[#allocation1] sm:$0xff] %v9178
      %s9371 = scalar_lea.vmem [#allocation1], 5
      %v9372 = vld [vmem:[%s9371] ss:$9 sm:$0xff]
      %9373 = vrot.lane.b32.xlu0 %v9372, 32
      %v9374 = vpop.permute.xlu0 %9373
      %9376 = vst.msk [vmem:[#allocation2 + $0x7] sm:$0x1] %vm9196, %v9374
      %9377 = vst [vmem:[#allocation1] sm:$0xff] %v9178
      %s9378 = scalar_lea.vmem [#allocation1], 6
      %v9379 = vld [vmem:[%s9378] ss:$9 sm:$0xff]
      %9380 = vrot.lane.b32.xlu0 %v9379, 64
      %v9381 = vpop.permute.xlu0 %9380
      %9383 = vst.msk [vmem:[#allocation2 + $0x7] sm:$0x1] %vm9206, %v9381
      %9384 = vst [vmem:[#allocation1] sm:$0xff] %v9178
      %s9385 = scalar_lea.vmem [#allocation1], 7
      %v9386 = vld [vmem:[%s9385] ss:$9 sm:$0xff]
      %9387 = vrot.lane.b32.xlu0 %v9386, 96
      %v9388 = vpop.permute.xlu0 %9387
      %9390 = vst.msk [vmem:[#allocation2 + $0x7] sm:$0x1] %vm9216, %v9388
      %9391 = vst.msk [vmem:[#allocation2 + $0x8] sm:$0x1] %vm9185, %v9179
      %9393 = vst [vmem:[#allocation1] sm:$0xff] %v9179
      %s9394 = scalar_lea.vmem [#allocation1], 1
      %v9395 = vld [vmem:[%s9394] ss:$9 sm:$0xff]
      %9396 = vrot.lane.b32.xlu0 %v9395, 32
      %v9397 = vpop.permute.xlu0 %9396
      %9399 = vst.msk [vmem:[#allocation2 + $0x8] sm:$0x1] %vm9196, %v9397
      %9400 = vst [vmem:[#allocation1] sm:$0xff] %v9179
      %s9401 = scalar_lea.vmem [#allocation1], 2
      %v9402 = vld [vmem:[%s9401] ss:$9 sm:$0xff]
      %9403 = vrot.lane.b32.xlu0 %v9402, 64
      %v9404 = vpop.permute.xlu0 %9403
      %9406 = vst.msk [vmem:[#allocation2 + $0x8] sm:$0x1] %vm9206, %v9404
      %9407 = vst [vmem:[#allocation1] sm:$0xff] %v9179
      %s9408 = scalar_lea.vmem [#allocation1], 3
      %v9409 = vld [vmem:[%s9408] ss:$9 sm:$0xff]
      %9410 = vrot.lane.b32.xlu0 %v9409, 96
      %v9411 = vpop.permute.xlu0 %9410
      %9413 = vst.msk [vmem:[#allocation2 + $0x8] sm:$0x1] %vm9216, %v9411
      %9414 = vst [vmem:[#allocation1] sm:$0xff] %v9179
      %s9415 = scalar_lea.vmem [#allocation1], 4
      %v9416 = vld [vmem:[%s9415] ss:$9 sm:$0xff]
      %9418 = vst.msk [vmem:[#allocation2 + $0x9] sm:$0x1] %vm9185, %v9416
      %9419 = vst [vmem:[#allocation1] sm:$0xff] %v9179
      %s9420 = scalar_lea.vmem [#allocation1], 5
      %v9421 = vld [vmem:[%s9420] ss:$9 sm:$0xff]
      %9422 = vrot.lane.b32.xlu0 %v9421, 32
      %v9423 = vpop.permute.xlu0 %9422
      %9425 = vst.msk [vmem:[#allocation2 + $0x9] sm:$0x1] %vm9196, %v9423
      %9426 = vst [vmem:[#allocation1] sm:$0xff] %v9179
      %s9427 = scalar_lea.vmem [#allocation1], 6
      %v9428 = vld [vmem:[%s9427] ss:$9 sm:$0xff]
      %9429 = vrot.lane.b32.xlu0 %v9428, 64
      %v9430 = vpop.permute.xlu0 %9429
      %9432 = vst.msk [vmem:[#allocation2 + $0x9] sm:$0x1] %vm9206, %v9430
      %9433 = vst [vmem:[#allocation1] sm:$0xff] %v9179
      %s9434 = scalar_lea.vmem [#allocation1], 7
      %v9435 = vld [vmem:[%s9434] ss:$9 sm:$0xff]
      %9436 = vrot.lane.b32.xlu0 %v9435, 96
      %v9437 = vpop.permute.xlu0 %9436
      %9439 = vst.msk [vmem:[#allocation2 + $0x9] sm:$0x1] %vm9216, %v9437
      %9440 = vst.msk [vmem:[#allocation2 + $0xa] sm:$0x1] %vm9185, %v9180
      %9442 = vst [vmem:[#allocation1] sm:$0xff] %v9180
      %s9443 = scalar_lea.vmem [#allocation1], 1
      %v9444 = vld [vmem:[%s9443] ss:$9 sm:$0xff]
      %9445 = vrot.lane.b32.xlu0 %v9444, 32
      %v9446 = vpop.permute.xlu0 %9445
      %9448 = vst.msk [vmem:[#allocation2 + $0xa] sm:$0x1] %vm9196, %v9446
      %9449 = vst [vmem:[#allocation1] sm:$0xff] %v9180
      %s9450 = scalar_lea.vmem [#allocation1], 2
      %v9451 = vld [vmem:[%s9450] ss:$9 sm:$0xff]
      %9452 = vrot.lane.b32.xlu0 %v9451, 64
      %v9453 = vpop.permute.xlu0 %9452
      %9455 = vst.msk [vmem:[#allocation2 + $0xa] sm:$0x1] %vm9206, %v9453
      %9456 = vst [vmem:[#allocation1] sm:$0xff] %v9180
      %s9457 = scalar_lea.vmem [#allocation1], 3
      %v9458 = vld [vmem:[%s9457] ss:$9 sm:$0xff]
      %9459 = vrot.lane.b32.xlu0 %v9458, 96
      %v9460 = vpop.permute.xlu0 %9459
      %9462 = vst.msk [vmem:[#allocation2 + $0xa] sm:$0x1] %vm9216, %v9460
      %9463 = vst [vmem:[#allocation1] sm:$0xff] %v9180
      %s9464 = scalar_lea.vmem [#allocation1], 4
      %v9465 = vld [vmem:[%s9464] ss:$9 sm:$0xff]
      %9467 = vst.msk [vmem:[#allocation2 + $0xb] sm:$0x1] %vm9185, %v9465
      %9468 = vst [vmem:[#allocation1] sm:$0xff] %v9180
      %s9469 = scalar_lea.vmem [#allocation1], 5
      %v9470 = vld [vmem:[%s9469] ss:$9 sm:$0xff]
      %9471 = vrot.lane.b32.xlu0 %v9470, 32
      %v9472 = vpop.permute.xlu0 %9471
      %9474 = vst.msk [vmem:[#allocation2 + $0xb] sm:$0x1] %vm9196, %v9472
      %9475 = vst [vmem:[#allocation1] sm:$0xff] %v9180
      %s9476 = scalar_lea.vmem [#allocation1], 6
      %v9477 = vld [vmem:[%s9476] ss:$9 sm:$0xff]
      %9478 = vrot.lane.b32.xlu0 %v9477, 64
      %v9479 = vpop.permute.xlu0 %9478
      %9481 = vst.msk [vmem:[#allocation2 + $0xb] sm:$0x1] %vm9206, %v9479
      %9482 = vst [vmem:[#allocation1] sm:$0xff] %v9180
      %s9483 = scalar_lea.vmem [#allocation1], 7
      %v9484 = vld [vmem:[%s9483] ss:$9 sm:$0xff]
      %9485 = vrot.lane.b32.xlu0 %v9484, 96
      %v9486 = vpop.permute.xlu0 %9485
      %9488 = vst.msk [vmem:[#allocation2 + $0xb] sm:$0x1] %vm9216, %v9486
      %9489 = vst.msk [vmem:[#allocation2 + $0xc] sm:$0x1] %vm9185, %v9181
      %9491 = vst [vmem:[#allocation1] sm:$0xff] %v9181
      %s9492 = scalar_lea.vmem [#allocation1], 1
      %v9493 = vld [vmem:[%s9492] ss:$9 sm:$0xff]
      %9494 = vrot.lane.b32.xlu0 %v9493, 32
      %v9495 = vpop.permute.xlu0 %9494
      %9497 = vst.msk [vmem:[#allocation2 + $0xc] sm:$0x1] %vm9196, %v9495
      %v9498 = vld [vmem:[#allocation2] sm:$0xff]
      %v9499 = vld [vmem:[#allocation2 + $0x8] sm:$0x1f]
      %v9502 = vperm.slane %v9498, 0
      %v9503 = vperm.slane %v9498, 1
      %v9504 = vperm.slane %v9498, 2
      %v9505 = vperm.slane %v9498, 3
      %v9506 = vperm.slane %v9498, 4
      %v9507 = vperm.slane %v9498, 5
      %v9508 = vperm.slane %v9498, 6
      %v9509 = vperm.slane %v9498, 7
      %v9510 = vperm.slane %v9499, 0
      %v9511 = vperm.slane %v9499, 1
      %v9512 = vperm.slane %v9499, 2
      %v9513 = vperm.slane %v9499, 3
      %v9514 = vperm.slane %v9499, 4
      %v9528 = vpack.c.bf16 %v9502, %v9502
      %v9529 = vpack.c.bf16 %v9503, %v9503
      %v9530 = vpack.c.bf16 %v9504, %v9504
      %v9531 = vpack.c.bf16 %v9505, %v9505
      %v9532 = vpack.c.bf16 %v9506, %v9506
      %v9533 = vpack.c.bf16 %v9507, %v9507
      %v9534 = vpack.c.bf16 %v9508, %v9508
      %v9535 = vpack.c.bf16 %v9509, %v9509
      %v9536 = vpack.c.bf16 %v9510, %v9510
      %v9537 = vpack.c.bf16 %v9511, %v9511
      %v9538 = vpack.c.bf16 %v9512, %v9512
      %v9539 = vpack.c.bf16 %v9513, %v9513
      %v9540 = vpack.c.bf16 %v9514, %v9514
      %v9741 = vunpack.c.l.b16 %v8620
      %v9742 = vunpack.c.l.b16 %v8621
      %v9743 = vunpack.c.l.b16 %v8622
      %v9744 = vunpack.c.l.b16 %v8623
      %v9745 = vunpack.c.l.b16 %v8624
      %v9746 = vunpack.c.l.b16 %v8625
      %v9747 = vunpack.c.l.b16 %v8626
      %v9748 = vunpack.c.l.b16 %v8627
      %v9749 = vunpack.c.l.b16 %v8628
      %v9750 = vunpack.c.l.b16 %v8629
      %v9751 = vunpack.c.l.b16 %v8630
      %v9752 = vunpack.c.l.b16 %v8631
      %v9753 = vunpack.c.l.b16 %v8632
      %v9754 = vunpack.c.l.b16 %v8633
      %v9755 = vunpack.c.l.b16 %v8634
      %v9756 = vunpack.c.l.b16 %v8635
      %v9757 = vunpack.c.l.b16 %v8636
      %v9758 = vunpack.c.l.b16 %v8637
      %v9759 = vunpack.c.l.b16 %v8638
      %v9760 = vunpack.c.l.b16 %v8639
      %v9761 = vunpack.c.l.b16 %v8640
      %v9762 = vunpack.c.l.b16 %v8641
      %v9763 = vunpack.c.l.b16 %v8642
      %v9764 = vunpack.c.l.b16 %v8643
      %v9765 = vunpack.c.l.b16 %v8644
      %v9766 = vunpack.c.l.b16 %v8645
      %v9767 = vunpack.c.l.b16 %v8646
      %v9768 = vunpack.c.l.b16 %v8647
      %v9769 = vunpack.c.l.b16 %v8648
      %v9770 = vunpack.c.l.b16 %v8649
      %v9771 = vunpack.c.l.b16 %v8650
      %v9772 = vunpack.c.l.b16 %v8651
      %v9773 = vunpack.c.l.b16 %v8652
      %v9774 = vunpack.c.l.b16 %v8653
      %v9775 = vunpack.c.l.b16 %v8654
      %v9776 = vunpack.c.l.b16 %v8655
      %v9777 = vunpack.c.l.b16 %v8656
      %v9778 = vunpack.c.l.b16 %v8657
      %v9779 = vunpack.c.l.b16 %v8658
      %v9780 = vunpack.c.l.b16 %v8659
      %v9781 = vunpack.c.l.b16 %v8660
      %v9782 = vunpack.c.l.b16 %v8661
      %v9783 = vunpack.c.l.b16 %v8662
      %v9784 = vunpack.c.l.b16 %v8663
      %v9785 = vunpack.c.l.b16 %v8664
      %v9786 = vunpack.c.l.b16 %v8665
      %v9787 = vunpack.c.l.b16 %v8666
      %v9788 = vunpack.c.l.b16 %v8667
      %v9789 = vunpack.c.l.b16 %v8668
      %v9790 = vunpack.c.l.b16 %v8669
      %v9791 = vunpack.c.l.b16 %v8670
      %v9792 = vunpack.c.l.b16 %v8671
      %v9793 = vunpack.c.l.b16 %v8672
      %v9794 = vunpack.c.l.b16 %v8673
      %v9795 = vunpack.c.l.b16 %v8674
      %v9796 = vunpack.c.l.b16 %v8675
      %v9797 = vunpack.c.l.b16 %v8676
      %v9798 = vunpack.c.l.b16 %v8677
      %v9799 = vunpack.c.l.b16 %v8678
      %v9800 = vunpack.c.l.b16 %v8679
      %v9801 = vunpack.c.l.b16 %v8680
      %v9802 = vunpack.c.l.b16 %v8681
      %v9803 = vunpack.c.l.b16 %v8682
      %v9804 = vunpack.c.l.b16 %v8683
      %v9805 = vunpack.c.l.b16 %v8684
      %v9806 = vunpack.c.l.b16 %v8685
      %v9807 = vunpack.c.l.b16 %v8686
      %v9808 = vunpack.c.l.b16 %v8687
      %v9809 = vunpack.c.l.b16 %v8688
      %v9810 = vunpack.c.l.b16 %v8689
      %v9811 = vunpack.c.l.b16 %v8690
      %v9812 = vunpack.c.l.b16 %v8691
      %v9813 = vunpack.c.l.b16 %v8692
      %v9814 = vunpack.c.l.b16 %v8693
      %v9815 = vunpack.c.l.b16 %v8694
      %v9816 = vunpack.c.l.b16 %v8695
      %v9817 = vunpack.c.l.b16 %v8696
      %v9818 = vunpack.c.l.b16 %v8697
      %v9819 = vunpack.c.l.b16 %v8698
      %v9820 = vunpack.c.l.b16 %v8699
      %v9821 = vunpack.c.l.b16 %v8700
      %v9822 = vunpack.c.l.b16 %v8701
      %v9823 = vunpack.c.l.b16 %v8702
      %v9824 = vunpack.c.l.b16 %v8703
      %v9825 = vunpack.c.l.b16 %v8704
      %v9826 = vunpack.c.l.b16 %v8705
      %v9827 = vunpack.c.l.b16 %v8706
      %v9828 = vunpack.c.l.b16 %v8707
      %v9829 = vunpack.c.l.b16 %v8708
      %v9830 = vunpack.c.l.b16 %v8709
      %v9831 = vunpack.c.l.b16 %v8710
      %v9832 = vunpack.c.l.b16 %v8711
      %v9833 = vunpack.c.l.b16 %v8712
      %v9834 = vunpack.c.l.b16 %v8713
      %v9835 = vunpack.c.l.b16 %v8714
      %v9836 = vunpack.c.l.b16 %v8715
      %v9837 = vunpack.c.l.b16 %v8716
      %v9838 = vunpack.c.l.b16 %v8717
      %v9839 = vunpack.c.l.b16 %v8718
      %v9840 = vunpack.c.l.b16 %v8719
      %v9841 = vunpack.c.l.b16 %v8720
      %v9842 = vunpack.c.l.b16 %v8721
      %v9843 = vunpack.c.l.b16 %v8722
      %v9844 = vunpack.c.l.b16 %v8723
      %v9845 = vunpack.c.l.b16 %v8724
      %v9846 = vunpack.c.l.b16 %v8725
      %v9847 = vunpack.c.l.b16 %v8726
      %v9848 = vunpack.c.l.b16 %v8727
      %v9849 = vunpack.c.l.b16 %v8728
      %v9850 = vunpack.c.l.b16 %v8729
      %v9851 = vunpack.c.l.b16 %v8730
      %v9852 = vunpack.c.l.b16 %v8731
      %v9853 = vunpack.c.l.b16 %v8732
      %v9854 = vunpack.c.l.b16 %v8733
      %v9855 = vunpack.c.l.b16 %v8734
      %v9856 = vunpack.c.l.b16 %v8735
      %v9857 = vunpack.c.l.b16 %v8736
      %v9858 = vunpack.c.l.b16 %v8737
      %v9859 = vunpack.c.l.b16 %v8738
      %v9860 = vunpack.c.l.b16 %v8739
      %v9861 = vunpack.c.l.b16 %v8740
      %v9862 = vunpack.c.l.b16 %v8741
      %v9863 = vunpack.c.l.b16 %v8742
      %v9864 = vunpack.c.l.b16 %v8743
      %v9865 = vunpack.c.l.b16 %v8744
      %v9866 = vunpack.c.l.b16 %v8745
      %v9867 = vunpack.c.l.b16 %v8746
      %v9868 = vunpack.c.l.b16 %v8747
      %v9869 = vunpack.c.l.b16 %v8748
      %v9870 = vunpack.c.l.b16 %v8749
      %v9871 = vunpack.c.l.b16 %v8750
      %v9872 = vunpack.c.l.b16 %v8751
      %v9873 = vunpack.c.l.b16 %v8752
      %v9874 = vunpack.c.l.b16 %v8753
      %v9875 = vunpack.c.l.b16 %v8754
      %v9876 = vunpack.c.l.b16 %v8755
      %v9877 = vunpack.c.l.b16 %v8756
      %v9878 = vunpack.c.l.b16 %v8757
      %v9879 = vunpack.c.l.b16 %v8758
      %v9880 = vunpack.c.l.b16 %v8759
      %v9881 = vunpack.c.l.b16 %v8760
      %v9882 = vunpack.c.l.b16 %v8761
      %v9883 = vunpack.c.l.b16 %v8762
      %v9884 = vunpack.c.l.b16 %v8763
      %v9885 = vunpack.c.l.b16 %v8764
      %v9886 = vunpack.c.l.b16 %v8765
      %v9887 = vunpack.c.l.b16 %v8766
      %v9888 = vunpack.c.l.b16 %v8767
      %v9889 = vunpack.c.l.b16 %v8768
      %v9890 = vunpack.c.l.b16 %v8769
      %v9891 = vunpack.c.l.b16 %v8770
      %v9892 = vunpack.c.l.b16 %v8771
      %v9893 = vunpack.c.l.b16 %v8772
      %v9894 = vunpack.c.l.b16 %v8773
      %v9895 = vunpack.c.l.b16 %v8774
      %v9896 = vunpack.c.l.b16 %v8775
      %v9897 = vunpack.c.l.b16 %v8776
      %v9898 = vunpack.c.l.b16 %v8777
      %v9899 = vunpack.c.l.b16 %v8778
      %v9900 = vunpack.c.l.b16 %v8779
      %v9901 = vunpack.c.l.b16 %v8780
      %v9902 = vunpack.c.l.b16 %v8781
      %v9903 = vunpack.c.l.b16 %v8782
      %v9904 = vunpack.c.l.b16 %v8783
      %v9905 = vunpack.c.l.b16 %v8784
      %v9906 = vunpack.c.l.b16 %v8785
      %v9907 = vunpack.c.l.b16 %v8786
      %v9908 = vunpack.c.l.b16 %v8787
      %v9909 = vunpack.c.l.b16 %v8788
      %v9910 = vunpack.c.l.b16 %v8789
      %v9911 = vunpack.c.l.b16 %v8790
      %v9912 = vunpack.c.l.b16 %v8791
      %v9913 = vunpack.c.l.b16 %v8792
      %v9914 = vunpack.c.l.b16 %v8793
      %v9915 = vunpack.c.l.b16 %v8794
      %v9916 = vunpack.c.l.b16 %v8795
      %v9917 = vunpack.c.l.b16 %v8796
      %v9918 = vunpack.c.l.b16 %v8797
      %v9919 = vunpack.c.l.b16 %v8798
      %v9920 = vunpack.c.l.b16 %v8799
      %v9921 = vunpack.c.l.b16 %v8800
      %v9922 = vunpack.c.l.b16 %v8801
      %v9923 = vunpack.c.l.b16 %v8802
      %v9924 = vunpack.c.l.b16 %v8803
      %v9925 = vunpack.c.l.b16 %v8804
      %v9926 = vunpack.c.l.b16 %v8805
      %v9927 = vunpack.c.l.b16 %v8806
      %v9928 = vunpack.c.l.b16 %v8807
      %v9929 = vunpack.c.l.b16 %v8808
      %v9930 = vunpack.c.l.b16 %v8809
      %v9931 = vunpack.c.l.b16 %v8810
      %v9932 = vunpack.c.l.b16 %v8811
      %v9933 = vunpack.c.l.b16 %v8812
      %v9934 = vunpack.c.l.b16 %v8813
      %v9935 = vunpack.c.l.b16 %v8814
      %v9936 = vunpack.c.l.b16 %v8815
      %v9937 = vunpack.c.l.b16 %v8816
      %v9938 = vunpack.c.l.b16 %v8817
      %v9939 = vunpack.c.l.b16 %v8818
      %v9940 = vunpack.c.l.b16 %v8819
      %v9941 = vpack.c.b16 %v9742, %v9741
      %v9942 = vpack.c.b16 %v9744, %v9743
      %v9943 = vpack.c.b16 %v9746, %v9745
      %v9944 = vpack.c.b16 %v9748, %v9747
      %v9945 = vpack.c.b16 %v9750, %v9749
      %v9946 = vpack.c.b16 %v9752, %v9751
      %v9947 = vpack.c.b16 %v9754, %v9753
      %v9948 = vpack.c.b16 %v9756, %v9755
      %v9949 = vpack.c.b16 %v9758, %v9757
      %v9950 = vpack.c.b16 %v9760, %v9759
      %v9951 = vpack.c.b16 %v9762, %v9761
      %v9952 = vpack.c.b16 %v9764, %v9763
      %v9953 = vpack.c.b16 %v9766, %v9765
      %v9954 = vpack.c.b16 %v9768, %v9767
      %v9955 = vpack.c.b16 %v9770, %v9769
      %v9956 = vpack.c.b16 %v9772, %v9771
      %v9957 = vpack.c.b16 %v9774, %v9773
      %v9958 = vpack.c.b16 %v9776, %v9775
      %v9959 = vpack.c.b16 %v9778, %v9777
      %v9960 = vpack.c.b16 %v9780, %v9779
      %v9961 = vpack.c.b16 %v9782, %v9781
      %v9962 = vpack.c.b16 %v9784, %v9783
      %v9963 = vpack.c.b16 %v9786, %v9785
      %v9964 = vpack.c.b16 %v9788, %v9787
      %v9965 = vpack.c.b16 %v9790, %v9789
      %v9966 = vpack.c.b16 %v9792, %v9791
      %v9967 = vpack.c.b16 %v9794, %v9793
      %v9968 = vpack.c.b16 %v9796, %v9795
      %v9969 = vpack.c.b16 %v9798, %v9797
      %v9970 = vpack.c.b16 %v9800, %v9799
      %v9971 = vpack.c.b16 %v9802, %v9801
      %v9972 = vpack.c.b16 %v9804, %v9803
      %v9973 = vpack.c.b16 %v9806, %v9805
      %v9974 = vpack.c.b16 %v9808, %v9807
      %v9975 = vpack.c.b16 %v9810, %v9809
      %v9976 = vpack.c.b16 %v9812, %v9811
      %v9977 = vpack.c.b16 %v9814, %v9813
      %v9978 = vpack.c.b16 %v9816, %v9815
      %v9979 = vpack.c.b16 %v9818, %v9817
      %v9980 = vpack.c.b16 %v9820, %v9819
      %v9981 = vpack.c.b16 %v9822, %v9821
      %v9982 = vpack.c.b16 %v9824, %v9823
      %v9983 = vpack.c.b16 %v9826, %v9825
      %v9984 = vpack.c.b16 %v9828, %v9827
      %v9985 = vpack.c.b16 %v9830, %v9829
      %v9986 = vpack.c.b16 %v9832, %v9831
      %v9987 = vpack.c.b16 %v9834, %v9833
      %v9988 = vpack.c.b16 %v9836, %v9835
      %v9989 = vpack.c.b16 %v9838, %v9837
      %v9990 = vpack.c.b16 %v9840, %v9839
      %v9991 = vpack.c.b16 %v9842, %v9841
      %v9992 = vpack.c.b16 %v9844, %v9843
      %v9993 = vpack.c.b16 %v9846, %v9845
      %v9994 = vpack.c.b16 %v9848, %v9847
      %v9995 = vpack.c.b16 %v9850, %v9849
      %v9996 = vpack.c.b16 %v9852, %v9851
      %v9997 = vpack.c.b16 %v9854, %v9853
      %v9998 = vpack.c.b16 %v9856, %v9855
      %v9999 = vpack.c.b16 %v9858, %v9857
      %v10000 = vpack.c.b16 %v9860, %v9859
      %v10001 = vpack.c.b16 %v9862, %v9861
      %v10002 = vpack.c.b16 %v9864, %v9863
      %v10003 = vpack.c.b16 %v9866, %v9865
      %v10004 = vpack.c.b16 %v9868, %v9867
      %v10005 = vpack.c.b16 %v9870, %v9869
      %v10006 = vpack.c.b16 %v9872, %v9871
      %v10007 = vpack.c.b16 %v9874, %v9873
      %v10008 = vpack.c.b16 %v9876, %v9875
      %v10009 = vpack.c.b16 %v9878, %v9877
      %v10010 = vpack.c.b16 %v9880, %v9879
      %v10011 = vpack.c.b16 %v9882, %v9881
      %v10012 = vpack.c.b16 %v9884, %v9883
      %v10013 = vpack.c.b16 %v9886, %v9885
      %v10014 = vpack.c.b16 %v9888, %v9887
      %v10015 = vpack.c.b16 %v9890, %v9889
      %v10016 = vpack.c.b16 %v9892, %v9891
      %v10017 = vpack.c.b16 %v9894, %v9893
      %v10018 = vpack.c.b16 %v9896, %v9895
      %v10019 = vpack.c.b16 %v9898, %v9897
      %v10020 = vpack.c.b16 %v9900, %v9899
      %v10021 = vpack.c.b16 %v9902, %v9901
      %v10022 = vpack.c.b16 %v9904, %v9903
      %v10023 = vpack.c.b16 %v9906, %v9905
      %v10024 = vpack.c.b16 %v9908, %v9907
      %v10025 = vpack.c.b16 %v9910, %v9909
      %v10026 = vpack.c.b16 %v9912, %v9911
      %v10027 = vpack.c.b16 %v9914, %v9913
      %v10028 = vpack.c.b16 %v9916, %v9915
      %v10029 = vpack.c.b16 %v9918, %v9917
      %v10030 = vpack.c.b16 %v9920, %v9919
      %v10031 = vpack.c.b16 %v9922, %v9921
      %v10032 = vpack.c.b16 %v9924, %v9923
      %v10033 = vpack.c.b16 %v9926, %v9925
      %v10034 = vpack.c.b16 %v9928, %v9927
      %v10035 = vpack.c.b16 %v9930, %v9929
      %v10036 = vpack.c.b16 %v9932, %v9931
      %v10037 = vpack.c.b16 %v9934, %v9933
      %v10038 = vpack.c.b16 %v9936, %v9935
      %v10039 = vpack.c.b16 %v9938, %v9937
      %v10040 = vpack.c.b16 %v9940, %v9939
      %vm10141 = vcmask 523264
      %v10143 = vsel %vm10141, %v9540, 0
      %10145 = vmatpush.bf16.msra.mxu0 %v9948
      %10146 = vmatpush.bf16.msra.mxu0 %v9947
      %10147 = vmatpush.bf16.msra.mxu0 %v9946
      %10148 = vmatpush.bf16.msra.mxu0 %v9945
      %10149 = vmatpush.bf16.msra.mxu0 %v9944
      %10150 = vmatpush.bf16.msra.mxu0 %v9943
      %10151 = vmatpush.bf16.msra.mxu0 %v9942
      %10152 = vmatpush.bf16.msra.mxu0 %v9941
      %10153 = vmatmul.bf16.gmra.mxu0 %v9528
      %v10154 = vpop.f32.mrf.mxu0
      %v10155 = vadd.f32 %v8820, %v10154
      %v10156 = vpop.f32.mrf.mxu0
      %10157 = vdwg.mxu0
      %10158 = vmatpush.bf16.msra.mxu0 %v9956
      %10159 = vmatpush.bf16.msra.mxu0 %v9955
      %10160 = vmatpush.bf16.msra.mxu0 %v9954
      %10161 = vmatpush.bf16.msra.mxu0 %v9953
      %10162 = vmatpush.bf16.msra.mxu0 %v9952
      %10163 = vmatpush.bf16.msra.mxu0 %v9951
      %10164 = vmatpush.bf16.msra.mxu0 %v9950
      %10165 = vmatpush.bf16.msra.mxu0 %v9949
      %10166 = vmatmul.bf16.gmra.mxu0 %v9529
      %v10167 = vpop.f32.mrf.mxu0
      %v10168 = vadd.f32 %v10155, %v10167
      %v10169 = vpop.f32.mrf.mxu0
      %10170 = vdwg.mxu0
      %10171 = vmatpush.bf16.msra.mxu0 %v9964
      %10172 = vmatpush.bf16.msra.mxu0 %v9963
      %10173 = vmatpush.bf16.msra.mxu0 %v9962
      %10174 = vmatpush.bf16.msra.mxu0 %v9961
      %10175 = vmatpush.bf16.msra.mxu0 %v9960
      %10176 = vmatpush.bf16.msra.mxu0 %v9959
      %10177 = vmatpush.bf16.msra.mxu0 %v9958
      %10178 = vmatpush.bf16.msra.mxu0 %v9957
      %10179 = vmatmul.bf16.gmra.mxu0 %v9530
      %v10180 = vpop.f32.mrf.mxu0
      %v10181 = vadd.f32 %v10168, %v10180
      %v10182 = vpop.f32.mrf.mxu0
      %10183 = vdwg.mxu0
      %10184 = vmatpush.bf16.msra.mxu0 %v9972
      %10185 = vmatpush.bf16.msra.mxu0 %v9971
      %10186 = vmatpush.bf16.msra.mxu0 %v9970
      %10187 = vmatpush.bf16.msra.mxu0 %v9969
      %10188 = vmatpush.bf16.msra.mxu0 %v9968
      %10189 = vmatpush.bf16.msra.mxu0 %v9967
      %10190 = vmatpush.bf16.msra.mxu0 %v9966
      %10191 = vmatpush.bf16.msra.mxu0 %v9965
      %10192 = vmatmul.bf16.gmra.mxu0 %v9531
      %v10193 = vpop.f32.mrf.mxu0
      %v10194 = vadd.f32 %v10181, %v10193
      %v10195 = vpop.f32.mrf.mxu0
      %10196 = vdwg.mxu0
      %10197 = vmatpush.bf16.msra.mxu0 %v9980
      %10198 = vmatpush.bf16.msra.mxu0 %v9979
      %10199 = vmatpush.bf16.msra.mxu0 %v9978
      %10200 = vmatpush.bf16.msra.mxu0 %v9977
      %10201 = vmatpush.bf16.msra.mxu0 %v9976
      %10202 = vmatpush.bf16.msra.mxu0 %v9975
      %10203 = vmatpush.bf16.msra.mxu0 %v9974
      %10204 = vmatpush.bf16.msra.mxu0 %v9973
      %10205 = vmatmul.bf16.gmra.mxu0 %v9532
      %v10206 = vpop.f32.mrf.mxu0
      %v10207 = vadd.f32 %v10194, %v10206
      %v10208 = vpop.f32.mrf.mxu0
      %10209 = vdwg.mxu0
      %10210 = vmatpush.bf16.msra.mxu0 %v9988
      %10211 = vmatpush.bf16.msra.mxu0 %v9987
      %10212 = vmatpush.bf16.msra.mxu0 %v9986
      %10213 = vmatpush.bf16.msra.mxu0 %v9985
      %10214 = vmatpush.bf16.msra.mxu0 %v9984
      %10215 = vmatpush.bf16.msra.mxu0 %v9983
      %10216 = vmatpush.bf16.msra.mxu0 %v9982
      %10217 = vmatpush.bf16.msra.mxu0 %v9981
      %10218 = vmatmul.bf16.gmra.mxu0 %v9533
      %v10219 = vpop.f32.mrf.mxu0
      %v10220 = vadd.f32 %v10207, %v10219
      %v10221 = vpop.f32.mrf.mxu0
      %10222 = vdwg.mxu0
      %10223 = vmatpush.bf16.msra.mxu0 %v9996
      %10224 = vmatpush.bf16.msra.mxu0 %v9995
      %10225 = vmatpush.bf16.msra.mxu0 %v9994
      %10226 = vmatpush.bf16.msra.mxu0 %v9993
      %10227 = vmatpush.bf16.msra.mxu0 %v9992
      %10228 = vmatpush.bf16.msra.mxu0 %v9991
      %10229 = vmatpush.bf16.msra.mxu0 %v9990
      %10230 = vmatpush.bf16.msra.mxu0 %v9989
      %10231 = vmatmul.bf16.gmra.mxu0 %v9534
      %v10232 = vpop.f32.mrf.mxu0
      %v10233 = vadd.f32 %v10220, %v10232
      %v10234 = vpop.f32.mrf.mxu0
      %10235 = vdwg.mxu0
      %10236 = vmatpush.bf16.msra.mxu0 %v10004
      %10237 = vmatpush.bf16.msra.mxu0 %v10003
      %10238 = vmatpush.bf16.msra.mxu0 %v10002
      %10239 = vmatpush.bf16.msra.mxu0 %v10001
      %10240 = vmatpush.bf16.msra.mxu0 %v10000
      %10241 = vmatpush.bf16.msra.mxu0 %v9999
      %10242 = vmatpush.bf16.msra.mxu0 %v9998
      %10243 = vmatpush.bf16.msra.mxu0 %v9997
      %10244 = vmatmul.bf16.gmra.mxu0 %v9535
      %v10245 = vpop.f32.mrf.mxu0
      %v10246 = vadd.f32 %v10233, %v10245
      %v10247 = vpop.f32.mrf.mxu0
      %10248 = vdwg.mxu0
      %10249 = vmatpush.bf16.msra.mxu0 %v10012
      %10250 = vmatpush.bf16.msra.mxu0 %v10011
      %10251 = vmatpush.bf16.msra.mxu0 %v10010
      %10252 = vmatpush.bf16.msra.mxu0 %v10009
      %10253 = vmatpush.bf16.msra.mxu0 %v10008
      %10254 = vmatpush.bf16.msra.mxu0 %v10007
      %10255 = vmatpush.bf16.msra.mxu0 %v10006
      %10256 = vmatpush.bf16.msra.mxu0 %v10005
      %10257 = vmatmul.bf16.gmra.mxu0 %v9536
      %v10258 = vpop.f32.mrf.mxu0
      %v10259 = vadd.f32 %v10246, %v10258
      %v10260 = vpop.f32.mrf.mxu0
      %10261 = vdwg.mxu0
      %10262 = vmatpush.bf16.msra.mxu0 %v10020
      %10263 = vmatpush.bf16.msra.mxu0 %v10019
      %10264 = vmatpush.bf16.msra.mxu0 %v10018
      %10265 = vmatpush.bf16.msra.mxu0 %v10017
      %10266 = vmatpush.bf16.msra.mxu0 %v10016
      %10267 = vmatpush.bf16.msra.mxu0 %v10015
      %10268 = vmatpush.bf16.msra.mxu0 %v10014
      %10269 = vmatpush.bf16.msra.mxu0 %v10013
      %10270 = vmatmul.bf16.gmra.mxu0 %v9537
      %v10271 = vpop.f32.mrf.mxu0
      %v10272 = vadd.f32 %v10259, %v10271
      %v10273 = vpop.f32.mrf.mxu0
      %10274 = vdwg.mxu0
      %10275 = vmatpush.bf16.msra.mxu0 %v10028
      %10276 = vmatpush.bf16.msra.mxu0 %v10027
      %10277 = vmatpush.bf16.msra.mxu0 %v10026
      %10278 = vmatpush.bf16.msra.mxu0 %v10025
      %10279 = vmatpush.bf16.msra.mxu0 %v10024
      %10280 = vmatpush.bf16.msra.mxu0 %v10023
      %10281 = vmatpush.bf16.msra.mxu0 %v10022
      %10282 = vmatpush.bf16.msra.mxu0 %v10021
      %10283 = vmatmul.bf16.gmra.mxu0 %v9538
      %v10284 = vpop.f32.mrf.mxu0
      %v10285 = vadd.f32 %v10272, %v10284
      %v10286 = vpop.f32.mrf.mxu0
      %10287 = vdwg.mxu0
      %10288 = vmatpush.bf16.msra.mxu0 %v10036
      %10289 = vmatpush.bf16.msra.mxu0 %v10035
      %10290 = vmatpush.bf16.msra.mxu0 %v10034
      %10291 = vmatpush.bf16.msra.mxu0 %v10033
      %10292 = vmatpush.bf16.msra.mxu0 %v10032
      %10293 = vmatpush.bf16.msra.mxu0 %v10031
      %10294 = vmatpush.bf16.msra.mxu0 %v10030
      %10295 = vmatpush.bf16.msra.mxu0 %v10029
      %10296 = vmatmul.bf16.gmra.mxu0 %v9539
      %v10297 = vpop.f32.mrf.mxu0
      %v10298 = vadd.f32 %v10285, %v10297
      %v10299 = vpop.f32.mrf.mxu0
      %10300 = vdwg.mxu0
      %10301 = vmatpush.bf16.msra.mxu0 0
      %10302 = vmatpush.bf16.msra.mxu0 0
      %10303 = vmatpush.bf16.msra.mxu0 0
      %10304 = vmatpush.bf16.msra.mxu0 0
      %10305 = vmatpush.bf16.msra.mxu0 %v10040
      %10306 = vmatpush.bf16.msra.mxu0 %v10039
      %10307 = vmatpush.bf16.msra.mxu0 %v10038
      %10308 = vmatpush.bf16.msra.mxu0 %v10037
      %10309 = vmatmul.bf16.gmra.mxu0 %v10143
      %v10310 = vpop.f32.mrf.mxu0
      %v10311 = vadd.f32 %v10298, %v10310
      %v10312 = vpop.f32.mrf.mxu0
      %10313 = vdwg.mxu0
      %v10314 = vmul.f32 %v10311, 0.5
      %v10315 = vmul.f32 %v10314, 1.442695
      %v10316 = vpow.pop %v10315
      %10318 = vrot.lane.b32.xlu0 %v10316, 112
      %v10319 = vpop.permute.xlu0 %10318
      %v10321 = vmul.f32 %v8619, %v10319
      %v10322 = vadd.f32 %v10311, %v10321
      %v10323 = vpack.c.bf16 %v10322, %v10322
      %v10326 = vunpack.c.l.b16 %v8821
      %v10327 = vunpack.c.h.b16 %v8821
      %v10328 = vunpack.c.l.b16 %v8822
      %v10329 = vunpack.c.h.b16 %v8822
      %v10330 = vpack.c.b16 %v10328, %v10326
      %v10331 = vpack.c.b16 %v10329, %v10327
      %v10335 = vperm.slane %v8823, 0
      %v10336 = vperm.slane %v8823, 1
      %v10340 = vsel %vm866, %v10323, 0
      %10342 = vmatpush.bf16.msra.mxu0 0
      %10343 = vmatpush.bf16.msra.mxu0 0
      %10344 = vmatpush.bf16.msra.mxu0 0
      %10345 = vmatpush.bf16.msra.mxu0 0
      %10346 = vmatpush.bf16.msra.mxu0 0
      %10347 = vmatpush.bf16.msra.mxu0 0
      %10348 = vmatpush.bf16.msra.mxu0 0
      %10349 = vmatpush.bf16.msra.mxu0 %v10330
      %10350 = vmatmul.bf16.gmra.mxu0 %v10340
      %v10351 = vpop.f32.mrf.mxu0
      %v10352 = vadd.f32 %v10335, %v10351
      %v10353 = vpop.f32.mrf.mxu0
      %10354 = vdwg.mxu0
      %10355 = vmatpush.bf16.msra.mxu0 0
      %10356 = vmatpush.bf16.msra.mxu0 0
      %10357 = vmatpush.bf16.msra.mxu0 0
      %10358 = vmatpush.bf16.msra.mxu0 0
      %10359 = vmatpush.bf16.msra.mxu0 0
      %10360 = vmatpush.bf16.msra.mxu0 0
      %10361 = vmatpush.bf16.msra.mxu0 0
      %10362 = vmatpush.bf16.msra.mxu0 %v10331
      %10363 = vmatmul.bf16.gmra.mxu0 %v10340
      %v10364 = vpop.f32.mrf.mxu0
      %v10365 = vadd.f32 %v10336, %v10364
      %v10366 = vpop.f32.mrf.mxu0
      %10367 = vdwg.mxu0
      %v10368 = vmax.f32 %v10352, 0.0
      %v10369 = vmax.f32 %v10365, 0.0
      %v10370 = vpack.c.bf16 %v10368, %v10368
      %v10371 = vpack.c.bf16 %v10369, %v10369
      %v10391 = vunpack.c.l.b16 %v8824
      %v10392 = vunpack.c.h.b16 %v8824
      %v10393 = vunpack.c.l.b16 %v8825
      %v10394 = vunpack.c.h.b16 %v8825
      %v10395 = vunpack.c.l.b16 %v8826
      %v10396 = vunpack.c.h.b16 %v8826
      %v10397 = vunpack.c.l.b16 %v8827
      %v10398 = vunpack.c.h.b16 %v8827
      %v10399 = vunpack.c.l.b16 %v8828
      %v10400 = vunpack.c.h.b16 %v8828
      %v10401 = vunpack.c.l.b16 %v8829
      %v10402 = vunpack.c.h.b16 %v8829
      %v10403 = vunpack.c.l.b16 %v8830
      %v10404 = vunpack.c.h.b16 %v8830
      %v10405 = vunpack.c.l.b16 %v8831
      %v10406 = vunpack.c.h.b16 %v8831
      %v10407 = vunpack.c.l.b16 %v8832
      %v10408 = vunpack.c.h.b16 %v8832
      %v10409 = vunpack.c.l.b16 %v8833
      %v10410 = vunpack.c.h.b16 %v8833
      %v10411 = vunpack.c.l.b16 %v8834
      %v10412 = vunpack.c.h.b16 %v8834
      %v10413 = vunpack.c.l.b16 %v8835
      %v10414 = vunpack.c.h.b16 %v8835
      %v10415 = vunpack.c.l.b16 %v8836
      %v10416 = vunpack.c.h.b16 %v8836
      %v10417 = vunpack.c.l.b16 %v8837
      %v10418 = vunpack.c.h.b16 %v8837
      %v10419 = vunpack.c.l.b16 %v8838
      %v10420 = vunpack.c.h.b16 %v8838
      %v10421 = vunpack.c.l.b16 %v8839
      %v10422 = vunpack.c.h.b16 %v8839
      %v10423 = vunpack.c.l.b16 %v8840
      %v10424 = vunpack.c.h.b16 %v8840
      %v10425 = vunpack.c.l.b16 %v8841
      %v10426 = vunpack.c.h.b16 %v8841
      %v10427 = vunpack.c.l.b16 %v8842
      %v10428 = vunpack.c.h.b16 %v8842
      %v10429 = vpack.c.b16 %v10393, %v10391
      %v10430 = vpack.c.b16 %v10394, %v10392
      %v10431 = vpack.c.b16 %v10397, %v10395
      %v10432 = vpack.c.b16 %v10398, %v10396
      %v10433 = vpack.c.b16 %v10401, %v10399
      %v10434 = vpack.c.b16 %v10402, %v10400
      %v10435 = vpack.c.b16 %v10405, %v10403
      %v10436 = vpack.c.b16 %v10406, %v10404
      %v10437 = vpack.c.b16 %v10409, %v10407
      %v10438 = vpack.c.b16 %v10410, %v10408
      %v10439 = vpack.c.b16 %v10413, %v10411
      %v10440 = vpack.c.b16 %v10414, %v10412
      %v10441 = vpack.c.b16 %v10417, %v10415
      %v10442 = vpack.c.b16 %v10418, %v10416
      %v10443 = vpack.c.b16 %v10421, %v10419
      %v10444 = vpack.c.b16 %v10422, %v10420
      %v10445 = vpack.c.b16 %v10425, %v10423
      %v10446 = vpack.c.b16 %v10426, %v10424
      %v10447 = vpack.c.b16 %v10427, %v10427
      %v10448 = vpack.c.b16 %v10428, %v10428
      %v10468 = vperm.slane %v8843, 0
      %v10469 = vperm.slane %v8843, 1
      %vm10472 = vcmask 179200
      %v10474 = vsel %vm10472, %v10371, 0
      %vm10476 = vcmask 1042432
      %v10478 = vsel %vm10476, %v10447, 0
      %v10481 = vsel %vm10476, %v10448, 0
      %10483 = vmatpush.bf16.msra.mxu0 %v10443
      %10484 = vmatpush.bf16.msra.mxu0 %v10441
      %10485 = vmatpush.bf16.msra.mxu0 %v10439
      %10486 = vmatpush.bf16.msra.mxu0 %v10437
      %10487 = vmatpush.bf16.msra.mxu0 %v10435
      %10488 = vmatpush.bf16.msra.mxu0 %v10433
      %10489 = vmatpush.bf16.msra.mxu0 %v10431
      %10490 = vmatpush.bf16.msra.mxu0 %v10429
      %10491 = vmatmul.bf16.gmra.mxu0 %v10370
      %v10492 = vpop.f32.mrf.mxu0
      %v10493 = vadd.f32 %v10468, %v10492
      %v10494 = vpop.f32.mrf.mxu0
      %10495 = vdwg.mxu0
      %10496 = vmatpush.bf16.msra.mxu0 0
      %10497 = vmatpush.bf16.msra.mxu0 0
      %10498 = vmatpush.bf16.msra.mxu0 0
      %10499 = vmatpush.bf16.msra.mxu0 0
      %10500 = vmatpush.bf16.msra.mxu0 0
      %10501 = vmatpush.bf16.msra.mxu0 0
      %10502 = vmatpush.bf16.msra.mxu0 %v10478
      %10503 = vmatpush.bf16.msra.mxu0 %v10445
      %10504 = vmatmul.bf16.gmra.mxu0 %v10474
      %v10505 = vpop.f32.mrf.mxu0
      %v10506 = vadd.f32 %v10493, %v10505
      %v10507 = vpop.f32.mrf.mxu0
      %10508 = vdwg.mxu0
      %10509 = vmatpush.bf16.msra.mxu0 %v10444
      %10510 = vmatpush.bf16.msra.mxu0 %v10442
      %10511 = vmatpush.bf16.msra.mxu0 %v10440
      %10512 = vmatpush.bf16.msra.mxu0 %v10438
      %10513 = vmatpush.bf16.msra.mxu0 %v10436
      %10514 = vmatpush.bf16.msra.mxu0 %v10434
      %10515 = vmatpush.bf16.msra.mxu0 %v10432
      %10516 = vmatpush.bf16.msra.mxu0 %v10430
      %10517 = vmatmul.bf16.gmra.mxu0 %v10370
      %v10518 = vpop.f32.mrf.mxu0
      %v10519 = vadd.f32 %v10469, %v10518
      %v10520 = vpop.f32.mrf.mxu0
      %10521 = vdwg.mxu0
      %10522 = vmatpush.bf16.msra.mxu0 0
      %10523 = vmatpush.bf16.msra.mxu0 0
      %10524 = vmatpush.bf16.msra.mxu0 0
      %10525 = vmatpush.bf16.msra.mxu0 0
      %10526 = vmatpush.bf16.msra.mxu0 0
      %10527 = vmatpush.bf16.msra.mxu0 0
      %10528 = vmatpush.bf16.msra.mxu0 %v10481
      %10529 = vmatpush.bf16.msra.mxu0 %v10446
      %10530 = vmatmul.bf16.gmra.mxu0 %v10474
      %v10531 = vpop.f32.mrf.mxu0
      %v10532 = vadd.f32 %v10519, %v10531
      %v10533 = vpop.f32.mrf.mxu0
      %10534 = vdwg.mxu0
      %10537 = vrot.lane.b32.xlu0 %v10506, 32
      %v10538 = vpop.permute.xlu0 %10537
      %10539 = vrot.lane.b32.xlu0 %v10532, 32
      %v10540 = vpop.permute.xlu0 %10539
      %vm10541 = vcmask 261120
      %v10542 = vsel %vm10541, %v10538, %v10540
      %v10545 = vsel %vm10541, %v10311, %v10538
      %vm10546 = vcmask 441344
      %v10547 = vsel %vm10546, %v10542, 0.0
      %10548 = vst.msk [vmem:[%s758] sm:$0xff] %vm8916, %v8995
      %10549 = vst.msk [vmem:[%s758 + $0x8] sm:$0xff] %vm8916, %v9010
      %10550 = vst.msk [vmem:[%s758 + $0x10] sm:$0xff] %vm8916, %v9025
      %10551 = vst.msk [vmem:[%s758 + $0x18] sm:$0xff] %vm8916, %v9040
      %10552 = vst.msk [vmem:[%s758 + $0x20] sm:$0xff] %vm8916, %v9055
      %10553 = vst.msk [vmem:[%s758 + $0x28] sm:$0xff] %vm8916, %v9070
      %10554 = vst.msk [vmem:[%s758 + $0x30] sm:$0x3] %vm8935, %v9085
      %v10557 = vrot.slane %v10547, 7
      %v10558 = vsel %vm793, %v10545, %v10557
      %vm10560 = vcmp.lt.s32.totalorder %v9182, 256
      %vm10561 = vmand %vm9183, %vm10560
      %10562 = vst.msk [vmem:[%s762] sm:$0x3] %vm10561, %v10558
      %p10563 = scmp.lt.s32.totalorder %s36, 1
      %s10564 = scalar_select %p10563, %s36, 1
      %s10565 = smul.addr %s10564, 7
      %s10566 = smul.addr %s10565, 8
      %s10567 = scalar_lea.vmem %s23, %s10566
      %p10568 = scmp.lt.s32.totalorder %s36, 1
      %s10569 = scalar_select %p10568, %s36, 1
      %s10570 = smul.addr %s10569, 2
      %s10571 = scalar_lea.vmem %s24, %s10570
      // Predicated region
      $region113: #{memto_vae_forward.1} parent=111 // pred_check
        %p10572 = pneg %p547
      $region114: #{memto_vae_forward.1} parent=111 // pred_check_branch
        %10574 = sbr.rel (%p10572) target = $region116
      $region115: #{memto_vae_forward.1} parent=111 // pred_region
        _
      $region116: #{memto_vae_forward.1} parent=111 // pred_fallthru
        _
      // Predicated region
      $region117: #{memto_vae_forward.1} parent=111 // pred_check
        %p10575 = pneg %p573
      $region118: #{memto_vae_forward.1} parent=111 // pred_check_branch
        %10577 = sbr.rel (%p10575) target = $region120
      $region119: #{memto_vae_forward.1} parent=111 // pred_region
        _
      $region120: #{memto_vae_forward.1} parent=111 // pred_fallthru
        _
    $region112: #{memto_vae_forward.1} parent=5 // pred_fallthru
      _
    %p10578 = scmp.le.s32.totalorder 2, %s31
    // Predicated region
    $region121: #{memto_vae_forward.1} parent=5 // pred_check
      %p10579 = pneg %p10578
    $region122: #{memto_vae_forward.1} parent=5 // pred_check_branch
      %10581 = sbr.rel (%p10579) target = $region124
    $region123: #{memto_vae_forward.1} parent=5 // pred_region
      %s10582 = ssub.s32 %s31, 2
      // Predicated region
      $region125: #{memto_vae_forward.1} parent=123 // pred_check
        %p10583 = pneg %p553
      $region126: #{memto_vae_forward.1} parent=123 // pred_check_branch
        %10585 = sbr.rel (%p10583) target = $region128
      $region127: #{memto_vae_forward.1} parent=123 // pred_region
        %p10586 = scmp.lt.s32.totalorder %s37, 1
        %s10587 = scalar_select %p10586, %s37, 1
        %s10588 = smul.addr %s10587, 7
        %s10589 = smul.addr %s10588, 8
        %s10590 = scalar_lea.vmem %s23, %s10589
      $region128: #{memto_vae_forward.1} parent=123 // pred_fallthru
        _
      // Predicated region
      $region129: #{memto_vae_forward.1} parent=123 // pred_check
        %p10591 = pneg %p579
      $region130: #{memto_vae_forward.1} parent=123 // pred_check_branch
        %10593 = sbr.rel (%p10591) target = $region132
      $region131: #{memto_vae_forward.1} parent=123 // pred_region
        %p10594 = scmp.lt.s32.totalorder %s37, 1
        %s10595 = scalar_select %p10594, %s37, 1
        %s10596 = smul.addr %s10595, 2
        %s10597 = scalar_lea.vmem %s24, %s10596
      $region132: #{memto_vae_forward.1} parent=123 // pred_fallthru
        _
    $region124: #{memto_vae_forward.1} parent=5 // pred_fallthru
      _
  $region6: #{memto_vae_forward.1} parent=0 // loop_footer
    %s35 = sadd.s32 1, %s31
  $region7: #{memto_vae_forward.1} parent=0 // loop_footer_branch
    %30 = sbr.rel target = $region3
  $region8: #{memto_vae_forward.1} parent=0 // loop_exit
    _

</llo_original>
